<compile_context>
chip_gen: v6e
topology: v6e:2x2x1
jax: 0.10.0
libtpu: 0.0.40
codegen_flags: <defaults>
</compile_context>

<pallas_src>
import functools

import jax
import jax.numpy as jnp
from jax import lax
from jax.experimental import pallas as pl
from jax.experimental.pallas import tpu as pltpu


def _round_up(x, m):
    return (x + m - 1) // m * m


def _chip_caps():
    """(physical VMEM bytes/core, preferred MXU row tile). Defensive queries."""
    vmem_cap = 128 * 1024 * 1024
    mxu_rows = 128
    try:
        vmem_cap = int(pltpu.get_tpu_info().vmem_capacity_bytes)
    except Exception:
        pass
    try:
        kind = jax.devices()[0].device_kind.lower()
        if ("v6" in kind) or ("v7" in kind):
            mxu_rows = 256          # 2x256x256 MXU: 256-row LHS fills the array
    except Exception:
        pass
    return vmem_cap, mxu_rows


def _compiler_params(dims, vmem_limit):
    return pltpu.CompilerParams(
        dimension_semantics=dims, vmem_limit_bytes=int(vmem_limit))


# -----------------------------------------------------------------------------
# Fused Pallas kernels: input projection + serial recurrence (+ fused FC)
# -----------------------------------------------------------------------------
def _lstm_body(x_ref, wih_ref, b_ref, whh_ref, gx_scr, h_scr, c_scr,
               *, t_tile, seq_len, mask_tail, y_ref=None):
    tT, B, Ein = x_ref.shape
    Hp = h_scr.shape[-1]            # padded hidden (multiple of 128)
    G = 4 * Hp

    @pl.when(pl.program_id(1) == 0)
    def _():
        h_scr[...] = jnp.zeros_like(h_scr)
        c_scr[...] = jnp.zeros_like(c_scr)

    # Fused input projection for this whole T tile: one throughput-bound MXU
    # matmul, result stays in VMEM scratch (no gates_x HBM round trip).
    xm = x_ref[...].reshape(tT * B, Ein)
    gx = jnp.dot(xm, wih_ref[...], preferred_element_type=jnp.float32) + b_ref[...]
    gx_scr[...] = gx.reshape(tT, B, G)

    t_base = pl.program_id(1) * t_tile

    def step(t, carry):
        gates = gx_scr[t] + jnp.dot(h_scr[...], whh_ref[...],
                                    preferred_element_type=jnp.float32)   # (B,4Hp) f32
        # PyTorch gate order: i, f, g, o; slices are 128-lane aligned (Hp padded).
        i_g = jax.nn.sigmoid(gates[:, 0 * Hp:1 * Hp])
        f_g = jax.nn.sigmoid(gates[:, 1 * Hp:2 * Hp])
        g_g = jnp.tanh(gates[:, 2 * Hp:3 * Hp])
        o_g = jax.nn.sigmoid(gates[:, 3 * Hp:4 * Hp])
        c_new = f_g * c_scr[...] + i_g * g_g
        h_new = o_g * jnp.tanh(c_new)
        if mask_tail:
            # Only commit state for real (non-padded) timesteps.
            valid = (t_base + t) < seq_len
            c_scr[...] = jnp.where(valid, c_new, c_scr[...])
            h_scr[...] = jnp.where(
                valid, h_new, h_scr[...].astype(jnp.float32)).astype(h_scr.dtype)
        else:
            c_scr[...] = c_new
            h_scr[...] = h_new.astype(h_scr.dtype)
        if y_ref is not None:
            y_ref[t] = h_new.astype(y_ref.dtype)
        return carry

    lax.fori_loop(0, tT, step, 0, unroll=min(tT, 8))


def _lstm_seq_kernel(x_ref, wih_ref, b_ref, whh_ref, y_ref, gx_scr, h_scr, c_scr,
                     *, t_tile, seq_len, mask_tail):
    """Non-final layer: emit the full hidden sequence (input to the next layer)."""
    _lstm_body(x_ref, wih_ref, b_ref, whh_ref, gx_scr, h_scr, c_scr,
               t_tile=t_tile, seq_len=seq_len, mask_tail=mask_tail, y_ref=y_ref)


def _lstm_last_fc_kernel(x_ref, wih_ref, b_ref, whh_ref, wfc_ref, bfc_ref, out_ref,
                         gx_scr, h_scr, c_scr, *, t_tile, seq_len, mask_tail):
    """Final layer: never write (T,B,H); fuse the FC on the last hidden state."""
    _lstm_body(x_ref, wih_ref, b_ref, whh_ref, gx_scr, h_scr, c_scr,
               t_tile=t_tile, seq_len=seq_len, mask_tail=mask_tail, y_ref=None)

    @pl.when(pl.program_id(1) == pl.num_programs(1) - 1)
    def _():
        # TODO(synk): dropout on h_n[-1] omitted (eval-mode identity).
        out_ref[...] = (
            jnp.dot(h_scr[...].astype(jnp.float32), wfc_ref[...],
                    preferred_element_type=jnp.float32) + bfc_ref[...]
        ).astype(out_ref.dtype)


# -----------------------------------------------------------------------------
# pallas_call wrappers
# -----------------------------------------------------------------------------
def _lstm_layer_seq(x, w_ih_t, bias, w_hh_t, out_dtype, *, t_tile, b_tile,
                    seq_len, vmem_limit):
    Tp, Bp, Ein = x.shape
    G = w_ih_t.shape[1]
    Hp = w_hh_t.shape[0]
    grid = (Bp // b_tile, Tp // t_tile)
    kernel = functools.partial(_lstm_seq_kernel, t_tile=t_tile, seq_len=seq_len,
                               mask_tail=(Tp != seq_len))
    return pl.pallas_call(
        kernel,
        out_shape=jax.ShapeDtypeStruct((Tp, Bp, Hp), out_dtype),
        grid=grid,
        in_specs=[
            pl.BlockSpec((t_tile, b_tile, Ein), lambda b, t: (t, b, 0)),
            pl.BlockSpec((Ein, G), lambda b, t: (0, 0)),
            pl.BlockSpec((1, G), lambda b, t: (0, 0)),
            pl.BlockSpec((Hp, G), lambda b, t: (0, 0)),
        ],
        out_specs=pl.BlockSpec((t_tile, b_tile, Hp), lambda b, t: (t, b, 0)),
        scratch_shapes=[
            pltpu.VMEM((t_tile, b_tile, G), jnp.float32),   # gates_x tile (VMEM only)
            pltpu.VMEM((b_tile, Hp), out_dtype),            # h (compute dtype)
            pltpu.VMEM((b_tile, Hp), jnp.float32),          # c (f32)
        ],
        compiler_params=_compiler_params(("parallel", "arbitrary"), vmem_limit),
    )(x, w_ih_t, bias, w_hh_t)


def _lstm_layer_last_fc(x, w_ih_t, bias, w_hh_t, w_fc_t, b_fc, compute_dtype,
                        *, t_tile, b_tile, seq_len, vmem_limit):
    Tp, Bp, Ein = x.shape
    G = w_ih_t.shape[1]
    Hp = w_hh_t.shape[0]
    Cp = w_fc_t.shape[1]
    grid = (Bp // b_tile, Tp // t_tile)
    kernel = functools.partial(_lstm_last_fc_kernel, t_tile=t_tile, seq_len=seq_len,
                               mask_tail=(Tp != seq_len))
    return pl.pallas_call(
        kernel,
        out_shape=jax.ShapeDtypeStruct((Bp, Cp), jnp.float32),
        grid=grid,
        in_specs=[
            pl.BlockSpec((t_tile, b_tile, Ein), lambda b, t: (t, b, 0)),
            pl.BlockSpec((Ein, G), lambda b, t: (0, 0)),
            pl.BlockSpec((1, G), lambda b, t: (0, 0)),
            pl.BlockSpec((Hp, G), lambda b, t: (0, 0)),
            pl.BlockSpec((Hp, Cp), lambda b, t: (0, 0)),
            pl.BlockSpec((1, Cp), lambda b, t: (0, 0)),
        ],
        out_specs=pl.BlockSpec((b_tile, Cp), lambda b, t: (b, 0)),
        scratch_shapes=[
            pltpu.VMEM((t_tile, b_tile, G), jnp.float32),   # gates_x tile
            pltpu.VMEM((b_tile, Hp), compute_dtype),        # h
            pltpu.VMEM((b_tile, Hp), jnp.float32),          # c
        ],
        compiler_params=_compiler_params(("parallel", "arbitrary"), vmem_limit),
    )(x, w_ih_t, bias, w_hh_t, w_fc_t, b_fc)


# -----------------------------------------------------------------------------
# Parameter layout: pad H -> multiple of 128 per gate, C -> multiple of 128
# -----------------------------------------------------------------------------
def _prepare_kernel_params(params, num_layers, compute_dtype):
    E = params["embedding"].shape[1]
    H = params["w_hh_0"].shape[1]
    C = params["fc_w"].shape[0]
    Hp = _round_up(H, 128)
    Cp = _round_up(C, 128)

    prep = {}
    for l in range(num_layers):
        in_dim = E if l == 0 else H
        in_pad = E if l == 0 else Hp
        w_ih = params[f"w_ih_{l}"].reshape(4, H, in_dim)
        w_ih = jnp.pad(w_ih, ((0, 0), (0, Hp - H), (0, in_pad - in_dim)))
        w_hh = params[f"w_hh_{l}"].reshape(4, H, H)
        w_hh = jnp.pad(w_hh, ((0, 0), (0, Hp - H), (0, Hp - H)))
        b = (params[f"b_ih_{l}"] + params[f"b_hh_{l}"]).reshape(4, H)
        b = jnp.pad(b, ((0, 0), (0, Hp - H)))
        prep[f"w_ih_t_{l}"] = w_ih.reshape(4 * Hp, in_pad).T.astype(compute_dtype)
        prep[f"w_hh_t_{l}"] = w_hh.reshape(4 * Hp, Hp).T.astype(compute_dtype)
        prep[f"b_{l}"] = b.reshape(1, 4 * Hp).astype(jnp.float32)

    fc_w = jnp.pad(params["fc_w"], ((0, Cp - C), (0, Hp - H)))
    prep["fc_w_t"] = fc_w.T.astype(jnp.float32)                       # (Hp, Cp)
    prep["fc_b"] = jnp.pad(params["fc_b"], (0, Cp - C)).reshape(1, Cp).astype(jnp.float32)
    return prep, Hp, C, Cp, E


# -----------------------------------------------------------------------------
# Full TextLSTM forward
# -----------------------------------------------------------------------------
@functools.partial(jax.jit,
                   static_argnames=("num_layers", "compute_dtype", "max_t_tile"))
def text_lstm_forward(tokens, params, num_layers, compute_dtype=jnp.bfloat16,
                      max_t_tile=None):
    B, T = tokens.shape
    kp, Hp, C, Cp, E = _prepare_kernel_params(params, num_layers, compute_dtype)

    vmem_cap, mxu_rows = _chip_caps()
    vmem_limit = min(int(vmem_cap * 0.7), 100 * 1024 * 1024)

    # Batch tiling: sublane-align small batches; large batches use MXU-row tiles
    # (256 fills the 2x256x256 MXU on v6e/v7x; 128 on v5e).
    if B <= mxu_rows:
        Bp = _round_up(B, 8)
        b_tile = Bp
    else:
        Bp = _round_up(B, mxu_rows)
        b_tile = mxu_rows

    itemsize = jnp.dtype(compute_dtype).itemsize
    Ein_max = max(E, Hp)
    G = 4 * Hp

    # Resident VMEM (not streamed along the time grid).
    resident = (
        Ein_max * G * itemsize          # W_ih^T (largest layer)
        + Hp * G * itemsize             # W_hh^T
        + G * 4                         # fused bias (f32)
        + Hp * Cp * 4 + Cp * 4          # FC weight / bias (f32)
        + b_tile * Hp * itemsize        # h scratch (compute dtype)
        + b_tile * Hp * 4               # c scratch (f32)
        + 2 * b_tile * Cp * 4           # logits output block (double-buffered)
    )
    # Streamed per timestep: x in (x2 buffers), y out (x2 buffers), gx scratch (x1 f32).
    per_t = b_tile * (2 * Ein_max * itemsize + 2 * Hp * itemsize + G * 4)
    margin = 2 * 1024 * 1024
    avail = max(vmem_limit - resident - margin, per_t)

    t_tile = max(1, min(T, avail // per_t))
    if max_t_tile is not None:
        t_tile = max(1, min(t_tile, max_t_tile))
    n_t_tiles = -(-T // t_tile)
    t_tile = -(-T // n_t_tiles)          # re-balance so tail padding stays small
    Tp = n_t_tiles * t_tile

    # Embedding lookup, gathered directly time-major (no separate HBM transpose).
    # TODO(synk): embedding gather kept in XLA (jnp.take); a Pallas DMA-gather is not needed here.
    tok = jnp.pad(tokens, ((0, Bp - B), (0, 0)))
    x = jnp.take(params["embedding"], tok.T, axis=0)           # (T, Bp, E) f32
    x = jnp.pad(x, ((0, Tp - T), (0, 0), (0, 0))).astype(compute_dtype)

    logits = None
    for l in range(num_layers):
        if l < num_layers - 1:
            x = _lstm_layer_seq(
                x, kp[f"w_ih_t_{l}"], kp[f"b_{l}"], kp[f"w_hh_t_{l}"], compute_dtype,
                t_tile=t_tile, b_tile=b_tile, seq_len=T, vmem_limit=vmem_limit)
            # TODO(synk): inter-layer LSTM dropout omitted (eval-mode identity).
        else:
            logits = _lstm_layer_last_fc(
                x, kp[f"w_ih_t_{l}"], kp[f"b_{l}"], kp[f"w_hh_t_{l}"],
                kp["fc_w_t"], kp["fc_b"], compute_dtype,
                t_tile=t_tile, b_tile=b_tile, seq_len=T, vmem_limit=vmem_limit)
    # TODO(synk): splitting gate columns across v7x TensorCores for the serial
    # phase (per-step h exchange via VMEM_SHARED) not implemented.
    return logits[:B, :C]


# -----------------------------------------------------------------------------
# Pure-JAX f32 reference (PyTorch semantics) for correctness check
# -----------------------------------------------------------------------------
def reference_forward(tokens, params, num_layers):
    x = jnp.take(params["embedding"], tokens, axis=0)   # (B, T, E)
    x = jnp.transpose(x, (1, 0, 2))                     # (T, B, E)
    B = tokens.shape[0]
    for l in range(num_layers):
        w_ih = params[f"w_ih_{l}"]
        w_hh = params[f"w_hh_{l}"]
        b = params[f"b_ih_{l}"] + params[f"b_hh_{l}"]
        H = w_hh.shape[1]
        h0 = jnp.zeros((B, H), jnp.float32)
        c0 = jnp.zeros((B, H), jnp.float32)

        def step(carry, x_t, w_ih=w_ih, w_hh=w_hh, b=b, H=H):
            h, c = carry
            gates = x_t @ w_ih.T + h @ w_hh.T + b
            i_g = jax.nn.sigmoid(gates[:, 0 * H:1 * H])
            f_g = jax.nn.sigmoid(gates[:, 1 * H:2 * H])
            g_g = jnp.tanh(gates[:, 2 * H:3 * H])
            o_g = jax.nn.sigmoid(gates[:, 3 * H:4 * H])
            c_new = f_g * c + i_g * g_g
            h_new = o_g * jnp.tanh(c_new)
            return (h_new, c_new), h_new

        (_, _), x = lax.scan(step, (h0, c0), x)
    h_last = x[-1]
    return h_last @ params["fc_w"].T + params["fc_b"]


# -----------------------------------------------------------------------------
# Deterministic PyTorch-layout parameter init
# -----------------------------------------------------------------------------
def init_params(key, vocab_size, embedding_dim, hidden_dim, num_layers, num_classes):
    params = {}
    key, k_emb = jax.random.split(key)
    params["embedding"] = jax.random.normal(k_emb, (vocab_size, embedding_dim), jnp.float32)

    bound = 1.0 / (hidden_dim ** 0.5)
    for l in range(num_layers):
        in_dim = embedding_dim if l == 0 else hidden_dim
        key, k1, k2, k3, k4 = jax.random.split(key, 5)
        params[f"w_ih_{l}"] = jax.random.uniform(k1, (4 * hidden_dim, in_dim), jnp.float32, -bound, bound)
        params[f"w_hh_{l}"] = jax.random.uniform(k2, (4 * hidden_dim, hidden_dim), jnp.float32, -bound, bound)
        params[f"b_ih_{l}"] = jax.random.uniform(k3, (4 * hidden_dim,), jnp.float32, -bound, bound)
        params[f"b_hh_{l}"] = jax.random.uniform(k4, (4 * hidden_dim,), jnp.float32, -bound, bound)

    key, k5, k6 = jax.random.split(key, 3)
    params["fc_w"] = jax.random.uniform(k5, (num_classes, hidden_dim), jnp.float32, -bound, bound)
    params["fc_b"] = jax.random.uniform(k6, (num_classes,), jnp.float32, -bound, bound)
    return params


if __name__ == "__main__":
    vocab_size = 50
    embedding_dim = 16
    hidden_dim = 32
    num_layers = 2
    num_classes = 4
    batch = 2
    seq_len = 8

    key = jax.random.PRNGKey(0)
    k_tok, k_par = jax.random.split(key)
    tokens = jax.random.randint(k_tok, (batch, seq_len), 0, vocab_size, dtype=jnp.int32)
    params = init_params(k_par, vocab_size, embedding_dim, hidden_dim, num_layers, num_classes)

    ref = reference_forward(tokens, params, num_layers)

    # f32 compute path: tight check against the pure-JAX reference.
    out_f32 = jax.block_until_ready(
        text_lstm_forward(tokens, params, num_layers=num_layers, compute_dtype=jnp.float32))
    assert out_f32.shape == (batch, num_classes)
    assert jnp.allclose(out_f32, ref, atol=1e-3, rtol=1e-3), (out_f32, ref)

    # f32 path with a forced small T tile -> exercises the padded-tail masking branch.
    out_tail = jax.block_until_ready(
        text_lstm_forward(tokens, params, num_layers=num_layers,
                          compute_dtype=jnp.float32, max_t_tile=3))
    assert jnp.allclose(out_tail, ref, atol=1e-3, rtol=1e-3), (out_tail, ref)

    # bf16 matmul path (default perf config): looser check (bf16 MXU precision).
    out_bf16 = jax.block_until_ready(
        text_lstm_forward(tokens, params, num_layers=num_layers, compute_dtype=jnp.bfloat16))
    assert out_bf16.shape == (batch, num_classes)
    assert jnp.allclose(out_bf16, ref, atol=5e-2, rtol=5e-2), (out_bf16, ref)

    print("KERNEL_OK")
</pallas_src>

<mosaic_0001>
module attributes {stable_mosaic.version = 11 : i64} {
  func.func @_lstm_seq_kernel(%arg0: i32, %arg1: i32, %arg2: memref<8x8x16xf32, #tpu.memory_space<vmem>>, %arg3: memref<16x512xf32, #tpu.memory_space<vmem>>, %arg4: memref<1x512xf32, #tpu.memory_space<vmem>>, %arg5: memref<128x512xf32, #tpu.memory_space<vmem>>, %arg6: memref<8x8x128xf32, #tpu.memory_space<vmem>>, %arg7: memref<8x8x512xf32, #tpu.memory_space<vmem>>, %arg8: memref<8x128xf32, #tpu.memory_space<vmem>>, %arg9: memref<8x128xf32, #tpu.memory_space<vmem>>) attributes {dimension_semantics = [#tpu.dimension_semantics<parallel>, #tpu.dimension_semantics<arbitrary>], iteration_bounds = array<i64: 1, 1>, scalar_prefetch = 0 : i64, scratch_operands = 3 : i64, tpu.core_type = #tpu.core_type<tc>, window_params = [{transform_indices = @transform_0, window_bounds = array<i64: 8, 8, 16>}, {pipeline_mode = #tpu.pipeline_mode<synchronous>, transform_indices = @transform_1, window_bounds = array<i64: 16, 512>}, {pipeline_mode = #tpu.pipeline_mode<synchronous>, transform_indices = @transform_2, window_bounds = array<i64: 1, 512>}, {pipeline_mode = #tpu.pipeline_mode<synchronous>, transform_indices = @transform_3, window_bounds = array<i64: 128, 512>}, {transform_indices = @transform_4, window_bounds = array<i64: 8, 8, 128>}]} {
    %c0_i32 = arith.constant 0 : i32
    %0 = arith.cmpi eq, %arg1, %c0_i32 : i32
    %1 = arith.extui %0 : i1 to i32
    %c0_i32_0 = arith.constant 0 : i32
    %2 = arith.cmpi ne, %1, %c0_i32_0 : i32
    scf.if %2 {
      %cst_155 = arith.constant 0.000000e+00 : f32
      %324 = vector.broadcast %cst_155 : f32 to vector<8x128xf32>
      %c0_156 = arith.constant 0 : index
      %c0_157 = arith.constant 0 : index
      %325 = vector.load %arg8[%c0_156, %c0_157] : memref<8x128xf32, #tpu.memory_space<vmem>>, vector<8x128xf32>
      tpu.vector_store %arg8[%c0_156, %c0_157], %324 {strides = array<i32>} : memref<8x128xf32, #tpu.memory_space<vmem>>, vector<8x128xf32>,
      %cst_158 = arith.constant 0.000000e+00 : f32
      %326 = vector.broadcast %cst_158 : f32 to vector<8x128xf32>
      %c0_159 = arith.constant 0 : index
      %c0_160 = arith.constant 0 : index
      %327 = vector.load %arg9[%c0_159, %c0_160] : memref<8x128xf32, #tpu.memory_space<vmem>>, vector<8x128xf32>
      tpu.vector_store %arg9[%c0_159, %c0_160], %326 {strides = array<i32>} : memref<8x128xf32, #tpu.memory_space<vmem>>, vector<8x128xf32>,
    } else {
    }
    %c0 = arith.constant 0 : index
    %c0_1 = arith.constant 0 : index
    %c0_2 = arith.constant 0 : index
    %3 = vector.load %arg2[%c0, %c0_1, %c0_2] : memref<8x8x16xf32, #tpu.memory_space<vmem>>, vector<8x8x16xf32>
    %4 = vector.shape_cast %3 : vector<8x8x16xf32> to vector<64x16xf32>
    %c0_3 = arith.constant 0 : index
    %c0_4 = arith.constant 0 : index
    %5 = vector.load %arg3[%c0_3, %c0_4] : memref<16x512xf32, #tpu.memory_space<vmem>>, vector<16x512xf32>
    %cst = arith.constant dense<0.000000e+00> : vector<64x512xf32>
    %6 = tpu.matmul %4, %5, %cst {dimension_numbers = #tpu.dot_dimension_numbers<[1], [0], [0], [1], [0, 0, 1, 1], [], []>} : vector<64x16xf32>, vector<16x512xf32>, vector<64x512xf32> -> vector<64x512xf32>
    %c0_5 = arith.constant 0 : index
    %c0_6 = arith.constant 0 : index
    %7 = vector.load %arg4[%c0_5, %c0_6] : memref<1x512xf32, #tpu.memory_space<vmem>>, vector<1x512xf32>
    %8 = vector.broadcast %7 : vector<1x512xf32> to vector<64x512xf32>
    %9 = arith.addf %6, %8 : vector<64x512xf32>
    %10 = vector.shape_cast %9 : vector<64x512xf32> to vector<8x8x512xf32>
    %c0_7 = arith.constant 0 : index
    %c0_8 = arith.constant 0 : index
    %c0_9 = arith.constant 0 : index
    %11 = vector.load %arg7[%c0_7, %c0_8, %c0_9] : memref<8x8x512xf32, #tpu.memory_space<vmem>>, vector<8x8x512xf32>
    tpu.vector_store %arg7[%c0_7, %c0_8, %c0_9], %10 {strides = array<i32>} : memref<8x8x512xf32, #tpu.memory_space<vmem>>, vector<8x8x512xf32>,
    %c0_i32_10 = arith.constant 0 : i32
    %12 = arith.index_cast %c0_i32_10 : i32 to index
    %c0_11 = arith.constant 0 : index
    %c0_12 = arith.constant 0 : index
    %13 = vector.load %arg7[%12, %c0_11, %c0_12] : memref<8x8x512xf32, #tpu.memory_space<vmem>>, vector<1x8x512xf32>
    %14 = vector.shape_cast %13 : vector<1x8x512xf32> to vector<8x512xf32>
    %c0_13 = arith.constant 0 : index
    %c0_14 = arith.constant 0 : index
    %15 = vector.load %arg8[%c0_13, %c0_14] : memref<8x128xf32, #tpu.memory_space<vmem>>, vector<8x128xf32>
    %c0_15 = arith.constant 0 : index
    %c0_16 = arith.constant 0 : index
    %16 = vector.load %arg5[%c0_15, %c0_16] : memref<128x512xf32, #tpu.memory_space<vmem>>, vector<128x512xf32>
    %cst_17 = arith.constant dense<0.000000e+00> : vector<8x512xf32>
    %17 = tpu.matmul %15, %16, %cst_17 {dimension_numbers = #tpu.dot_dimension_numbers<[1], [0], [0], [1], [0, 0, 1, 1], [], []>} : vector<8x128xf32>, vector<128x512xf32>, vector<8x512xf32> -> vector<8x512xf32>
    %18 = arith.addf %14, %17 : vector<8x512xf32>
    %19 = vector.extract_strided_slice %18 {offsets = [0, 0], sizes = [8, 128], strides = [1, 1]} : vector<8x512xf32> to vector<8x128xf32>
    %20 = arith.negf %19 : vector<8x128xf32>
    %21 = math.exp %20 : vector<8x128xf32>
    %cst_18 = arith.constant 1.000000e+00 : f32
    %22 = vector.broadcast %cst_18 : f32 to vector<8x128xf32>
    %23 = arith.addf %22, %21 : vector<8x128xf32>
    %24 = arith.divf %22, %23 : vector<8x128xf32>
    %25 = vector.extract_strided_slice %18 {offsets = [0, 128], sizes = [8, 128], strides = [1, 1]} : vector<8x512xf32> to vector<8x128xf32>
    %26 = arith.negf %25 : vector<8x128xf32>
    %27 = math.exp %26 : vector<8x128xf32>
    %cst_19 = arith.constant 1.000000e+00 : f32
    %28 = vector.broadcast %cst_19 : f32 to vector<8x128xf32>
    %29 = arith.addf %28, %27 : vector<8x128xf32>
    %30 = arith.divf %28, %29 : vector<8x128xf32>
    %31 = vector.extract_strided_slice %18 {offsets = [0, 256], sizes = [8, 128], strides = [1, 1]} : vector<8x512xf32> to vector<8x128xf32>
    %32 = math.tanh %31 : vector<8x128xf32>
    %33 = vector.extract_strided_slice %18 {offsets = [0, 384], sizes = [8, 128], strides = [1, 1]} : vector<8x512xf32> to vector<8x128xf32>
    %34 = arith.negf %33 : vector<8x128xf32>
    %35 = math.exp %34 : vector<8x128xf32>
    %cst_20 = arith.constant 1.000000e+00 : f32
    %36 = vector.broadcast %cst_20 : f32 to vector<8x128xf32>
    %37 = arith.addf %36, %35 : vector<8x128xf32>
    %38 = arith.divf %36, %37 : vector<8x128xf32>
    %c0_21 = arith.constant 0 : index
    %c0_22 = arith.constant 0 : index
    %39 = vector.load %arg9[%c0_21, %c0_22] : memref<8x128xf32, #tpu.memory_space<vmem>>, vector<8x128xf32>
    %40 = arith.mulf %30, %39 : vector<8x128xf32>
    %41 = arith.mulf %24, %32 : vector<8x128xf32>
    %42 = arith.addf %40, %41 : vector<8x128xf32>
    %43 = math.tanh %42 : vector<8x128xf32>
    %44 = arith.mulf %38, %43 : vector<8x128xf32>
    %c0_23 = arith.constant 0 : index
    %c0_24 = arith.constant 0 : index
    %45 = vector.load %arg9[%c0_23, %c0_24] : memref<8x128xf32, #tpu.memory_space<vmem>>, vector<8x128xf32>
    tpu.vector_store %arg9[%c0_23, %c0_24], %42 {strides = array<i32>} : memref<8x128xf32, #tpu.memory_space<vmem>>, vector<8x128xf32>,
    %c0_25 = arith.constant 0 : index
    %c0_26 = arith.constant 0 : index
    %46 = vector.load %arg8[%c0_25, %c0_26] : memref<8x128xf32, #tpu.memory_space<vmem>>, vector<8x128xf32>
    tpu.vector_store %arg8[%c0_25, %c0_26], %44 {strides = array<i32>} : memref<8x128xf32, #tpu.memory_space<vmem>>, vector<8x128xf32>,
    %47 = arith.index_cast %c0_i32_10 : i32 to index
    %c0_27 = arith.constant 0 : index
    %c0_28 = arith.constant 0 : index
    %48 = vector.load %arg6[%47, %c0_27, %c0_28] : memref<8x8x128xf32, #tpu.memory_space<vmem>>, vector<1x8x128xf32>
    %49 = vector.shape_cast %48 : vector<1x8x128xf32> to vector<8x128xf32>
    %50 = vector.shape_cast %44 : vector<8x128xf32> to vector<1x8x128xf32>
    tpu.vector_store %arg6[%47, %c0_27, %c0_28], %50 {strides = array<i32>} : memref<8x8x128xf32, #tpu.memory_space<vmem>>, vector<1x8x128xf32>,
    %c1_i32 = arith.constant 1 : i32
    %51 = arith.index_cast %c1_i32 : i32 to index
    %c0_29 = arith.constant 0 : index
    %c0_30 = arith.constant 0 : index
    %52 = vector.load %arg7[%51, %c0_29, %c0_30] : memref<8x8x512xf32, #tpu.memory_space<vmem>>, vector<1x8x512xf32>
    %53 = vector.shape_cast %52 : vector<1x8x512xf32> to vector<8x512xf32>
    %c0_31 = arith.constant 0 : index
    %c0_32 = arith.constant 0 : index
    %54 = vector.load %arg8[%c0_31, %c0_32] : memref<8x128xf32, #tpu.memory_space<vmem>>, vector<8x128xf32>
    %c0_33 = arith.constant 0 : index
    %c0_34 = arith.constant 0 : index
    %55 = vector.load %arg5[%c0_33, %c0_34] : memref<128x512xf32, #tpu.memory_space<vmem>>, vector<128x512xf32>
    %cst_35 = arith.constant dense<0.000000e+00> : vector<8x512xf32>
    %56 = tpu.matmul %54, %55, %cst_35 {dimension_numbers = #tpu.dot_dimension_numbers<[1], [0], [0], [1], [0, 0, 1, 1], [], []>} : vector<8x128xf32>, vector<128x512xf32>, vector<8x512xf32> -> vector<8x512xf32>
    %57 = arith.addf %53, %56 : vector<8x512xf32>
    %58 = vector.extract_strided_slice %57 {offsets = [0, 0], sizes = [8, 128], strides = [1, 1]} : vector<8x512xf32> to vector<8x128xf32>
    %59 = arith.negf %58 : vector<8x128xf32>
    %60 = math.exp %59 : vector<8x128xf32>
    %cst_36 = arith.constant 1.000000e+00 : f32
    %61 = vector.broadcast %cst_36 : f32 to vector<8x128xf32>
    %62 = arith.addf %61, %60 : vector<8x128xf32>
    %63 = arith.divf %61, %62 : vector<8x128xf32>
    %64 = vector.extract_strided_slice %57 {offsets = [0, 128], sizes = [8, 128], strides = [1, 1]} : vector<8x512xf32> to vector<8x128xf32>
    %65 = arith.negf %64 : vector<8x128xf32>
    %66 = math.exp %65 : vector<8x128xf32>
    %cst_37 = arith.constant 1.000000e+00 : f32
    %67 = vector.broadcast %cst_37 : f32 to vector<8x128xf32>
    %68 = arith.addf %67, %66 : vector<8x128xf32>
    %69 = arith.divf %67, %68 : vector<8x128xf32>
    %70 = vector.extract_strided_slice %57 {offsets = [0, 256], sizes = [8, 128], strides = [1, 1]} : vector<8x512xf32> to vector<8x128xf32>
    %71 = math.tanh %70 : vector<8x128xf32>
    %72 = vector.extract_strided_slice %57 {offsets = [0, 384], sizes = [8, 128], strides = [1, 1]} : vector<8x512xf32> to vector<8x128xf32>
    %73 = arith.negf %72 : vector<8x128xf32>
    %74 = math.exp %73 : vector<8x128xf32>
    %cst_38 = arith.constant 1.000000e+00 : f32
    %75 = vector.broadcast %cst_38 : f32 to vector<8x128xf32>
    %76 = arith.addf %75, %74 : vector<8x128xf32>
    %77 = arith.divf %75, %76 : vector<8x128xf32>
    %c0_39 = arith.constant 0 : index
    %c0_40 = arith.constant 0 : index
    %78 = vector.load %arg9[%c0_39, %c0_40] : memref<8x128xf32, #tpu.memory_space<vmem>>, vector<8x128xf32>
    %79 = arith.mulf %69, %78 : vector<8x128xf32>
    %80 = arith.mulf %63, %71 : vector<8x128xf32>
    %81 = arith.addf %79, %80 : vector<8x128xf32>
    %82 = math.tanh %81 : vector<8x128xf32>
    %83 = arith.mulf %77, %82 : vector<8x128xf32>
    %c0_41 = arith.constant 0 : index
    %c0_42 = arith.constant 0 : index
    %84 = vector.load %arg9[%c0_41, %c0_42] : memref<8x128xf32, #tpu.memory_space<vmem>>, vector<8x128xf32>
    tpu.vector_store %arg9[%c0_41, %c0_42], %81 {strides = array<i32>} : memref<8x128xf32, #tpu.memory_space<vmem>>, vector<8x128xf32>,
    %c0_43 = arith.constant 0 : index
    %c0_44 = arith.constant 0 : index
    %85 = vector.load %arg8[%c0_43, %c0_44] : memref<8x128xf32, #tpu.memory_space<vmem>>, vector<8x128xf32>
    tpu.vector_store %arg8[%c0_43, %c0_44], %83 {strides = array<i32>} : memref<8x128xf32, #tpu.memory_space<vmem>>, vector<8x128xf32>,
    %86 = arith.index_cast %c1_i32 : i32 to index
    %c0_45 = arith.constant 0 : index
    %c0_46 = arith.constant 0 : index
    %87 = vector.load %arg6[%86, %c0_45, %c0_46] : memref<8x8x128xf32, #tpu.memory_space<vmem>>, vector<1x8x128xf32>
    %88 = vector.shape_cast %87 : vector<1x8x128xf32> to vector<8x128xf32>
    %89 = vector.shape_cast %83 : vector<8x128xf32> to vector<1x8x128xf32>
    tpu.vector_store %arg6[%86, %c0_45, %c0_46], %89 {strides = array<i32>} : memref<8x8x128xf32, #tpu.memory_space<vmem>>, vector<1x8x128xf32>,
    %c2_i32 = arith.constant 2 : i32
    %90 = arith.index_cast %c2_i32 : i32 to index
    %c0_47 = arith.constant 0 : index
    %c0_48 = arith.constant 0 : index
    %91 = vector.load %arg7[%90, %c0_47, %c0_48] : memref<8x8x512xf32, #tpu.memory_space<vmem>>, vector<1x8x512xf32>
    %92 = vector.shape_cast %91 : vector<1x8x512xf32> to vector<8x512xf32>
    %c0_49 = arith.constant 0 : index
    %c0_50 = arith.constant 0 : index
    %93 = vector.load %arg8[%c0_49, %c0_50] : memref<8x128xf32, #tpu.memory_space<vmem>>, vector<8x128xf32>
    %c0_51 = arith.constant 0 : index
    %c0_52 = arith.constant 0 : index
    %94 = vector.load %arg5[%c0_51, %c0_52] : memref<128x512xf32, #tpu.memory_space<vmem>>, vector<128x512xf32>
    %cst_53 = arith.constant dense<0.000000e+00> : vector<8x512xf32>
    %95 = tpu.matmul %93, %94, %cst_53 {dimension_numbers = #tpu.dot_dimension_numbers<[1], [0], [0], [1], [0, 0, 1, 1], [], []>} : vector<8x128xf32>, vector<128x512xf32>, vector<8x512xf32> -> vector<8x512xf32>
    %96 = arith.addf %92, %95 : vector<8x512xf32>
    %97 = vector.extract_strided_slice %96 {offsets = [0, 0], sizes = [8, 128], strides = [1, 1]} : vector<8x512xf32> to vector<8x128xf32>
    %98 = arith.negf %97 : vector<8x128xf32>
    %99 = math.exp %98 : vector<8x128xf32>
    %cst_54 = arith.constant 1.000000e+00 : f32
    %100 = vector.broadcast %cst_54 : f32 to vector<8x128xf32>
    %101 = arith.addf %100, %99 : vector<8x128xf32>
    %102 = arith.divf %100, %101 : vector<8x128xf32>
    %103 = vector.extract_strided_slice %96 {offsets = [0, 128], sizes = [8, 128], strides = [1, 1]} : vector<8x512xf32> to vector<8x128xf32>
    %104 = arith.negf %103 : vector<8x128xf32>
    %105 = math.exp %104 : vector<8x128xf32>
    %cst_55 = arith.constant 1.000000e+00 : f32
    %106 = vector.broadcast %cst_55 : f32 to vector<8x128xf32>
    %107 = arith.addf %106, %105 : vector<8x128xf32>
    %108 = arith.divf %106, %107 : vector<8x128xf32>
    %109 = vector.extract_strided_slice %96 {offsets = [0, 256], sizes = [8, 128], strides = [1, 1]} : vector<8x512xf32> to vector<8x128xf32>
    %110 = math.tanh %109 : vector<8x128xf32>
    %111 = vector.extract_strided_slice %96 {offsets = [0, 384], sizes = [8, 128], strides = [1, 1]} : vector<8x512xf32> to vector<8x128xf32>
    %112 = arith.negf %111 : vector<8x128xf32>
    %113 = math.exp %112 : vector<8x128xf32>
    %cst_56 = arith.constant 1.000000e+00 : f32
    %114 = vector.broadcast %cst_56 : f32 to vector<8x128xf32>
    %115 = arith.addf %114, %113 : vector<8x128xf32>
    %116 = arith.divf %114, %115 : vector<8x128xf32>
    %c0_57 = arith.constant 0 : index
    %c0_58 = arith.constant 0 : index
    %117 = vector.load %arg9[%c0_57, %c0_58] : memref<8x128xf32, #tpu.memory_space<vmem>>, vector<8x128xf32>
    %118 = arith.mulf %108, %117 : vector<8x128xf32>
    %119 = arith.mulf %102, %110 : vector<8x128xf32>
    %120 = arith.addf %118, %119 : vector<8x128xf32>
    %121 = math.tanh %120 : vector<8x128xf32>
    %122 = arith.mulf %116, %121 : vector<8x128xf32>
    %c0_59 = arith.constant 0 : index
    %c0_60 = arith.constant 0 : index
    %123 = vector.load %arg9[%c0_59, %c0_60] : memref<8x128xf32, #tpu.memory_space<vmem>>, vector<8x128xf32>
    tpu.vector_store %arg9[%c0_59, %c0_60], %120 {strides = array<i32>} : memref<8x128xf32, #tpu.memory_space<vmem>>, vector<8x128xf32>,
    %c0_61 = arith.constant 0 : index
    %c0_62 = arith.constant 0 : index
    %124 = vector.load %arg8[%c0_61, %c0_62] : memref<8x128xf32, #tpu.memory_space<vmem>>, vector<8x128xf32>
    tpu.vector_store %arg8[%c0_61, %c0_62], %122 {strides = array<i32>} : memref<8x128xf32, #tpu.memory_space<vmem>>, vector<8x128xf32>,
    %125 = arith.index_cast %c2_i32 : i32 to index
    %c0_63 = arith.constant 0 : index
    %c0_64 = arith.constant 0 : index
    %126 = vector.load %arg6[%125, %c0_63, %c0_64] : memref<8x8x128xf32, #tpu.memory_space<vmem>>, vector<1x8x128xf32>
    %127 = vector.shape_cast %126 : vector<1x8x128xf32> to vector<8x128xf32>
    %128 = vector.shape_cast %122 : vector<8x128xf32> to vector<1x8x128xf32>
    tpu.vector_store %arg6[%125, %c0_63, %c0_64], %128 {strides = array<i32>} : memref<8x8x128xf32, #tpu.memory_space<vmem>>, vector<1x8x128xf32>,
    %c3_i32 = arith.constant 3 : i32
    %129 = arith.index_cast %c3_i32 : i32 to index
    %c0_65 = arith.constant 0 : index
    %c0_66 = arith.constant 0 : index
    %130 = vector.load %arg7[%129, %c0_65, %c0_66] : memref<8x8x512xf32, #tpu.memory_space<vmem>>, vector<1x8x512xf32>
    %131 = vector.shape_cast %130 : vector<1x8x512xf32> to vector<8x512xf32>
    %c0_67 = arith.constant 0 : index
    %c0_68 = arith.constant 0 : index
    %132 = vector.load %arg8[%c0_67, %c0_68] : memref<8x128xf32, #tpu.memory_space<vmem>>, vector<8x128xf32>
    %c0_69 = arith.constant 0 : index
    %c0_70 = arith.constant 0 : index
    %133 = vector.load %arg5[%c0_69, %c0_70] : memref<128x512xf32, #tpu.memory_space<vmem>>, vector<128x512xf32>
    %cst_71 = arith.constant dense<0.000000e+00> : vector<8x512xf32>
    %134 = tpu.matmul %132, %133, %cst_71 {dimension_numbers = #tpu.dot_dimension_numbers<[1], [0], [0], [1], [0, 0, 1, 1], [], []>} : vector<8x128xf32>, vector<128x512xf32>, vector<8x512xf32> -> vector<8x512xf32>
    %135 = arith.addf %131, %134 : vector<8x512xf32>
    %136 = vector.extract_strided_slice %135 {offsets = [0, 0], sizes = [8, 128], strides = [1, 1]} : vector<8x512xf32> to vector<8x128xf32>
    %137 = arith.negf %136 : vector<8x128xf32>
    %138 = math.exp %137 : vector<8x128xf32>
    %cst_72 = arith.constant 1.000000e+00 : f32
    %139 = vector.broadcast %cst_72 : f32 to vector<8x128xf32>
    %140 = arith.addf %139, %138 : vector<8x128xf32>
    %141 = arith.divf %139, %140 : vector<8x128xf32>
    %142 = vector.extract_strided_slice %135 {offsets = [0, 128], sizes = [8, 128], strides = [1, 1]} : vector<8x512xf32> to vector<8x128xf32>
    %143 = arith.negf %142 : vector<8x128xf32>
    %144 = math.exp %143 : vector<8x128xf32>
    %cst_73 = arith.constant 1.000000e+00 : f32
    %145 = vector.broadcast %cst_73 : f32 to vector<8x128xf32>
    %146 = arith.addf %145, %144 : vector<8x128xf32>
    %147 = arith.divf %145, %146 : vector<8x128xf32>
    %148 = vector.extract_strided_slice %135 {offsets = [0, 256], sizes = [8, 128], strides = [1, 1]} : vector<8x512xf32> to vector<8x128xf32>
    %149 = math.tanh %148 : vector<8x128xf32>
    %150 = vector.extract_strided_slice %135 {offsets = [0, 384], sizes = [8, 128], strides = [1, 1]} : vector<8x512xf32> to vector<8x128xf32>
    %151 = arith.negf %150 : vector<8x128xf32>
    %152 = math.exp %151 : vector<8x128xf32>
    %cst_74 = arith.constant 1.000000e+00 : f32
    %153 = vector.broadcast %cst_74 : f32 to vector<8x128xf32>
    %154 = arith.addf %153, %152 : vector<8x128xf32>
    %155 = arith.divf %153, %154 : vector<8x128xf32>
    %c0_75 = arith.constant 0 : index
    %c0_76 = arith.constant 0 : index
    %156 = vector.load %arg9[%c0_75, %c0_76] : memref<8x128xf32, #tpu.memory_space<vmem>>, vector<8x128xf32>
    %157 = arith.mulf %147, %156 : vector<8x128xf32>
    %158 = arith.mulf %141, %149 : vector<8x128xf32>
    %159 = arith.addf %157, %158 : vector<8x128xf32>
    %160 = math.tanh %159 : vector<8x128xf32>
    %161 = arith.mulf %155, %160 : vector<8x128xf32>
    %c0_77 = arith.constant 0 : index
    %c0_78 = arith.constant 0 : index
    %162 = vector.load %arg9[%c0_77, %c0_78] : memref<8x128xf32, #tpu.memory_space<vmem>>, vector<8x128xf32>
    tpu.vector_store %arg9[%c0_77, %c0_78], %159 {strides = array<i32>} : memref<8x128xf32, #tpu.memory_space<vmem>>, vector<8x128xf32>,
    %c0_79 = arith.constant 0 : index
    %c0_80 = arith.constant 0 : index
    %163 = vector.load %arg8[%c0_79, %c0_80] : memref<8x128xf32, #tpu.memory_space<vmem>>, vector<8x128xf32>
    tpu.vector_store %arg8[%c0_79, %c0_80], %161 {strides = array<i32>} : memref<8x128xf32, #tpu.memory_space<vmem>>, vector<8x128xf32>,
    %164 = arith.index_cast %c3_i32 : i32 to index
    %c0_81 = arith.constant 0 : index
    %c0_82 = arith.constant 0 : index
    %165 = vector.load %arg6[%164, %c0_81, %c0_82] : memref<8x8x128xf32, #tpu.memory_space<vmem>>, vector<1x8x128xf32>
    %166 = vector.shape_cast %165 : vector<1x8x128xf32> to vector<8x128xf32>
    %167 = vector.shape_cast %161 : vector<8x128xf32> to vector<1x8x128xf32>
    tpu.vector_store %arg6[%164, %c0_81, %c0_82], %167 {strides = array<i32>} : memref<8x8x128xf32, #tpu.memory_space<vmem>>, vector<1x8x128xf32>,
    %c4_i32 = arith.constant 4 : i32
    %168 = arith.index_cast %c4_i32 : i32 to index
    %c0_83 = arith.constant 0 : index
    %c0_84 = arith.constant 0 : index
    %169 = vector.load %arg7[%168, %c0_83, %c0_84] : memref<8x8x512xf32, #tpu.memory_space<vmem>>, vector<1x8x512xf32>
    %170 = vector.shape_cast %169 : vector<1x8x512xf32> to vector<8x512xf32>
    %c0_85 = arith.constant 0 : index
    %c0_86 = arith.constant 0 : index
    %171 = vector.load %arg8[%c0_85, %c0_86] : memref<8x128xf32, #tpu.memory_space<vmem>>, vector<8x128xf32>
    %c0_87 = arith.constant 0 : index
    %c0_88 = arith.constant 0 : index
    %172 = vector.load %arg5[%c0_87, %c0_88] : memref<128x512xf32, #tpu.memory_space<vmem>>, vector<128x512xf32>
    %cst_89 = arith.constant dense<0.000000e+00> : vector<8x512xf32>
    %173 = tpu.matmul %171, %172, %cst_89 {dimension_numbers = #tpu.dot_dimension_numbers<[1], [0], [0], [1], [0, 0, 1, 1], [], []>} : vector<8x128xf32>, vector<128x512xf32>, vector<8x512xf32> -> vector<8x512xf32>
    %174 = arith.addf %170, %173 : vector<8x512xf32>
    %175 = vector.extract_strided_slice %174 {offsets = [0, 0], sizes = [8, 128], strides = [1, 1]} : vector<8x512xf32> to vector<8x128xf32>
    %176 = arith.negf %175 : vector<8x128xf32>
    %177 = math.exp %176 : vector<8x128xf32>
    %cst_90 = arith.constant 1.000000e+00 : f32
    %178 = vector.broadcast %cst_90 : f32 to vector<8x128xf32>
    %179 = arith.addf %178, %177 : vector<8x128xf32>
    %180 = arith.divf %178, %179 : vector<8x128xf32>
    %181 = vector.extract_strided_slice %174 {offsets = [0, 128], sizes = [8, 128], strides = [1, 1]} : vector<8x512xf32> to vector<8x128xf32>
    %182 = arith.negf %181 : vector<8x128xf32>
    %183 = math.exp %182 : vector<8x128xf32>
    %cst_91 = arith.constant 1.000000e+00 : f32
    %184 = vector.broadcast %cst_91 : f32 to vector<8x128xf32>
    %185 = arith.addf %184, %183 : vector<8x128xf32>
    %186 = arith.divf %184, %185 : vector<8x128xf32>
    %187 = vector.extract_strided_slice %174 {offsets = [0, 256], sizes = [8, 128], strides = [1, 1]} : vector<8x512xf32> to vector<8x128xf32>
    %188 = math.tanh %187 : vector<8x128xf32>
    %189 = vector.extract_strided_slice %174 {offsets = [0, 384], sizes = [8, 128], strides = [1, 1]} : vector<8x512xf32> to vector<8x128xf32>
    %190 = arith.negf %189 : vector<8x128xf32>
    %191 = math.exp %190 : vector<8x128xf32>
    %cst_92 = arith.constant 1.000000e+00 : f32
    %192 = vector.broadcast %cst_92 : f32 to vector<8x128xf32>
    %193 = arith.addf %192, %191 : vector<8x128xf32>
    %194 = arith.divf %192, %193 : vector<8x128xf32>
    %c0_93 = arith.constant 0 : index
    %c0_94 = arith.constant 0 : index
    %195 = vector.load %arg9[%c0_93, %c0_94] : memref<8x128xf32, #tpu.memory_space<vmem>>, vector<8x128xf32>
    %196 = arith.mulf %186, %195 : vector<8x128xf32>
    %197 = arith.mulf %180, %188 : vector<8x128xf32>
    %198 = arith.addf %196, %197 : vector<8x128xf32>
    %199 = math.tanh %198 : vector<8x128xf32>
    %200 = arith.mulf %194, %199 : vector<8x128xf32>
    %c0_95 = arith.constant 0 : index
    %c0_96 = arith.constant 0 : index
    %201 = vector.load %arg9[%c0_95, %c0_96] : memref<8x128xf32, #tpu.memory_space<vmem>>, vector<8x128xf32>
    tpu.vector_store %arg9[%c0_95, %c0_96], %198 {strides = array<i32>} : memref<8x128xf32, #tpu.memory_space<vmem>>, vector<8x128xf32>,
    %c0_97 = arith.constant 0 : index
    %c0_98 = arith.constant 0 : index
    %202 = vector.load %arg8[%c0_97, %c0_98] : memref<8x128xf32, #tpu.memory_space<vmem>>, vector<8x128xf32>
    tpu.vector_store %arg8[%c0_97, %c0_98], %200 {strides = array<i32>} : memref<8x128xf32, #tpu.memory_space<vmem>>, vector<8x128xf32>,
    %203 = arith.index_cast %c4_i32 : i32 to index
    %c0_99 = arith.constant 0 : index
    %c0_100 = arith.constant 0 : index
    %204 = vector.load %arg6[%203, %c0_99, %c0_100] : memref<8x8x128xf32, #tpu.memory_space<vmem>>, vector<1x8x128xf32>
    %205 = vector.shape_cast %204 : vector<1x8x128xf32> to vector<8x128xf32>
    %206 = vector.shape_cast %200 : vector<8x128xf32> to vector<1x8x128xf32>
    tpu.vector_store %arg6[%203, %c0_99, %c0_100], %206 {strides = array<i32>} : memref<8x8x128xf32, #tpu.memory_space<vmem>>, vector<1x8x128xf32>,
    %c5_i32 = arith.constant 5 : i32
    %207 = arith.index_cast %c5_i32 : i32 to index
    %c0_101 = arith.constant 0 : index
    %c0_102 = arith.constant 0 : index
    %208 = vector.load %arg7[%207, %c0_101, %c0_102] : memref<8x8x512xf32, #tpu.memory_space<vmem>>, vector<1x8x512xf32>
    %209 = vector.shape_cast %208 : vector<1x8x512xf32> to vector<8x512xf32>
    %c0_103 = arith.constant 0 : index
    %c0_104 = arith.constant 0 : index
    %210 = vector.load %arg8[%c0_103, %c0_104] : memref<8x128xf32, #tpu.memory_space<vmem>>, vector<8x128xf32>
    %c0_105 = arith.constant 0 : index
    %c0_106 = arith.constant 0 : index
    %211 = vector.load %arg5[%c0_105, %c0_106] : memref<128x512xf32, #tpu.memory_space<vmem>>, vector<128x512xf32>
    %cst_107 = arith.constant dense<0.000000e+00> : vector<8x512xf32>
    %212 = tpu.matmul %210, %211, %cst_107 {dimension_numbers = #tpu.dot_dimension_numbers<[1], [0], [0], [1], [0, 0, 1, 1], [], []>} : vector<8x128xf32>, vector<128x512xf32>, vector<8x512xf32> -> vector<8x512xf32>
    %213 = arith.addf %209, %212 : vector<8x512xf32>
    %214 = vector.extract_strided_slice %213 {offsets = [0, 0], sizes = [8, 128], strides = [1, 1]} : vector<8x512xf32> to vector<8x128xf32>
    %215 = arith.negf %214 : vector<8x128xf32>
    %216 = math.exp %215 : vector<8x128xf32>
    %cst_108 = arith.constant 1.000000e+00 : f32
    %217 = vector.broadcast %cst_108 : f32 to vector<8x128xf32>
    %218 = arith.addf %217, %216 : vector<8x128xf32>
    %219 = arith.divf %217, %218 : vector<8x128xf32>
    %220 = vector.extract_strided_slice %213 {offsets = [0, 128], sizes = [8, 128], strides = [1, 1]} : vector<8x512xf32> to vector<8x128xf32>
    %221 = arith.negf %220 : vector<8x128xf32>
    %222 = math.exp %221 : vector<8x128xf32>
    %cst_109 = arith.constant 1.000000e+00 : f32
    %223 = vector.broadcast %cst_109 : f32 to vector<8x128xf32>
    %224 = arith.addf %223, %222 : vector<8x128xf32>
    %225 = arith.divf %223, %224 : vector<8x128xf32>
    %226 = vector.extract_strided_slice %213 {offsets = [0, 256], sizes = [8, 128], strides = [1, 1]} : vector<8x512xf32> to vector<8x128xf32>
    %227 = math.tanh %226 : vector<8x128xf32>
    %228 = vector.extract_strided_slice %213 {offsets = [0, 384], sizes = [8, 128], strides = [1, 1]} : vector<8x512xf32> to vector<8x128xf32>
    %229 = arith.negf %228 : vector<8x128xf32>
    %230 = math.exp %229 : vector<8x128xf32>
    %cst_110 = arith.constant 1.000000e+00 : f32
    %231 = vector.broadcast %cst_110 : f32 to vector<8x128xf32>
    %232 = arith.addf %231, %230 : vector<8x128xf32>
    %233 = arith.divf %231, %232 : vector<8x128xf32>
    %c0_111 = arith.constant 0 : index
    %c0_112 = arith.constant 0 : index
    %234 = vector.load %arg9[%c0_111, %c0_112] : memref<8x128xf32, #tpu.memory_space<vmem>>, vector<8x128xf32>
    %235 = arith.mulf %225, %234 : vector<8x128xf32>
    %236 = arith.mulf %219, %227 : vector<8x128xf32>
    %237 = arith.addf %235, %236 : vector<8x128xf32>
    %238 = math.tanh %237 : vector<8x128xf32>
    %239 = arith.mulf %233, %238 : vector<8x128xf32>
    %c0_113 = arith.constant 0 : index
    %c0_114 = arith.constant 0 : index
    %240 = vector.load %arg9[%c0_113, %c0_114] : memref<8x128xf32, #tpu.memory_space<vmem>>, vector<8x128xf32>
    tpu.vector_store %arg9[%c0_113, %c0_114], %237 {strides = array<i32>} : memref<8x128xf32, #tpu.memory_space<vmem>>, vector<8x128xf32>,
    %c0_115 = arith.constant 0 : index
    %c0_116 = arith.constant 0 : index
    %241 = vector.load %arg8[%c0_115, %c0_116] : memref<8x128xf32, #tpu.memory_space<vmem>>, vector<8x128xf32>
    tpu.vector_store %arg8[%c0_115, %c0_116], %239 {strides = array<i32>} : memref<8x128xf32, #tpu.memory_space<vmem>>, vector<8x128xf32>,
    %242 = arith.index_cast %c5_i32 : i32 to index
    %c0_117 = arith.constant 0 : index
    %c0_118 = arith.constant 0 : index
    %243 = vector.load %arg6[%242, %c0_117, %c0_118] : memref<8x8x128xf32, #tpu.memory_space<vmem>>, vector<1x8x128xf32>
    %244 = vector.shape_cast %243 : vector<1x8x128xf32> to vector<8x128xf32>
    %245 = vector.shape_cast %239 : vector<8x128xf32> to vector<1x8x128xf32>
    tpu.vector_store %arg6[%242, %c0_117, %c0_118], %245 {strides = array<i32>} : memref<8x8x128xf32, #tpu.memory_space<vmem>>, vector<1x8x128xf32>,
    %c6_i32 = arith.constant 6 : i32
    %246 = arith.index_cast %c6_i32 : i32 to index
    %c0_119 = arith.constant 0 : index
    %c0_120 = arith.constant 0 : index
    %247 = vector.load %arg7[%246, %c0_119, %c0_120] : memref<8x8x512xf32, #tpu.memory_space<vmem>>, vector<1x8x512xf32>
    %248 = vector.shape_cast %247 : vector<1x8x512xf32> to vector<8x512xf32>
    %c0_121 = arith.constant 0 : index
    %c0_122 = arith.constant 0 : index
    %249 = vector.load %arg8[%c0_121, %c0_122] : memref<8x128xf32, #tpu.memory_space<vmem>>, vector<8x128xf32>
    %c0_123 = arith.constant 0 : index
    %c0_124 = arith.constant 0 : index
    %250 = vector.load %arg5[%c0_123, %c0_124] : memref<128x512xf32, #tpu.memory_space<vmem>>, vector<128x512xf32>
    %cst_125 = arith.constant dense<0.000000e+00> : vector<8x512xf32>
    %251 = tpu.matmul %249, %250, %cst_125 {dimension_numbers = #tpu.dot_dimension_numbers<[1], [0], [0], [1], [0, 0, 1, 1], [], []>} : vector<8x128xf32>, vector<128x512xf32>, vector<8x512xf32> -> vector<8x512xf32>
    %252 = arith.addf %248, %251 : vector<8x512xf32>
    %253 = vector.extract_strided_slice %252 {offsets = [0, 0], sizes = [8, 128], strides = [1, 1]} : vector<8x512xf32> to vector<8x128xf32>
    %254 = arith.negf %253 : vector<8x128xf32>
    %255 = math.exp %254 : vector<8x128xf32>
    %cst_126 = arith.constant 1.000000e+00 : f32
    %256 = vector.broadcast %cst_126 : f32 to vector<8x128xf32>
    %257 = arith.addf %256, %255 : vector<8x128xf32>
    %258 = arith.divf %256, %257 : vector<8x128xf32>
    %259 = vector.extract_strided_slice %252 {offsets = [0, 128], sizes = [8, 128], strides = [1, 1]} : vector<8x512xf32> to vector<8x128xf32>
    %260 = arith.negf %259 : vector<8x128xf32>
    %261 = math.exp %260 : vector<8x128xf32>
    %cst_127 = arith.constant 1.000000e+00 : f32
    %262 = vector.broadcast %cst_127 : f32 to vector<8x128xf32>
    %263 = arith.addf %262, %261 : vector<8x128xf32>
    %264 = arith.divf %262, %263 : vector<8x128xf32>
    %265 = vector.extract_strided_slice %252 {offsets = [0, 256], sizes = [8, 128], strides = [1, 1]} : vector<8x512xf32> to vector<8x128xf32>
    %266 = math.tanh %265 : vector<8x128xf32>
    %267 = vector.extract_strided_slice %252 {offsets = [0, 384], sizes = [8, 128], strides = [1, 1]} : vector<8x512xf32> to vector<8x128xf32>
    %268 = arith.negf %267 : vector<8x128xf32>
    %269 = math.exp %268 : vector<8x128xf32>
    %cst_128 = arith.constant 1.000000e+00 : f32
    %270 = vector.broadcast %cst_128 : f32 to vector<8x128xf32>
    %271 = arith.addf %270, %269 : vector<8x128xf32>
    %272 = arith.divf %270, %271 : vector<8x128xf32>
    %c0_129 = arith.constant 0 : index
    %c0_130 = arith.constant 0 : index
    %273 = vector.load %arg9[%c0_129, %c0_130] : memref<8x128xf32, #tpu.memory_space<vmem>>, vector<8x128xf32>
    %274 = arith.mulf %264, %273 : vector<8x128xf32>
    %275 = arith.mulf %258, %266 : vector<8x128xf32>
    %276 = arith.addf %274, %275 : vector<8x128xf32>
    %277 = math.tanh %276 : vector<8x128xf32>
    %278 = arith.mulf %272, %277 : vector<8x128xf32>
    %c0_131 = arith.constant 0 : index
    %c0_132 = arith.constant 0 : index
    %279 = vector.load %arg9[%c0_131, %c0_132] : memref<8x128xf32, #tpu.memory_space<vmem>>, vector<8x128xf32>
    tpu.vector_store %arg9[%c0_131, %c0_132], %276 {strides = array<i32>} : memref<8x128xf32, #tpu.memory_space<vmem>>, vector<8x128xf32>,
    %c0_133 = arith.constant 0 : index
    %c0_134 = arith.constant 0 : index
    %280 = vector.load %arg8[%c0_133, %c0_134] : memref<8x128xf32, #tpu.memory_space<vmem>>, vector<8x128xf32>
    tpu.vector_store %arg8[%c0_133, %c0_134], %278 {strides = array<i32>} : memref<8x128xf32, #tpu.memory_space<vmem>>, vector<8x128xf32>,
    %281 = arith.index_cast %c6_i32 : i32 to index
    %c0_135 = arith.constant 0 : index
    %c0_136 = arith.constant 0 : index
    %282 = vector.load %arg6[%281, %c0_135, %c0_136] : memref<8x8x128xf32, #tpu.memory_space<vmem>>, vector<1x8x128xf32>
    %283 = vector.shape_cast %282 : vector<1x8x128xf32> to vector<8x128xf32>
    %284 = vector.shape_cast %278 : vector<8x128xf32> to vector<1x8x128xf32>
    tpu.vector_store %arg6[%281, %c0_135, %c0_136], %284 {strides = array<i32>} : memref<8x8x128xf32, #tpu.memory_space<vmem>>, vector<1x8x128xf32>,
    %c7_i32 = arith.constant 7 : i32
    %285 = arith.index_cast %c7_i32 : i32 to index
    %c0_137 = arith.constant 0 : index
    %c0_138 = arith.constant 0 : index
    %286 = vector.load %arg7[%285, %c0_137, %c0_138] : memref<8x8x512xf32, #tpu.memory_space<vmem>>, vector<1x8x512xf32>
    %287 = vector.shape_cast %286 : vector<1x8x512xf32> to vector<8x512xf32>
    %c0_139 = arith.constant 0 : index
    %c0_140 = arith.constant 0 : index
    %288 = vector.load %arg8[%c0_139, %c0_140] : memref<8x128xf32, #tpu.memory_space<vmem>>, vector<8x128xf32>
    %c0_141 = arith.constant 0 : index
    %c0_142 = arith.constant 0 : index
    %289 = vector.load %arg5[%c0_141, %c0_142] : memref<128x512xf32, #tpu.memory_space<vmem>>, vector<128x512xf32>
    %cst_143 = arith.constant dense<0.000000e+00> : vector<8x512xf32>
    %290 = tpu.matmul %288, %289, %cst_143 {dimension_numbers = #tpu.dot_dimension_numbers<[1], [0], [0], [1], [0, 0, 1, 1], [], []>} : vector<8x128xf32>, vector<128x512xf32>, vector<8x512xf32> -> vector<8x512xf32>
    %291 = arith.addf %287, %290 : vector<8x512xf32>
    %292 = vector.extract_strided_slice %291 {offsets = [0, 0], sizes = [8, 128], strides = [1, 1]} : vector<8x512xf32> to vector<8x128xf32>
    %293 = arith.negf %292 : vector<8x128xf32>
    %294 = math.exp %293 : vector<8x128xf32>
    %cst_144 = arith.constant 1.000000e+00 : f32
    %295 = vector.broadcast %cst_144 : f32 to vector<8x128xf32>
    %296 = arith.addf %295, %294 : vector<8x128xf32>
    %297 = arith.divf %295, %296 : vector<8x128xf32>
    %298 = vector.extract_strided_slice %291 {offsets = [0, 128], sizes = [8, 128], strides = [1, 1]} : vector<8x512xf32> to vector<8x128xf32>
    %299 = arith.negf %298 : vector<8x128xf32>
    %300 = math.exp %299 : vector<8x128xf32>
    %cst_145 = arith.constant 1.000000e+00 : f32
    %301 = vector.broadcast %cst_145 : f32 to vector<8x128xf32>
    %302 = arith.addf %301, %300 : vector<8x128xf32>
    %303 = arith.divf %301, %302 : vector<8x128xf32>
    %304 = vector.extract_strided_slice %291 {offsets = [0, 256], sizes = [8, 128], strides = [1, 1]} : vector<8x512xf32> to vector<8x128xf32>
    %305 = math.tanh %304 : vector<8x128xf32>
    %306 = vector.extract_strided_slice %291 {offsets = [0, 384], sizes = [8, 128], strides = [1, 1]} : vector<8x512xf32> to vector<8x128xf32>
    %307 = arith.negf %306 : vector<8x128xf32>
    %308 = math.exp %307 : vector<8x128xf32>
    %cst_146 = arith.constant 1.000000e+00 : f32
    %309 = vector.broadcast %cst_146 : f32 to vector<8x128xf32>
    %310 = arith.addf %309, %308 : vector<8x128xf32>
    %311 = arith.divf %309, %310 : vector<8x128xf32>
    %c0_147 = arith.constant 0 : index
    %c0_148 = arith.constant 0 : index
    %312 = vector.load %arg9[%c0_147, %c0_148] : memref<8x128xf32, #tpu.memory_space<vmem>>, vector<8x128xf32>
    %313 = arith.mulf %303, %312 : vector<8x128xf32>
    %314 = arith.mulf %297, %305 : vector<8x128xf32>
    %315 = arith.addf %313, %314 : vector<8x128xf32>
    %316 = math.tanh %315 : vector<8x128xf32>
    %317 = arith.mulf %311, %316 : vector<8x128xf32>
    %c0_149 = arith.constant 0 : index
    %c0_150 = arith.constant 0 : index
    %318 = vector.load %arg9[%c0_149, %c0_150] : memref<8x128xf32, #tpu.memory_space<vmem>>, vector<8x128xf32>
    tpu.vector_store %arg9[%c0_149, %c0_150], %315 {strides = array<i32>} : memref<8x128xf32, #tpu.memory_space<vmem>>, vector<8x128xf32>,
    %c0_151 = arith.constant 0 : index
    %c0_152 = arith.constant 0 : index
    %319 = vector.load %arg8[%c0_151, %c0_152] : memref<8x128xf32, #tpu.memory_space<vmem>>, vector<8x128xf32>
    tpu.vector_store %arg8[%c0_151, %c0_152], %317 {strides = array<i32>} : memref<8x128xf32, #tpu.memory_space<vmem>>, vector<8x128xf32>,
    %320 = arith.index_cast %c7_i32 : i32 to index
    %c0_153 = arith.constant 0 : index
    %c0_154 = arith.constant 0 : index
    %321 = vector.load %arg6[%320, %c0_153, %c0_154] : memref<8x8x128xf32, #tpu.memory_space<vmem>>, vector<1x8x128xf32>
    %322 = vector.shape_cast %321 : vector<1x8x128xf32> to vector<8x128xf32>
    %323 = vector.shape_cast %317 : vector<8x128xf32> to vector<1x8x128xf32>
    tpu.vector_store %arg6[%320, %c0_153, %c0_154], %323 {strides = array<i32>} : memref<8x8x128xf32, #tpu.memory_space<vmem>>, vector<1x8x128xf32>,
    %c8_i32 = arith.constant 8 : i32
    return
  }
  func.func @transform_0(%arg0: i32, %arg1: i32) -> (i32, i32, i32) {
    %c0_i32 = arith.constant 0 : i32
    %c0_i32_0 = arith.constant 0 : i32
    return %arg1, %arg0, %c0_i32 : i32, i32, i32
  }
  func.func @transform_1(%arg0: i32, %arg1: i32) -> (i32, i32) {
    %c0_i32 = arith.constant 0 : i32
    %c0_i32_0 = arith.constant 0 : i32
    %c0_i32_1 = arith.constant 0 : i32
    return %c0_i32, %c0_i32_0 : i32, i32
  }
  func.func @transform_2(%arg0: i32, %arg1: i32) -> (i32, i32) {
    %c0_i32 = arith.constant 0 : i32
    %c0_i32_0 = arith.constant 0 : i32
    %c0_i32_1 = arith.constant 0 : i32
    return %c0_i32, %c0_i32_0 : i32, i32
  }
  func.func @transform_3(%arg0: i32, %arg1: i32) -> (i32, i32) {
    %c0_i32 = arith.constant 0 : i32
    %c0_i32_0 = arith.constant 0 : i32
    %c0_i32_1 = arith.constant 0 : i32
    return %c0_i32, %c0_i32_0 : i32, i32
  }
  func.func @transform_4(%arg0: i32, %arg1: i32) -> (i32, i32, i32) {
    %c0_i32 = arith.constant 0 : i32
    %c0_i32_0 = arith.constant 0 : i32
    return %arg1, %arg0, %c0_i32 : i32, i32, i32
  }
}

module attributes {stable_mosaic.version = 11 : i64} {
  func.func @_lstm_last_fc_kernel(%arg0: i32, %arg1: i32, %arg2: memref<8x8x128xf32, #tpu.memory_space<vmem>>, %arg3: memref<128x512xf32, #tpu.memory_space<vmem>>, %arg4: memref<1x512xf32, #tpu.memory_space<vmem>>, %arg5: memref<128x512xf32, #tpu.memory_space<vmem>>, %arg6: memref<128x128xf32, #tpu.memory_space<vmem>>, %arg7: memref<1x128xf32, #tpu.memory_space<vmem>>, %arg8: memref<8x128xf32, #tpu.memory_space<vmem>>, %arg9: memref<8x8x512xf32, #tpu.memory_space<vmem>>, %arg10: memref<8x128xf32, #tpu.memory_space<vmem>>, %arg11: memref<8x128xf32, #tpu.memory_space<vmem>>) attributes {dimension_semantics = [#tpu.dimension_semantics<parallel>, #tpu.dimension_semantics<arbitrary>], iteration_bounds = array<i64: 1, 1>, scalar_prefetch = 0 : i64, scratch_operands = 3 : i64, tpu.core_type = #tpu.core_type<tc>, window_params = [{transform_indices = @transform_0, window_bounds = array<i64: 8, 8, 128>}, {pipeline_mode = #tpu.pipeline_mode<synchronous>, transform_indices = @transform_1, window_bounds = array<i64: 128, 512>}, {pipeline_mode = #tpu.pipeline_mode<synchronous>, transform_indices = @transform_2, window_bounds = array<i64: 1, 512>}, {pipeline_mode = #tpu.pipeline_mode<synchronous>, transform_indices = @transform_3, window_bounds = array<i64: 128, 512>}, {pipeline_mode = #tpu.pipeline_mode<synchronous>, transform_indices = @transform_4, window_bounds = array<i64: 128, 128>}, {pipeline_mode = #tpu.pipeline_mode<synchronous>, transform_indices = @transform_5, window_bounds = array<i64: 1, 128>}, {transform_indices = @transform_6, window_bounds = array<i64: 8, 128>}]} {
    %c0_i32 = arith.constant 0 : i32
    %0 = arith.cmpi eq, %arg1, %c0_i32 : i32
    %1 = arith.extui %0 : i1 to i32
    %c0_i32_0 = arith.constant 0 : i32
    %2 = arith.cmpi ne, %1, %c0_i32_0 : i32
    scf.if %2 {
      %cst_141 = arith.constant 0.000000e+00 : f32
      %295 = vector.broadcast %cst_141 : f32 to vector<8x128xf32>
      %c0_142 = arith.constant 0 : index
      %c0_143 = arith.constant 0 : index
      %296 = vector.load %arg10[%c0_142, %c0_143] : memref<8x128xf32, #tpu.memory_space<vmem>>, vector<8x128xf32>
      tpu.vector_store %arg10[%c0_142, %c0_143], %295 {strides = array<i32>} : memref<8x128xf32, #tpu.memory_space<vmem>>, vector<8x128xf32>,
      %cst_144 = arith.constant 0.000000e+00 : f32
      %297 = vector.broadcast %cst_144 : f32 to vector<8x128xf32>
      %c0_145 = arith.constant 0 : index
      %c0_146 = arith.constant 0 : index
      %298 = vector.load %arg11[%c0_145, %c0_146] : memref<8x128xf32, #tpu.memory_space<vmem>>, vector<8x128xf32>
      tpu.vector_store %arg11[%c0_145, %c0_146], %297 {strides = array<i32>} : memref<8x128xf32, #tpu.memory_space<vmem>>, vector<8x128xf32>,
    } else {
    }
    %c0 = arith.constant 0 : index
    %c0_1 = arith.constant 0 : index
    %c0_2 = arith.constant 0 : index
    %3 = vector.load %arg2[%c0, %c0_1, %c0_2] : memref<8x8x128xf32, #tpu.memory_space<vmem>>, vector<8x8x128xf32>
    %4 = vector.shape_cast %3 : vector<8x8x128xf32> to vector<64x128xf32>
    %c0_3 = arith.constant 0 : index
    %c0_4 = arith.constant 0 : index
    %5 = vector.load %arg3[%c0_3, %c0_4] : memref<128x512xf32, #tpu.memory_space<vmem>>, vector<128x512xf32>
    %cst = arith.constant dense<0.000000e+00> : vector<64x512xf32>
    %6 = tpu.matmul %4, %5, %cst {dimension_numbers = #tpu.dot_dimension_numbers<[1], [0], [0], [1], [0, 0, 1, 1], [], []>} : vector<64x128xf32>, vector<128x512xf32>, vector<64x512xf32> -> vector<64x512xf32>
    %c0_5 = arith.constant 0 : index
    %c0_6 = arith.constant 0 : index
    %7 = vector.load %arg4[%c0_5, %c0_6] : memref<1x512xf32, #tpu.memory_space<vmem>>, vector<1x512xf32>
    %8 = vector.broadcast %7 : vector<1x512xf32> to vector<64x512xf32>
    %9 = arith.addf %6, %8 : vector<64x512xf32>
    %10 = vector.shape_cast %9 : vector<64x512xf32> to vector<8x8x512xf32>
    %c0_7 = arith.constant 0 : index
    %c0_8 = arith.constant 0 : index
    %c0_9 = arith.constant 0 : index
    %11 = vector.load %arg9[%c0_7, %c0_8, %c0_9] : memref<8x8x512xf32, #tpu.memory_space<vmem>>, vector<8x8x512xf32>
    tpu.vector_store %arg9[%c0_7, %c0_8, %c0_9], %10 {strides = array<i32>} : memref<8x8x512xf32, #tpu.memory_space<vmem>>, vector<8x8x512xf32>,
    %c0_i32_10 = arith.constant 0 : i32
    %12 = arith.index_cast %c0_i32_10 : i32 to index
    %c0_11 = arith.constant 0 : index
    %c0_12 = arith.constant 0 : index
    %13 = vector.load %arg9[%12, %c0_11, %c0_12] : memref<8x8x512xf32, #tpu.memory_space<vmem>>, vector<1x8x512xf32>
    %14 = vector.shape_cast %13 : vector<1x8x512xf32> to vector<8x512xf32>
    %c0_13 = arith.constant 0 : index
    %c0_14 = arith.constant 0 : index
    %15 = vector.load %arg10[%c0_13, %c0_14] : memref<8x128xf32, #tpu.memory_space<vmem>>, vector<8x128xf32>
    %c0_15 = arith.constant 0 : index
    %c0_16 = arith.constant 0 : index
    %16 = vector.load %arg5[%c0_15, %c0_16] : memref<128x512xf32, #tpu.memory_space<vmem>>, vector<128x512xf32>
    %cst_17 = arith.constant dense<0.000000e+00> : vector<8x512xf32>
    %17 = tpu.matmul %15, %16, %cst_17 {dimension_numbers = #tpu.dot_dimension_numbers<[1], [0], [0], [1], [0, 0, 1, 1], [], []>} : vector<8x128xf32>, vector<128x512xf32>, vector<8x512xf32> -> vector<8x512xf32>
    %18 = arith.addf %14, %17 : vector<8x512xf32>
    %19 = vector.extract_strided_slice %18 {offsets = [0, 0], sizes = [8, 128], strides = [1, 1]} : vector<8x512xf32> to vector<8x128xf32>
    %20 = arith.negf %19 : vector<8x128xf32>
    %21 = math.exp %20 : vector<8x128xf32>
    %cst_18 = arith.constant 1.000000e+00 : f32
    %22 = vector.broadcast %cst_18 : f32 to vector<8x128xf32>
    %23 = arith.addf %22, %21 : vector<8x128xf32>
    %24 = arith.divf %22, %23 : vector<8x128xf32>
    %25 = vector.extract_strided_slice %18 {offsets = [0, 128], sizes = [8, 128], strides = [1, 1]} : vector<8x512xf32> to vector<8x128xf32>
    %26 = arith.negf %25 : vector<8x128xf32>
    %27 = math.exp %26 : vector<8x128xf32>
    %cst_19 = arith.constant 1.000000e+00 : f32
    %28 = vector.broadcast %cst_19 : f32 to vector<8x128xf32>
    %29 = arith.addf %28, %27 : vector<8x128xf32>
    %30 = arith.divf %28, %29 : vector<8x128xf32>
    %31 = vector.extract_strided_slice %18 {offsets = [0, 256], sizes = [8, 128], strides = [1, 1]} : vector<8x512xf32> to vector<8x128xf32>
    %32 = math.tanh %31 : vector<8x128xf32>
    %33 = vector.extract_strided_slice %18 {offsets = [0, 384], sizes = [8, 128], strides = [1, 1]} : vector<8x512xf32> to vector<8x128xf32>
    %34 = arith.negf %33 : vector<8x128xf32>
    %35 = math.exp %34 : vector<8x128xf32>
    %cst_20 = arith.constant 1.000000e+00 : f32
    %36 = vector.broadcast %cst_20 : f32 to vector<8x128xf32>
    %37 = arith.addf %36, %35 : vector<8x128xf32>
    %38 = arith.divf %36, %37 : vector<8x128xf32>
    %c0_21 = arith.constant 0 : index
    %c0_22 = arith.constant 0 : index
    %39 = vector.load %arg11[%c0_21, %c0_22] : memref<8x128xf32, #tpu.memory_space<vmem>>, vector<8x128xf32>
    %40 = arith.mulf %30, %39 : vector<8x128xf32>
    %41 = arith.mulf %24, %32 : vector<8x128xf32>
    %42 = arith.addf %40, %41 : vector<8x128xf32>
    %43 = math.tanh %42 : vector<8x128xf32>
    %44 = arith.mulf %38, %43 : vector<8x128xf32>
    %c0_23 = arith.constant 0 : index
    %c0_24 = arith.constant 0 : index
    %45 = vector.load %arg11[%c0_23, %c0_24] : memref<8x128xf32, #tpu.memory_space<vmem>>, vector<8x128xf32>
    tpu.vector_store %arg11[%c0_23, %c0_24], %42 {strides = array<i32>} : memref<8x128xf32, #tpu.memory_space<vmem>>, vector<8x128xf32>,
    %c0_25 = arith.constant 0 : index
    %c0_26 = arith.constant 0 : index
    %46 = vector.load %arg10[%c0_25, %c0_26] : memref<8x128xf32, #tpu.memory_space<vmem>>, vector<8x128xf32>
    tpu.vector_store %arg10[%c0_25, %c0_26], %44 {strides = array<i32>} : memref<8x128xf32, #tpu.memory_space<vmem>>, vector<8x128xf32>,
    %c1_i32 = arith.constant 1 : i32
    %47 = arith.index_cast %c1_i32 : i32 to index
    %c0_27 = arith.constant 0 : index
    %c0_28 = arith.constant 0 : index
    %48 = vector.load %arg9[%47, %c0_27, %c0_28] : memref<8x8x512xf32, #tpu.memory_space<vmem>>, vector<1x8x512xf32>
    %49 = vector.shape_cast %48 : vector<1x8x512xf32> to vector<8x512xf32>
    %c0_29 = arith.constant 0 : index
    %c0_30 = arith.constant 0 : index
    %50 = vector.load %arg10[%c0_29, %c0_30] : memref<8x128xf32, #tpu.memory_space<vmem>>, vector<8x128xf32>
    %c0_31 = arith.constant 0 : index
    %c0_32 = arith.constant 0 : index
    %51 = vector.load %arg5[%c0_31, %c0_32] : memref<128x512xf32, #tpu.memory_space<vmem>>, vector<128x512xf32>
    %cst_33 = arith.constant dense<0.000000e+00> : vector<8x512xf32>
    %52 = tpu.matmul %50, %51, %cst_33 {dimension_numbers = #tpu.dot_dimension_numbers<[1], [0], [0], [1], [0, 0, 1, 1], [], []>} : vector<8x128xf32>, vector<128x512xf32>, vector<8x512xf32> -> vector<8x512xf32>
    %53 = arith.addf %49, %52 : vector<8x512xf32>
    %54 = vector.extract_strided_slice %53 {offsets = [0, 0], sizes = [8, 128], strides = [1, 1]} : vector<8x512xf32> to vector<8x128xf32>
    %55 = arith.negf %54 : vector<8x128xf32>
    %56 = math.exp %55 : vector<8x128xf32>
    %cst_34 = arith.constant 1.000000e+00 : f32
    %57 = vector.broadcast %cst_34 : f32 to vector<8x128xf32>
    %58 = arith.addf %57, %56 : vector<8x128xf32>
    %59 = arith.divf %57, %58 : vector<8x128xf32>
    %60 = vector.extract_strided_slice %53 {offsets = [0, 128], sizes = [8, 128], strides = [1, 1]} : vector<8x512xf32> to vector<8x128xf32>
    %61 = arith.negf %60 : vector<8x128xf32>
    %62 = math.exp %61 : vector<8x128xf32>
    %cst_35 = arith.constant 1.000000e+00 : f32
    %63 = vector.broadcast %cst_35 : f32 to vector<8x128xf32>
    %64 = arith.addf %63, %62 : vector<8x128xf32>
    %65 = arith.divf %63, %64 : vector<8x128xf32>
    %66 = vector.extract_strided_slice %53 {offsets = [0, 256], sizes = [8, 128], strides = [1, 1]} : vector<8x512xf32> to vector<8x128xf32>
    %67 = math.tanh %66 : vector<8x128xf32>
    %68 = vector.extract_strided_slice %53 {offsets = [0, 384], sizes = [8, 128], strides = [1, 1]} : vector<8x512xf32> to vector<8x128xf32>
    %69 = arith.negf %68 : vector<8x128xf32>
    %70 = math.exp %69 : vector<8x128xf32>
    %cst_36 = arith.constant 1.000000e+00 : f32
    %71 = vector.broadcast %cst_36 : f32 to vector<8x128xf32>
    %72 = arith.addf %71, %70 : vector<8x128xf32>
    %73 = arith.divf %71, %72 : vector<8x128xf32>
    %c0_37 = arith.constant 0 : index
    %c0_38 = arith.constant 0 : index
    %74 = vector.load %arg11[%c0_37, %c0_38] : memref<8x128xf32, #tpu.memory_space<vmem>>, vector<8x128xf32>
    %75 = arith.mulf %65, %74 : vector<8x128xf32>
    %76 = arith.mulf %59, %67 : vector<8x128xf32>
    %77 = arith.addf %75, %76 : vector<8x128xf32>
    %78 = math.tanh %77 : vector<8x128xf32>
    %79 = arith.mulf %73, %78 : vector<8x128xf32>
    %c0_39 = arith.constant 0 : index
    %c0_40 = arith.constant 0 : index
    %80 = vector.load %arg11[%c0_39, %c0_40] : memref<8x128xf32, #tpu.memory_space<vmem>>, vector<8x128xf32>
    tpu.vector_store %arg11[%c0_39, %c0_40], %77 {strides = array<i32>} : memref<8x128xf32, #tpu.memory_space<vmem>>, vector<8x128xf32>,
    %c0_41 = arith.constant 0 : index
    %c0_42 = arith.constant 0 : index
    %81 = vector.load %arg10[%c0_41, %c0_42] : memref<8x128xf32, #tpu.memory_space<vmem>>, vector<8x128xf32>
    tpu.vector_store %arg10[%c0_41, %c0_42], %79 {strides = array<i32>} : memref<8x128xf32, #tpu.memory_space<vmem>>, vector<8x128xf32>,
    %c2_i32 = arith.constant 2 : i32
    %82 = arith.index_cast %c2_i32 : i32 to index
    %c0_43 = arith.constant 0 : index
    %c0_44 = arith.constant 0 : index
    %83 = vector.load %arg9[%82, %c0_43, %c0_44] : memref<8x8x512xf32, #tpu.memory_space<vmem>>, vector<1x8x512xf32>
    %84 = vector.shape_cast %83 : vector<1x8x512xf32> to vector<8x512xf32>
    %c0_45 = arith.constant 0 : index
    %c0_46 = arith.constant 0 : index
    %85 = vector.load %arg10[%c0_45, %c0_46] : memref<8x128xf32, #tpu.memory_space<vmem>>, vector<8x128xf32>
    %c0_47 = arith.constant 0 : index
    %c0_48 = arith.constant 0 : index
    %86 = vector.load %arg5[%c0_47, %c0_48] : memref<128x512xf32, #tpu.memory_space<vmem>>, vector<128x512xf32>
    %cst_49 = arith.constant dense<0.000000e+00> : vector<8x512xf32>
    %87 = tpu.matmul %85, %86, %cst_49 {dimension_numbers = #tpu.dot_dimension_numbers<[1], [0], [0], [1], [0, 0, 1, 1], [], []>} : vector<8x128xf32>, vector<128x512xf32>, vector<8x512xf32> -> vector<8x512xf32>
    %88 = arith.addf %84, %87 : vector<8x512xf32>
    %89 = vector.extract_strided_slice %88 {offsets = [0, 0], sizes = [8, 128], strides = [1, 1]} : vector<8x512xf32> to vector<8x128xf32>
    %90 = arith.negf %89 : vector<8x128xf32>
    %91 = math.exp %90 : vector<8x128xf32>
    %cst_50 = arith.constant 1.000000e+00 : f32
    %92 = vector.broadcast %cst_50 : f32 to vector<8x128xf32>
    %93 = arith.addf %92, %91 : vector<8x128xf32>
    %94 = arith.divf %92, %93 : vector<8x128xf32>
    %95 = vector.extract_strided_slice %88 {offsets = [0, 128], sizes = [8, 128], strides = [1, 1]} : vector<8x512xf32> to vector<8x128xf32>
    %96 = arith.negf %95 : vector<8x128xf32>
    %97 = math.exp %96 : vector<8x128xf32>
    %cst_51 = arith.constant 1.000000e+00 : f32
    %98 = vector.broadcast %cst_51 : f32 to vector<8x128xf32>
    %99 = arith.addf %98, %97 : vector<8x128xf32>
    %100 = arith.divf %98, %99 : vector<8x128xf32>
    %101 = vector.extract_strided_slice %88 {offsets = [0, 256], sizes = [8, 128], strides = [1, 1]} : vector<8x512xf32> to vector<8x128xf32>
    %102 = math.tanh %101 : vector<8x128xf32>
    %103 = vector.extract_strided_slice %88 {offsets = [0, 384], sizes = [8, 128], strides = [1, 1]} : vector<8x512xf32> to vector<8x128xf32>
    %104 = arith.negf %103 : vector<8x128xf32>
    %105 = math.exp %104 : vector<8x128xf32>
    %cst_52 = arith.constant 1.000000e+00 : f32
    %106 = vector.broadcast %cst_52 : f32 to vector<8x128xf32>
    %107 = arith.addf %106, %105 : vector<8x128xf32>
    %108 = arith.divf %106, %107 : vector<8x128xf32>
    %c0_53 = arith.constant 0 : index
    %c0_54 = arith.constant 0 : index
    %109 = vector.load %arg11[%c0_53, %c0_54] : memref<8x128xf32, #tpu.memory_space<vmem>>, vector<8x128xf32>
    %110 = arith.mulf %100, %109 : vector<8x128xf32>
    %111 = arith.mulf %94, %102 : vector<8x128xf32>
    %112 = arith.addf %110, %111 : vector<8x128xf32>
    %113 = math.tanh %112 : vector<8x128xf32>
    %114 = arith.mulf %108, %113 : vector<8x128xf32>
    %c0_55 = arith.constant 0 : index
    %c0_56 = arith.constant 0 : index
    %115 = vector.load %arg11[%c0_55, %c0_56] : memref<8x128xf32, #tpu.memory_space<vmem>>, vector<8x128xf32>
    tpu.vector_store %arg11[%c0_55, %c0_56], %112 {strides = array<i32>} : memref<8x128xf32, #tpu.memory_space<vmem>>, vector<8x128xf32>,
    %c0_57 = arith.constant 0 : index
    %c0_58 = arith.constant 0 : index
    %116 = vector.load %arg10[%c0_57, %c0_58] : memref<8x128xf32, #tpu.memory_space<vmem>>, vector<8x128xf32>
    tpu.vector_store %arg10[%c0_57, %c0_58], %114 {strides = array<i32>} : memref<8x128xf32, #tpu.memory_space<vmem>>, vector<8x128xf32>,
    %c3_i32 = arith.constant 3 : i32
    %117 = arith.index_cast %c3_i32 : i32 to index
    %c0_59 = arith.constant 0 : index
    %c0_60 = arith.constant 0 : index
    %118 = vector.load %arg9[%117, %c0_59, %c0_60] : memref<8x8x512xf32, #tpu.memory_space<vmem>>, vector<1x8x512xf32>
    %119 = vector.shape_cast %118 : vector<1x8x512xf32> to vector<8x512xf32>
    %c0_61 = arith.constant 0 : index
    %c0_62 = arith.constant 0 : index
    %120 = vector.load %arg10[%c0_61, %c0_62] : memref<8x128xf32, #tpu.memory_space<vmem>>, vector<8x128xf32>
    %c0_63 = arith.constant 0 : index
    %c0_64 = arith.constant 0 : index
    %121 = vector.load %arg5[%c0_63, %c0_64] : memref<128x512xf32, #tpu.memory_space<vmem>>, vector<128x512xf32>
    %cst_65 = arith.constant dense<0.000000e+00> : vector<8x512xf32>
    %122 = tpu.matmul %120, %121, %cst_65 {dimension_numbers = #tpu.dot_dimension_numbers<[1], [0], [0], [1], [0, 0, 1, 1], [], []>} : vector<8x128xf32>, vector<128x512xf32>, vector<8x512xf32> -> vector<8x512xf32>
    %123 = arith.addf %119, %122 : vector<8x512xf32>
    %124 = vector.extract_strided_slice %123 {offsets = [0, 0], sizes = [8, 128], strides = [1, 1]} : vector<8x512xf32> to vector<8x128xf32>
    %125 = arith.negf %124 : vector<8x128xf32>
    %126 = math.exp %125 : vector<8x128xf32>
    %cst_66 = arith.constant 1.000000e+00 : f32
    %127 = vector.broadcast %cst_66 : f32 to vector<8x128xf32>
    %128 = arith.addf %127, %126 : vector<8x128xf32>
    %129 = arith.divf %127, %128 : vector<8x128xf32>
    %130 = vector.extract_strided_slice %123 {offsets = [0, 128], sizes = [8, 128], strides = [1, 1]} : vector<8x512xf32> to vector<8x128xf32>
    %131 = arith.negf %130 : vector<8x128xf32>
    %132 = math.exp %131 : vector<8x128xf32>
    %cst_67 = arith.constant 1.000000e+00 : f32
    %133 = vector.broadcast %cst_67 : f32 to vector<8x128xf32>
    %134 = arith.addf %133, %132 : vector<8x128xf32>
    %135 = arith.divf %133, %134 : vector<8x128xf32>
    %136 = vector.extract_strided_slice %123 {offsets = [0, 256], sizes = [8, 128], strides = [1, 1]} : vector<8x512xf32> to vector<8x128xf32>
    %137 = math.tanh %136 : vector<8x128xf32>
    %138 = vector.extract_strided_slice %123 {offsets = [0, 384], sizes = [8, 128], strides = [1, 1]} : vector<8x512xf32> to vector<8x128xf32>
    %139 = arith.negf %138 : vector<8x128xf32>
    %140 = math.exp %139 : vector<8x128xf32>
    %cst_68 = arith.constant 1.000000e+00 : f32
    %141 = vector.broadcast %cst_68 : f32 to vector<8x128xf32>
    %142 = arith.addf %141, %140 : vector<8x128xf32>
    %143 = arith.divf %141, %142 : vector<8x128xf32>
    %c0_69 = arith.constant 0 : index
    %c0_70 = arith.constant 0 : index
    %144 = vector.load %arg11[%c0_69, %c0_70] : memref<8x128xf32, #tpu.memory_space<vmem>>, vector<8x128xf32>
    %145 = arith.mulf %135, %144 : vector<8x128xf32>
    %146 = arith.mulf %129, %137 : vector<8x128xf32>
    %147 = arith.addf %145, %146 : vector<8x128xf32>
    %148 = math.tanh %147 : vector<8x128xf32>
    %149 = arith.mulf %143, %148 : vector<8x128xf32>
    %c0_71 = arith.constant 0 : index
    %c0_72 = arith.constant 0 : index
    %150 = vector.load %arg11[%c0_71, %c0_72] : memref<8x128xf32, #tpu.memory_space<vmem>>, vector<8x128xf32>
    tpu.vector_store %arg11[%c0_71, %c0_72], %147 {strides = array<i32>} : memref<8x128xf32, #tpu.memory_space<vmem>>, vector<8x128xf32>,
    %c0_73 = arith.constant 0 : index
    %c0_74 = arith.constant 0 : index
    %151 = vector.load %arg10[%c0_73, %c0_74] : memref<8x128xf32, #tpu.memory_space<vmem>>, vector<8x128xf32>
    tpu.vector_store %arg10[%c0_73, %c0_74], %149 {strides = array<i32>} : memref<8x128xf32, #tpu.memory_space<vmem>>, vector<8x128xf32>,
    %c4_i32 = arith.constant 4 : i32
    %152 = arith.index_cast %c4_i32 : i32 to index
    %c0_75 = arith.constant 0 : index
    %c0_76 = arith.constant 0 : index
    %153 = vector.load %arg9[%152, %c0_75, %c0_76] : memref<8x8x512xf32, #tpu.memory_space<vmem>>, vector<1x8x512xf32>
    %154 = vector.shape_cast %153 : vector<1x8x512xf32> to vector<8x512xf32>
    %c0_77 = arith.constant 0 : index
    %c0_78 = arith.constant 0 : index
    %155 = vector.load %arg10[%c0_77, %c0_78] : memref<8x128xf32, #tpu.memory_space<vmem>>, vector<8x128xf32>
    %c0_79 = arith.constant 0 : index
    %c0_80 = arith.constant 0 : index
    %156 = vector.load %arg5[%c0_79, %c0_80] : memref<128x512xf32, #tpu.memory_space<vmem>>, vector<128x512xf32>
    %cst_81 = arith.constant dense<0.000000e+00> : vector<8x512xf32>
    %157 = tpu.matmul %155, %156, %cst_81 {dimension_numbers = #tpu.dot_dimension_numbers<[1], [0], [0], [1], [0, 0, 1, 1], [], []>} : vector<8x128xf32>, vector<128x512xf32>, vector<8x512xf32> -> vector<8x512xf32>
    %158 = arith.addf %154, %157 : vector<8x512xf32>
    %159 = vector.extract_strided_slice %158 {offsets = [0, 0], sizes = [8, 128], strides = [1, 1]} : vector<8x512xf32> to vector<8x128xf32>
    %160 = arith.negf %159 : vector<8x128xf32>
    %161 = math.exp %160 : vector<8x128xf32>
    %cst_82 = arith.constant 1.000000e+00 : f32
    %162 = vector.broadcast %cst_82 : f32 to vector<8x128xf32>
    %163 = arith.addf %162, %161 : vector<8x128xf32>
    %164 = arith.divf %162, %163 : vector<8x128xf32>
    %165 = vector.extract_strided_slice %158 {offsets = [0, 128], sizes = [8, 128], strides = [1, 1]} : vector<8x512xf32> to vector<8x128xf32>
    %166 = arith.negf %165 : vector<8x128xf32>
    %167 = math.exp %166 : vector<8x128xf32>
    %cst_83 = arith.constant 1.000000e+00 : f32
    %168 = vector.broadcast %cst_83 : f32 to vector<8x128xf32>
    %169 = arith.addf %168, %167 : vector<8x128xf32>
    %170 = arith.divf %168, %169 : vector<8x128xf32>
    %171 = vector.extract_strided_slice %158 {offsets = [0, 256], sizes = [8, 128], strides = [1, 1]} : vector<8x512xf32> to vector<8x128xf32>
    %172 = math.tanh %171 : vector<8x128xf32>
    %173 = vector.extract_strided_slice %158 {offsets = [0, 384], sizes = [8, 128], strides = [1, 1]} : vector<8x512xf32> to vector<8x128xf32>
    %174 = arith.negf %173 : vector<8x128xf32>
    %175 = math.exp %174 : vector<8x128xf32>
    %cst_84 = arith.constant 1.000000e+00 : f32
    %176 = vector.broadcast %cst_84 : f32 to vector<8x128xf32>
    %177 = arith.addf %176, %175 : vector<8x128xf32>
    %178 = arith.divf %176, %177 : vector<8x128xf32>
    %c0_85 = arith.constant 0 : index
    %c0_86 = arith.constant 0 : index
    %179 = vector.load %arg11[%c0_85, %c0_86] : memref<8x128xf32, #tpu.memory_space<vmem>>, vector<8x128xf32>
    %180 = arith.mulf %170, %179 : vector<8x128xf32>
    %181 = arith.mulf %164, %172 : vector<8x128xf32>
    %182 = arith.addf %180, %181 : vector<8x128xf32>
    %183 = math.tanh %182 : vector<8x128xf32>
    %184 = arith.mulf %178, %183 : vector<8x128xf32>
    %c0_87 = arith.constant 0 : index
    %c0_88 = arith.constant 0 : index
    %185 = vector.load %arg11[%c0_87, %c0_88] : memref<8x128xf32, #tpu.memory_space<vmem>>, vector<8x128xf32>
    tpu.vector_store %arg11[%c0_87, %c0_88], %182 {strides = array<i32>} : memref<8x128xf32, #tpu.memory_space<vmem>>, vector<8x128xf32>,
    %c0_89 = arith.constant 0 : index
    %c0_90 = arith.constant 0 : index
    %186 = vector.load %arg10[%c0_89, %c0_90] : memref<8x128xf32, #tpu.memory_space<vmem>>, vector<8x128xf32>
    tpu.vector_store %arg10[%c0_89, %c0_90], %184 {strides = array<i32>} : memref<8x128xf32, #tpu.memory_space<vmem>>, vector<8x128xf32>,
    %c5_i32 = arith.constant 5 : i32
    %187 = arith.index_cast %c5_i32 : i32 to index
    %c0_91 = arith.constant 0 : index
    %c0_92 = arith.constant 0 : index
    %188 = vector.load %arg9[%187, %c0_91, %c0_92] : memref<8x8x512xf32, #tpu.memory_space<vmem>>, vector<1x8x512xf32>
    %189 = vector.shape_cast %188 : vector<1x8x512xf32> to vector<8x512xf32>
    %c0_93 = arith.constant 0 : index
    %c0_94 = arith.constant 0 : index
    %190 = vector.load %arg10[%c0_93, %c0_94] : memref<8x128xf32, #tpu.memory_space<vmem>>, vector<8x128xf32>
    %c0_95 = arith.constant 0 : index
    %c0_96 = arith.constant 0 : index
    %191 = vector.load %arg5[%c0_95, %c0_96] : memref<128x512xf32, #tpu.memory_space<vmem>>, vector<128x512xf32>
    %cst_97 = arith.constant dense<0.000000e+00> : vector<8x512xf32>
    %192 = tpu.matmul %190, %191, %cst_97 {dimension_numbers = #tpu.dot_dimension_numbers<[1], [0], [0], [1], [0, 0, 1, 1], [], []>} : vector<8x128xf32>, vector<128x512xf32>, vector<8x512xf32> -> vector<8x512xf32>
    %193 = arith.addf %189, %192 : vector<8x512xf32>
    %194 = vector.extract_strided_slice %193 {offsets = [0, 0], sizes = [8, 128], strides = [1, 1]} : vector<8x512xf32> to vector<8x128xf32>
    %195 = arith.negf %194 : vector<8x128xf32>
    %196 = math.exp %195 : vector<8x128xf32>
    %cst_98 = arith.constant 1.000000e+00 : f32
    %197 = vector.broadcast %cst_98 : f32 to vector<8x128xf32>
    %198 = arith.addf %197, %196 : vector<8x128xf32>
    %199 = arith.divf %197, %198 : vector<8x128xf32>
    %200 = vector.extract_strided_slice %193 {offsets = [0, 128], sizes = [8, 128], strides = [1, 1]} : vector<8x512xf32> to vector<8x128xf32>
    %201 = arith.negf %200 : vector<8x128xf32>
    %202 = math.exp %201 : vector<8x128xf32>
    %cst_99 = arith.constant 1.000000e+00 : f32
    %203 = vector.broadcast %cst_99 : f32 to vector<8x128xf32>
    %204 = arith.addf %203, %202 : vector<8x128xf32>
    %205 = arith.divf %203, %204 : vector<8x128xf32>
    %206 = vector.extract_strided_slice %193 {offsets = [0, 256], sizes = [8, 128], strides = [1, 1]} : vector<8x512xf32> to vector<8x128xf32>
    %207 = math.tanh %206 : vector<8x128xf32>
    %208 = vector.extract_strided_slice %193 {offsets = [0, 384], sizes = [8, 128], strides = [1, 1]} : vector<8x512xf32> to vector<8x128xf32>
    %209 = arith.negf %208 : vector<8x128xf32>
    %210 = math.exp %209 : vector<8x128xf32>
    %cst_100 = arith.constant 1.000000e+00 : f32
    %211 = vector.broadcast %cst_100 : f32 to vector<8x128xf32>
    %212 = arith.addf %211, %210 : vector<8x128xf32>
    %213 = arith.divf %211, %212 : vector<8x128xf32>
    %c0_101 = arith.constant 0 : index
    %c0_102 = arith.constant 0 : index
    %214 = vector.load %arg11[%c0_101, %c0_102] : memref<8x128xf32, #tpu.memory_space<vmem>>, vector<8x128xf32>
    %215 = arith.mulf %205, %214 : vector<8x128xf32>
    %216 = arith.mulf %199, %207 : vector<8x128xf32>
    %217 = arith.addf %215, %216 : vector<8x128xf32>
    %218 = math.tanh %217 : vector<8x128xf32>
    %219 = arith.mulf %213, %218 : vector<8x128xf32>
    %c0_103 = arith.constant 0 : index
    %c0_104 = arith.constant 0 : index
    %220 = vector.load %arg11[%c0_103, %c0_104] : memref<8x128xf32, #tpu.memory_space<vmem>>, vector<8x128xf32>
    tpu.vector_store %arg11[%c0_103, %c0_104], %217 {strides = array<i32>} : memref<8x128xf32, #tpu.memory_space<vmem>>, vector<8x128xf32>,
    %c0_105 = arith.constant 0 : index
    %c0_106 = arith.constant 0 : index
    %221 = vector.load %arg10[%c0_105, %c0_106] : memref<8x128xf32, #tpu.memory_space<vmem>>, vector<8x128xf32>
    tpu.vector_store %arg10[%c0_105, %c0_106], %219 {strides = array<i32>} : memref<8x128xf32, #tpu.memory_space<vmem>>, vector<8x128xf32>,
    %c6_i32 = arith.constant 6 : i32
    %222 = arith.index_cast %c6_i32 : i32 to index
    %c0_107 = arith.constant 0 : index
    %c0_108 = arith.constant 0 : index
    %223 = vector.load %arg9[%222, %c0_107, %c0_108] : memref<8x8x512xf32, #tpu.memory_space<vmem>>, vector<1x8x512xf32>
    %224 = vector.shape_cast %223 : vector<1x8x512xf32> to vector<8x512xf32>
    %c0_109 = arith.constant 0 : index
    %c0_110 = arith.constant 0 : index
    %225 = vector.load %arg10[%c0_109, %c0_110] : memref<8x128xf32, #tpu.memory_space<vmem>>, vector<8x128xf32>
    %c0_111 = arith.constant 0 : index
    %c0_112 = arith.constant 0 : index
    %226 = vector.load %arg5[%c0_111, %c0_112] : memref<128x512xf32, #tpu.memory_space<vmem>>, vector<128x512xf32>
    %cst_113 = arith.constant dense<0.000000e+00> : vector<8x512xf32>
    %227 = tpu.matmul %225, %226, %cst_113 {dimension_numbers = #tpu.dot_dimension_numbers<[1], [0], [0], [1], [0, 0, 1, 1], [], []>} : vector<8x128xf32>, vector<128x512xf32>, vector<8x512xf32> -> vector<8x512xf32>
    %228 = arith.addf %224, %227 : vector<8x512xf32>
    %229 = vector.extract_strided_slice %228 {offsets = [0, 0], sizes = [8, 128], strides = [1, 1]} : vector<8x512xf32> to vector<8x128xf32>
    %230 = arith.negf %229 : vector<8x128xf32>
    %231 = math.exp %230 : vector<8x128xf32>
    %cst_114 = arith.constant 1.000000e+00 : f32
    %232 = vector.broadcast %cst_114 : f32 to vector<8x128xf32>
    %233 = arith.addf %232, %231 : vector<8x128xf32>
    %234 = arith.divf %232, %233 : vector<8x128xf32>
    %235 = vector.extract_strided_slice %228 {offsets = [0, 128], sizes = [8, 128], strides = [1, 1]} : vector<8x512xf32> to vector<8x128xf32>
    %236 = arith.negf %235 : vector<8x128xf32>
    %237 = math.exp %236 : vector<8x128xf32>
    %cst_115 = arith.constant 1.000000e+00 : f32
    %238 = vector.broadcast %cst_115 : f32 to vector<8x128xf32>
    %239 = arith.addf %238, %237 : vector<8x128xf32>
    %240 = arith.divf %238, %239 : vector<8x128xf32>
    %241 = vector.extract_strided_slice %228 {offsets = [0, 256], sizes = [8, 128], strides = [1, 1]} : vector<8x512xf32> to vector<8x128xf32>
    %242 = math.tanh %241 : vector<8x128xf32>
    %243 = vector.extract_strided_slice %228 {offsets = [0, 384], sizes = [8, 128], strides = [1, 1]} : vector<8x512xf32> to vector<8x128xf32>
    %244 = arith.negf %243 : vector<8x128xf32>
    %245 = math.exp %244 : vector<8x128xf32>
    %cst_116 = arith.constant 1.000000e+00 : f32
    %246 = vector.broadcast %cst_116 : f32 to vector<8x128xf32>
    %247 = arith.addf %246, %245 : vector<8x128xf32>
    %248 = arith.divf %246, %247 : vector<8x128xf32>
    %c0_117 = arith.constant 0 : index
    %c0_118 = arith.constant 0 : index
    %249 = vector.load %arg11[%c0_117, %c0_118] : memref<8x128xf32, #tpu.memory_space<vmem>>, vector<8x128xf32>
    %250 = arith.mulf %240, %249 : vector<8x128xf32>
    %251 = arith.mulf %234, %242 : vector<8x128xf32>
    %252 = arith.addf %250, %251 : vector<8x128xf32>
    %253 = math.tanh %252 : vector<8x128xf32>
    %254 = arith.mulf %248, %253 : vector<8x128xf32>
    %c0_119 = arith.constant 0 : index
    %c0_120 = arith.constant 0 : index
    %255 = vector.load %arg11[%c0_119, %c0_120] : memref<8x128xf32, #tpu.memory_space<vmem>>, vector<8x128xf32>
    tpu.vector_store %arg11[%c0_119, %c0_120], %252 {strides = array<i32>} : memref<8x128xf32, #tpu.memory_space<vmem>>, vector<8x128xf32>,
    %c0_121 = arith.constant 0 : index
    %c0_122 = arith.constant 0 : index
    %256 = vector.load %arg10[%c0_121, %c0_122] : memref<8x128xf32, #tpu.memory_space<vmem>>, vector<8x128xf32>
    tpu.vector_store %arg10[%c0_121, %c0_122], %254 {strides = array<i32>} : memref<8x128xf32, #tpu.memory_space<vmem>>, vector<8x128xf32>,
    %c7_i32 = arith.constant 7 : i32
    %257 = arith.index_cast %c7_i32 : i32 to index
    %c0_123 = arith.constant 0 : index
    %c0_124 = arith.constant 0 : index
    %258 = vector.load %arg9[%257, %c0_123, %c0_124] : memref<8x8x512xf32, #tpu.memory_space<vmem>>, vector<1x8x512xf32>
    %259 = vector.shape_cast %258 : vector<1x8x512xf32> to vector<8x512xf32>
    %c0_125 = arith.constant 0 : index
    %c0_126 = arith.constant 0 : index
    %260 = vector.load %arg10[%c0_125, %c0_126] : memref<8x128xf32, #tpu.memory_space<vmem>>, vector<8x128xf32>
    %c0_127 = arith.constant 0 : index
    %c0_128 = arith.constant 0 : index
    %261 = vector.load %arg5[%c0_127, %c0_128] : memref<128x512xf32, #tpu.memory_space<vmem>>, vector<128x512xf32>
    %cst_129 = arith.constant dense<0.000000e+00> : vector<8x512xf32>
    %262 = tpu.matmul %260, %261, %cst_129 {dimension_numbers = #tpu.dot_dimension_numbers<[1], [0], [0], [1], [0, 0, 1, 1], [], []>} : vector<8x128xf32>, vector<128x512xf32>, vector<8x512xf32> -> vector<8x512xf32>
    %263 = arith.addf %259, %262 : vector<8x512xf32>
    %264 = vector.extract_strided_slice %263 {offsets = [0, 0], sizes = [8, 128], strides = [1, 1]} : vector<8x512xf32> to vector<8x128xf32>
    %265 = arith.negf %264 : vector<8x128xf32>
    %266 = math.exp %265 : vector<8x128xf32>
    %cst_130 = arith.constant 1.000000e+00 : f32
    %267 = vector.broadcast %cst_130 : f32 to vector<8x128xf32>
    %268 = arith.addf %267, %266 : vector<8x128xf32>
    %269 = arith.divf %267, %268 : vector<8x128xf32>
    %270 = vector.extract_strided_slice %263 {offsets = [0, 128], sizes = [8, 128], strides = [1, 1]} : vector<8x512xf32> to vector<8x128xf32>
    %271 = arith.negf %270 : vector<8x128xf32>
    %272 = math.exp %271 : vector<8x128xf32>
    %cst_131 = arith.constant 1.000000e+00 : f32
    %273 = vector.broadcast %cst_131 : f32 to vector<8x128xf32>
    %274 = arith.addf %273, %272 : vector<8x128xf32>
    %275 = arith.divf %273, %274 : vector<8x128xf32>
    %276 = vector.extract_strided_slice %263 {offsets = [0, 256], sizes = [8, 128], strides = [1, 1]} : vector<8x512xf32> to vector<8x128xf32>
    %277 = math.tanh %276 : vector<8x128xf32>
    %278 = vector.extract_strided_slice %263 {offsets = [0, 384], sizes = [8, 128], strides = [1, 1]} : vector<8x512xf32> to vector<8x128xf32>
    %279 = arith.negf %278 : vector<8x128xf32>
    %280 = math.exp %279 : vector<8x128xf32>
    %cst_132 = arith.constant 1.000000e+00 : f32
    %281 = vector.broadcast %cst_132 : f32 to vector<8x128xf32>
    %282 = arith.addf %281, %280 : vector<8x128xf32>
    %283 = arith.divf %281, %282 : vector<8x128xf32>
    %c0_133 = arith.constant 0 : index
    %c0_134 = arith.constant 0 : index
    %284 = vector.load %arg11[%c0_133, %c0_134] : memref<8x128xf32, #tpu.memory_space<vmem>>, vector<8x128xf32>
    %285 = arith.mulf %275, %284 : vector<8x128xf32>
    %286 = arith.mulf %269, %277 : vector<8x128xf32>
    %287 = arith.addf %285, %286 : vector<8x128xf32>
    %288 = math.tanh %287 : vector<8x128xf32>
    %289 = arith.mulf %283, %288 : vector<8x128xf32>
    %c0_135 = arith.constant 0 : index
    %c0_136 = arith.constant 0 : index
    %290 = vector.load %arg11[%c0_135, %c0_136] : memref<8x128xf32, #tpu.memory_space<vmem>>, vector<8x128xf32>
    tpu.vector_store %arg11[%c0_135, %c0_136], %287 {strides = array<i32>} : memref<8x128xf32, #tpu.memory_space<vmem>>, vector<8x128xf32>,
    %c0_137 = arith.constant 0 : index
    %c0_138 = arith.constant 0 : index
    %291 = vector.load %arg10[%c0_137, %c0_138] : memref<8x128xf32, #tpu.memory_space<vmem>>, vector<8x128xf32>
    tpu.vector_store %arg10[%c0_137, %c0_138], %289 {strides = array<i32>} : memref<8x128xf32, #tpu.memory_space<vmem>>, vector<8x128xf32>,
    %c8_i32 = arith.constant 8 : i32
    %c0_i32_139 = arith.constant 0 : i32
    %292 = arith.cmpi eq, %arg1, %c0_i32_139 : i32
    %293 = arith.extui %292 : i1 to i32
    %c0_i32_140 = arith.constant 0 : i32
    %294 = arith.cmpi ne, %293, %c0_i32_140 : i32
    scf.if %294 {
      %c0_141 = arith.constant 0 : index
      %c0_142 = arith.constant 0 : index
      %295 = vector.load %arg10[%c0_141, %c0_142] : memref<8x128xf32, #tpu.memory_space<vmem>>, vector<8x128xf32>
      %c0_143 = arith.constant 0 : index
      %c0_144 = arith.constant 0 : index
      %296 = vector.load %arg6[%c0_143, %c0_144] : memref<128x128xf32, #tpu.memory_space<vmem>>, vector<128x128xf32>
      %cst_145 = arith.constant dense<0.000000e+00> : vector<8x128xf32>
      %297 = tpu.matmul %295, %296, %cst_145 {dimension_numbers = #tpu.dot_dimension_numbers<[1], [0], [0], [1], [0, 0, 1, 1], [], []>} : vector<8x128xf32>, vector<128x128xf32>, vector<8x128xf32> -> vector<8x128xf32>
      %c0_146 = arith.constant 0 : index
      %c0_147 = arith.constant 0 : index
      %298 = vector.load %arg7[%c0_146, %c0_147] : memref<1x128xf32, #tpu.memory_space<vmem>>, vector<1x128xf32>
      %299 = vector.broadcast %298 : vector<1x128xf32> to vector<8x128xf32>
      %300 = arith.addf %297, %299 : vector<8x128xf32>
      %c0_148 = arith.constant 0 : index
      %c0_149 = arith.constant 0 : index
      %301 = vector.load %arg8[%c0_148, %c0_149] : memref<8x128xf32, #tpu.memory_space<vmem>>, vector<8x128xf32>
      tpu.vector_store %arg8[%c0_148, %c0_149], %300 {strides = array<i32>} : memref<8x128xf32, #tpu.memory_space<vmem>>, vector<8x128xf32>,
    } else {
    }
    return
  }
  func.func @transform_0(%arg0: i32, %arg1: i32) -> (i32, i32, i32) {
    %c0_i32 = arith.constant 0 : i32
    %c0_i32_0 = arith.constant 0 : i32
    return %arg1, %arg0, %c0_i32 : i32, i32, i32
  }
  func.func @transform_1(%arg0: i32, %arg1: i32) -> (i32, i32) {
    %c0_i32 = arith.constant 0 : i32
    %c0_i32_0 = arith.constant 0 : i32
    %c0_i32_1 = arith.constant 0 : i32
    return %c0_i32, %c0_i32_0 : i32, i32
  }
  func.func @transform_2(%arg0: i32, %arg1: i32) -> (i32, i32) {
    %c0_i32 = arith.constant 0 : i32
    %c0_i32_0 = arith.constant 0 : i32
    %c0_i32_1 = arith.constant 0 : i32
    return %c0_i32, %c0_i32_0 : i32, i32
  }
  func.func @transform_3(%arg0: i32, %arg1: i32) -> (i32, i32) {
    %c0_i32 = arith.constant 0 : i32
    %c0_i32_0 = arith.constant 0 : i32
    %c0_i32_1 = arith.constant 0 : i32
    return %c0_i32, %c0_i32_0 : i32, i32
  }
  func.func @transform_4(%arg0: i32, %arg1: i32) -> (i32, i32) {
    %c0_i32 = arith.constant 0 : i32
    %c0_i32_0 = arith.constant 0 : i32
    %c0_i32_1 = arith.constant 0 : i32
    return %c0_i32, %c0_i32_0 : i32, i32
  }
  func.func @transform_5(%arg0: i32, %arg1: i32) -> (i32, i32) {
    %c0_i32 = arith.constant 0 : i32
    %c0_i32_0 = arith.constant 0 : i32
    %c0_i32_1 = arith.constant 0 : i32
    return %c0_i32, %c0_i32_0 : i32, i32
  }
  func.func @transform_6(%arg0: i32, %arg1: i32) -> (i32, i32) {
    %c0_i32 = arith.constant 0 : i32
    %c0_i32_0 = arith.constant 0 : i32
    return %arg0, %c0_i32 : i32, i32
  }
}

</mosaic_0001>

<llo_original>
// kernel: text_lstm_forward.3
$region0: #{text_lstm_forward.3}
  #allocation0 [shape = 'u32[]', space=smem, size = 0x4, offset = 0x4, fixed_abs, tag = 'smem constant byte address 0x4 - core index']
  #allocation1 [shape = 'u32[144,128]{1,0:T(1,128)}', space=vmem, size = 0x12000, scoped, tag = 'internal scratch']
  #allocation2 [shape = 'f32[8,8,512]{2,1,0:T(8,128)}', space=vmem, size = 0x20000, scoped, tag = 'scratch operand']
  #allocation3 [shape = 'f32[8,128]{1,0:T(8,128)}', space=vmem, size = 0x1000, scoped, tag = 'scratch operand']
  #allocation4 [shape = 'f32[8,128]{1,0:T(8,128)}', space=vmem, size = 0x1000, scoped, tag = 'scratch operand']
  %s0 = inlined_call_operand.vmem [shape: f32[8,8,128], index: 0, kind: input, shape index: {}]
  %s1 = inlined_call_operand.vmem [shape: f32[128,512], index: 1, kind: input, shape index: {}]
  %s2 = inlined_call_operand.vmem [shape: f32[1,512], index: 2, kind: input, shape index: {}]
  %s3 = inlined_call_operand.vmem [shape: f32[128,512], index: 3, kind: input, shape index: {}]
  %s4 = inlined_call_operand.vmem [shape: f32[128,128], index: 4, kind: input, shape index: {}]
  %s5 = inlined_call_operand.vmem [shape: f32[1,128], index: 5, kind: input, shape index: {}]
  %s6 = inlined_call_operand.vmem [shape: f32[8,128], index: 6, kind: output, shape index: {}]
  %s7 = sld [smem:[#allocation0]]
  $region42: #{text_lstm_forward.3} parent=0
    _
  %s9 = ssub.s32 1, %s7
  %s10 = scalar_select 0, %s9, %s7
  // Predicated region
  $region2: #{text_lstm_forward.3} parent=0 // pred_check
    _
  $region3: #{text_lstm_forward.3} parent=0 // pred_check_branch
    %12 = sbr.rel (0) target = $region5
  $region4: #{text_lstm_forward.3} parent=0 // pred_region
    _
  $region5: #{text_lstm_forward.3} parent=0 // pred_fallthru
    _
  // Predicated region
  $region6: #{text_lstm_forward.3} parent=0 // pred_check
    _
  $region7: #{text_lstm_forward.3} parent=0 // pred_check_branch
    %14 = sbr.rel (0) target = $region9
  $region8: #{text_lstm_forward.3} parent=0 // pred_region
    _
  $region9: #{text_lstm_forward.3} parent=0 // pred_fallthru
    _
  // Predicated region
  $region10: #{text_lstm_forward.3} parent=0 // pred_check
    _
  $region11: #{text_lstm_forward.3} parent=0 // pred_check_branch
    %16 = sbr.rel (0) target = $region13
  $region12: #{text_lstm_forward.3} parent=0 // pred_region
    _
  $region13: #{text_lstm_forward.3} parent=0 // pred_fallthru
    _
  // Predicated region
  $region14: #{text_lstm_forward.3} parent=0 // pred_check
    _
  $region15: #{text_lstm_forward.3} parent=0 // pred_check_branch
    %18 = sbr.rel (0) target = $region17
  $region16: #{text_lstm_forward.3} parent=0 // pred_region
    _
  $region17: #{text_lstm_forward.3} parent=0 // pred_fallthru
    _
  // Predicated region
  $region18: #{text_lstm_forward.3} parent=0 // pred_check
    _
  $region19: #{text_lstm_forward.3} parent=0 // pred_check_branch
    %20 = sbr.rel (0) target = $region21
  $region20: #{text_lstm_forward.3} parent=0 // pred_region
    _
  $region21: #{text_lstm_forward.3} parent=0 // pred_fallthru
    _
  // Predicated region
  $region22: #{text_lstm_forward.3} parent=0 // pred_check
    _
  $region23: #{text_lstm_forward.3} parent=0 // pred_check_branch
    %22 = sbr.rel (0) target = $region25
  $region24: #{text_lstm_forward.3} parent=0 // pred_region
    _
  $region25: #{text_lstm_forward.3} parent=0 // pred_fallthru
    _
  %p23 = scmp.eq.s32.totalorder 0, 0
  // Predicated region
  $region26: #{text_lstm_forward.3} parent=0 // pred_check
    %p24 = pneg %p23
  $region27: #{text_lstm_forward.3} parent=0 // pred_check_branch
    %26 = sbr.rel (%p24) target = $region29
  $region28: #{text_lstm_forward.3} parent=0 // pred_region
    %27 = vst [vmem:[#allocation3] sm:$0xff] 0.0
    %28 = vst [vmem:[#allocation4] sm:$0xff] 0.0
  $region29: #{text_lstm_forward.3} parent=0 // pred_fallthru
    _
  %v29 = vld [vmem:[%s0] sm:$0xff]
  %v30 = vld [vmem:[%s0 + $0x8] sm:$0xff]
  %v31 = vld [vmem:[%s0 + $0x10] sm:$0xff]
  %v32 = vld [vmem:[%s0 + $0x18] sm:$0xff]
  %v33 = vld [vmem:[%s0 + $0x20] sm:$0xff]
  %v34 = vld [vmem:[%s0 + $0x28] sm:$0xff]
  %v35 = vld [vmem:[%s0 + $0x30] sm:$0xff]
  %v36 = vld [vmem:[%s0 + $0x38] sm:$0xff]
  %v37 = vld [vmem:[%s1] sm:$0xff]
  %v38 = vld [vmem:[%s1 + $0x8] sm:$0xff]
  %v39 = vld [vmem:[%s1 + $0x10] sm:$0xff]
  %v40 = vld [vmem:[%s1 + $0x18] sm:$0xff]
  %v41 = vld [vmem:[%s1 + $0x20] sm:$0xff]
  %v42 = vld [vmem:[%s1 + $0x28] sm:$0xff]
  %v43 = vld [vmem:[%s1 + $0x30] sm:$0xff]
  %v44 = vld [vmem:[%s1 + $0x38] sm:$0xff]
  %v45 = vld [vmem:[%s1 + $0x40] sm:$0xff]
  %v46 = vld [vmem:[%s1 + $0x48] sm:$0xff]
  %v47 = vld [vmem:[%s1 + $0x50] sm:$0xff]
  %v48 = vld [vmem:[%s1 + $0x58] sm:$0xff]
  %v49 = vld [vmem:[%s1 + $0x60] sm:$0xff]
  %v50 = vld [vmem:[%s1 + $0x68] sm:$0xff]
  %v51 = vld [vmem:[%s1 + $0x70] sm:$0xff]
  %v52 = vld [vmem:[%s1 + $0x78] sm:$0xff]
  %v53 = vld [vmem:[%s1 + $0x80] sm:$0xff]
  %v54 = vld [vmem:[%s1 + $0x88] sm:$0xff]
  %v55 = vld [vmem:[%s1 + $0x90] sm:$0xff]
  %v56 = vld [vmem:[%s1 + $0x98] sm:$0xff]
  %v57 = vld [vmem:[%s1 + $0xa0] sm:$0xff]
  %v58 = vld [vmem:[%s1 + $0xa8] sm:$0xff]
  %v59 = vld [vmem:[%s1 + $0xb0] sm:$0xff]
  %v60 = vld [vmem:[%s1 + $0xb8] sm:$0xff]
  %v61 = vld [vmem:[%s1 + $0xc0] sm:$0xff]
  %v62 = vld [vmem:[%s1 + $0xc8] sm:$0xff]
  %v63 = vld [vmem:[%s1 + $0xd0] sm:$0xff]
  %v64 = vld [vmem:[%s1 + $0xd8] sm:$0xff]
  %v65 = vld [vmem:[%s1 + $0xe0] sm:$0xff]
  %v66 = vld [vmem:[%s1 + $0xe8] sm:$0xff]
  %v67 = vld [vmem:[%s1 + $0xf0] sm:$0xff]
  %v68 = vld [vmem:[%s1 + $0xf8] sm:$0xff]
  %v69 = vld [vmem:[%s1 + $0x100] sm:$0xff]
  %v70 = vld [vmem:[%s1 + $0x108] sm:$0xff]
  %v71 = vld [vmem:[%s1 + $0x110] sm:$0xff]
  %v72 = vld [vmem:[%s1 + $0x118] sm:$0xff]
  %v73 = vld [vmem:[%s1 + $0x120] sm:$0xff]
  %v74 = vld [vmem:[%s1 + $0x128] sm:$0xff]
  %v75 = vld [vmem:[%s1 + $0x130] sm:$0xff]
  %v76 = vld [vmem:[%s1 + $0x138] sm:$0xff]
  %v77 = vld [vmem:[%s1 + $0x140] sm:$0xff]
  %v78 = vld [vmem:[%s1 + $0x148] sm:$0xff]
  %v79 = vld [vmem:[%s1 + $0x150] sm:$0xff]
  %v80 = vld [vmem:[%s1 + $0x158] sm:$0xff]
  %v81 = vld [vmem:[%s1 + $0x160] sm:$0xff]
  %v82 = vld [vmem:[%s1 + $0x168] sm:$0xff]
  %v83 = vld [vmem:[%s1 + $0x170] sm:$0xff]
  %v84 = vld [vmem:[%s1 + $0x178] sm:$0xff]
  %v85 = vld [vmem:[%s1 + $0x180] sm:$0xff]
  %v86 = vld [vmem:[%s1 + $0x188] sm:$0xff]
  %v87 = vld [vmem:[%s1 + $0x190] sm:$0xff]
  %v88 = vld [vmem:[%s1 + $0x198] sm:$0xff]
  %v89 = vld [vmem:[%s1 + $0x1a0] sm:$0xff]
  %v90 = vld [vmem:[%s1 + $0x1a8] sm:$0xff]
  %v91 = vld [vmem:[%s1 + $0x1b0] sm:$0xff]
  %v92 = vld [vmem:[%s1 + $0x1b8] sm:$0xff]
  %v93 = vld [vmem:[%s1 + $0x1c0] sm:$0xff]
  %v94 = vld [vmem:[%s1 + $0x1c8] sm:$0xff]
  %v95 = vld [vmem:[%s1 + $0x1d0] sm:$0xff]
  %v96 = vld [vmem:[%s1 + $0x1d8] sm:$0xff]
  %v97 = vld [vmem:[%s1 + $0x1e0] sm:$0xff]
  %v98 = vld [vmem:[%s1 + $0x1e8] sm:$0xff]
  %v99 = vld [vmem:[%s1 + $0x1f0] sm:$0xff]
  %v100 = vld [vmem:[%s1 + $0x1f8] sm:$0xff]
  %v101 = vld [vmem:[%s2] sm:$0xf]
  %v103 = vlaneseq
  %v104 = vshrl.u32 %v103, 7
  %v105 = vsub.s32 0, %v104
  %v106 = vrot.slane %v101, %v105
  %v107 = vlaneseq
  %v108 = vshrl.u32 %v107, 7
  %v109 = vsub.s32 1, %v108
  %v110 = vrot.slane %v101, %v109
  %v111 = vlaneseq
  %v112 = vshrl.u32 %v111, 7
  %v113 = vsub.s32 2, %v112
  %v114 = vrot.slane %v101, %v113
  %v115 = vlaneseq
  %v116 = vshrl.u32 %v115, 7
  %v117 = vsub.s32 3, %v116
  %v118 = vrot.slane %v101, %v117
  %123 = vmatprep.subr.mxu0 %v98
  %124 = vmatpush1.msra.mxu0 %v97
  %125 = vmatprep.subr.mxu0 %v94
  %126 = vmatpush1.msra.mxu0 %v93
  %127 = vmatprep.subr.mxu0 %v90
  %128 = vmatpush1.msra.mxu0 %v89
  %129 = vmatprep.subr.mxu0 %v86
  %130 = vmatpush1.msra.mxu0 %v85
  %131 = vmatprep.subr.mxu0 %v82
  %132 = vmatpush1.msra.mxu0 %v81
  %133 = vmatprep.subr.mxu0 %v78
  %134 = vmatpush1.msra.mxu0 %v77
  %135 = vmatprep.subr.mxu0 %v74
  %136 = vmatpush1.msra.mxu0 %v73
  %137 = vmatprep.subr.mxu0 %v70
  %138 = vmatpush1.msra.mxu0 %v69
  %139 = vmatprep.subr.mxu0 %v66
  %140 = vmatpush1.msra.mxu0 %v65
  %141 = vmatprep.subr.mxu0 %v62
  %142 = vmatpush1.msra.mxu0 %v61
  %143 = vmatprep.subr.mxu0 %v58
  %144 = vmatpush1.msra.mxu0 %v57
  %145 = vmatprep.subr.mxu0 %v54
  %146 = vmatpush1.msra.mxu0 %v53
  %147 = vmatprep.subr.mxu0 %v50
  %148 = vmatpush1.msra.mxu0 %v49
  %149 = vmatprep.subr.mxu0 %v46
  %150 = vmatpush1.msra.mxu0 %v45
  %151 = vmatprep.subr.mxu0 %v42
  %152 = vmatpush1.msra.mxu0 %v41
  %153 = vmatprep.subr.mxu0 %v38
  %154 = vmatpush1.msra.mxu0 %v37
  %155 = vmatprep.subr.mxu0 0.0
  %156 = vmatpush2.msra.mxu0 0.0
  %157 = vmatprep.subr.mxu0 0.0
  %158 = vmatpush2.msra.mxu0 0.0
  %159 = vmatprep.subr.mxu0 0.0
  %160 = vmatpush2.msra.mxu0 0.0
  %161 = vmatprep.subr.mxu0 0.0
  %162 = vmatpush2.msra.mxu0 0.0
  %163 = vmatprep.subr.mxu0 0.0
  %164 = vmatpush2.msra.mxu0 0.0
  %165 = vmatprep.subr.mxu0 0.0
  %166 = vmatpush2.msra.mxu0 0.0
  %167 = vmatprep.subr.mxu0 0.0
  %168 = vmatpush2.msra.mxu0 0.0
  %169 = vmatprep.subr.mxu0 0.0
  %170 = vmatpush2.msra.mxu0 0.0
  %171 = vmatprep.subr.mxu0 0.0
  %172 = vmatpush2.msra.mxu0 0.0
  %173 = vmatprep.subr.mxu0 0.0
  %174 = vmatpush2.msra.mxu0 0.0
  %175 = vmatprep.subr.mxu0 0.0
  %176 = vmatpush2.msra.mxu0 0.0
  %177 = vmatprep.subr.mxu0 0.0
  %178 = vmatpush2.msra.mxu0 0.0
  %179 = vmatprep.subr.mxu0 0.0
  %180 = vmatpush2.msra.mxu0 0.0
  %181 = vmatprep.subr.mxu0 0.0
  %182 = vmatpush2.msra.mxu0 0.0
  %183 = vmatprep.subr.mxu0 0.0
  %184 = vmatpush2.msra.mxu0 0.0
  %185 = vmatprep.subr.mxu0 0.0
  %186 = vmatpush2.msra.mxu0 0.0
  %187 = vmatprep.mubr.f32.mxu0 0.0
  %188 = vmatmul.mubr.f32.gmra.mxu0 %v29
  %v189 = vpop.f32.mrf.mxu0
  %v190 = vadd.f32 %v106, %v189
  %v191 = vpop.f32.mrf.mxu0
  %v192 = vadd.f32 %v110, %v191
  %193 = vmatprep.mubr.f32.mxu0 0.0
  %194 = vmatmul.mubr.f32.gmra.mxu0 %v30
  %v195 = vpop.f32.mrf.mxu0
  %v196 = vadd.f32 %v106, %v195
  %v197 = vpop.f32.mrf.mxu0
  %v198 = vadd.f32 %v110, %v197
  %199 = vmatprep.mubr.f32.mxu0 0.0
  %200 = vmatmul.mubr.f32.gmra.mxu0 %v31
  %v201 = vpop.f32.mrf.mxu0
  %v202 = vadd.f32 %v106, %v201
  %v203 = vpop.f32.mrf.mxu0
  %v204 = vadd.f32 %v110, %v203
  %205 = vmatprep.mubr.f32.mxu0 0.0
  %206 = vmatmul.mubr.f32.gmra.mxu0 %v32
  %v207 = vpop.f32.mrf.mxu0
  %v208 = vadd.f32 %v106, %v207
  %v209 = vpop.f32.mrf.mxu0
  %v210 = vadd.f32 %v110, %v209
  %211 = vmatprep.mubr.f32.mxu0 0.0
  %212 = vmatmul.mubr.f32.gmra.mxu0 %v33
  %v213 = vpop.f32.mrf.mxu0
  %v214 = vadd.f32 %v106, %v213
  %v215 = vpop.f32.mrf.mxu0
  %v216 = vadd.f32 %v110, %v215
  %217 = vmatprep.mubr.f32.mxu0 0.0
  %218 = vmatmul.mubr.f32.gmra.mxu0 %v34
  %v219 = vpop.f32.mrf.mxu0
  %v220 = vadd.f32 %v106, %v219
  %v221 = vpop.f32.mrf.mxu0
  %v222 = vadd.f32 %v110, %v221
  %223 = vmatprep.mubr.f32.mxu0 0.0
  %224 = vmatmul.mubr.f32.gmra.mxu0 %v35
  %v225 = vpop.f32.mrf.mxu0
  %v226 = vadd.f32 %v106, %v225
  %v227 = vpop.f32.mrf.mxu0
  %v228 = vadd.f32 %v110, %v227
  %229 = vmatprep.mubr.f32.mxu0 0.0
  %230 = vmatmul.mubr.f32.gmra.mxu0 %v36
  %v231 = vpop.f32.mrf.mxu0
  %v232 = vadd.f32 %v106, %v231
  %v233 = vpop.f32.mrf.mxu0
  %v234 = vadd.f32 %v110, %v233
  %235 = vdwg.mxu0
  %236 = vmatprep.subr.mxu0 %v100
  %237 = vmatpush1.msra.mxu0 %v99
  %238 = vmatprep.subr.mxu0 %v96
  %239 = vmatpush1.msra.mxu0 %v95
  %240 = vmatprep.subr.mxu0 %v92
  %241 = vmatpush1.msra.mxu0 %v91
  %242 = vmatprep.subr.mxu0 %v88
  %243 = vmatpush1.msra.mxu0 %v87
  %244 = vmatprep.subr.mxu0 %v84
  %245 = vmatpush1.msra.mxu0 %v83
  %246 = vmatprep.subr.mxu0 %v80
  %247 = vmatpush1.msra.mxu0 %v79
  %248 = vmatprep.subr.mxu0 %v76
  %249 = vmatpush1.msra.mxu0 %v75
  %250 = vmatprep.subr.mxu0 %v72
  %251 = vmatpush1.msra.mxu0 %v71
  %252 = vmatprep.subr.mxu0 %v68
  %253 = vmatpush1.msra.mxu0 %v67
  %254 = vmatprep.subr.mxu0 %v64
  %255 = vmatpush1.msra.mxu0 %v63
  %256 = vmatprep.subr.mxu0 %v60
  %257 = vmatpush1.msra.mxu0 %v59
  %258 = vmatprep.subr.mxu0 %v56
  %259 = vmatpush1.msra.mxu0 %v55
  %260 = vmatprep.subr.mxu0 %v52
  %261 = vmatpush1.msra.mxu0 %v51
  %262 = vmatprep.subr.mxu0 %v48
  %263 = vmatpush1.msra.mxu0 %v47
  %264 = vmatprep.subr.mxu0 %v44
  %265 = vmatpush1.msra.mxu0 %v43
  %266 = vmatprep.subr.mxu0 %v40
  %267 = vmatpush1.msra.mxu0 %v39
  %268 = vmatprep.subr.mxu0 0.0
  %269 = vmatpush2.msra.mxu0 0.0
  %270 = vmatprep.subr.mxu0 0.0
  %271 = vmatpush2.msra.mxu0 0.0
  %272 = vmatprep.subr.mxu0 0.0
  %273 = vmatpush2.msra.mxu0 0.0
  %274 = vmatprep.subr.mxu0 0.0
  %275 = vmatpush2.msra.mxu0 0.0
  %276 = vmatprep.subr.mxu0 0.0
  %277 = vmatpush2.msra.mxu0 0.0
  %278 = vmatprep.subr.mxu0 0.0
  %279 = vmatpush2.msra.mxu0 0.0
  %280 = vmatprep.subr.mxu0 0.0
  %281 = vmatpush2.msra.mxu0 0.0
  %282 = vmatprep.subr.mxu0 0.0
  %283 = vmatpush2.msra.mxu0 0.0
  %284 = vmatprep.subr.mxu0 0.0
  %285 = vmatpush2.msra.mxu0 0.0
  %286 = vmatprep.subr.mxu0 0.0
  %287 = vmatpush2.msra.mxu0 0.0
  %288 = vmatprep.subr.mxu0 0.0
  %289 = vmatpush2.msra.mxu0 0.0
  %290 = vmatprep.subr.mxu0 0.0
  %291 = vmatpush2.msra.mxu0 0.0
  %292 = vmatprep.subr.mxu0 0.0
  %293 = vmatpush2.msra.mxu0 0.0
  %294 = vmatprep.subr.mxu0 0.0
  %295 = vmatpush2.msra.mxu0 0.0
  %296 = vmatprep.subr.mxu0 0.0
  %297 = vmatpush2.msra.mxu0 0.0
  %298 = vmatprep.subr.mxu0 0.0
  %299 = vmatpush2.msra.mxu0 0.0
  %300 = vmatprep.mubr.f32.mxu0 0.0
  %301 = vmatmul.mubr.f32.gmra.mxu0 %v29
  %v302 = vpop.f32.mrf.mxu0
  %v303 = vadd.f32 %v114, %v302
  %v304 = vpop.f32.mrf.mxu0
  %v305 = vadd.f32 %v118, %v304
  %306 = vmatprep.mubr.f32.mxu0 0.0
  %307 = vmatmul.mubr.f32.gmra.mxu0 %v30
  %v308 = vpop.f32.mrf.mxu0
  %v309 = vadd.f32 %v114, %v308
  %v310 = vpop.f32.mrf.mxu0
  %v311 = vadd.f32 %v118, %v310
  %312 = vmatprep.mubr.f32.mxu0 0.0
  %313 = vmatmul.mubr.f32.gmra.mxu0 %v31
  %v314 = vpop.f32.mrf.mxu0
  %v315 = vadd.f32 %v114, %v314
  %v316 = vpop.f32.mrf.mxu0
  %v317 = vadd.f32 %v118, %v316
  %318 = vmatprep.mubr.f32.mxu0 0.0
  %319 = vmatmul.mubr.f32.gmra.mxu0 %v32
  %v320 = vpop.f32.mrf.mxu0
  %v321 = vadd.f32 %v114, %v320
  %v322 = vpop.f32.mrf.mxu0
  %v323 = vadd.f32 %v118, %v322
  %324 = vmatprep.mubr.f32.mxu0 0.0
  %325 = vmatmul.mubr.f32.gmra.mxu0 %v33
  %v326 = vpop.f32.mrf.mxu0
  %v327 = vadd.f32 %v114, %v326
  %v328 = vpop.f32.mrf.mxu0
  %v329 = vadd.f32 %v118, %v328
  %330 = vmatprep.mubr.f32.mxu0 0.0
  %331 = vmatmul.mubr.f32.gmra.mxu0 %v34
  %v332 = vpop.f32.mrf.mxu0
  %v333 = vadd.f32 %v114, %v332
  %v334 = vpop.f32.mrf.mxu0
  %v335 = vadd.f32 %v118, %v334
  %336 = vmatprep.mubr.f32.mxu0 0.0
  %337 = vmatmul.mubr.f32.gmra.mxu0 %v35
  %v338 = vpop.f32.mrf.mxu0
  %v339 = vadd.f32 %v114, %v338
  %v340 = vpop.f32.mrf.mxu0
  %v341 = vadd.f32 %v118, %v340
  %342 = vmatprep.mubr.f32.mxu0 0.0
  %343 = vmatmul.mubr.f32.gmra.mxu0 %v36
  %v344 = vpop.f32.mrf.mxu0
  %v345 = vadd.f32 %v114, %v344
  %v346 = vpop.f32.mrf.mxu0
  %v347 = vadd.f32 %v118, %v346
  %348 = vdwg.mxu0
  %349 = vst [vmem:[#allocation2] sm:$0xff] %v190
  %350 = vst [vmem:[#allocation2 + $0x8] sm:$0xff] %v192
  %351 = vst [vmem:[#allocation2 + $0x10] sm:$0xff] %v303
  %352 = vst [vmem:[#allocation2 + $0x18] sm:$0xff] %v305
  %353 = vst [vmem:[#allocation2 + $0x20] sm:$0xff] %v196
  %354 = vst [vmem:[#allocation2 + $0x28] sm:$0xff] %v198
  %355 = vst [vmem:[#allocation2 + $0x30] sm:$0xff] %v309
  %356 = vst [vmem:[#allocation2 + $0x38] sm:$0xff] %v311
  %357 = vst [vmem:[#allocation2 + $0x40] sm:$0xff] %v202
  %358 = vst [vmem:[#allocation2 + $0x48] sm:$0xff] %v204
  %359 = vst [vmem:[#allocation2 + $0x50] sm:$0xff] %v315
  %360 = vst [vmem:[#allocation2 + $0x58] sm:$0xff] %v317
  %361 = vst [vmem:[#allocation2 + $0x60] sm:$0xff] %v208
  %362 = vst [vmem:[#allocation2 + $0x68] sm:$0xff] %v210
  %363 = vst [vmem:[#allocation2 + $0x70] sm:$0xff] %v321
  %364 = vst [vmem:[#allocation2 + $0x78] sm:$0xff] %v323
  %365 = vst [vmem:[#allocation2 + $0x80] sm:$0xff] %v214
  %366 = vst [vmem:[#allocation2 + $0x88] sm:$0xff] %v216
  %367 = vst [vmem:[#allocation2 + $0x90] sm:$0xff] %v327
  %368 = vst [vmem:[#allocation2 + $0x98] sm:$0xff] %v329
  %369 = vst [vmem:[#allocation2 + $0xa0] sm:$0xff] %v220
  %370 = vst [vmem:[#allocation2 + $0xa8] sm:$0xff] %v222
  %371 = vst [vmem:[#allocation2 + $0xb0] sm:$0xff] %v333
  %372 = vst [vmem:[#allocation2 + $0xb8] sm:$0xff] %v335
  %373 = vst [vmem:[#allocation2 + $0xc0] sm:$0xff] %v226
  %374 = vst [vmem:[#allocation2 + $0xc8] sm:$0xff] %v228
  %375 = vst [vmem:[#allocation2 + $0xd0] sm:$0xff] %v339
  %376 = vst [vmem:[#allocation2 + $0xd8] sm:$0xff] %v341
  %377 = vst [vmem:[#allocation2 + $0xe0] sm:$0xff] %v232
  %378 = vst [vmem:[#allocation2 + $0xe8] sm:$0xff] %v234
  %379 = vst [vmem:[#allocation2 + $0xf0] sm:$0xff] %v345
  %380 = vst [vmem:[#allocation2 + $0xf8] sm:$0xff] %v347
  %v381 = vld [vmem:[#allocation2] sm:$0xff]
  %v382 = vld [vmem:[#allocation2 + $0x8] sm:$0xff]
  %v383 = vld [vmem:[#allocation2 + $0x10] sm:$0xff]
  %v384 = vld [vmem:[#allocation2 + $0x18] sm:$0xff]
  %v385 = vld [vmem:[#allocation3] sm:$0xff]
  %v386 = vld [vmem:[%s3] sm:$0xff]
  %v387 = vld [vmem:[%s3 + $0x8] sm:$0xff]
  %v388 = vld [vmem:[%s3 + $0x10] sm:$0xff]
  %v389 = vld [vmem:[%s3 + $0x18] sm:$0xff]
  %v390 = vld [vmem:[%s3 + $0x20] sm:$0xff]
  %v391 = vld [vmem:[%s3 + $0x28] sm:$0xff]
  %v392 = vld [vmem:[%s3 + $0x30] sm:$0xff]
  %v393 = vld [vmem:[%s3 + $0x38] sm:$0xff]
  %v394 = vld [vmem:[%s3 + $0x40] sm:$0xff]
  %v395 = vld [vmem:[%s3 + $0x48] sm:$0xff]
  %v396 = vld [vmem:[%s3 + $0x50] sm:$0xff]
  %v397 = vld [vmem:[%s3 + $0x58] sm:$0xff]
  %v398 = vld [vmem:[%s3 + $0x60] sm:$0xff]
  %v399 = vld [vmem:[%s3 + $0x68] sm:$0xff]
  %v400 = vld [vmem:[%s3 + $0x70] sm:$0xff]
  %v401 = vld [vmem:[%s3 + $0x78] sm:$0xff]
  %v402 = vld [vmem:[%s3 + $0x80] sm:$0xff]
  %v403 = vld [vmem:[%s3 + $0x88] sm:$0xff]
  %v404 = vld [vmem:[%s3 + $0x90] sm:$0xff]
  %v405 = vld [vmem:[%s3 + $0x98] sm:$0xff]
  %v406 = vld [vmem:[%s3 + $0xa0] sm:$0xff]
  %v407 = vld [vmem:[%s3 + $0xa8] sm:$0xff]
  %v408 = vld [vmem:[%s3 + $0xb0] sm:$0xff]
  %v409 = vld [vmem:[%s3 + $0xb8] sm:$0xff]
  %v410 = vld [vmem:[%s3 + $0xc0] sm:$0xff]
  %v411 = vld [vmem:[%s3 + $0xc8] sm:$0xff]
  %v412 = vld [vmem:[%s3 + $0xd0] sm:$0xff]
  %v413 = vld [vmem:[%s3 + $0xd8] sm:$0xff]
  %v414 = vld [vmem:[%s3 + $0xe0] sm:$0xff]
  %v415 = vld [vmem:[%s3 + $0xe8] sm:$0xff]
  %v416 = vld [vmem:[%s3 + $0xf0] sm:$0xff]
  %v417 = vld [vmem:[%s3 + $0xf8] sm:$0xff]
  %v418 = vld [vmem:[%s3 + $0x100] sm:$0xff]
  %v419 = vld [vmem:[%s3 + $0x108] sm:$0xff]
  %v420 = vld [vmem:[%s3 + $0x110] sm:$0xff]
  %v421 = vld [vmem:[%s3 + $0x118] sm:$0xff]
  %v422 = vld [vmem:[%s3 + $0x120] sm:$0xff]
  %v423 = vld [vmem:[%s3 + $0x128] sm:$0xff]
  %v424 = vld [vmem:[%s3 + $0x130] sm:$0xff]
  %v425 = vld [vmem:[%s3 + $0x138] sm:$0xff]
  %v426 = vld [vmem:[%s3 + $0x140] sm:$0xff]
  %v427 = vld [vmem:[%s3 + $0x148] sm:$0xff]
  %v428 = vld [vmem:[%s3 + $0x150] sm:$0xff]
  %v429 = vld [vmem:[%s3 + $0x158] sm:$0xff]
  %v430 = vld [vmem:[%s3 + $0x160] sm:$0xff]
  %v431 = vld [vmem:[%s3 + $0x168] sm:$0xff]
  %v432 = vld [vmem:[%s3 + $0x170] sm:$0xff]
  %v433 = vld [vmem:[%s3 + $0x178] sm:$0xff]
  %v434 = vld [vmem:[%s3 + $0x180] sm:$0xff]
  %v435 = vld [vmem:[%s3 + $0x188] sm:$0xff]
  %v436 = vld [vmem:[%s3 + $0x190] sm:$0xff]
  %v437 = vld [vmem:[%s3 + $0x198] sm:$0xff]
  %v438 = vld [vmem:[%s3 + $0x1a0] sm:$0xff]
  %v439 = vld [vmem:[%s3 + $0x1a8] sm:$0xff]
  %v440 = vld [vmem:[%s3 + $0x1b0] sm:$0xff]
  %v441 = vld [vmem:[%s3 + $0x1b8] sm:$0xff]
  %v442 = vld [vmem:[%s3 + $0x1c0] sm:$0xff]
  %v443 = vld [vmem:[%s3 + $0x1c8] sm:$0xff]
  %v444 = vld [vmem:[%s3 + $0x1d0] sm:$0xff]
  %v445 = vld [vmem:[%s3 + $0x1d8] sm:$0xff]
  %v446 = vld [vmem:[%s3 + $0x1e0] sm:$0xff]
  %v447 = vld [vmem:[%s3 + $0x1e8] sm:$0xff]
  %v448 = vld [vmem:[%s3 + $0x1f0] sm:$0xff]
  %v449 = vld [vmem:[%s3 + $0x1f8] sm:$0xff]
  %450 = vmatprep.subr.mxu0 %v447
  %451 = vmatpush1.msra.mxu0 %v446
  %452 = vmatprep.subr.mxu0 %v443
  %453 = vmatpush1.msra.mxu0 %v442
  %454 = vmatprep.subr.mxu0 %v439
  %455 = vmatpush1.msra.mxu0 %v438
  %456 = vmatprep.subr.mxu0 %v435
  %457 = vmatpush1.msra.mxu0 %v434
  %458 = vmatprep.subr.mxu0 %v431
  %459 = vmatpush1.msra.mxu0 %v430
  %460 = vmatprep.subr.mxu0 %v427
  %461 = vmatpush1.msra.mxu0 %v426
  %462 = vmatprep.subr.mxu0 %v423
  %463 = vmatpush1.msra.mxu0 %v422
  %464 = vmatprep.subr.mxu0 %v419
  %465 = vmatpush1.msra.mxu0 %v418
  %466 = vmatprep.subr.mxu0 %v415
  %467 = vmatpush1.msra.mxu0 %v414
  %468 = vmatprep.subr.mxu0 %v411
  %469 = vmatpush1.msra.mxu0 %v410
  %470 = vmatprep.subr.mxu0 %v407
  %471 = vmatpush1.msra.mxu0 %v406
  %472 = vmatprep.subr.mxu0 %v403
  %473 = vmatpush1.msra.mxu0 %v402
  %474 = vmatprep.subr.mxu0 %v399
  %475 = vmatpush1.msra.mxu0 %v398
  %476 = vmatprep.subr.mxu0 %v395
  %477 = vmatpush1.msra.mxu0 %v394
  %478 = vmatprep.subr.mxu0 %v391
  %479 = vmatpush1.msra.mxu0 %v390
  %480 = vmatprep.subr.mxu0 %v387
  %481 = vmatpush1.msra.mxu0 %v386
  %482 = vmatprep.subr.mxu0 0.0
  %483 = vmatpush2.msra.mxu0 0.0
  %484 = vmatprep.subr.mxu0 0.0
  %485 = vmatpush2.msra.mxu0 0.0
  %486 = vmatprep.subr.mxu0 0.0
  %487 = vmatpush2.msra.mxu0 0.0
  %488 = vmatprep.subr.mxu0 0.0
  %489 = vmatpush2.msra.mxu0 0.0
  %490 = vmatprep.subr.mxu0 0.0
  %491 = vmatpush2.msra.mxu0 0.0
  %492 = vmatprep.subr.mxu0 0.0
  %493 = vmatpush2.msra.mxu0 0.0
  %494 = vmatprep.subr.mxu0 0.0
  %495 = vmatpush2.msra.mxu0 0.0
  %496 = vmatprep.subr.mxu0 0.0
  %497 = vmatpush2.msra.mxu0 0.0
  %498 = vmatprep.subr.mxu0 0.0
  %499 = vmatpush2.msra.mxu0 0.0
  %500 = vmatprep.subr.mxu0 0.0
  %501 = vmatpush2.msra.mxu0 0.0
  %502 = vmatprep.subr.mxu0 0.0
  %503 = vmatpush2.msra.mxu0 0.0
  %504 = vmatprep.subr.mxu0 0.0
  %505 = vmatpush2.msra.mxu0 0.0
  %506 = vmatprep.subr.mxu0 0.0
  %507 = vmatpush2.msra.mxu0 0.0
  %508 = vmatprep.subr.mxu0 0.0
  %509 = vmatpush2.msra.mxu0 0.0
  %510 = vmatprep.subr.mxu0 0.0
  %511 = vmatpush2.msra.mxu0 0.0
  %512 = vmatprep.subr.mxu0 0.0
  %513 = vmatpush2.msra.mxu0 0.0
  %514 = vmatprep.mubr.f32.mxu0 0.0
  %515 = vmatmul.mubr.f32.gmra.mxu0 %v385
  %v516 = vpop.f32.mrf.mxu0
  %v517 = vadd.f32 0.0, %v516
  %v518 = vpop.f32.mrf.mxu0
  %v519 = vadd.f32 0.0, %v518
  %520 = vdwg.mxu0
  %521 = vmatprep.subr.mxu0 %v449
  %522 = vmatpush1.msra.mxu0 %v448
  %523 = vmatprep.subr.mxu0 %v445
  %524 = vmatpush1.msra.mxu0 %v444
  %525 = vmatprep.subr.mxu0 %v441
  %526 = vmatpush1.msra.mxu0 %v440
  %527 = vmatprep.subr.mxu0 %v437
  %528 = vmatpush1.msra.mxu0 %v436
  %529 = vmatprep.subr.mxu0 %v433
  %530 = vmatpush1.msra.mxu0 %v432
  %531 = vmatprep.subr.mxu0 %v429
  %532 = vmatpush1.msra.mxu0 %v428
  %533 = vmatprep.subr.mxu0 %v425
  %534 = vmatpush1.msra.mxu0 %v424
  %535 = vmatprep.subr.mxu0 %v421
  %536 = vmatpush1.msra.mxu0 %v420
  %537 = vmatprep.subr.mxu0 %v417
  %538 = vmatpush1.msra.mxu0 %v416
  %539 = vmatprep.subr.mxu0 %v413
  %540 = vmatpush1.msra.mxu0 %v412
  %541 = vmatprep.subr.mxu0 %v409
  %542 = vmatpush1.msra.mxu0 %v408
  %543 = vmatprep.subr.mxu0 %v405
  %544 = vmatpush1.msra.mxu0 %v404
  %545 = vmatprep.subr.mxu0 %v401
  %546 = vmatpush1.msra.mxu0 %v400
  %547 = vmatprep.subr.mxu0 %v397
  %548 = vmatpush1.msra.mxu0 %v396
  %549 = vmatprep.subr.mxu0 %v393
  %550 = vmatpush1.msra.mxu0 %v392
  %551 = vmatprep.subr.mxu0 %v389
  %552 = vmatpush1.msra.mxu0 %v388
  %553 = vmatprep.subr.mxu0 0.0
  %554 = vmatpush2.msra.mxu0 0.0
  %555 = vmatprep.subr.mxu0 0.0
  %556 = vmatpush2.msra.mxu0 0.0
  %557 = vmatprep.subr.mxu0 0.0
  %558 = vmatpush2.msra.mxu0 0.0
  %559 = vmatprep.subr.mxu0 0.0
  %560 = vmatpush2.msra.mxu0 0.0
  %561 = vmatprep.subr.mxu0 0.0
  %562 = vmatpush2.msra.mxu0 0.0
  %563 = vmatprep.subr.mxu0 0.0
  %564 = vmatpush2.msra.mxu0 0.0
  %565 = vmatprep.subr.mxu0 0.0
  %566 = vmatpush2.msra.mxu0 0.0
  %567 = vmatprep.subr.mxu0 0.0
  %568 = vmatpush2.msra.mxu0 0.0
  %569 = vmatprep.subr.mxu0 0.0
  %570 = vmatpush2.msra.mxu0 0.0
  %571 = vmatprep.subr.mxu0 0.0
  %572 = vmatpush2.msra.mxu0 0.0
  %573 = vmatprep.subr.mxu0 0.0
  %574 = vmatpush2.msra.mxu0 0.0
  %575 = vmatprep.subr.mxu0 0.0
  %576 = vmatpush2.msra.mxu0 0.0
  %577 = vmatprep.subr.mxu0 0.0
  %578 = vmatpush2.msra.mxu0 0.0
  %579 = vmatprep.subr.mxu0 0.0
  %580 = vmatpush2.msra.mxu0 0.0
  %581 = vmatprep.subr.mxu0 0.0
  %582 = vmatpush2.msra.mxu0 0.0
  %583 = vmatprep.subr.mxu0 0.0
  %584 = vmatpush2.msra.mxu0 0.0
  %585 = vmatprep.mubr.f32.mxu0 0.0
  %586 = vmatmul.mubr.f32.gmra.mxu0 %v385
  %v587 = vpop.f32.mrf.mxu0
  %v588 = vadd.f32 0.0, %v587
  %v589 = vpop.f32.mrf.mxu0
  %v590 = vadd.f32 0.0, %v589
  %591 = vdwg.mxu0
  %v592 = vadd.f32 %v381, %v517
  %v593 = vadd.f32 %v382, %v519
  %v594 = vadd.f32 %v383, %v588
  %v595 = vadd.f32 %v384, %v590
  %v596 = vxor.u32 %v592, 2147483648
  %v597 = vmul.f32 %v596, 1.442695
  %v598 = vpow.pop %v597
  %v599 = vadd.f32 %v598, 1.0
  %v600 = vrcp.pop %v599
  %v601 = vmul.f32 1.0, %v600
  %v602 = vxor.u32 %v593, 2147483648
  %v603 = vmul.f32 %v602, 1.442695
  %v604 = vpow.pop %v603
  %v605 = vadd.f32 %v604, 1.0
  %v606 = vrcp.pop %v605
  %v607 = vmul.f32 1.0, %v606
  %v608 = vtanh.pop %v594
  %v609 = vxor.u32 %v595, 2147483648
  %v610 = vmul.f32 %v609, 1.442695
  %v611 = vpow.pop %v610
  %v612 = vadd.f32 %v611, 1.0
  %v613 = vrcp.pop %v612
  %v614 = vmul.f32 1.0, %v613
  %v615 = vld [vmem:[#allocation4] sm:$0xff]
  %v616 = vmul.f32 %v607, %v615
  %v617 = vmul.f32 %v601, %v608
  %v618 = vadd.f32 %v616, %v617
  %v619 = vtanh.pop %v618
  %v620 = vmul.f32 %v614, %v619
  %621 = vst [vmem:[#allocation4] sm:$0xff] %v618
  %622 = vst [vmem:[#allocation3] sm:$0xff] %v620
  %s623 = scalar_lea.vmem [#allocation2], 32
  %v624 = vld [vmem:[%s623] sm:$0xff]
  %v625 = vld [vmem:[%s623 + $0x8] sm:$0xff]
  %v626 = vld [vmem:[%s623 + $0x10] sm:$0xff]
  %v627 = vld [vmem:[%s623 + $0x18] sm:$0xff]
  %v628 = vld [vmem:[#allocation3] sm:$0xff]
  %v629 = vld [vmem:[%s3] sm:$0xff]
  %v630 = vld [vmem:[%s3 + $0x8] sm:$0xff]
  %v631 = vld [vmem:[%s3 + $0x10] sm:$0xff]
  %v632 = vld [vmem:[%s3 + $0x18] sm:$0xff]
  %v633 = vld [vmem:[%s3 + $0x20] sm:$0xff]
  %v634 = vld [vmem:[%s3 + $0x28] sm:$0xff]
  %v635 = vld [vmem:[%s3 + $0x30] sm:$0xff]
  %v636 = vld [vmem:[%s3 + $0x38] sm:$0xff]
  %v637 = vld [vmem:[%s3 + $0x40] sm:$0xff]
  %v638 = vld [vmem:[%s3 + $0x48] sm:$0xff]
  %v639 = vld [vmem:[%s3 + $0x50] sm:$0xff]
  %v640 = vld [vmem:[%s3 + $0x58] sm:$0xff]
  %v641 = vld [vmem:[%s3 + $0x60] sm:$0xff]
  %v642 = vld [vmem:[%s3 + $0x68] sm:$0xff]
  %v643 = vld [vmem:[%s3 + $0x70] sm:$0xff]
  %v644 = vld [vmem:[%s3 + $0x78] sm:$0xff]
  %v645 = vld [vmem:[%s3 + $0x80] sm:$0xff]
  %v646 = vld [vmem:[%s3 + $0x88] sm:$0xff]
  %v647 = vld [vmem:[%s3 + $0x90] sm:$0xff]
  %v648 = vld [vmem:[%s3 + $0x98] sm:$0xff]
  %v649 = vld [vmem:[%s3 + $0xa0] sm:$0xff]
  %v650 = vld [vmem:[%s3 + $0xa8] sm:$0xff]
  %v651 = vld [vmem:[%s3 + $0xb0] sm:$0xff]
  %v652 = vld [vmem:[%s3 + $0xb8] sm:$0xff]
  %v653 = vld [vmem:[%s3 + $0xc0] sm:$0xff]
  %v654 = vld [vmem:[%s3 + $0xc8] sm:$0xff]
  %v655 = vld [vmem:[%s3 + $0xd0] sm:$0xff]
  %v656 = vld [vmem:[%s3 + $0xd8] sm:$0xff]
  %v657 = vld [vmem:[%s3 + $0xe0] sm:$0xff]
  %v658 = vld [vmem:[%s3 + $0xe8] sm:$0xff]
  %v659 = vld [vmem:[%s3 + $0xf0] sm:$0xff]
  %v660 = vld [vmem:[%s3 + $0xf8] sm:$0xff]
  %v661 = vld [vmem:[%s3 + $0x100] sm:$0xff]
  %v662 = vld [vmem:[%s3 + $0x108] sm:$0xff]
  %v663 = vld [vmem:[%s3 + $0x110] sm:$0xff]
  %v664 = vld [vmem:[%s3 + $0x118] sm:$0xff]
  %v665 = vld [vmem:[%s3 + $0x120] sm:$0xff]
  %v666 = vld [vmem:[%s3 + $0x128] sm:$0xff]
  %v667 = vld [vmem:[%s3 + $0x130] sm:$0xff]
  %v668 = vld [vmem:[%s3 + $0x138] sm:$0xff]
  %v669 = vld [vmem:[%s3 + $0x140] sm:$0xff]
  %v670 = vld [vmem:[%s3 + $0x148] sm:$0xff]
  %v671 = vld [vmem:[%s3 + $0x150] sm:$0xff]
  %v672 = vld [vmem:[%s3 + $0x158] sm:$0xff]
  %v673 = vld [vmem:[%s3 + $0x160] sm:$0xff]
  %v674 = vld [vmem:[%s3 + $0x168] sm:$0xff]
  %v675 = vld [vmem:[%s3 + $0x170] sm:$0xff]
  %v676 = vld [vmem:[%s3 + $0x178] sm:$0xff]
  %v677 = vld [vmem:[%s3 + $0x180] sm:$0xff]
  %v678 = vld [vmem:[%s3 + $0x188] sm:$0xff]
  %v679 = vld [vmem:[%s3 + $0x190] sm:$0xff]
  %v680 = vld [vmem:[%s3 + $0x198] sm:$0xff]
  %v681 = vld [vmem:[%s3 + $0x1a0] sm:$0xff]
  %v682 = vld [vmem:[%s3 + $0x1a8] sm:$0xff]
  %v683 = vld [vmem:[%s3 + $0x1b0] sm:$0xff]
  %v684 = vld [vmem:[%s3 + $0x1b8] sm:$0xff]
  %v685 = vld [vmem:[%s3 + $0x1c0] sm:$0xff]
  %v686 = vld [vmem:[%s3 + $0x1c8] sm:$0xff]
  %v687 = vld [vmem:[%s3 + $0x1d0] sm:$0xff]
  %v688 = vld [vmem:[%s3 + $0x1d8] sm:$0xff]
  %v689 = vld [vmem:[%s3 + $0x1e0] sm:$0xff]
  %v690 = vld [vmem:[%s3 + $0x1e8] sm:$0xff]
  %v691 = vld [vmem:[%s3 + $0x1f0] sm:$0xff]
  %v692 = vld [vmem:[%s3 + $0x1f8] sm:$0xff]
  %693 = vmatprep.subr.mxu0 %v690
  %694 = vmatpush1.msra.mxu0 %v689
  %695 = vmatprep.subr.mxu0 %v686
  %696 = vmatpush1.msra.mxu0 %v685
  %697 = vmatprep.subr.mxu0 %v682
  %698 = vmatpush1.msra.mxu0 %v681
  %699 = vmatprep.subr.mxu0 %v678
  %700 = vmatpush1.msra.mxu0 %v677
  %701 = vmatprep.subr.mxu0 %v674
  %702 = vmatpush1.msra.mxu0 %v673
  %703 = vmatprep.subr.mxu0 %v670
  %704 = vmatpush1.msra.mxu0 %v669
  %705 = vmatprep.subr.mxu0 %v666
  %706 = vmatpush1.msra.mxu0 %v665
  %707 = vmatprep.subr.mxu0 %v662
  %708 = vmatpush1.msra.mxu0 %v661
  %709 = vmatprep.subr.mxu0 %v658
  %710 = vmatpush1.msra.mxu0 %v657
  %711 = vmatprep.subr.mxu0 %v654
  %712 = vmatpush1.msra.mxu0 %v653
  %713 = vmatprep.subr.mxu0 %v650
  %714 = vmatpush1.msra.mxu0 %v649
  %715 = vmatprep.subr.mxu0 %v646
  %716 = vmatpush1.msra.mxu0 %v645
  %717 = vmatprep.subr.mxu0 %v642
  %718 = vmatpush1.msra.mxu0 %v641
  %719 = vmatprep.subr.mxu0 %v638
  %720 = vmatpush1.msra.mxu0 %v637
  %721 = vmatprep.subr.mxu0 %v634
  %722 = vmatpush1.msra.mxu0 %v633
  %723 = vmatprep.subr.mxu0 %v630
  %724 = vmatpush1.msra.mxu0 %v629
  %725 = vmatprep.subr.mxu0 0.0
  %726 = vmatpush2.msra.mxu0 0.0
  %727 = vmatprep.subr.mxu0 0.0
  %728 = vmatpush2.msra.mxu0 0.0
  %729 = vmatprep.subr.mxu0 0.0
  %730 = vmatpush2.msra.mxu0 0.0
  %731 = vmatprep.subr.mxu0 0.0
  %732 = vmatpush2.msra.mxu0 0.0
  %733 = vmatprep.subr.mxu0 0.0
  %734 = vmatpush2.msra.mxu0 0.0
  %735 = vmatprep.subr.mxu0 0.0
  %736 = vmatpush2.msra.mxu0 0.0
  %737 = vmatprep.subr.mxu0 0.0
  %738 = vmatpush2.msra.mxu0 0.0
  %739 = vmatprep.subr.mxu0 0.0
  %740 = vmatpush2.msra.mxu0 0.0
  %741 = vmatprep.subr.mxu0 0.0
  %742 = vmatpush2.msra.mxu0 0.0
  %743 = vmatprep.subr.mxu0 0.0
  %744 = vmatpush2.msra.mxu0 0.0
  %745 = vmatprep.subr.mxu0 0.0
  %746 = vmatpush2.msra.mxu0 0.0
  %747 = vmatprep.subr.mxu0 0.0
  %748 = vmatpush2.msra.mxu0 0.0
  %749 = vmatprep.subr.mxu0 0.0
  %750 = vmatpush2.msra.mxu0 0.0
  %751 = vmatprep.subr.mxu0 0.0
  %752 = vmatpush2.msra.mxu0 0.0
  %753 = vmatprep.subr.mxu0 0.0
  %754 = vmatpush2.msra.mxu0 0.0
  %755 = vmatprep.subr.mxu0 0.0
  %756 = vmatpush2.msra.mxu0 0.0
  %757 = vmatprep.mubr.f32.mxu0 0.0
  %758 = vmatmul.mubr.f32.gmra.mxu0 %v628
  %v759 = vpop.f32.mrf.mxu0
  %v760 = vadd.f32 0.0, %v759
  %v761 = vpop.f32.mrf.mxu0
  %v762 = vadd.f32 0.0, %v761
  %763 = vdwg.mxu0
  %764 = vmatprep.subr.mxu0 %v692
  %765 = vmatpush1.msra.mxu0 %v691
  %766 = vmatprep.subr.mxu0 %v688
  %767 = vmatpush1.msra.mxu0 %v687
  %768 = vmatprep.subr.mxu0 %v684
  %769 = vmatpush1.msra.mxu0 %v683
  %770 = vmatprep.subr.mxu0 %v680
  %771 = vmatpush1.msra.mxu0 %v679
  %772 = vmatprep.subr.mxu0 %v676
  %773 = vmatpush1.msra.mxu0 %v675
  %774 = vmatprep.subr.mxu0 %v672
  %775 = vmatpush1.msra.mxu0 %v671
  %776 = vmatprep.subr.mxu0 %v668
  %777 = vmatpush1.msra.mxu0 %v667
  %778 = vmatprep.subr.mxu0 %v664
  %779 = vmatpush1.msra.mxu0 %v663
  %780 = vmatprep.subr.mxu0 %v660
  %781 = vmatpush1.msra.mxu0 %v659
  %782 = vmatprep.subr.mxu0 %v656
  %783 = vmatpush1.msra.mxu0 %v655
  %784 = vmatprep.subr.mxu0 %v652
  %785 = vmatpush1.msra.mxu0 %v651
  %786 = vmatprep.subr.mxu0 %v648
  %787 = vmatpush1.msra.mxu0 %v647
  %788 = vmatprep.subr.mxu0 %v644
  %789 = vmatpush1.msra.mxu0 %v643
  %790 = vmatprep.subr.mxu0 %v640
  %791 = vmatpush1.msra.mxu0 %v639
  %792 = vmatprep.subr.mxu0 %v636
  %793 = vmatpush1.msra.mxu0 %v635
  %794 = vmatprep.subr.mxu0 %v632
  %795 = vmatpush1.msra.mxu0 %v631
  %796 = vmatprep.subr.mxu0 0.0
  %797 = vmatpush2.msra.mxu0 0.0
  %798 = vmatprep.subr.mxu0 0.0
  %799 = vmatpush2.msra.mxu0 0.0
  %800 = vmatprep.subr.mxu0 0.0
  %801 = vmatpush2.msra.mxu0 0.0
  %802 = vmatprep.subr.mxu0 0.0
  %803 = vmatpush2.msra.mxu0 0.0
  %804 = vmatprep.subr.mxu0 0.0
  %805 = vmatpush2.msra.mxu0 0.0
  %806 = vmatprep.subr.mxu0 0.0
  %807 = vmatpush2.msra.mxu0 0.0
  %808 = vmatprep.subr.mxu0 0.0
  %809 = vmatpush2.msra.mxu0 0.0
  %810 = vmatprep.subr.mxu0 0.0
  %811 = vmatpush2.msra.mxu0 0.0
  %812 = vmatprep.subr.mxu0 0.0
  %813 = vmatpush2.msra.mxu0 0.0
  %814 = vmatprep.subr.mxu0 0.0
  %815 = vmatpush2.msra.mxu0 0.0
  %816 = vmatprep.subr.mxu0 0.0
  %817 = vmatpush2.msra.mxu0 0.0
  %818 = vmatprep.subr.mxu0 0.0
  %819 = vmatpush2.msra.mxu0 0.0
  %820 = vmatprep.subr.mxu0 0.0
  %821 = vmatpush2.msra.mxu0 0.0
  %822 = vmatprep.subr.mxu0 0.0
  %823 = vmatpush2.msra.mxu0 0.0
  %824 = vmatprep.subr.mxu0 0.0
  %825 = vmatpush2.msra.mxu0 0.0
  %826 = vmatprep.subr.mxu0 0.0
  %827 = vmatpush2.msra.mxu0 0.0
  %828 = vmatprep.mubr.f32.mxu0 0.0
  %829 = vmatmul.mubr.f32.gmra.mxu0 %v628
  %v830 = vpop.f32.mrf.mxu0
  %v831 = vadd.f32 0.0, %v830
  %v832 = vpop.f32.mrf.mxu0
  %v833 = vadd.f32 0.0, %v832
  %834 = vdwg.mxu0
  %v835 = vadd.f32 %v624, %v760
  %v836 = vadd.f32 %v625, %v762
  %v837 = vadd.f32 %v626, %v831
  %v838 = vadd.f32 %v627, %v833
  %v839 = vxor.u32 %v835, 2147483648
  %v840 = vmul.f32 %v839, 1.442695
  %v841 = vpow.pop %v840
  %v842 = vadd.f32 %v841, 1.0
  %v843 = vrcp.pop %v842
  %v844 = vmul.f32 1.0, %v843
  %v845 = vxor.u32 %v836, 2147483648
  %v846 = vmul.f32 %v845, 1.442695
  %v847 = vpow.pop %v846
  %v848 = vadd.f32 %v847, 1.0
  %v849 = vrcp.pop %v848
  %v850 = vmul.f32 1.0, %v849
  %v851 = vtanh.pop %v837
  %v852 = vxor.u32 %v838, 2147483648
  %v853 = vmul.f32 %v852, 1.442695
  %v854 = vpow.pop %v853
  %v855 = vadd.f32 %v854, 1.0
  %v856 = vrcp.pop %v855
  %v857 = vmul.f32 1.0, %v856
  %v858 = vld [vmem:[#allocation4] sm:$0xff]
  %v859 = vmul.f32 %v850, %v858
  %v860 = vmul.f32 %v844, %v851
  %v861 = vadd.f32 %v859, %v860
  %v862 = vtanh.pop %v861
  %v863 = vmul.f32 %v857, %v862
  %864 = vst [vmem:[#allocation4] sm:$0xff] %v861
  %865 = vst [vmem:[#allocation3] sm:$0xff] %v863
  %s866 = scalar_lea.vmem [#allocation2], 64
  %v867 = vld [vmem:[%s866] sm:$0xff]
  %v868 = vld [vmem:[%s866 + $0x8] sm:$0xff]
  %v869 = vld [vmem:[%s866 + $0x10] sm:$0xff]
  %v870 = vld [vmem:[%s866 + $0x18] sm:$0xff]
  %v871 = vld [vmem:[#allocation3] sm:$0xff]
  %v872 = vld [vmem:[%s3] sm:$0xff]
  %v873 = vld [vmem:[%s3 + $0x8] sm:$0xff]
  %v874 = vld [vmem:[%s3 + $0x10] sm:$0xff]
  %v875 = vld [vmem:[%s3 + $0x18] sm:$0xff]
  %v876 = vld [vmem:[%s3 + $0x20] sm:$0xff]
  %v877 = vld [vmem:[%s3 + $0x28] sm:$0xff]
  %v878 = vld [vmem:[%s3 + $0x30] sm:$0xff]
  %v879 = vld [vmem:[%s3 + $0x38] sm:$0xff]
  %v880 = vld [vmem:[%s3 + $0x40] sm:$0xff]
  %v881 = vld [vmem:[%s3 + $0x48] sm:$0xff]
  %v882 = vld [vmem:[%s3 + $0x50] sm:$0xff]
  %v883 = vld [vmem:[%s3 + $0x58] sm:$0xff]
  %v884 = vld [vmem:[%s3 + $0x60] sm:$0xff]
  %v885 = vld [vmem:[%s3 + $0x68] sm:$0xff]
  %v886 = vld [vmem:[%s3 + $0x70] sm:$0xff]
  %v887 = vld [vmem:[%s3 + $0x78] sm:$0xff]
  %v888 = vld [vmem:[%s3 + $0x80] sm:$0xff]
  %v889 = vld [vmem:[%s3 + $0x88] sm:$0xff]
  %v890 = vld [vmem:[%s3 + $0x90] sm:$0xff]
  %v891 = vld [vmem:[%s3 + $0x98] sm:$0xff]
  %v892 = vld [vmem:[%s3 + $0xa0] sm:$0xff]
  %v893 = vld [vmem:[%s3 + $0xa8] sm:$0xff]
  %v894 = vld [vmem:[%s3 + $0xb0] sm:$0xff]
  %v895 = vld [vmem:[%s3 + $0xb8] sm:$0xff]
  %v896 = vld [vmem:[%s3 + $0xc0] sm:$0xff]
  %v897 = vld [vmem:[%s3 + $0xc8] sm:$0xff]
  %v898 = vld [vmem:[%s3 + $0xd0] sm:$0xff]
  %v899 = vld [vmem:[%s3 + $0xd8] sm:$0xff]
  %v900 = vld [vmem:[%s3 + $0xe0] sm:$0xff]
  %v901 = vld [vmem:[%s3 + $0xe8] sm:$0xff]
  %v902 = vld [vmem:[%s3 + $0xf0] sm:$0xff]
  %v903 = vld [vmem:[%s3 + $0xf8] sm:$0xff]
  %v904 = vld [vmem:[%s3 + $0x100] sm:$0xff]
  %v905 = vld [vmem:[%s3 + $0x108] sm:$0xff]
  %v906 = vld [vmem:[%s3 + $0x110] sm:$0xff]
  %v907 = vld [vmem:[%s3 + $0x118] sm:$0xff]
  %v908 = vld [vmem:[%s3 + $0x120] sm:$0xff]
  %v909 = vld [vmem:[%s3 + $0x128] sm:$0xff]
  %v910 = vld [vmem:[%s3 + $0x130] sm:$0xff]
  %v911 = vld [vmem:[%s3 + $0x138] sm:$0xff]
  %v912 = vld [vmem:[%s3 + $0x140] sm:$0xff]
  %v913 = vld [vmem:[%s3 + $0x148] sm:$0xff]
  %v914 = vld [vmem:[%s3 + $0x150] sm:$0xff]
  %v915 = vld [vmem:[%s3 + $0x158] sm:$0xff]
  %v916 = vld [vmem:[%s3 + $0x160] sm:$0xff]
  %v917 = vld [vmem:[%s3 + $0x168] sm:$0xff]
  %v918 = vld [vmem:[%s3 + $0x170] sm:$0xff]
  %v919 = vld [vmem:[%s3 + $0x178] sm:$0xff]
  %v920 = vld [vmem:[%s3 + $0x180] sm:$0xff]
  %v921 = vld [vmem:[%s3 + $0x188] sm:$0xff]
  %v922 = vld [vmem:[%s3 + $0x190] sm:$0xff]
  %v923 = vld [vmem:[%s3 + $0x198] sm:$0xff]
  %v924 = vld [vmem:[%s3 + $0x1a0] sm:$0xff]
  %v925 = vld [vmem:[%s3 + $0x1a8] sm:$0xff]
  %v926 = vld [vmem:[%s3 + $0x1b0] sm:$0xff]
  %v927 = vld [vmem:[%s3 + $0x1b8] sm:$0xff]
  %v928 = vld [vmem:[%s3 + $0x1c0] sm:$0xff]
  %v929 = vld [vmem:[%s3 + $0x1c8] sm:$0xff]
  %v930 = vld [vmem:[%s3 + $0x1d0] sm:$0xff]
  %v931 = vld [vmem:[%s3 + $0x1d8] sm:$0xff]
  %v932 = vld [vmem:[%s3 + $0x1e0] sm:$0xff]
  %v933 = vld [vmem:[%s3 + $0x1e8] sm:$0xff]
  %v934 = vld [vmem:[%s3 + $0x1f0] sm:$0xff]
  %v935 = vld [vmem:[%s3 + $0x1f8] sm:$0xff]
  %936 = vmatprep.subr.mxu0 %v933
  %937 = vmatpush1.msra.mxu0 %v932
  %938 = vmatprep.subr.mxu0 %v929
  %939 = vmatpush1.msra.mxu0 %v928
  %940 = vmatprep.subr.mxu0 %v925
  %941 = vmatpush1.msra.mxu0 %v924
  %942 = vmatprep.subr.mxu0 %v921
  %943 = vmatpush1.msra.mxu0 %v920
  %944 = vmatprep.subr.mxu0 %v917
  %945 = vmatpush1.msra.mxu0 %v916
  %946 = vmatprep.subr.mxu0 %v913
  %947 = vmatpush1.msra.mxu0 %v912
  %948 = vmatprep.subr.mxu0 %v909
  %949 = vmatpush1.msra.mxu0 %v908
  %950 = vmatprep.subr.mxu0 %v905
  %951 = vmatpush1.msra.mxu0 %v904
  %952 = vmatprep.subr.mxu0 %v901
  %953 = vmatpush1.msra.mxu0 %v900
  %954 = vmatprep.subr.mxu0 %v897
  %955 = vmatpush1.msra.mxu0 %v896
  %956 = vmatprep.subr.mxu0 %v893
  %957 = vmatpush1.msra.mxu0 %v892
  %958 = vmatprep.subr.mxu0 %v889
  %959 = vmatpush1.msra.mxu0 %v888
  %960 = vmatprep.subr.mxu0 %v885
  %961 = vmatpush1.msra.mxu0 %v884
  %962 = vmatprep.subr.mxu0 %v881
  %963 = vmatpush1.msra.mxu0 %v880
  %964 = vmatprep.subr.mxu0 %v877
  %965 = vmatpush1.msra.mxu0 %v876
  %966 = vmatprep.subr.mxu0 %v873
  %967 = vmatpush1.msra.mxu0 %v872
  %968 = vmatprep.subr.mxu0 0.0
  %969 = vmatpush2.msra.mxu0 0.0
  %970 = vmatprep.subr.mxu0 0.0
  %971 = vmatpush2.msra.mxu0 0.0
  %972 = vmatprep.subr.mxu0 0.0
  %973 = vmatpush2.msra.mxu0 0.0
  %974 = vmatprep.subr.mxu0 0.0
  %975 = vmatpush2.msra.mxu0 0.0
  %976 = vmatprep.subr.mxu0 0.0
  %977 = vmatpush2.msra.mxu0 0.0
  %978 = vmatprep.subr.mxu0 0.0
  %979 = vmatpush2.msra.mxu0 0.0
  %980 = vmatprep.subr.mxu0 0.0
  %981 = vmatpush2.msra.mxu0 0.0
  %982 = vmatprep.subr.mxu0 0.0
  %983 = vmatpush2.msra.mxu0 0.0
  %984 = vmatprep.subr.mxu0 0.0
  %985 = vmatpush2.msra.mxu0 0.0
  %986 = vmatprep.subr.mxu0 0.0
  %987 = vmatpush2.msra.mxu0 0.0
  %988 = vmatprep.subr.mxu0 0.0
  %989 = vmatpush2.msra.mxu0 0.0
  %990 = vmatprep.subr.mxu0 0.0
  %991 = vmatpush2.msra.mxu0 0.0
  %992 = vmatprep.subr.mxu0 0.0
  %993 = vmatpush2.msra.mxu0 0.0
  %994 = vmatprep.subr.mxu0 0.0
  %995 = vmatpush2.msra.mxu0 0.0
  %996 = vmatprep.subr.mxu0 0.0
  %997 = vmatpush2.msra.mxu0 0.0
  %998 = vmatprep.subr.mxu0 0.0
  %999 = vmatpush2.msra.mxu0 0.0
  %1000 = vmatprep.mubr.f32.mxu0 0.0
  %1001 = vmatmul.mubr.f32.gmra.mxu0 %v871
  %v1002 = vpop.f32.mrf.mxu0
  %v1003 = vadd.f32 0.0, %v1002
  %v1004 = vpop.f32.mrf.mxu0
  %v1005 = vadd.f32 0.0, %v1004
  %1006 = vdwg.mxu0
  %1007 = vmatprep.subr.mxu0 %v935
  %1008 = vmatpush1.msra.mxu0 %v934
  %1009 = vmatprep.subr.mxu0 %v931
  %1010 = vmatpush1.msra.mxu0 %v930
  %1011 = vmatprep.subr.mxu0 %v927
  %1012 = vmatpush1.msra.mxu0 %v926
  %1013 = vmatprep.subr.mxu0 %v923
  %1014 = vmatpush1.msra.mxu0 %v922
  %1015 = vmatprep.subr.mxu0 %v919
  %1016 = vmatpush1.msra.mxu0 %v918
  %1017 = vmatprep.subr.mxu0 %v915
  %1018 = vmatpush1.msra.mxu0 %v914
  %1019 = vmatprep.subr.mxu0 %v911
  %1020 = vmatpush1.msra.mxu0 %v910
  %1021 = vmatprep.subr.mxu0 %v907
  %1022 = vmatpush1.msra.mxu0 %v906
  %1023 = vmatprep.subr.mxu0 %v903
  %1024 = vmatpush1.msra.mxu0 %v902
  %1025 = vmatprep.subr.mxu0 %v899
  %1026 = vmatpush1.msra.mxu0 %v898
  %1027 = vmatprep.subr.mxu0 %v895
  %1028 = vmatpush1.msra.mxu0 %v894
  %1029 = vmatprep.subr.mxu0 %v891
  %1030 = vmatpush1.msra.mxu0 %v890
  %1031 = vmatprep.subr.mxu0 %v887
  %1032 = vmatpush1.msra.mxu0 %v886
  %1033 = vmatprep.subr.mxu0 %v883
  %1034 = vmatpush1.msra.mxu0 %v882
  %1035 = vmatprep.subr.mxu0 %v879
  %1036 = vmatpush1.msra.mxu0 %v878
  %1037 = vmatprep.subr.mxu0 %v875
  %1038 = vmatpush1.msra.mxu0 %v874
  %1039 = vmatprep.subr.mxu0 0.0
  %1040 = vmatpush2.msra.mxu0 0.0
  %1041 = vmatprep.subr.mxu0 0.0
  %1042 = vmatpush2.msra.mxu0 0.0
  %1043 = vmatprep.subr.mxu0 0.0
  %1044 = vmatpush2.msra.mxu0 0.0
  %1045 = vmatprep.subr.mxu0 0.0
  %1046 = vmatpush2.msra.mxu0 0.0
  %1047 = vmatprep.subr.mxu0 0.0
  %1048 = vmatpush2.msra.mxu0 0.0
  %1049 = vmatprep.subr.mxu0 0.0
  %1050 = vmatpush2.msra.mxu0 0.0
  %1051 = vmatprep.subr.mxu0 0.0
  %1052 = vmatpush2.msra.mxu0 0.0
  %1053 = vmatprep.subr.mxu0 0.0
  %1054 = vmatpush2.msra.mxu0 0.0
  %1055 = vmatprep.subr.mxu0 0.0
  %1056 = vmatpush2.msra.mxu0 0.0
  %1057 = vmatprep.subr.mxu0 0.0
  %1058 = vmatpush2.msra.mxu0 0.0
  %1059 = vmatprep.subr.mxu0 0.0
  %1060 = vmatpush2.msra.mxu0 0.0
  %1061 = vmatprep.subr.mxu0 0.0
  %1062 = vmatpush2.msra.mxu0 0.0
  %1063 = vmatprep.subr.mxu0 0.0
  %1064 = vmatpush2.msra.mxu0 0.0
  %1065 = vmatprep.subr.mxu0 0.0
  %1066 = vmatpush2.msra.mxu0 0.0
  %1067 = vmatprep.subr.mxu0 0.0
  %1068 = vmatpush2.msra.mxu0 0.0
  %1069 = vmatprep.subr.mxu0 0.0
  %1070 = vmatpush2.msra.mxu0 0.0
  %1071 = vmatprep.mubr.f32.mxu0 0.0
  %1072 = vmatmul.mubr.f32.gmra.mxu0 %v871
  %v1073 = vpop.f32.mrf.mxu0
  %v1074 = vadd.f32 0.0, %v1073
  %v1075 = vpop.f32.mrf.mxu0
  %v1076 = vadd.f32 0.0, %v1075
  %1077 = vdwg.mxu0
  %v1078 = vadd.f32 %v867, %v1003
  %v1079 = vadd.f32 %v868, %v1005
  %v1080 = vadd.f32 %v869, %v1074
  %v1081 = vadd.f32 %v870, %v1076
  %v1082 = vxor.u32 %v1078, 2147483648
  %v1083 = vmul.f32 %v1082, 1.442695
  %v1084 = vpow.pop %v1083
  %v1085 = vadd.f32 %v1084, 1.0
  %v1086 = vrcp.pop %v1085
  %v1087 = vmul.f32 1.0, %v1086
  %v1088 = vxor.u32 %v1079, 2147483648
  %v1089 = vmul.f32 %v1088, 1.442695
  %v1090 = vpow.pop %v1089
  %v1091 = vadd.f32 %v1090, 1.0
  %v1092 = vrcp.pop %v1091
  %v1093 = vmul.f32 1.0, %v1092
  %v1094 = vtanh.pop %v1080
  %v1095 = vxor.u32 %v1081, 2147483648
  %v1096 = vmul.f32 %v1095, 1.442695
  %v1097 = vpow.pop %v1096
  %v1098 = vadd.f32 %v1097, 1.0
  %v1099 = vrcp.pop %v1098
  %v1100 = vmul.f32 1.0, %v1099
  %v1101 = vld [vmem:[#allocation4] sm:$0xff]
  %v1102 = vmul.f32 %v1093, %v1101
  %v1103 = vmul.f32 %v1087, %v1094
  %v1104 = vadd.f32 %v1102, %v1103
  %v1105 = vtanh.pop %v1104
  %v1106 = vmul.f32 %v1100, %v1105
  %1107 = vst [vmem:[#allocation4] sm:$0xff] %v1104
  %1108 = vst [vmem:[#allocation3] sm:$0xff] %v1106
  %s1109 = scalar_lea.vmem [#allocation2], 96
  %v1110 = vld [vmem:[%s1109] sm:$0xff]
  %v1111 = vld [vmem:[%s1109 + $0x8] sm:$0xff]
  %v1112 = vld [vmem:[%s1109 + $0x10] sm:$0xff]
  %v1113 = vld [vmem:[%s1109 + $0x18] sm:$0xff]
  %v1114 = vld [vmem:[#allocation3] sm:$0xff]
  %v1115 = vld [vmem:[%s3] sm:$0xff]
  %v1116 = vld [vmem:[%s3 + $0x8] sm:$0xff]
  %v1117 = vld [vmem:[%s3 + $0x10] sm:$0xff]
  %v1118 = vld [vmem:[%s3 + $0x18] sm:$0xff]
  %v1119 = vld [vmem:[%s3 + $0x20] sm:$0xff]
  %v1120 = vld [vmem:[%s3 + $0x28] sm:$0xff]
  %v1121 = vld [vmem:[%s3 + $0x30] sm:$0xff]
  %v1122 = vld [vmem:[%s3 + $0x38] sm:$0xff]
  %v1123 = vld [vmem:[%s3 + $0x40] sm:$0xff]
  %v1124 = vld [vmem:[%s3 + $0x48] sm:$0xff]
  %v1125 = vld [vmem:[%s3 + $0x50] sm:$0xff]
  %v1126 = vld [vmem:[%s3 + $0x58] sm:$0xff]
  %v1127 = vld [vmem:[%s3 + $0x60] sm:$0xff]
  %v1128 = vld [vmem:[%s3 + $0x68] sm:$0xff]
  %v1129 = vld [vmem:[%s3 + $0x70] sm:$0xff]
  %v1130 = vld [vmem:[%s3 + $0x78] sm:$0xff]
  %v1131 = vld [vmem:[%s3 + $0x80] sm:$0xff]
  %v1132 = vld [vmem:[%s3 + $0x88] sm:$0xff]
  %v1133 = vld [vmem:[%s3 + $0x90] sm:$0xff]
  %v1134 = vld [vmem:[%s3 + $0x98] sm:$0xff]
  %v1135 = vld [vmem:[%s3 + $0xa0] sm:$0xff]
  %v1136 = vld [vmem:[%s3 + $0xa8] sm:$0xff]
  %v1137 = vld [vmem:[%s3 + $0xb0] sm:$0xff]
  %v1138 = vld [vmem:[%s3 + $0xb8] sm:$0xff]
  %v1139 = vld [vmem:[%s3 + $0xc0] sm:$0xff]
  %v1140 = vld [vmem:[%s3 + $0xc8] sm:$0xff]
  %v1141 = vld [vmem:[%s3 + $0xd0] sm:$0xff]
  %v1142 = vld [vmem:[%s3 + $0xd8] sm:$0xff]
  %v1143 = vld [vmem:[%s3 + $0xe0] sm:$0xff]
  %v1144 = vld [vmem:[%s3 + $0xe8] sm:$0xff]
  %v1145 = vld [vmem:[%s3 + $0xf0] sm:$0xff]
  %v1146 = vld [vmem:[%s3 + $0xf8] sm:$0xff]
  %v1147 = vld [vmem:[%s3 + $0x100] sm:$0xff]
  %v1148 = vld [vmem:[%s3 + $0x108] sm:$0xff]
  %v1149 = vld [vmem:[%s3 + $0x110] sm:$0xff]
  %v1150 = vld [vmem:[%s3 + $0x118] sm:$0xff]
  %v1151 = vld [vmem:[%s3 + $0x120] sm:$0xff]
  %v1152 = vld [vmem:[%s3 + $0x128] sm:$0xff]
  %v1153 = vld [vmem:[%s3 + $0x130] sm:$0xff]
  %v1154 = vld [vmem:[%s3 + $0x138] sm:$0xff]
  %v1155 = vld [vmem:[%s3 + $0x140] sm:$0xff]
  %v1156 = vld [vmem:[%s3 + $0x148] sm:$0xff]
  %v1157 = vld [vmem:[%s3 + $0x150] sm:$0xff]
  %v1158 = vld [vmem:[%s3 + $0x158] sm:$0xff]
  %v1159 = vld [vmem:[%s3 + $0x160] sm:$0xff]
  %v1160 = vld [vmem:[%s3 + $0x168] sm:$0xff]
  %v1161 = vld [vmem:[%s3 + $0x170] sm:$0xff]
  %v1162 = vld [vmem:[%s3 + $0x178] sm:$0xff]
  %v1163 = vld [vmem:[%s3 + $0x180] sm:$0xff]
  %v1164 = vld [vmem:[%s3 + $0x188] sm:$0xff]
  %v1165 = vld [vmem:[%s3 + $0x190] sm:$0xff]
  %v1166 = vld [vmem:[%s3 + $0x198] sm:$0xff]
  %v1167 = vld [vmem:[%s3 + $0x1a0] sm:$0xff]
  %v1168 = vld [vmem:[%s3 + $0x1a8] sm:$0xff]
  %v1169 = vld [vmem:[%s3 + $0x1b0] sm:$0xff]
  %v1170 = vld [vmem:[%s3 + $0x1b8] sm:$0xff]
  %v1171 = vld [vmem:[%s3 + $0x1c0] sm:$0xff]
  %v1172 = vld [vmem:[%s3 + $0x1c8] sm:$0xff]
  %v1173 = vld [vmem:[%s3 + $0x1d0] sm:$0xff]
  %v1174 = vld [vmem:[%s3 + $0x1d8] sm:$0xff]
  %v1175 = vld [vmem:[%s3 + $0x1e0] sm:$0xff]
  %v1176 = vld [vmem:[%s3 + $0x1e8] sm:$0xff]
  %v1177 = vld [vmem:[%s3 + $0x1f0] sm:$0xff]
  %v1178 = vld [vmem:[%s3 + $0x1f8] sm:$0xff]
  %1179 = vmatprep.subr.mxu0 %v1176
  %1180 = vmatpush1.msra.mxu0 %v1175
  %1181 = vmatprep.subr.mxu0 %v1172
  %1182 = vmatpush1.msra.mxu0 %v1171
  %1183 = vmatprep.subr.mxu0 %v1168
  %1184 = vmatpush1.msra.mxu0 %v1167
  %1185 = vmatprep.subr.mxu0 %v1164
  %1186 = vmatpush1.msra.mxu0 %v1163
  %1187 = vmatprep.subr.mxu0 %v1160
  %1188 = vmatpush1.msra.mxu0 %v1159
  %1189 = vmatprep.subr.mxu0 %v1156
  %1190 = vmatpush1.msra.mxu0 %v1155
  %1191 = vmatprep.subr.mxu0 %v1152
  %1192 = vmatpush1.msra.mxu0 %v1151
  %1193 = vmatprep.subr.mxu0 %v1148
  %1194 = vmatpush1.msra.mxu0 %v1147
  %1195 = vmatprep.subr.mxu0 %v1144
  %1196 = vmatpush1.msra.mxu0 %v1143
  %1197 = vmatprep.subr.mxu0 %v1140
  %1198 = vmatpush1.msra.mxu0 %v1139
  %1199 = vmatprep.subr.mxu0 %v1136
  %1200 = vmatpush1.msra.mxu0 %v1135
  %1201 = vmatprep.subr.mxu0 %v1132
  %1202 = vmatpush1.msra.mxu0 %v1131
  %1203 = vmatprep.subr.mxu0 %v1128
  %1204 = vmatpush1.msra.mxu0 %v1127
  %1205 = vmatprep.subr.mxu0 %v1124
  %1206 = vmatpush1.msra.mxu0 %v1123
  %1207 = vmatprep.subr.mxu0 %v1120
  %1208 = vmatpush1.msra.mxu0 %v1119
  %1209 = vmatprep.subr.mxu0 %v1116
  %1210 = vmatpush1.msra.mxu0 %v1115
  %1211 = vmatprep.subr.mxu0 0.0
  %1212 = vmatpush2.msra.mxu0 0.0
  %1213 = vmatprep.subr.mxu0 0.0
  %1214 = vmatpush2.msra.mxu0 0.0
  %1215 = vmatprep.subr.mxu0 0.0
  %1216 = vmatpush2.msra.mxu0 0.0
  %1217 = vmatprep.subr.mxu0 0.0
  %1218 = vmatpush2.msra.mxu0 0.0
  %1219 = vmatprep.subr.mxu0 0.0
  %1220 = vmatpush2.msra.mxu0 0.0
  %1221 = vmatprep.subr.mxu0 0.0
  %1222 = vmatpush2.msra.mxu0 0.0
  %1223 = vmatprep.subr.mxu0 0.0
  %1224 = vmatpush2.msra.mxu0 0.0
  %1225 = vmatprep.subr.mxu0 0.0
  %1226 = vmatpush2.msra.mxu0 0.0
  %1227 = vmatprep.subr.mxu0 0.0
  %1228 = vmatpush2.msra.mxu0 0.0
  %1229 = vmatprep.subr.mxu0 0.0
  %1230 = vmatpush2.msra.mxu0 0.0
  %1231 = vmatprep.subr.mxu0 0.0
  %1232 = vmatpush2.msra.mxu0 0.0
  %1233 = vmatprep.subr.mxu0 0.0
  %1234 = vmatpush2.msra.mxu0 0.0
  %1235 = vmatprep.subr.mxu0 0.0
  %1236 = vmatpush2.msra.mxu0 0.0
  %1237 = vmatprep.subr.mxu0 0.0
  %1238 = vmatpush2.msra.mxu0 0.0
  %1239 = vmatprep.subr.mxu0 0.0
  %1240 = vmatpush2.msra.mxu0 0.0
  %1241 = vmatprep.subr.mxu0 0.0
  %1242 = vmatpush2.msra.mxu0 0.0
  %1243 = vmatprep.mubr.f32.mxu0 0.0
  %1244 = vmatmul.mubr.f32.gmra.mxu0 %v1114
  %v1245 = vpop.f32.mrf.mxu0
  %v1246 = vadd.f32 0.0, %v1245
  %v1247 = vpop.f32.mrf.mxu0
  %v1248 = vadd.f32 0.0, %v1247
  %1249 = vdwg.mxu0
  %1250 = vmatprep.subr.mxu0 %v1178
  %1251 = vmatpush1.msra.mxu0 %v1177
  %1252 = vmatprep.subr.mxu0 %v1174
  %1253 = vmatpush1.msra.mxu0 %v1173
  %1254 = vmatprep.subr.mxu0 %v1170
  %1255 = vmatpush1.msra.mxu0 %v1169
  %1256 = vmatprep.subr.mxu0 %v1166
  %1257 = vmatpush1.msra.mxu0 %v1165
  %1258 = vmatprep.subr.mxu0 %v1162
  %1259 = vmatpush1.msra.mxu0 %v1161
  %1260 = vmatprep.subr.mxu0 %v1158
  %1261 = vmatpush1.msra.mxu0 %v1157
  %1262 = vmatprep.subr.mxu0 %v1154
  %1263 = vmatpush1.msra.mxu0 %v1153
  %1264 = vmatprep.subr.mxu0 %v1150
  %1265 = vmatpush1.msra.mxu0 %v1149
  %1266 = vmatprep.subr.mxu0 %v1146
  %1267 = vmatpush1.msra.mxu0 %v1145
  %1268 = vmatprep.subr.mxu0 %v1142
  %1269 = vmatpush1.msra.mxu0 %v1141
  %1270 = vmatprep.subr.mxu0 %v1138
  %1271 = vmatpush1.msra.mxu0 %v1137
  %1272 = vmatprep.subr.mxu0 %v1134
  %1273 = vmatpush1.msra.mxu0 %v1133
  %1274 = vmatprep.subr.mxu0 %v1130
  %1275 = vmatpush1.msra.mxu0 %v1129
  %1276 = vmatprep.subr.mxu0 %v1126
  %1277 = vmatpush1.msra.mxu0 %v1125
  %1278 = vmatprep.subr.mxu0 %v1122
  %1279 = vmatpush1.msra.mxu0 %v1121
  %1280 = vmatprep.subr.mxu0 %v1118
  %1281 = vmatpush1.msra.mxu0 %v1117
  %1282 = vmatprep.subr.mxu0 0.0
  %1283 = vmatpush2.msra.mxu0 0.0
  %1284 = vmatprep.subr.mxu0 0.0
  %1285 = vmatpush2.msra.mxu0 0.0
  %1286 = vmatprep.subr.mxu0 0.0
  %1287 = vmatpush2.msra.mxu0 0.0
  %1288 = vmatprep.subr.mxu0 0.0
  %1289 = vmatpush2.msra.mxu0 0.0
  %1290 = vmatprep.subr.mxu0 0.0
  %1291 = vmatpush2.msra.mxu0 0.0
  %1292 = vmatprep.subr.mxu0 0.0
  %1293 = vmatpush2.msra.mxu0 0.0
  %1294 = vmatprep.subr.mxu0 0.0
  %1295 = vmatpush2.msra.mxu0 0.0
  %1296 = vmatprep.subr.mxu0 0.0
  %1297 = vmatpush2.msra.mxu0 0.0
  %1298 = vmatprep.subr.mxu0 0.0
  %1299 = vmatpush2.msra.mxu0 0.0
  %1300 = vmatprep.subr.mxu0 0.0
  %1301 = vmatpush2.msra.mxu0 0.0
  %1302 = vmatprep.subr.mxu0 0.0
  %1303 = vmatpush2.msra.mxu0 0.0
  %1304 = vmatprep.subr.mxu0 0.0
  %1305 = vmatpush2.msra.mxu0 0.0
  %1306 = vmatprep.subr.mxu0 0.0
  %1307 = vmatpush2.msra.mxu0 0.0
  %1308 = vmatprep.subr.mxu0 0.0
  %1309 = vmatpush2.msra.mxu0 0.0
  %1310 = vmatprep.subr.mxu0 0.0
  %1311 = vmatpush2.msra.mxu0 0.0
  %1312 = vmatprep.subr.mxu0 0.0
  %1313 = vmatpush2.msra.mxu0 0.0
  %1314 = vmatprep.mubr.f32.mxu0 0.0
  %1315 = vmatmul.mubr.f32.gmra.mxu0 %v1114
  %v1316 = vpop.f32.mrf.mxu0
  %v1317 = vadd.f32 0.0, %v1316
  %v1318 = vpop.f32.mrf.mxu0
  %v1319 = vadd.f32 0.0, %v1318
  %1320 = vdwg.mxu0
  %v1321 = vadd.f32 %v1110, %v1246
  %v1322 = vadd.f32 %v1111, %v1248
  %v1323 = vadd.f32 %v1112, %v1317
  %v1324 = vadd.f32 %v1113, %v1319
  %v1325 = vxor.u32 %v1321, 2147483648
  %v1326 = vmul.f32 %v1325, 1.442695
  %v1327 = vpow.pop %v1326
  %v1328 = vadd.f32 %v1327, 1.0
  %v1329 = vrcp.pop %v1328
  %v1330 = vmul.f32 1.0, %v1329
  %v1331 = vxor.u32 %v1322, 2147483648
  %v1332 = vmul.f32 %v1331, 1.442695
  %v1333 = vpow.pop %v1332
  %v1334 = vadd.f32 %v1333, 1.0
  %v1335 = vrcp.pop %v1334
  %v1336 = vmul.f32 1.0, %v1335
  %v1337 = vtanh.pop %v1323
  %v1338 = vxor.u32 %v1324, 2147483648
  %v1339 = vmul.f32 %v1338, 1.442695
  %v1340 = vpow.pop %v1339
  %v1341 = vadd.f32 %v1340, 1.0
  %v1342 = vrcp.pop %v1341
  %v1343 = vmul.f32 1.0, %v1342
  %v1344 = vld [vmem:[#allocation4] sm:$0xff]
  %v1345 = vmul.f32 %v1336, %v1344
  %v1346 = vmul.f32 %v1330, %v1337
  %v1347 = vadd.f32 %v1345, %v1346
  %v1348 = vtanh.pop %v1347
  %v1349 = vmul.f32 %v1343, %v1348
  %1350 = vst [vmem:[#allocation4] sm:$0xff] %v1347
  %1351 = vst [vmem:[#allocation3] sm:$0xff] %v1349
  %s1352 = scalar_lea.vmem [#allocation2], 128
  %v1353 = vld [vmem:[%s1352] sm:$0xff]
  %v1354 = vld [vmem:[%s1352 + $0x8] sm:$0xff]
  %v1355 = vld [vmem:[%s1352 + $0x10] sm:$0xff]
  %v1356 = vld [vmem:[%s1352 + $0x18] sm:$0xff]
  %v1357 = vld [vmem:[#allocation3] sm:$0xff]
  %v1358 = vld [vmem:[%s3] sm:$0xff]
  %v1359 = vld [vmem:[%s3 + $0x8] sm:$0xff]
  %v1360 = vld [vmem:[%s3 + $0x10] sm:$0xff]
  %v1361 = vld [vmem:[%s3 + $0x18] sm:$0xff]
  %v1362 = vld [vmem:[%s3 + $0x20] sm:$0xff]
  %v1363 = vld [vmem:[%s3 + $0x28] sm:$0xff]
  %v1364 = vld [vmem:[%s3 + $0x30] sm:$0xff]
  %v1365 = vld [vmem:[%s3 + $0x38] sm:$0xff]
  %v1366 = vld [vmem:[%s3 + $0x40] sm:$0xff]
  %v1367 = vld [vmem:[%s3 + $0x48] sm:$0xff]
  %v1368 = vld [vmem:[%s3 + $0x50] sm:$0xff]
  %v1369 = vld [vmem:[%s3 + $0x58] sm:$0xff]
  %v1370 = vld [vmem:[%s3 + $0x60] sm:$0xff]
  %v1371 = vld [vmem:[%s3 + $0x68] sm:$0xff]
  %v1372 = vld [vmem:[%s3 + $0x70] sm:$0xff]
  %v1373 = vld [vmem:[%s3 + $0x78] sm:$0xff]
  %v1374 = vld [vmem:[%s3 + $0x80] sm:$0xff]
  %v1375 = vld [vmem:[%s3 + $0x88] sm:$0xff]
  %v1376 = vld [vmem:[%s3 + $0x90] sm:$0xff]
  %v1377 = vld [vmem:[%s3 + $0x98] sm:$0xff]
  %v1378 = vld [vmem:[%s3 + $0xa0] sm:$0xff]
  %v1379 = vld [vmem:[%s3 + $0xa8] sm:$0xff]
  %v1380 = vld [vmem:[%s3 + $0xb0] sm:$0xff]
  %v1381 = vld [vmem:[%s3 + $0xb8] sm:$0xff]
  %v1382 = vld [vmem:[%s3 + $0xc0] sm:$0xff]
  %v1383 = vld [vmem:[%s3 + $0xc8] sm:$0xff]
  %v1384 = vld [vmem:[%s3 + $0xd0] sm:$0xff]
  %v1385 = vld [vmem:[%s3 + $0xd8] sm:$0xff]
  %v1386 = vld [vmem:[%s3 + $0xe0] sm:$0xff]
  %v1387 = vld [vmem:[%s3 + $0xe8] sm:$0xff]
  %v1388 = vld [vmem:[%s3 + $0xf0] sm:$0xff]
  %v1389 = vld [vmem:[%s3 + $0xf8] sm:$0xff]
  %v1390 = vld [vmem:[%s3 + $0x100] sm:$0xff]
  %v1391 = vld [vmem:[%s3 + $0x108] sm:$0xff]
  %v1392 = vld [vmem:[%s3 + $0x110] sm:$0xff]
  %v1393 = vld [vmem:[%s3 + $0x118] sm:$0xff]
  %v1394 = vld [vmem:[%s3 + $0x120] sm:$0xff]
  %v1395 = vld [vmem:[%s3 + $0x128] sm:$0xff]
  %v1396 = vld [vmem:[%s3 + $0x130] sm:$0xff]
  %v1397 = vld [vmem:[%s3 + $0x138] sm:$0xff]
  %v1398 = vld [vmem:[%s3 + $0x140] sm:$0xff]
  %v1399 = vld [vmem:[%s3 + $0x148] sm:$0xff]
  %v1400 = vld [vmem:[%s3 + $0x150] sm:$0xff]
  %v1401 = vld [vmem:[%s3 + $0x158] sm:$0xff]
  %v1402 = vld [vmem:[%s3 + $0x160] sm:$0xff]
  %v1403 = vld [vmem:[%s3 + $0x168] sm:$0xff]
  %v1404 = vld [vmem:[%s3 + $0x170] sm:$0xff]
  %v1405 = vld [vmem:[%s3 + $0x178] sm:$0xff]
  %v1406 = vld [vmem:[%s3 + $0x180] sm:$0xff]
  %v1407 = vld [vmem:[%s3 + $0x188] sm:$0xff]
  %v1408 = vld [vmem:[%s3 + $0x190] sm:$0xff]
  %v1409 = vld [vmem:[%s3 + $0x198] sm:$0xff]
  %v1410 = vld [vmem:[%s3 + $0x1a0] sm:$0xff]
  %v1411 = vld [vmem:[%s3 + $0x1a8] sm:$0xff]
  %v1412 = vld [vmem:[%s3 + $0x1b0] sm:$0xff]
  %v1413 = vld [vmem:[%s3 + $0x1b8] sm:$0xff]
  %v1414 = vld [vmem:[%s3 + $0x1c0] sm:$0xff]
  %v1415 = vld [vmem:[%s3 + $0x1c8] sm:$0xff]
  %v1416 = vld [vmem:[%s3 + $0x1d0] sm:$0xff]
  %v1417 = vld [vmem:[%s3 + $0x1d8] sm:$0xff]
  %v1418 = vld [vmem:[%s3 + $0x1e0] sm:$0xff]
  %v1419 = vld [vmem:[%s3 + $0x1e8] sm:$0xff]
  %v1420 = vld [vmem:[%s3 + $0x1f0] sm:$0xff]
  %v1421 = vld [vmem:[%s3 + $0x1f8] sm:$0xff]
  %1422 = vmatprep.subr.mxu0 %v1419
  %1423 = vmatpush1.msra.mxu0 %v1418
  %1424 = vmatprep.subr.mxu0 %v1415
  %1425 = vmatpush1.msra.mxu0 %v1414
  %1426 = vmatprep.subr.mxu0 %v1411
  %1427 = vmatpush1.msra.mxu0 %v1410
  %1428 = vmatprep.subr.mxu0 %v1407
  %1429 = vmatpush1.msra.mxu0 %v1406
  %1430 = vmatprep.subr.mxu0 %v1403
  %1431 = vmatpush1.msra.mxu0 %v1402
  %1432 = vmatprep.subr.mxu0 %v1399
  %1433 = vmatpush1.msra.mxu0 %v1398
  %1434 = vmatprep.subr.mxu0 %v1395
  %1435 = vmatpush1.msra.mxu0 %v1394
  %1436 = vmatprep.subr.mxu0 %v1391
  %1437 = vmatpush1.msra.mxu0 %v1390
  %1438 = vmatprep.subr.mxu0 %v1387
  %1439 = vmatpush1.msra.mxu0 %v1386
  %1440 = vmatprep.subr.mxu0 %v1383
  %1441 = vmatpush1.msra.mxu0 %v1382
  %1442 = vmatprep.subr.mxu0 %v1379
  %1443 = vmatpush1.msra.mxu0 %v1378
  %1444 = vmatprep.subr.mxu0 %v1375
  %1445 = vmatpush1.msra.mxu0 %v1374
  %1446 = vmatprep.subr.mxu0 %v1371
  %1447 = vmatpush1.msra.mxu0 %v1370
  %1448 = vmatprep.subr.mxu0 %v1367
  %1449 = vmatpush1.msra.mxu0 %v1366
  %1450 = vmatprep.subr.mxu0 %v1363
  %1451 = vmatpush1.msra.mxu0 %v1362
  %1452 = vmatprep.subr.mxu0 %v1359
  %1453 = vmatpush1.msra.mxu0 %v1358
  %1454 = vmatprep.subr.mxu0 0.0
  %1455 = vmatpush2.msra.mxu0 0.0
  %1456 = vmatprep.subr.mxu0 0.0
  %1457 = vmatpush2.msra.mxu0 0.0
  %1458 = vmatprep.subr.mxu0 0.0
  %1459 = vmatpush2.msra.mxu0 0.0
  %1460 = vmatprep.subr.mxu0 0.0
  %1461 = vmatpush2.msra.mxu0 0.0
  %1462 = vmatprep.subr.mxu0 0.0
  %1463 = vmatpush2.msra.mxu0 0.0
  %1464 = vmatprep.subr.mxu0 0.0
  %1465 = vmatpush2.msra.mxu0 0.0
  %1466 = vmatprep.subr.mxu0 0.0
  %1467 = vmatpush2.msra.mxu0 0.0
  %1468 = vmatprep.subr.mxu0 0.0
  %1469 = vmatpush2.msra.mxu0 0.0
  %1470 = vmatprep.subr.mxu0 0.0
  %1471 = vmatpush2.msra.mxu0 0.0
  %1472 = vmatprep.subr.mxu0 0.0
  %1473 = vmatpush2.msra.mxu0 0.0
  %1474 = vmatprep.subr.mxu0 0.0
  %1475 = vmatpush2.msra.mxu0 0.0
  %1476 = vmatprep.subr.mxu0 0.0
  %1477 = vmatpush2.msra.mxu0 0.0
  %1478 = vmatprep.subr.mxu0 0.0
  %1479 = vmatpush2.msra.mxu0 0.0
  %1480 = vmatprep.subr.mxu0 0.0
  %1481 = vmatpush2.msra.mxu0 0.0
  %1482 = vmatprep.subr.mxu0 0.0
  %1483 = vmatpush2.msra.mxu0 0.0
  %1484 = vmatprep.subr.mxu0 0.0
  %1485 = vmatpush2.msra.mxu0 0.0
  %1486 = vmatprep.mubr.f32.mxu0 0.0
  %1487 = vmatmul.mubr.f32.gmra.mxu0 %v1357
  %v1488 = vpop.f32.mrf.mxu0
  %v1489 = vadd.f32 0.0, %v1488
  %v1490 = vpop.f32.mrf.mxu0
  %v1491 = vadd.f32 0.0, %v1490
  %1492 = vdwg.mxu0
  %1493 = vmatprep.subr.mxu0 %v1421
  %1494 = vmatpush1.msra.mxu0 %v1420
  %1495 = vmatprep.subr.mxu0 %v1417
  %1496 = vmatpush1.msra.mxu0 %v1416
  %1497 = vmatprep.subr.mxu0 %v1413
  %1498 = vmatpush1.msra.mxu0 %v1412
  %1499 = vmatprep.subr.mxu0 %v1409
  %1500 = vmatpush1.msra.mxu0 %v1408
  %1501 = vmatprep.subr.mxu0 %v1405
  %1502 = vmatpush1.msra.mxu0 %v1404
  %1503 = vmatprep.subr.mxu0 %v1401
  %1504 = vmatpush1.msra.mxu0 %v1400
  %1505 = vmatprep.subr.mxu0 %v1397
  %1506 = vmatpush1.msra.mxu0 %v1396
  %1507 = vmatprep.subr.mxu0 %v1393
  %1508 = vmatpush1.msra.mxu0 %v1392
  %1509 = vmatprep.subr.mxu0 %v1389
  %1510 = vmatpush1.msra.mxu0 %v1388
  %1511 = vmatprep.subr.mxu0 %v1385
  %1512 = vmatpush1.msra.mxu0 %v1384
  %1513 = vmatprep.subr.mxu0 %v1381
  %1514 = vmatpush1.msra.mxu0 %v1380
  %1515 = vmatprep.subr.mxu0 %v1377
  %1516 = vmatpush1.msra.mxu0 %v1376
  %1517 = vmatprep.subr.mxu0 %v1373
  %1518 = vmatpush1.msra.mxu0 %v1372
  %1519 = vmatprep.subr.mxu0 %v1369
  %1520 = vmatpush1.msra.mxu0 %v1368
  %1521 = vmatprep.subr.mxu0 %v1365
  %1522 = vmatpush1.msra.mxu0 %v1364
  %1523 = vmatprep.subr.mxu0 %v1361
  %1524 = vmatpush1.msra.mxu0 %v1360
  %1525 = vmatprep.subr.mxu0 0.0
  %1526 = vmatpush2.msra.mxu0 0.0
  %1527 = vmatprep.subr.mxu0 0.0
  %1528 = vmatpush2.msra.mxu0 0.0
  %1529 = vmatprep.subr.mxu0 0.0
  %1530 = vmatpush2.msra.mxu0 0.0
  %1531 = vmatprep.subr.mxu0 0.0
  %1532 = vmatpush2.msra.mxu0 0.0
  %1533 = vmatprep.subr.mxu0 0.0
  %1534 = vmatpush2.msra.mxu0 0.0
  %1535 = vmatprep.subr.mxu0 0.0
  %1536 = vmatpush2.msra.mxu0 0.0
  %1537 = vmatprep.subr.mxu0 0.0
  %1538 = vmatpush2.msra.mxu0 0.0
  %1539 = vmatprep.subr.mxu0 0.0
  %1540 = vmatpush2.msra.mxu0 0.0
  %1541 = vmatprep.subr.mxu0 0.0
  %1542 = vmatpush2.msra.mxu0 0.0
  %1543 = vmatprep.subr.mxu0 0.0
  %1544 = vmatpush2.msra.mxu0 0.0
  %1545 = vmatprep.subr.mxu0 0.0
  %1546 = vmatpush2.msra.mxu0 0.0
  %1547 = vmatprep.subr.mxu0 0.0
  %1548 = vmatpush2.msra.mxu0 0.0
  %1549 = vmatprep.subr.mxu0 0.0
  %1550 = vmatpush2.msra.mxu0 0.0
  %1551 = vmatprep.subr.mxu0 0.0
  %1552 = vmatpush2.msra.mxu0 0.0
  %1553 = vmatprep.subr.mxu0 0.0
  %1554 = vmatpush2.msra.mxu0 0.0
  %1555 = vmatprep.subr.mxu0 0.0
  %1556 = vmatpush2.msra.mxu0 0.0
  %1557 = vmatprep.mubr.f32.mxu0 0.0
  %1558 = vmatmul.mubr.f32.gmra.mxu0 %v1357
  %v1559 = vpop.f32.mrf.mxu0
  %v1560 = vadd.f32 0.0, %v1559
  %v1561 = vpop.f32.mrf.mxu0
  %v1562 = vadd.f32 0.0, %v1561
  %1563 = vdwg.mxu0
  %v1564 = vadd.f32 %v1353, %v1489
  %v1565 = vadd.f32 %v1354, %v1491
  %v1566 = vadd.f32 %v1355, %v1560
  %v1567 = vadd.f32 %v1356, %v1562
  %v1568 = vxor.u32 %v1564, 2147483648
  %v1569 = vmul.f32 %v1568, 1.442695
  %v1570 = vpow.pop %v1569
  %v1571 = vadd.f32 %v1570, 1.0
  %v1572 = vrcp.pop %v1571
  %v1573 = vmul.f32 1.0, %v1572
  %v1574 = vxor.u32 %v1565, 2147483648
  %v1575 = vmul.f32 %v1574, 1.442695
  %v1576 = vpow.pop %v1575
  %v1577 = vadd.f32 %v1576, 1.0
  %v1578 = vrcp.pop %v1577
  %v1579 = vmul.f32 1.0, %v1578
  %v1580 = vtanh.pop %v1566
  %v1581 = vxor.u32 %v1567, 2147483648
  %v1582 = vmul.f32 %v1581, 1.442695
  %v1583 = vpow.pop %v1582
  %v1584 = vadd.f32 %v1583, 1.0
  %v1585 = vrcp.pop %v1584
  %v1586 = vmul.f32 1.0, %v1585
  %v1587 = vld [vmem:[#allocation4] sm:$0xff]
  %v1588 = vmul.f32 %v1579, %v1587
  %v1589 = vmul.f32 %v1573, %v1580
  %v1590 = vadd.f32 %v1588, %v1589
  %v1591 = vtanh.pop %v1590
  %v1592 = vmul.f32 %v1586, %v1591
  %1593 = vst [vmem:[#allocation4] sm:$0xff] %v1590
  %1594 = vst [vmem:[#allocation3] sm:$0xff] %v1592
  %s1595 = scalar_lea.vmem [#allocation2], 160
  %v1596 = vld [vmem:[%s1595] sm:$0xff]
  %v1597 = vld [vmem:[%s1595 + $0x8] sm:$0xff]
  %v1598 = vld [vmem:[%s1595 + $0x10] sm:$0xff]
  %v1599 = vld [vmem:[%s1595 + $0x18] sm:$0xff]
  %v1600 = vld [vmem:[#allocation3] sm:$0xff]
  %v1601 = vld [vmem:[%s3] sm:$0xff]
  %v1602 = vld [vmem:[%s3 + $0x8] sm:$0xff]
  %v1603 = vld [vmem:[%s3 + $0x10] sm:$0xff]
  %v1604 = vld [vmem:[%s3 + $0x18] sm:$0xff]
  %v1605 = vld [vmem:[%s3 + $0x20] sm:$0xff]
  %v1606 = vld [vmem:[%s3 + $0x28] sm:$0xff]
  %v1607 = vld [vmem:[%s3 + $0x30] sm:$0xff]
  %v1608 = vld [vmem:[%s3 + $0x38] sm:$0xff]
  %v1609 = vld [vmem:[%s3 + $0x40] sm:$0xff]
  %v1610 = vld [vmem:[%s3 + $0x48] sm:$0xff]
  %v1611 = vld [vmem:[%s3 + $0x50] sm:$0xff]
  %v1612 = vld [vmem:[%s3 + $0x58] sm:$0xff]
  %v1613 = vld [vmem:[%s3 + $0x60] sm:$0xff]
  %v1614 = vld [vmem:[%s3 + $0x68] sm:$0xff]
  %v1615 = vld [vmem:[%s3 + $0x70] sm:$0xff]
  %v1616 = vld [vmem:[%s3 + $0x78] sm:$0xff]
  %v1617 = vld [vmem:[%s3 + $0x80] sm:$0xff]
  %v1618 = vld [vmem:[%s3 + $0x88] sm:$0xff]
  %v1619 = vld [vmem:[%s3 + $0x90] sm:$0xff]
  %v1620 = vld [vmem:[%s3 + $0x98] sm:$0xff]
  %v1621 = vld [vmem:[%s3 + $0xa0] sm:$0xff]
  %v1622 = vld [vmem:[%s3 + $0xa8] sm:$0xff]
  %v1623 = vld [vmem:[%s3 + $0xb0] sm:$0xff]
  %v1624 = vld [vmem:[%s3 + $0xb8] sm:$0xff]
  %v1625 = vld [vmem:[%s3 + $0xc0] sm:$0xff]
  %v1626 = vld [vmem:[%s3 + $0xc8] sm:$0xff]
  %v1627 = vld [vmem:[%s3 + $0xd0] sm:$0xff]
  %v1628 = vld [vmem:[%s3 + $0xd8] sm:$0xff]
  %v1629 = vld [vmem:[%s3 + $0xe0] sm:$0xff]
  %v1630 = vld [vmem:[%s3 + $0xe8] sm:$0xff]
  %v1631 = vld [vmem:[%s3 + $0xf0] sm:$0xff]
  %v1632 = vld [vmem:[%s3 + $0xf8] sm:$0xff]
  %v1633 = vld [vmem:[%s3 + $0x100] sm:$0xff]
  %v1634 = vld [vmem:[%s3 + $0x108] sm:$0xff]
  %v1635 = vld [vmem:[%s3 + $0x110] sm:$0xff]
  %v1636 = vld [vmem:[%s3 + $0x118] sm:$0xff]
  %v1637 = vld [vmem:[%s3 + $0x120] sm:$0xff]
  %v1638 = vld [vmem:[%s3 + $0x128] sm:$0xff]
  %v1639 = vld [vmem:[%s3 + $0x130] sm:$0xff]
  %v1640 = vld [vmem:[%s3 + $0x138] sm:$0xff]
  %v1641 = vld [vmem:[%s3 + $0x140] sm:$0xff]
  %v1642 = vld [vmem:[%s3 + $0x148] sm:$0xff]
  %v1643 = vld [vmem:[%s3 + $0x150] sm:$0xff]
  %v1644 = vld [vmem:[%s3 + $0x158] sm:$0xff]
  %v1645 = vld [vmem:[%s3 + $0x160] sm:$0xff]
  %v1646 = vld [vmem:[%s3 + $0x168] sm:$0xff]
  %v1647 = vld [vmem:[%s3 + $0x170] sm:$0xff]
  %v1648 = vld [vmem:[%s3 + $0x178] sm:$0xff]
  %v1649 = vld [vmem:[%s3 + $0x180] sm:$0xff]
  %v1650 = vld [vmem:[%s3 + $0x188] sm:$0xff]
  %v1651 = vld [vmem:[%s3 + $0x190] sm:$0xff]
  %v1652 = vld [vmem:[%s3 + $0x198] sm:$0xff]
  %v1653 = vld [vmem:[%s3 + $0x1a0] sm:$0xff]
  %v1654 = vld [vmem:[%s3 + $0x1a8] sm:$0xff]
  %v1655 = vld [vmem:[%s3 + $0x1b0] sm:$0xff]
  %v1656 = vld [vmem:[%s3 + $0x1b8] sm:$0xff]
  %v1657 = vld [vmem:[%s3 + $0x1c0] sm:$0xff]
  %v1658 = vld [vmem:[%s3 + $0x1c8] sm:$0xff]
  %v1659 = vld [vmem:[%s3 + $0x1d0] sm:$0xff]
  %v1660 = vld [vmem:[%s3 + $0x1d8] sm:$0xff]
  %v1661 = vld [vmem:[%s3 + $0x1e0] sm:$0xff]
  %v1662 = vld [vmem:[%s3 + $0x1e8] sm:$0xff]
  %v1663 = vld [vmem:[%s3 + $0x1f0] sm:$0xff]
  %v1664 = vld [vmem:[%s3 + $0x1f8] sm:$0xff]
  %1665 = vmatprep.subr.mxu0 %v1662
  %1666 = vmatpush1.msra.mxu0 %v1661
  %1667 = vmatprep.subr.mxu0 %v1658
  %1668 = vmatpush1.msra.mxu0 %v1657
  %1669 = vmatprep.subr.mxu0 %v1654
  %1670 = vmatpush1.msra.mxu0 %v1653
  %1671 = vmatprep.subr.mxu0 %v1650
  %1672 = vmatpush1.msra.mxu0 %v1649
  %1673 = vmatprep.subr.mxu0 %v1646
  %1674 = vmatpush1.msra.mxu0 %v1645
  %1675 = vmatprep.subr.mxu0 %v1642
  %1676 = vmatpush1.msra.mxu0 %v1641
  %1677 = vmatprep.subr.mxu0 %v1638
  %1678 = vmatpush1.msra.mxu0 %v1637
  %1679 = vmatprep.subr.mxu0 %v1634
  %1680 = vmatpush1.msra.mxu0 %v1633
  %1681 = vmatprep.subr.mxu0 %v1630
  %1682 = vmatpush1.msra.mxu0 %v1629
  %1683 = vmatprep.subr.mxu0 %v1626
  %1684 = vmatpush1.msra.mxu0 %v1625
  %1685 = vmatprep.subr.mxu0 %v1622
  %1686 = vmatpush1.msra.mxu0 %v1621
  %1687 = vmatprep.subr.mxu0 %v1618
  %1688 = vmatpush1.msra.mxu0 %v1617
  %1689 = vmatprep.subr.mxu0 %v1614
  %1690 = vmatpush1.msra.mxu0 %v1613
  %1691 = vmatprep.subr.mxu0 %v1610
  %1692 = vmatpush1.msra.mxu0 %v1609
  %1693 = vmatprep.subr.mxu0 %v1606
  %1694 = vmatpush1.msra.mxu0 %v1605
  %1695 = vmatprep.subr.mxu0 %v1602
  %1696 = vmatpush1.msra.mxu0 %v1601
  %1697 = vmatprep.subr.mxu0 0.0
  %1698 = vmatpush2.msra.mxu0 0.0
  %1699 = vmatprep.subr.mxu0 0.0
  %1700 = vmatpush2.msra.mxu0 0.0
  %1701 = vmatprep.subr.mxu0 0.0
  %1702 = vmatpush2.msra.mxu0 0.0
  %1703 = vmatprep.subr.mxu0 0.0
  %1704 = vmatpush2.msra.mxu0 0.0
  %1705 = vmatprep.subr.mxu0 0.0
  %1706 = vmatpush2.msra.mxu0 0.0
  %1707 = vmatprep.subr.mxu0 0.0
  %1708 = vmatpush2.msra.mxu0 0.0
  %1709 = vmatprep.subr.mxu0 0.0
  %1710 = vmatpush2.msra.mxu0 0.0
  %1711 = vmatprep.subr.mxu0 0.0
  %1712 = vmatpush2.msra.mxu0 0.0
  %1713 = vmatprep.subr.mxu0 0.0
  %1714 = vmatpush2.msra.mxu0 0.0
  %1715 = vmatprep.subr.mxu0 0.0
  %1716 = vmatpush2.msra.mxu0 0.0
  %1717 = vmatprep.subr.mxu0 0.0
  %1718 = vmatpush2.msra.mxu0 0.0
  %1719 = vmatprep.subr.mxu0 0.0
  %1720 = vmatpush2.msra.mxu0 0.0
  %1721 = vmatprep.subr.mxu0 0.0
  %1722 = vmatpush2.msra.mxu0 0.0
  %1723 = vmatprep.subr.mxu0 0.0
  %1724 = vmatpush2.msra.mxu0 0.0
  %1725 = vmatprep.subr.mxu0 0.0
  %1726 = vmatpush2.msra.mxu0 0.0
  %1727 = vmatprep.subr.mxu0 0.0
  %1728 = vmatpush2.msra.mxu0 0.0
  %1729 = vmatprep.mubr.f32.mxu0 0.0
  %1730 = vmatmul.mubr.f32.gmra.mxu0 %v1600
  %v1731 = vpop.f32.mrf.mxu0
  %v1732 = vadd.f32 0.0, %v1731
  %v1733 = vpop.f32.mrf.mxu0
  %v1734 = vadd.f32 0.0, %v1733
  %1735 = vdwg.mxu0
  %1736 = vmatprep.subr.mxu0 %v1664
  %1737 = vmatpush1.msra.mxu0 %v1663
  %1738 = vmatprep.subr.mxu0 %v1660
  %1739 = vmatpush1.msra.mxu0 %v1659
  %1740 = vmatprep.subr.mxu0 %v1656
  %1741 = vmatpush1.msra.mxu0 %v1655
  %1742 = vmatprep.subr.mxu0 %v1652
  %1743 = vmatpush1.msra.mxu0 %v1651
  %1744 = vmatprep.subr.mxu0 %v1648
  %1745 = vmatpush1.msra.mxu0 %v1647
  %1746 = vmatprep.subr.mxu0 %v1644
  %1747 = vmatpush1.msra.mxu0 %v1643
  %1748 = vmatprep.subr.mxu0 %v1640
  %1749 = vmatpush1.msra.mxu0 %v1639
  %1750 = vmatprep.subr.mxu0 %v1636
  %1751 = vmatpush1.msra.mxu0 %v1635
  %1752 = vmatprep.subr.mxu0 %v1632
  %1753 = vmatpush1.msra.mxu0 %v1631
  %1754 = vmatprep.subr.mxu0 %v1628
  %1755 = vmatpush1.msra.mxu0 %v1627
  %1756 = vmatprep.subr.mxu0 %v1624
  %1757 = vmatpush1.msra.mxu0 %v1623
  %1758 = vmatprep.subr.mxu0 %v1620
  %1759 = vmatpush1.msra.mxu0 %v1619
  %1760 = vmatprep.subr.mxu0 %v1616
  %1761 = vmatpush1.msra.mxu0 %v1615
  %1762 = vmatprep.subr.mxu0 %v1612
  %1763 = vmatpush1.msra.mxu0 %v1611
  %1764 = vmatprep.subr.mxu0 %v1608
  %1765 = vmatpush1.msra.mxu0 %v1607
  %1766 = vmatprep.subr.mxu0 %v1604
  %1767 = vmatpush1.msra.mxu0 %v1603
  %1768 = vmatprep.subr.mxu0 0.0
  %1769 = vmatpush2.msra.mxu0 0.0
  %1770 = vmatprep.subr.mxu0 0.0
  %1771 = vmatpush2.msra.mxu0 0.0
  %1772 = vmatprep.subr.mxu0 0.0
  %1773 = vmatpush2.msra.mxu0 0.0
  %1774 = vmatprep.subr.mxu0 0.0
  %1775 = vmatpush2.msra.mxu0 0.0
  %1776 = vmatprep.subr.mxu0 0.0
  %1777 = vmatpush2.msra.mxu0 0.0
  %1778 = vmatprep.subr.mxu0 0.0
  %1779 = vmatpush2.msra.mxu0 0.0
  %1780 = vmatprep.subr.mxu0 0.0
  %1781 = vmatpush2.msra.mxu0 0.0
  %1782 = vmatprep.subr.mxu0 0.0
  %1783 = vmatpush2.msra.mxu0 0.0
  %1784 = vmatprep.subr.mxu0 0.0
  %1785 = vmatpush2.msra.mxu0 0.0
  %1786 = vmatprep.subr.mxu0 0.0
  %1787 = vmatpush2.msra.mxu0 0.0
  %1788 = vmatprep.subr.mxu0 0.0
  %1789 = vmatpush2.msra.mxu0 0.0
  %1790 = vmatprep.subr.mxu0 0.0
  %1791 = vmatpush2.msra.mxu0 0.0
  %1792 = vmatprep.subr.mxu0 0.0
  %1793 = vmatpush2.msra.mxu0 0.0
  %1794 = vmatprep.subr.mxu0 0.0
  %1795 = vmatpush2.msra.mxu0 0.0
  %1796 = vmatprep.subr.mxu0 0.0
  %1797 = vmatpush2.msra.mxu0 0.0
  %1798 = vmatprep.subr.mxu0 0.0
  %1799 = vmatpush2.msra.mxu0 0.0
  %1800 = vmatprep.mubr.f32.mxu0 0.0
  %1801 = vmatmul.mubr.f32.gmra.mxu0 %v1600
  %v1802 = vpop.f32.mrf.mxu0
  %v1803 = vadd.f32 0.0, %v1802
  %v1804 = vpop.f32.mrf.mxu0
  %v1805 = vadd.f32 0.0, %v1804
  %1806 = vdwg.mxu0
  %v1807 = vadd.f32 %v1596, %v1732
  %v1808 = vadd.f32 %v1597, %v1734
  %v1809 = vadd.f32 %v1598, %v1803
  %v1810 = vadd.f32 %v1599, %v1805
  %v1811 = vxor.u32 %v1807, 2147483648
  %v1812 = vmul.f32 %v1811, 1.442695
  %v1813 = vpow.pop %v1812
  %v1814 = vadd.f32 %v1813, 1.0
  %v1815 = vrcp.pop %v1814
  %v1816 = vmul.f32 1.0, %v1815
  %v1817 = vxor.u32 %v1808, 2147483648
  %v1818 = vmul.f32 %v1817, 1.442695
  %v1819 = vpow.pop %v1818
  %v1820 = vadd.f32 %v1819, 1.0
  %v1821 = vrcp.pop %v1820
  %v1822 = vmul.f32 1.0, %v1821
  %v1823 = vtanh.pop %v1809
  %v1824 = vxor.u32 %v1810, 2147483648
  %v1825 = vmul.f32 %v1824, 1.442695
  %v1826 = vpow.pop %v1825
  %v1827 = vadd.f32 %v1826, 1.0
  %v1828 = vrcp.pop %v1827
  %v1829 = vmul.f32 1.0, %v1828
  %v1830 = vld [vmem:[#allocation4] sm:$0xff]
  %v1831 = vmul.f32 %v1822, %v1830
  %v1832 = vmul.f32 %v1816, %v1823
  %v1833 = vadd.f32 %v1831, %v1832
  %v1834 = vtanh.pop %v1833
  %v1835 = vmul.f32 %v1829, %v1834
  %1836 = vst [vmem:[#allocation4] sm:$0xff] %v1833
  %1837 = vst [vmem:[#allocation3] sm:$0xff] %v1835
  %s1838 = scalar_lea.vmem [#allocation2], 192
  %v1839 = vld [vmem:[%s1838] sm:$0xff]
  %v1840 = vld [vmem:[%s1838 + $0x8] sm:$0xff]
  %v1841 = vld [vmem:[%s1838 + $0x10] sm:$0xff]
  %v1842 = vld [vmem:[%s1838 + $0x18] sm:$0xff]
  %v1843 = vld [vmem:[#allocation3] sm:$0xff]
  %v1844 = vld [vmem:[%s3] sm:$0xff]
  %v1845 = vld [vmem:[%s3 + $0x8] sm:$0xff]
  %v1846 = vld [vmem:[%s3 + $0x10] sm:$0xff]
  %v1847 = vld [vmem:[%s3 + $0x18] sm:$0xff]
  %v1848 = vld [vmem:[%s3 + $0x20] sm:$0xff]
  %v1849 = vld [vmem:[%s3 + $0x28] sm:$0xff]
  %v1850 = vld [vmem:[%s3 + $0x30] sm:$0xff]
  %v1851 = vld [vmem:[%s3 + $0x38] sm:$0xff]
  %v1852 = vld [vmem:[%s3 + $0x40] sm:$0xff]
  %v1853 = vld [vmem:[%s3 + $0x48] sm:$0xff]
  %v1854 = vld [vmem:[%s3 + $0x50] sm:$0xff]
  %v1855 = vld [vmem:[%s3 + $0x58] sm:$0xff]
  %v1856 = vld [vmem:[%s3 + $0x60] sm:$0xff]
  %v1857 = vld [vmem:[%s3 + $0x68] sm:$0xff]
  %v1858 = vld [vmem:[%s3 + $0x70] sm:$0xff]
  %v1859 = vld [vmem:[%s3 + $0x78] sm:$0xff]
  %v1860 = vld [vmem:[%s3 + $0x80] sm:$0xff]
  %v1861 = vld [vmem:[%s3 + $0x88] sm:$0xff]
  %v1862 = vld [vmem:[%s3 + $0x90] sm:$0xff]
  %v1863 = vld [vmem:[%s3 + $0x98] sm:$0xff]
  %v1864 = vld [vmem:[%s3 + $0xa0] sm:$0xff]
  %v1865 = vld [vmem:[%s3 + $0xa8] sm:$0xff]
  %v1866 = vld [vmem:[%s3 + $0xb0] sm:$0xff]
  %v1867 = vld [vmem:[%s3 + $0xb8] sm:$0xff]
  %v1868 = vld [vmem:[%s3 + $0xc0] sm:$0xff]
  %v1869 = vld [vmem:[%s3 + $0xc8] sm:$0xff]
  %v1870 = vld [vmem:[%s3 + $0xd0] sm:$0xff]
  %v1871 = vld [vmem:[%s3 + $0xd8] sm:$0xff]
  %v1872 = vld [vmem:[%s3 + $0xe0] sm:$0xff]
  %v1873 = vld [vmem:[%s3 + $0xe8] sm:$0xff]
  %v1874 = vld [vmem:[%s3 + $0xf0] sm:$0xff]
  %v1875 = vld [vmem:[%s3 + $0xf8] sm:$0xff]
  %v1876 = vld [vmem:[%s3 + $0x100] sm:$0xff]
  %v1877 = vld [vmem:[%s3 + $0x108] sm:$0xff]
  %v1878 = vld [vmem:[%s3 + $0x110] sm:$0xff]
  %v1879 = vld [vmem:[%s3 + $0x118] sm:$0xff]
  %v1880 = vld [vmem:[%s3 + $0x120] sm:$0xff]
  %v1881 = vld [vmem:[%s3 + $0x128] sm:$0xff]
  %v1882 = vld [vmem:[%s3 + $0x130] sm:$0xff]
  %v1883 = vld [vmem:[%s3 + $0x138] sm:$0xff]
  %v1884 = vld [vmem:[%s3 + $0x140] sm:$0xff]
  %v1885 = vld [vmem:[%s3 + $0x148] sm:$0xff]
  %v1886 = vld [vmem:[%s3 + $0x150] sm:$0xff]
  %v1887 = vld [vmem:[%s3 + $0x158] sm:$0xff]
  %v1888 = vld [vmem:[%s3 + $0x160] sm:$0xff]
  %v1889 = vld [vmem:[%s3 + $0x168] sm:$0xff]
  %v1890 = vld [vmem:[%s3 + $0x170] sm:$0xff]
  %v1891 = vld [vmem:[%s3 + $0x178] sm:$0xff]
  %v1892 = vld [vmem:[%s3 + $0x180] sm:$0xff]
  %v1893 = vld [vmem:[%s3 + $0x188] sm:$0xff]
  %v1894 = vld [vmem:[%s3 + $0x190] sm:$0xff]
  %v1895 = vld [vmem:[%s3 + $0x198] sm:$0xff]
  %v1896 = vld [vmem:[%s3 + $0x1a0] sm:$0xff]
  %v1897 = vld [vmem:[%s3 + $0x1a8] sm:$0xff]
  %v1898 = vld [vmem:[%s3 + $0x1b0] sm:$0xff]
  %v1899 = vld [vmem:[%s3 + $0x1b8] sm:$0xff]
  %v1900 = vld [vmem:[%s3 + $0x1c0] sm:$0xff]
  %v1901 = vld [vmem:[%s3 + $0x1c8] sm:$0xff]
  %v1902 = vld [vmem:[%s3 + $0x1d0] sm:$0xff]
  %v1903 = vld [vmem:[%s3 + $0x1d8] sm:$0xff]
  %v1904 = vld [vmem:[%s3 + $0x1e0] sm:$0xff]
  %v1905 = vld [vmem:[%s3 + $0x1e8] sm:$0xff]
  %v1906 = vld [vmem:[%s3 + $0x1f0] sm:$0xff]
  %v1907 = vld [vmem:[%s3 + $0x1f8] sm:$0xff]
  %1908 = vmatprep.subr.mxu0 %v1905
  %1909 = vmatpush1.msra.mxu0 %v1904
  %1910 = vmatprep.subr.mxu0 %v1901
  %1911 = vmatpush1.msra.mxu0 %v1900
  %1912 = vmatprep.subr.mxu0 %v1897
  %1913 = vmatpush1.msra.mxu0 %v1896
  %1914 = vmatprep.subr.mxu0 %v1893
  %1915 = vmatpush1.msra.mxu0 %v1892
  %1916 = vmatprep.subr.mxu0 %v1889
  %1917 = vmatpush1.msra.mxu0 %v1888
  %1918 = vmatprep.subr.mxu0 %v1885
  %1919 = vmatpush1.msra.mxu0 %v1884
  %1920 = vmatprep.subr.mxu0 %v1881
  %1921 = vmatpush1.msra.mxu0 %v1880
  %1922 = vmatprep.subr.mxu0 %v1877
  %1923 = vmatpush1.msra.mxu0 %v1876
  %1924 = vmatprep.subr.mxu0 %v1873
  %1925 = vmatpush1.msra.mxu0 %v1872
  %1926 = vmatprep.subr.mxu0 %v1869
  %1927 = vmatpush1.msra.mxu0 %v1868
  %1928 = vmatprep.subr.mxu0 %v1865
  %1929 = vmatpush1.msra.mxu0 %v1864
  %1930 = vmatprep.subr.mxu0 %v1861
  %1931 = vmatpush1.msra.mxu0 %v1860
  %1932 = vmatprep.subr.mxu0 %v1857
  %1933 = vmatpush1.msra.mxu0 %v1856
  %1934 = vmatprep.subr.mxu0 %v1853
  %1935 = vmatpush1.msra.mxu0 %v1852
  %1936 = vmatprep.subr.mxu0 %v1849
  %1937 = vmatpush1.msra.mxu0 %v1848
  %1938 = vmatprep.subr.mxu0 %v1845
  %1939 = vmatpush1.msra.mxu0 %v1844
  %1940 = vmatprep.subr.mxu0 0.0
  %1941 = vmatpush2.msra.mxu0 0.0
  %1942 = vmatprep.subr.mxu0 0.0
  %1943 = vmatpush2.msra.mxu0 0.0
  %1944 = vmatprep.subr.mxu0 0.0
  %1945 = vmatpush2.msra.mxu0 0.0
  %1946 = vmatprep.subr.mxu0 0.0
  %1947 = vmatpush2.msra.mxu0 0.0
  %1948 = vmatprep.subr.mxu0 0.0
  %1949 = vmatpush2.msra.mxu0 0.0
  %1950 = vmatprep.subr.mxu0 0.0
  %1951 = vmatpush2.msra.mxu0 0.0
  %1952 = vmatprep.subr.mxu0 0.0
  %1953 = vmatpush2.msra.mxu0 0.0
  %1954 = vmatprep.subr.mxu0 0.0
  %1955 = vmatpush2.msra.mxu0 0.0
  %1956 = vmatprep.subr.mxu0 0.0
  %1957 = vmatpush2.msra.mxu0 0.0
  %1958 = vmatprep.subr.mxu0 0.0
  %1959 = vmatpush2.msra.mxu0 0.0
  %1960 = vmatprep.subr.mxu0 0.0
  %1961 = vmatpush2.msra.mxu0 0.0
  %1962 = vmatprep.subr.mxu0 0.0
  %1963 = vmatpush2.msra.mxu0 0.0
  %1964 = vmatprep.subr.mxu0 0.0
  %1965 = vmatpush2.msra.mxu0 0.0
  %1966 = vmatprep.subr.mxu0 0.0
  %1967 = vmatpush2.msra.mxu0 0.0
  %1968 = vmatprep.subr.mxu0 0.0
  %1969 = vmatpush2.msra.mxu0 0.0
  %1970 = vmatprep.subr.mxu0 0.0
  %1971 = vmatpush2.msra.mxu0 0.0
  %1972 = vmatprep.mubr.f32.mxu0 0.0
  %1973 = vmatmul.mubr.f32.gmra.mxu0 %v1843
  %v1974 = vpop.f32.mrf.mxu0
  %v1975 = vadd.f32 0.0, %v1974
  %v1976 = vpop.f32.mrf.mxu0
  %v1977 = vadd.f32 0.0, %v1976
  %1978 = vdwg.mxu0
  %1979 = vmatprep.subr.mxu0 %v1907
  %1980 = vmatpush1.msra.mxu0 %v1906
  %1981 = vmatprep.subr.mxu0 %v1903
  %1982 = vmatpush1.msra.mxu0 %v1902
  %1983 = vmatprep.subr.mxu0 %v1899
  %1984 = vmatpush1.msra.mxu0 %v1898
  %1985 = vmatprep.subr.mxu0 %v1895
  %1986 = vmatpush1.msra.mxu0 %v1894
  %1987 = vmatprep.subr.mxu0 %v1891
  %1988 = vmatpush1.msra.mxu0 %v1890
  %1989 = vmatprep.subr.mxu0 %v1887
  %1990 = vmatpush1.msra.mxu0 %v1886
  %1991 = vmatprep.subr.mxu0 %v1883
  %1992 = vmatpush1.msra.mxu0 %v1882
  %1993 = vmatprep.subr.mxu0 %v1879
  %1994 = vmatpush1.msra.mxu0 %v1878
  %1995 = vmatprep.subr.mxu0 %v1875
  %1996 = vmatpush1.msra.mxu0 %v1874
  %1997 = vmatprep.subr.mxu0 %v1871
  %1998 = vmatpush1.msra.mxu0 %v1870
  %1999 = vmatprep.subr.mxu0 %v1867
  %2000 = vmatpush1.msra.mxu0 %v1866
  %2001 = vmatprep.subr.mxu0 %v1863
  %2002 = vmatpush1.msra.mxu0 %v1862
  %2003 = vmatprep.subr.mxu0 %v1859
  %2004 = vmatpush1.msra.mxu0 %v1858
  %2005 = vmatprep.subr.mxu0 %v1855
  %2006 = vmatpush1.msra.mxu0 %v1854
  %2007 = vmatprep.subr.mxu0 %v1851
  %2008 = vmatpush1.msra.mxu0 %v1850
  %2009 = vmatprep.subr.mxu0 %v1847
  %2010 = vmatpush1.msra.mxu0 %v1846
  %2011 = vmatprep.subr.mxu0 0.0
  %2012 = vmatpush2.msra.mxu0 0.0
  %2013 = vmatprep.subr.mxu0 0.0
  %2014 = vmatpush2.msra.mxu0 0.0
  %2015 = vmatprep.subr.mxu0 0.0
  %2016 = vmatpush2.msra.mxu0 0.0
  %2017 = vmatprep.subr.mxu0 0.0
  %2018 = vmatpush2.msra.mxu0 0.0
  %2019 = vmatprep.subr.mxu0 0.0
  %2020 = vmatpush2.msra.mxu0 0.0
  %2021 = vmatprep.subr.mxu0 0.0
  %2022 = vmatpush2.msra.mxu0 0.0
  %2023 = vmatprep.subr.mxu0 0.0
  %2024 = vmatpush2.msra.mxu0 0.0
  %2025 = vmatprep.subr.mxu0 0.0
  %2026 = vmatpush2.msra.mxu0 0.0
  %2027 = vmatprep.subr.mxu0 0.0
  %2028 = vmatpush2.msra.mxu0 0.0
  %2029 = vmatprep.subr.mxu0 0.0
  %2030 = vmatpush2.msra.mxu0 0.0
  %2031 = vmatprep.subr.mxu0 0.0
  %2032 = vmatpush2.msra.mxu0 0.0
  %2033 = vmatprep.subr.mxu0 0.0
  %2034 = vmatpush2.msra.mxu0 0.0
  %2035 = vmatprep.subr.mxu0 0.0
  %2036 = vmatpush2.msra.mxu0 0.0
  %2037 = vmatprep.subr.mxu0 0.0
  %2038 = vmatpush2.msra.mxu0 0.0
  %2039 = vmatprep.subr.mxu0 0.0
  %2040 = vmatpush2.msra.mxu0 0.0
  %2041 = vmatprep.subr.mxu0 0.0
  %2042 = vmatpush2.msra.mxu0 0.0
  %2043 = vmatprep.mubr.f32.mxu0 0.0
  %2044 = vmatmul.mubr.f32.gmra.mxu0 %v1843
  %v2045 = vpop.f32.mrf.mxu0
  %v2046 = vadd.f32 0.0, %v2045
  %v2047 = vpop.f32.mrf.mxu0
  %v2048 = vadd.f32 0.0, %v2047
  %2049 = vdwg.mxu0
  %v2050 = vadd.f32 %v1839, %v1975
  %v2051 = vadd.f32 %v1840, %v1977
  %v2052 = vadd.f32 %v1841, %v2046
  %v2053 = vadd.f32 %v1842, %v2048
  %v2054 = vxor.u32 %v2050, 2147483648
  %v2055 = vmul.f32 %v2054, 1.442695
  %v2056 = vpow.pop %v2055
  %v2057 = vadd.f32 %v2056, 1.0
  %v2058 = vrcp.pop %v2057
  %v2059 = vmul.f32 1.0, %v2058
  %v2060 = vxor.u32 %v2051, 2147483648
  %v2061 = vmul.f32 %v2060, 1.442695
  %v2062 = vpow.pop %v2061
  %v2063 = vadd.f32 %v2062, 1.0
  %v2064 = vrcp.pop %v2063
  %v2065 = vmul.f32 1.0, %v2064
  %v2066 = vtanh.pop %v2052
  %v2067 = vxor.u32 %v2053, 2147483648
  %v2068 = vmul.f32 %v2067, 1.442695
  %v2069 = vpow.pop %v2068
  %v2070 = vadd.f32 %v2069, 1.0
  %v2071 = vrcp.pop %v2070
  %v2072 = vmul.f32 1.0, %v2071
  %v2073 = vld [vmem:[#allocation4] sm:$0xff]
  %v2074 = vmul.f32 %v2065, %v2073
  %v2075 = vmul.f32 %v2059, %v2066
  %v2076 = vadd.f32 %v2074, %v2075
  %v2077 = vtanh.pop %v2076
  %v2078 = vmul.f32 %v2072, %v2077
  %2079 = vst [vmem:[#allocation4] sm:$0xff] %v2076
  %2080 = vst [vmem:[#allocation3] sm:$0xff] %v2078
  %s2081 = scalar_lea.vmem [#allocation2], 224
  %v2082 = vld [vmem:[%s2081] sm:$0xff]
  %v2083 = vld [vmem:[%s2081 + $0x8] sm:$0xff]
  %v2084 = vld [vmem:[%s2081 + $0x10] sm:$0xff]
  %v2085 = vld [vmem:[%s2081 + $0x18] sm:$0xff]
  %v2086 = vld [vmem:[#allocation3] sm:$0xff]
  %v2087 = vld [vmem:[%s3] sm:$0xff]
  %v2088 = vld [vmem:[%s3 + $0x8] sm:$0xff]
  %v2089 = vld [vmem:[%s3 + $0x10] sm:$0xff]
  %v2090 = vld [vmem:[%s3 + $0x18] sm:$0xff]
  %v2091 = vld [vmem:[%s3 + $0x20] sm:$0xff]
  %v2092 = vld [vmem:[%s3 + $0x28] sm:$0xff]
  %v2093 = vld [vmem:[%s3 + $0x30] sm:$0xff]
  %v2094 = vld [vmem:[%s3 + $0x38] sm:$0xff]
  %v2095 = vld [vmem:[%s3 + $0x40] sm:$0xff]
  %v2096 = vld [vmem:[%s3 + $0x48] sm:$0xff]
  %v2097 = vld [vmem:[%s3 + $0x50] sm:$0xff]
  %v2098 = vld [vmem:[%s3 + $0x58] sm:$0xff]
  %v2099 = vld [vmem:[%s3 + $0x60] sm:$0xff]
  %v2100 = vld [vmem:[%s3 + $0x68] sm:$0xff]
  %v2101 = vld [vmem:[%s3 + $0x70] sm:$0xff]
  %v2102 = vld [vmem:[%s3 + $0x78] sm:$0xff]
  %v2103 = vld [vmem:[%s3 + $0x80] sm:$0xff]
  %v2104 = vld [vmem:[%s3 + $0x88] sm:$0xff]
  %v2105 = vld [vmem:[%s3 + $0x90] sm:$0xff]
  %v2106 = vld [vmem:[%s3 + $0x98] sm:$0xff]
  %v2107 = vld [vmem:[%s3 + $0xa0] sm:$0xff]
  %v2108 = vld [vmem:[%s3 + $0xa8] sm:$0xff]
  %v2109 = vld [vmem:[%s3 + $0xb0] sm:$0xff]
  %v2110 = vld [vmem:[%s3 + $0xb8] sm:$0xff]
  %v2111 = vld [vmem:[%s3 + $0xc0] sm:$0xff]
  %v2112 = vld [vmem:[%s3 + $0xc8] sm:$0xff]
  %v2113 = vld [vmem:[%s3 + $0xd0] sm:$0xff]
  %v2114 = vld [vmem:[%s3 + $0xd8] sm:$0xff]
  %v2115 = vld [vmem:[%s3 + $0xe0] sm:$0xff]
  %v2116 = vld [vmem:[%s3 + $0xe8] sm:$0xff]
  %v2117 = vld [vmem:[%s3 + $0xf0] sm:$0xff]
  %v2118 = vld [vmem:[%s3 + $0xf8] sm:$0xff]
  %v2119 = vld [vmem:[%s3 + $0x100] sm:$0xff]
  %v2120 = vld [vmem:[%s3 + $0x108] sm:$0xff]
  %v2121 = vld [vmem:[%s3 + $0x110] sm:$0xff]
  %v2122 = vld [vmem:[%s3 + $0x118] sm:$0xff]
  %v2123 = vld [vmem:[%s3 + $0x120] sm:$0xff]
  %v2124 = vld [vmem:[%s3 + $0x128] sm:$0xff]
  %v2125 = vld [vmem:[%s3 + $0x130] sm:$0xff]
  %v2126 = vld [vmem:[%s3 + $0x138] sm:$0xff]
  %v2127 = vld [vmem:[%s3 + $0x140] sm:$0xff]
  %v2128 = vld [vmem:[%s3 + $0x148] sm:$0xff]
  %v2129 = vld [vmem:[%s3 + $0x150] sm:$0xff]
  %v2130 = vld [vmem:[%s3 + $0x158] sm:$0xff]
  %v2131 = vld [vmem:[%s3 + $0x160] sm:$0xff]
  %v2132 = vld [vmem:[%s3 + $0x168] sm:$0xff]
  %v2133 = vld [vmem:[%s3 + $0x170] sm:$0xff]
  %v2134 = vld [vmem:[%s3 + $0x178] sm:$0xff]
  %v2135 = vld [vmem:[%s3 + $0x180] sm:$0xff]
  %v2136 = vld [vmem:[%s3 + $0x188] sm:$0xff]
  %v2137 = vld [vmem:[%s3 + $0x190] sm:$0xff]
  %v2138 = vld [vmem:[%s3 + $0x198] sm:$0xff]
  %v2139 = vld [vmem:[%s3 + $0x1a0] sm:$0xff]
  %v2140 = vld [vmem:[%s3 + $0x1a8] sm:$0xff]
  %v2141 = vld [vmem:[%s3 + $0x1b0] sm:$0xff]
  %v2142 = vld [vmem:[%s3 + $0x1b8] sm:$0xff]
  %v2143 = vld [vmem:[%s3 + $0x1c0] sm:$0xff]
  %v2144 = vld [vmem:[%s3 + $0x1c8] sm:$0xff]
  %v2145 = vld [vmem:[%s3 + $0x1d0] sm:$0xff]
  %v2146 = vld [vmem:[%s3 + $0x1d8] sm:$0xff]
  %v2147 = vld [vmem:[%s3 + $0x1e0] sm:$0xff]
  %v2148 = vld [vmem:[%s3 + $0x1e8] sm:$0xff]
  %v2149 = vld [vmem:[%s3 + $0x1f0] sm:$0xff]
  %v2150 = vld [vmem:[%s3 + $0x1f8] sm:$0xff]
  %2151 = vmatprep.subr.mxu0 %v2148
  %2152 = vmatpush1.msra.mxu0 %v2147
  %2153 = vmatprep.subr.mxu0 %v2144
  %2154 = vmatpush1.msra.mxu0 %v2143
  %2155 = vmatprep.subr.mxu0 %v2140
  %2156 = vmatpush1.msra.mxu0 %v2139
  %2157 = vmatprep.subr.mxu0 %v2136
  %2158 = vmatpush1.msra.mxu0 %v2135
  %2159 = vmatprep.subr.mxu0 %v2132
  %2160 = vmatpush1.msra.mxu0 %v2131
  %2161 = vmatprep.subr.mxu0 %v2128
  %2162 = vmatpush1.msra.mxu0 %v2127
  %2163 = vmatprep.subr.mxu0 %v2124
  %2164 = vmatpush1.msra.mxu0 %v2123
  %2165 = vmatprep.subr.mxu0 %v2120
  %2166 = vmatpush1.msra.mxu0 %v2119
  %2167 = vmatprep.subr.mxu0 %v2116
  %2168 = vmatpush1.msra.mxu0 %v2115
  %2169 = vmatprep.subr.mxu0 %v2112
  %2170 = vmatpush1.msra.mxu0 %v2111
  %2171 = vmatprep.subr.mxu0 %v2108
  %2172 = vmatpush1.msra.mxu0 %v2107
  %2173 = vmatprep.subr.mxu0 %v2104
  %2174 = vmatpush1.msra.mxu0 %v2103
  %2175 = vmatprep.subr.mxu0 %v2100
  %2176 = vmatpush1.msra.mxu0 %v2099
  %2177 = vmatprep.subr.mxu0 %v2096
  %2178 = vmatpush1.msra.mxu0 %v2095
  %2179 = vmatprep.subr.mxu0 %v2092
  %2180 = vmatpush1.msra.mxu0 %v2091
  %2181 = vmatprep.subr.mxu0 %v2088
  %2182 = vmatpush1.msra.mxu0 %v2087
  %2183 = vmatprep.subr.mxu0 0.0
  %2184 = vmatpush2.msra.mxu0 0.0
  %2185 = vmatprep.subr.mxu0 0.0
  %2186 = vmatpush2.msra.mxu0 0.0
  %2187 = vmatprep.subr.mxu0 0.0
  %2188 = vmatpush2.msra.mxu0 0.0
  %2189 = vmatprep.subr.mxu0 0.0
  %2190 = vmatpush2.msra.mxu0 0.0
  %2191 = vmatprep.subr.mxu0 0.0
  %2192 = vmatpush2.msra.mxu0 0.0
  %2193 = vmatprep.subr.mxu0 0.0
  %2194 = vmatpush2.msra.mxu0 0.0
  %2195 = vmatprep.subr.mxu0 0.0
  %2196 = vmatpush2.msra.mxu0 0.0
  %2197 = vmatprep.subr.mxu0 0.0
  %2198 = vmatpush2.msra.mxu0 0.0
  %2199 = vmatprep.subr.mxu0 0.0
  %2200 = vmatpush2.msra.mxu0 0.0
  %2201 = vmatprep.subr.mxu0 0.0
  %2202 = vmatpush2.msra.mxu0 0.0
  %2203 = vmatprep.subr.mxu0 0.0
  %2204 = vmatpush2.msra.mxu0 0.0
  %2205 = vmatprep.subr.mxu0 0.0
  %2206 = vmatpush2.msra.mxu0 0.0
  %2207 = vmatprep.subr.mxu0 0.0
  %2208 = vmatpush2.msra.mxu0 0.0
  %2209 = vmatprep.subr.mxu0 0.0
  %2210 = vmatpush2.msra.mxu0 0.0
  %2211 = vmatprep.subr.mxu0 0.0
  %2212 = vmatpush2.msra.mxu0 0.0
  %2213 = vmatprep.subr.mxu0 0.0
  %2214 = vmatpush2.msra.mxu0 0.0
  %2215 = vmatprep.mubr.f32.mxu0 0.0
  %2216 = vmatmul.mubr.f32.gmra.mxu0 %v2086
  %v2217 = vpop.f32.mrf.mxu0
  %v2218 = vadd.f32 0.0, %v2217
  %v2219 = vpop.f32.mrf.mxu0
  %v2220 = vadd.f32 0.0, %v2219
  %2221 = vdwg.mxu0
  %2222 = vmatprep.subr.mxu0 %v2150
  %2223 = vmatpush1.msra.mxu0 %v2149
  %2224 = vmatprep.subr.mxu0 %v2146
  %2225 = vmatpush1.msra.mxu0 %v2145
  %2226 = vmatprep.subr.mxu0 %v2142
  %2227 = vmatpush1.msra.mxu0 %v2141
  %2228 = vmatprep.subr.mxu0 %v2138
  %2229 = vmatpush1.msra.mxu0 %v2137
  %2230 = vmatprep.subr.mxu0 %v2134
  %2231 = vmatpush1.msra.mxu0 %v2133
  %2232 = vmatprep.subr.mxu0 %v2130
  %2233 = vmatpush1.msra.mxu0 %v2129
  %2234 = vmatprep.subr.mxu0 %v2126
  %2235 = vmatpush1.msra.mxu0 %v2125
  %2236 = vmatprep.subr.mxu0 %v2122
  %2237 = vmatpush1.msra.mxu0 %v2121
  %2238 = vmatprep.subr.mxu0 %v2118
  %2239 = vmatpush1.msra.mxu0 %v2117
  %2240 = vmatprep.subr.mxu0 %v2114
  %2241 = vmatpush1.msra.mxu0 %v2113
  %2242 = vmatprep.subr.mxu0 %v2110
  %2243 = vmatpush1.msra.mxu0 %v2109
  %2244 = vmatprep.subr.mxu0 %v2106
  %2245 = vmatpush1.msra.mxu0 %v2105
  %2246 = vmatprep.subr.mxu0 %v2102
  %2247 = vmatpush1.msra.mxu0 %v2101
  %2248 = vmatprep.subr.mxu0 %v2098
  %2249 = vmatpush1.msra.mxu0 %v2097
  %2250 = vmatprep.subr.mxu0 %v2094
  %2251 = vmatpush1.msra.mxu0 %v2093
  %2252 = vmatprep.subr.mxu0 %v2090
  %2253 = vmatpush1.msra.mxu0 %v2089
  %2254 = vmatprep.subr.mxu0 0.0
  %2255 = vmatpush2.msra.mxu0 0.0
  %2256 = vmatprep.subr.mxu0 0.0
  %2257 = vmatpush2.msra.mxu0 0.0
  %2258 = vmatprep.subr.mxu0 0.0
  %2259 = vmatpush2.msra.mxu0 0.0
  %2260 = vmatprep.subr.mxu0 0.0
  %2261 = vmatpush2.msra.mxu0 0.0
  %2262 = vmatprep.subr.mxu0 0.0
  %2263 = vmatpush2.msra.mxu0 0.0
  %2264 = vmatprep.subr.mxu0 0.0
  %2265 = vmatpush2.msra.mxu0 0.0
  %2266 = vmatprep.subr.mxu0 0.0
  %2267 = vmatpush2.msra.mxu0 0.0
  %2268 = vmatprep.subr.mxu0 0.0
  %2269 = vmatpush2.msra.mxu0 0.0
  %2270 = vmatprep.subr.mxu0 0.0
  %2271 = vmatpush2.msra.mxu0 0.0
  %2272 = vmatprep.subr.mxu0 0.0
  %2273 = vmatpush2.msra.mxu0 0.0
  %2274 = vmatprep.subr.mxu0 0.0
  %2275 = vmatpush2.msra.mxu0 0.0
  %2276 = vmatprep.subr.mxu0 0.0
  %2277 = vmatpush2.msra.mxu0 0.0
  %2278 = vmatprep.subr.mxu0 0.0
  %2279 = vmatpush2.msra.mxu0 0.0
  %2280 = vmatprep.subr.mxu0 0.0
  %2281 = vmatpush2.msra.mxu0 0.0
  %2282 = vmatprep.subr.mxu0 0.0
  %2283 = vmatpush2.msra.mxu0 0.0
  %2284 = vmatprep.subr.mxu0 0.0
  %2285 = vmatpush2.msra.mxu0 0.0
  %2286 = vmatprep.mubr.f32.mxu0 0.0
  %2287 = vmatmul.mubr.f32.gmra.mxu0 %v2086
  %v2288 = vpop.f32.mrf.mxu0
  %v2289 = vadd.f32 0.0, %v2288
  %v2290 = vpop.f32.mrf.mxu0
  %v2291 = vadd.f32 0.0, %v2290
  %2292 = vdwg.mxu0
  %v2293 = vadd.f32 %v2082, %v2218
  %v2294 = vadd.f32 %v2083, %v2220
  %v2295 = vadd.f32 %v2084, %v2289
  %v2296 = vadd.f32 %v2085, %v2291
  %v2297 = vxor.u32 %v2293, 2147483648
  %v2298 = vmul.f32 %v2297, 1.442695
  %v2299 = vpow.pop %v2298
  %v2300 = vadd.f32 %v2299, 1.0
  %v2301 = vrcp.pop %v2300
  %v2302 = vmul.f32 1.0, %v2301
  %v2303 = vxor.u32 %v2294, 2147483648
  %v2304 = vmul.f32 %v2303, 1.442695
  %v2305 = vpow.pop %v2304
  %v2306 = vadd.f32 %v2305, 1.0
  %v2307 = vrcp.pop %v2306
  %v2308 = vmul.f32 1.0, %v2307
  %v2309 = vtanh.pop %v2295
  %v2310 = vxor.u32 %v2296, 2147483648
  %v2311 = vmul.f32 %v2310, 1.442695
  %v2312 = vpow.pop %v2311
  %v2313 = vadd.f32 %v2312, 1.0
  %v2314 = vrcp.pop %v2313
  %v2315 = vmul.f32 1.0, %v2314
  %v2316 = vld [vmem:[#allocation4] sm:$0xff]
  %v2317 = vmul.f32 %v2308, %v2316
  %v2318 = vmul.f32 %v2302, %v2309
  %v2319 = vadd.f32 %v2317, %v2318
  %v2320 = vtanh.pop %v2319
  %v2321 = vmul.f32 %v2315, %v2320
  %2322 = vst [vmem:[#allocation4] sm:$0xff] %v2319
  %2323 = vst [vmem:[#allocation3] sm:$0xff] %v2321
  // Predicated region
  $region30: #{text_lstm_forward.3} parent=0 // pred_check
    %p2324 = pneg %p23
  $region31: #{text_lstm_forward.3} parent=0 // pred_check_branch
    %2326 = sbr.rel (%p2324) target = $region33
  $region32: #{text_lstm_forward.3} parent=0 // pred_region
    %v2327 = vld [vmem:[#allocation3] sm:$0xff]
    %v2328 = vld [vmem:[%s4] sm:$0xff]
    %v2329 = vld [vmem:[%s4 + $0x8] sm:$0xff]
    %v2330 = vld [vmem:[%s4 + $0x10] sm:$0xff]
    %v2331 = vld [vmem:[%s4 + $0x18] sm:$0xff]
    %v2332 = vld [vmem:[%s4 + $0x20] sm:$0xff]
    %v2333 = vld [vmem:[%s4 + $0x28] sm:$0xff]
    %v2334 = vld [vmem:[%s4 + $0x30] sm:$0xff]
    %v2335 = vld [vmem:[%s4 + $0x38] sm:$0xff]
    %v2336 = vld [vmem:[%s4 + $0x40] sm:$0xff]
    %v2337 = vld [vmem:[%s4 + $0x48] sm:$0xff]
    %v2338 = vld [vmem:[%s4 + $0x50] sm:$0xff]
    %v2339 = vld [vmem:[%s4 + $0x58] sm:$0xff]
    %v2340 = vld [vmem:[%s4 + $0x60] sm:$0xff]
    %v2341 = vld [vmem:[%s4 + $0x68] sm:$0xff]
    %v2342 = vld [vmem:[%s4 + $0x70] sm:$0xff]
    %v2343 = vld [vmem:[%s4 + $0x78] sm:$0xff]
    %v2344 = vld [vmem:[%s5] sm:$0x1]
    %v2346 = vlaneseq
    %v2347 = vshrl.u32 %v2346, 7
    %v2348 = vsub.s32 0, %v2347
    %v2349 = vrot.slane %v2344, %v2348
    %2351 = vmatprep.subr.mxu0 0.0
    %2352 = vmatpush1.msra.mxu0 %v2343
    %2353 = vmatprep.subr.mxu0 0.0
    %2354 = vmatpush1.msra.mxu0 %v2342
    %2355 = vmatprep.subr.mxu0 0.0
    %2356 = vmatpush1.msra.mxu0 %v2341
    %2357 = vmatprep.subr.mxu0 0.0
    %2358 = vmatpush1.msra.mxu0 %v2340
    %2359 = vmatprep.subr.mxu0 0.0
    %2360 = vmatpush1.msra.mxu0 %v2339
    %2361 = vmatprep.subr.mxu0 0.0
    %2362 = vmatpush1.msra.mxu0 %v2338
    %2363 = vmatprep.subr.mxu0 0.0
    %2364 = vmatpush1.msra.mxu0 %v2337
    %2365 = vmatprep.subr.mxu0 0.0
    %2366 = vmatpush1.msra.mxu0 %v2336
    %2367 = vmatprep.subr.mxu0 0.0
    %2368 = vmatpush1.msra.mxu0 %v2335
    %2369 = vmatprep.subr.mxu0 0.0
    %2370 = vmatpush1.msra.mxu0 %v2334
    %2371 = vmatprep.subr.mxu0 0.0
    %2372 = vmatpush1.msra.mxu0 %v2333
    %2373 = vmatprep.subr.mxu0 0.0
    %2374 = vmatpush1.msra.mxu0 %v2332
    %2375 = vmatprep.subr.mxu0 0.0
    %2376 = vmatpush1.msra.mxu0 %v2331
    %2377 = vmatprep.subr.mxu0 0.0
    %2378 = vmatpush1.msra.mxu0 %v2330
    %2379 = vmatprep.subr.mxu0 0.0
    %2380 = vmatpush1.msra.mxu0 %v2329
    %2381 = vmatprep.subr.mxu0 0.0
    %2382 = vmatpush1.msra.mxu0 %v2328
    %2383 = vmatprep.subr.mxu0 0.0
    %2384 = vmatpush2.msra.mxu0 0.0
    %2385 = vmatprep.subr.mxu0 0.0
    %2386 = vmatpush2.msra.mxu0 0.0
    %2387 = vmatprep.subr.mxu0 0.0
    %2388 = vmatpush2.msra.mxu0 0.0
    %2389 = vmatprep.subr.mxu0 0.0
    %2390 = vmatpush2.msra.mxu0 0.0
    %2391 = vmatprep.subr.mxu0 0.0
    %2392 = vmatpush2.msra.mxu0 0.0
    %2393 = vmatprep.subr.mxu0 0.0
    %2394 = vmatpush2.msra.mxu0 0.0
    %2395 = vmatprep.subr.mxu0 0.0
    %2396 = vmatpush2.msra.mxu0 0.0
    %2397 = vmatprep.subr.mxu0 0.0
    %2398 = vmatpush2.msra.mxu0 0.0
    %2399 = vmatprep.subr.mxu0 0.0
    %2400 = vmatpush2.msra.mxu0 0.0
    %2401 = vmatprep.subr.mxu0 0.0
    %2402 = vmatpush2.msra.mxu0 0.0
    %2403 = vmatprep.subr.mxu0 0.0
    %2404 = vmatpush2.msra.mxu0 0.0
    %2405 = vmatprep.subr.mxu0 0.0
    %2406 = vmatpush2.msra.mxu0 0.0
    %2407 = vmatprep.subr.mxu0 0.0
    %2408 = vmatpush2.msra.mxu0 0.0
    %2409 = vmatprep.subr.mxu0 0.0
    %2410 = vmatpush2.msra.mxu0 0.0
    %2411 = vmatprep.subr.mxu0 0.0
    %2412 = vmatpush2.msra.mxu0 0.0
    %2413 = vmatprep.subr.mxu0 0.0
    %2414 = vmatpush2.msra.mxu0 0.0
    %2415 = vmatprep.mubr.f32.mxu0 0.0
    %2416 = vmatmul.mubr.f32.gmra.mxu0 %v2327
    %v2417 = vpop.f32.mrf.mxu0
    %v2418 = vadd.f32 %v2349, %v2417
    %v2419 = vpop.f32.mrf.mxu0
    %2420 = vdwg.mxu0
    %2421 = vst [vmem:[%s6] sm:$0xff] %v2418
  $region33: #{text_lstm_forward.3} parent=0 // pred_fallthru
    _
  // Predicated region
  $region34: #{text_lstm_forward.3} parent=0 // pred_check
    _
  $region35: #{text_lstm_forward.3} parent=0 // pred_check_branch
    %2423 = sbr.rel (0) target = $region37
  $region36: #{text_lstm_forward.3} parent=0 // pred_region
    _
  $region37: #{text_lstm_forward.3} parent=0 // pred_fallthru
    _
  // Predicated region
  $region38: #{text_lstm_forward.3} parent=0 // pred_check
    _
  $region39: #{text_lstm_forward.3} parent=0 // pred_check_branch
    %2425 = sbr.rel (0) target = $region41
  $region40: #{text_lstm_forward.3} parent=0 // pred_region
    _
  $region41: #{text_lstm_forward.3} parent=0 // pred_fallthru
    _

// kernel: text_lstm_forward.2
$region0: #{text_lstm_forward.2}
  #allocation0 [shape = 'u32[]', space=smem, size = 0x4, offset = 0x4, fixed_abs, tag = 'smem constant byte address 0x4 - core index']
  #allocation1 [shape = 'u32[144,128]{1,0:T(1,128)}', space=vmem, size = 0x12000, scoped, tag = 'internal scratch']
  #allocation2 [shape = 'f32[8,8,512]{2,1,0:T(8,128)}', space=vmem, size = 0x20000, scoped, tag = 'scratch operand']
  #allocation3 [shape = 'f32[8,128]{1,0:T(8,128)}', space=vmem, size = 0x1000, scoped, tag = 'scratch operand']
  #allocation4 [shape = 'f32[8,128]{1,0:T(8,128)}', space=vmem, size = 0x1000, scoped, tag = 'scratch operand']
  %s0 = inlined_call_operand.vmem [shape: f32[8,8,16], index: 0, kind: input, shape index: {}]
  %s1 = inlined_call_operand.vmem [shape: f32[16,512], index: 1, kind: input, shape index: {}]
  %s2 = inlined_call_operand.vmem [shape: f32[1,512], index: 2, kind: input, shape index: {}]
  %s3 = inlined_call_operand.vmem [shape: f32[128,512], index: 3, kind: input, shape index: {}]
  %s4 = inlined_call_operand.vmem [shape: f32[8,8,128], index: 4, kind: output, shape index: {}]
  %s5 = sld [smem:[#allocation0]]
  $region30: #{text_lstm_forward.2} parent=0
    _
  %s7 = ssub.s32 1, %s5
  %s8 = scalar_select 0, %s7, %s5
  // Predicated region
  $region2: #{text_lstm_forward.2} parent=0 // pred_check
    _
  $region3: #{text_lstm_forward.2} parent=0 // pred_check_branch
    %10 = sbr.rel (0) target = $region5
  $region4: #{text_lstm_forward.2} parent=0 // pred_region
    _
  $region5: #{text_lstm_forward.2} parent=0 // pred_fallthru
    _
  // Predicated region
  $region6: #{text_lstm_forward.2} parent=0 // pred_check
    _
  $region7: #{text_lstm_forward.2} parent=0 // pred_check_branch
    %12 = sbr.rel (0) target = $region9
  $region8: #{text_lstm_forward.2} parent=0 // pred_region
    _
  $region9: #{text_lstm_forward.2} parent=0 // pred_fallthru
    _
  // Predicated region
  $region10: #{text_lstm_forward.2} parent=0 // pred_check
    _
  $region11: #{text_lstm_forward.2} parent=0 // pred_check_branch
    %14 = sbr.rel (0) target = $region13
  $region12: #{text_lstm_forward.2} parent=0 // pred_region
    _
  $region13: #{text_lstm_forward.2} parent=0 // pred_fallthru
    _
  // Predicated region
  $region14: #{text_lstm_forward.2} parent=0 // pred_check
    _
  $region15: #{text_lstm_forward.2} parent=0 // pred_check_branch
    %16 = sbr.rel (0) target = $region17
  $region16: #{text_lstm_forward.2} parent=0 // pred_region
    _
  $region17: #{text_lstm_forward.2} parent=0 // pred_fallthru
    _
  %p17 = scmp.eq.s32.totalorder 0, 0
  // Predicated region
  $region18: #{text_lstm_forward.2} parent=0 // pred_check
    %p18 = pneg %p17
  $region19: #{text_lstm_forward.2} parent=0 // pred_check_branch
    %20 = sbr.rel (%p18) target = $region21
  $region20: #{text_lstm_forward.2} parent=0 // pred_region
    %21 = vst [vmem:[#allocation3] sm:$0xff] 0.0
    %22 = vst [vmem:[#allocation4] sm:$0xff] 0.0
  $region21: #{text_lstm_forward.2} parent=0 // pred_fallthru
    _
  %v23 = vld [vmem:[%s0] sm:$0xff]
  %v24 = vld [vmem:[%s0 + $0x8] sm:$0xff]
  %v25 = vld [vmem:[%s0 + $0x10] sm:$0xff]
  %v26 = vld [vmem:[%s0 + $0x18] sm:$0xff]
  %v27 = vld [vmem:[%s0 + $0x20] sm:$0xff]
  %v28 = vld [vmem:[%s0 + $0x28] sm:$0xff]
  %v29 = vld [vmem:[%s0 + $0x30] sm:$0xff]
  %v30 = vld [vmem:[%s0 + $0x38] sm:$0xff]
  %v31 = vld [vmem:[%s1] sm:$0xff]
  %v32 = vld [vmem:[%s1 + $0x8] sm:$0xff]
  %v33 = vld [vmem:[%s1 + $0x10] sm:$0xff]
  %v34 = vld [vmem:[%s1 + $0x18] sm:$0xff]
  %v35 = vld [vmem:[%s1 + $0x20] sm:$0xff]
  %v36 = vld [vmem:[%s1 + $0x28] sm:$0xff]
  %v37 = vld [vmem:[%s1 + $0x30] sm:$0xff]
  %v38 = vld [vmem:[%s1 + $0x38] sm:$0xff]
  %v39 = vld [vmem:[%s2] sm:$0xf]
  %v41 = vlaneseq
  %v42 = vshrl.u32 %v41, 7
  %v43 = vsub.s32 0, %v42
  %v44 = vrot.slane %v39, %v43
  %v45 = vlaneseq
  %v46 = vshrl.u32 %v45, 7
  %v47 = vsub.s32 1, %v46
  %v48 = vrot.slane %v39, %v47
  %v49 = vlaneseq
  %v50 = vshrl.u32 %v49, 7
  %v51 = vsub.s32 2, %v50
  %v52 = vrot.slane %v39, %v51
  %v53 = vlaneseq
  %v54 = vshrl.u32 %v53, 7
  %v55 = vsub.s32 3, %v54
  %v56 = vrot.slane %v39, %v55
  %vm61 = vcmask 130048
  %v63 = vsel %vm61, %v23, 0
  %v66 = vsel %vm61, %v24, 0
  %v69 = vsel %vm61, %v25, 0
  %v72 = vsel %vm61, %v26, 0
  %v75 = vsel %vm61, %v27, 0
  %v78 = vsel %vm61, %v28, 0
  %v81 = vsel %vm61, %v29, 0
  %v84 = vsel %vm61, %v30, 0
  %86 = vmatprep.subr.mxu0 0.0
  %87 = vmatpush1.msra.mxu0 0.0
  %88 = vmatprep.subr.mxu0 0.0
  %89 = vmatpush1.msra.mxu0 0.0
  %90 = vmatprep.subr.mxu0 0.0
  %91 = vmatpush1.msra.mxu0 0.0
  %92 = vmatprep.subr.mxu0 0.0
  %93 = vmatpush1.msra.mxu0 0.0
  %94 = vmatprep.subr.mxu0 0.0
  %95 = vmatpush1.msra.mxu0 0.0
  %96 = vmatprep.subr.mxu0 0.0
  %97 = vmatpush1.msra.mxu0 0.0
  %98 = vmatprep.subr.mxu0 0.0
  %99 = vmatpush1.msra.mxu0 0.0
  %100 = vmatprep.subr.mxu0 0.0
  %101 = vmatpush1.msra.mxu0 0.0
  %102 = vmatprep.subr.mxu0 0.0
  %103 = vmatpush1.msra.mxu0 0.0
  %104 = vmatprep.subr.mxu0 0.0
  %105 = vmatpush1.msra.mxu0 0.0
  %106 = vmatprep.subr.mxu0 0.0
  %107 = vmatpush1.msra.mxu0 0.0
  %108 = vmatprep.subr.mxu0 0.0
  %109 = vmatpush1.msra.mxu0 0.0
  %110 = vmatprep.subr.mxu0 0.0
  %111 = vmatpush1.msra.mxu0 0.0
  %112 = vmatprep.subr.mxu0 0.0
  %113 = vmatpush1.msra.mxu0 0.0
  %114 = vmatprep.subr.mxu0 %v36
  %115 = vmatpush1.msra.mxu0 %v35
  %116 = vmatprep.subr.mxu0 %v32
  %117 = vmatpush1.msra.mxu0 %v31
  %118 = vmatprep.subr.mxu0 0.0
  %119 = vmatpush2.msra.mxu0 0.0
  %120 = vmatprep.subr.mxu0 0.0
  %121 = vmatpush2.msra.mxu0 0.0
  %122 = vmatprep.subr.mxu0 0.0
  %123 = vmatpush2.msra.mxu0 0.0
  %124 = vmatprep.subr.mxu0 0.0
  %125 = vmatpush2.msra.mxu0 0.0
  %126 = vmatprep.subr.mxu0 0.0
  %127 = vmatpush2.msra.mxu0 0.0
  %128 = vmatprep.subr.mxu0 0.0
  %129 = vmatpush2.msra.mxu0 0.0
  %130 = vmatprep.subr.mxu0 0.0
  %131 = vmatpush2.msra.mxu0 0.0
  %132 = vmatprep.subr.mxu0 0.0
  %133 = vmatpush2.msra.mxu0 0.0
  %134 = vmatprep.subr.mxu0 0.0
  %135 = vmatpush2.msra.mxu0 0.0
  %136 = vmatprep.subr.mxu0 0.0
  %137 = vmatpush2.msra.mxu0 0.0
  %138 = vmatprep.subr.mxu0 0.0
  %139 = vmatpush2.msra.mxu0 0.0
  %140 = vmatprep.subr.mxu0 0.0
  %141 = vmatpush2.msra.mxu0 0.0
  %142 = vmatprep.subr.mxu0 0.0
  %143 = vmatpush2.msra.mxu0 0.0
  %144 = vmatprep.subr.mxu0 0.0
  %145 = vmatpush2.msra.mxu0 0.0
  %146 = vmatprep.subr.mxu0 0.0
  %147 = vmatpush2.msra.mxu0 0.0
  %148 = vmatprep.subr.mxu0 0.0
  %149 = vmatpush2.msra.mxu0 0.0
  %150 = vmatprep.mubr.f32.mxu0 0.0
  %151 = vmatmul.mubr.f32.gmra.mxu0 %v63
  %v152 = vpop.f32.mrf.mxu0
  %v153 = vadd.f32 %v44, %v152
  %v154 = vpop.f32.mrf.mxu0
  %v155 = vadd.f32 %v48, %v154
  %156 = vmatprep.mubr.f32.mxu0 0.0
  %157 = vmatmul.mubr.f32.gmra.mxu0 %v66
  %v158 = vpop.f32.mrf.mxu0
  %v159 = vadd.f32 %v44, %v158
  %v160 = vpop.f32.mrf.mxu0
  %v161 = vadd.f32 %v48, %v160
  %162 = vmatprep.mubr.f32.mxu0 0.0
  %163 = vmatmul.mubr.f32.gmra.mxu0 %v69
  %v164 = vpop.f32.mrf.mxu0
  %v165 = vadd.f32 %v44, %v164
  %v166 = vpop.f32.mrf.mxu0
  %v167 = vadd.f32 %v48, %v166
  %168 = vmatprep.mubr.f32.mxu0 0.0
  %169 = vmatmul.mubr.f32.gmra.mxu0 %v72
  %v170 = vpop.f32.mrf.mxu0
  %v171 = vadd.f32 %v44, %v170
  %v172 = vpop.f32.mrf.mxu0
  %v173 = vadd.f32 %v48, %v172
  %174 = vmatprep.mubr.f32.mxu0 0.0
  %175 = vmatmul.mubr.f32.gmra.mxu0 %v75
  %v176 = vpop.f32.mrf.mxu0
  %v177 = vadd.f32 %v44, %v176
  %v178 = vpop.f32.mrf.mxu0
  %v179 = vadd.f32 %v48, %v178
  %180 = vmatprep.mubr.f32.mxu0 0.0
  %181 = vmatmul.mubr.f32.gmra.mxu0 %v78
  %v182 = vpop.f32.mrf.mxu0
  %v183 = vadd.f32 %v44, %v182
  %v184 = vpop.f32.mrf.mxu0
  %v185 = vadd.f32 %v48, %v184
  %186 = vmatprep.mubr.f32.mxu0 0.0
  %187 = vmatmul.mubr.f32.gmra.mxu0 %v81
  %v188 = vpop.f32.mrf.mxu0
  %v189 = vadd.f32 %v44, %v188
  %v190 = vpop.f32.mrf.mxu0
  %v191 = vadd.f32 %v48, %v190
  %192 = vmatprep.mubr.f32.mxu0 0.0
  %193 = vmatmul.mubr.f32.gmra.mxu0 %v84
  %v194 = vpop.f32.mrf.mxu0
  %v195 = vadd.f32 %v44, %v194
  %v196 = vpop.f32.mrf.mxu0
  %v197 = vadd.f32 %v48, %v196
  %198 = vdwg.mxu0
  %199 = vmatprep.subr.mxu0 0.0
  %200 = vmatpush1.msra.mxu0 0.0
  %201 = vmatprep.subr.mxu0 0.0
  %202 = vmatpush1.msra.mxu0 0.0
  %203 = vmatprep.subr.mxu0 0.0
  %204 = vmatpush1.msra.mxu0 0.0
  %205 = vmatprep.subr.mxu0 0.0
  %206 = vmatpush1.msra.mxu0 0.0
  %207 = vmatprep.subr.mxu0 0.0
  %208 = vmatpush1.msra.mxu0 0.0
  %209 = vmatprep.subr.mxu0 0.0
  %210 = vmatpush1.msra.mxu0 0.0
  %211 = vmatprep.subr.mxu0 0.0
  %212 = vmatpush1.msra.mxu0 0.0
  %213 = vmatprep.subr.mxu0 0.0
  %214 = vmatpush1.msra.mxu0 0.0
  %215 = vmatprep.subr.mxu0 0.0
  %216 = vmatpush1.msra.mxu0 0.0
  %217 = vmatprep.subr.mxu0 0.0
  %218 = vmatpush1.msra.mxu0 0.0
  %219 = vmatprep.subr.mxu0 0.0
  %220 = vmatpush1.msra.mxu0 0.0
  %221 = vmatprep.subr.mxu0 0.0
  %222 = vmatpush1.msra.mxu0 0.0
  %223 = vmatprep.subr.mxu0 0.0
  %224 = vmatpush1.msra.mxu0 0.0
  %225 = vmatprep.subr.mxu0 0.0
  %226 = vmatpush1.msra.mxu0 0.0
  %227 = vmatprep.subr.mxu0 %v38
  %228 = vmatpush1.msra.mxu0 %v37
  %229 = vmatprep.subr.mxu0 %v34
  %230 = vmatpush1.msra.mxu0 %v33
  %231 = vmatprep.subr.mxu0 0.0
  %232 = vmatpush2.msra.mxu0 0.0
  %233 = vmatprep.subr.mxu0 0.0
  %234 = vmatpush2.msra.mxu0 0.0
  %235 = vmatprep.subr.mxu0 0.0
  %236 = vmatpush2.msra.mxu0 0.0
  %237 = vmatprep.subr.mxu0 0.0
  %238 = vmatpush2.msra.mxu0 0.0
  %239 = vmatprep.subr.mxu0 0.0
  %240 = vmatpush2.msra.mxu0 0.0
  %241 = vmatprep.subr.mxu0 0.0
  %242 = vmatpush2.msra.mxu0 0.0
  %243 = vmatprep.subr.mxu0 0.0
  %244 = vmatpush2.msra.mxu0 0.0
  %245 = vmatprep.subr.mxu0 0.0
  %246 = vmatpush2.msra.mxu0 0.0
  %247 = vmatprep.subr.mxu0 0.0
  %248 = vmatpush2.msra.mxu0 0.0
  %249 = vmatprep.subr.mxu0 0.0
  %250 = vmatpush2.msra.mxu0 0.0
  %251 = vmatprep.subr.mxu0 0.0
  %252 = vmatpush2.msra.mxu0 0.0
  %253 = vmatprep.subr.mxu0 0.0
  %254 = vmatpush2.msra.mxu0 0.0
  %255 = vmatprep.subr.mxu0 0.0
  %256 = vmatpush2.msra.mxu0 0.0
  %257 = vmatprep.subr.mxu0 0.0
  %258 = vmatpush2.msra.mxu0 0.0
  %259 = vmatprep.subr.mxu0 0.0
  %260 = vmatpush2.msra.mxu0 0.0
  %261 = vmatprep.subr.mxu0 0.0
  %262 = vmatpush2.msra.mxu0 0.0
  %263 = vmatprep.mubr.f32.mxu0 0.0
  %264 = vmatmul.mubr.f32.gmra.mxu0 %v63
  %v265 = vpop.f32.mrf.mxu0
  %v266 = vadd.f32 %v52, %v265
  %v267 = vpop.f32.mrf.mxu0
  %v268 = vadd.f32 %v56, %v267
  %269 = vmatprep.mubr.f32.mxu0 0.0
  %270 = vmatmul.mubr.f32.gmra.mxu0 %v66
  %v271 = vpop.f32.mrf.mxu0
  %v272 = vadd.f32 %v52, %v271
  %v273 = vpop.f32.mrf.mxu0
  %v274 = vadd.f32 %v56, %v273
  %275 = vmatprep.mubr.f32.mxu0 0.0
  %276 = vmatmul.mubr.f32.gmra.mxu0 %v69
  %v277 = vpop.f32.mrf.mxu0
  %v278 = vadd.f32 %v52, %v277
  %v279 = vpop.f32.mrf.mxu0
  %v280 = vadd.f32 %v56, %v279
  %281 = vmatprep.mubr.f32.mxu0 0.0
  %282 = vmatmul.mubr.f32.gmra.mxu0 %v72
  %v283 = vpop.f32.mrf.mxu0
  %v284 = vadd.f32 %v52, %v283
  %v285 = vpop.f32.mrf.mxu0
  %v286 = vadd.f32 %v56, %v285
  %287 = vmatprep.mubr.f32.mxu0 0.0
  %288 = vmatmul.mubr.f32.gmra.mxu0 %v75
  %v289 = vpop.f32.mrf.mxu0
  %v290 = vadd.f32 %v52, %v289
  %v291 = vpop.f32.mrf.mxu0
  %v292 = vadd.f32 %v56, %v291
  %293 = vmatprep.mubr.f32.mxu0 0.0
  %294 = vmatmul.mubr.f32.gmra.mxu0 %v78
  %v295 = vpop.f32.mrf.mxu0
  %v296 = vadd.f32 %v52, %v295
  %v297 = vpop.f32.mrf.mxu0
  %v298 = vadd.f32 %v56, %v297
  %299 = vmatprep.mubr.f32.mxu0 0.0
  %300 = vmatmul.mubr.f32.gmra.mxu0 %v81
  %v301 = vpop.f32.mrf.mxu0
  %v302 = vadd.f32 %v52, %v301
  %v303 = vpop.f32.mrf.mxu0
  %v304 = vadd.f32 %v56, %v303
  %305 = vmatprep.mubr.f32.mxu0 0.0
  %306 = vmatmul.mubr.f32.gmra.mxu0 %v84
  %v307 = vpop.f32.mrf.mxu0
  %v308 = vadd.f32 %v52, %v307
  %v309 = vpop.f32.mrf.mxu0
  %v310 = vadd.f32 %v56, %v309
  %311 = vdwg.mxu0
  %312 = vst [vmem:[#allocation2] sm:$0xff] %v153
  %313 = vst [vmem:[#allocation2 + $0x8] sm:$0xff] %v155
  %314 = vst [vmem:[#allocation2 + $0x10] sm:$0xff] %v266
  %315 = vst [vmem:[#allocation2 + $0x18] sm:$0xff] %v268
  %316 = vst [vmem:[#allocation2 + $0x20] sm:$0xff] %v159
  %317 = vst [vmem:[#allocation2 + $0x28] sm:$0xff] %v161
  %318 = vst [vmem:[#allocation2 + $0x30] sm:$0xff] %v272
  %319 = vst [vmem:[#allocation2 + $0x38] sm:$0xff] %v274
  %320 = vst [vmem:[#allocation2 + $0x40] sm:$0xff] %v165
  %321 = vst [vmem:[#allocation2 + $0x48] sm:$0xff] %v167
  %322 = vst [vmem:[#allocation2 + $0x50] sm:$0xff] %v278
  %323 = vst [vmem:[#allocation2 + $0x58] sm:$0xff] %v280
  %324 = vst [vmem:[#allocation2 + $0x60] sm:$0xff] %v171
  %325 = vst [vmem:[#allocation2 + $0x68] sm:$0xff] %v173
  %326 = vst [vmem:[#allocation2 + $0x70] sm:$0xff] %v284
  %327 = vst [vmem:[#allocation2 + $0x78] sm:$0xff] %v286
  %328 = vst [vmem:[#allocation2 + $0x80] sm:$0xff] %v177
  %329 = vst [vmem:[#allocation2 + $0x88] sm:$0xff] %v179
  %330 = vst [vmem:[#allocation2 + $0x90] sm:$0xff] %v290
  %331 = vst [vmem:[#allocation2 + $0x98] sm:$0xff] %v292
  %332 = vst [vmem:[#allocation2 + $0xa0] sm:$0xff] %v183
  %333 = vst [vmem:[#allocation2 + $0xa8] sm:$0xff] %v185
  %334 = vst [vmem:[#allocation2 + $0xb0] sm:$0xff] %v296
  %335 = vst [vmem:[#allocation2 + $0xb8] sm:$0xff] %v298
  %336 = vst [vmem:[#allocation2 + $0xc0] sm:$0xff] %v189
  %337 = vst [vmem:[#allocation2 + $0xc8] sm:$0xff] %v191
  %338 = vst [vmem:[#allocation2 + $0xd0] sm:$0xff] %v302
  %339 = vst [vmem:[#allocation2 + $0xd8] sm:$0xff] %v304
  %340 = vst [vmem:[#allocation2 + $0xe0] sm:$0xff] %v195
  %341 = vst [vmem:[#allocation2 + $0xe8] sm:$0xff] %v197
  %342 = vst [vmem:[#allocation2 + $0xf0] sm:$0xff] %v308
  %343 = vst [vmem:[#allocation2 + $0xf8] sm:$0xff] %v310
  %v344 = vld [vmem:[#allocation2] sm:$0xff]
  %v345 = vld [vmem:[#allocation2 + $0x8] sm:$0xff]
  %v346 = vld [vmem:[#allocation2 + $0x10] sm:$0xff]
  %v347 = vld [vmem:[#allocation2 + $0x18] sm:$0xff]
  %v348 = vld [vmem:[#allocation3] sm:$0xff]
  %v349 = vld [vmem:[%s3] sm:$0xff]
  %v350 = vld [vmem:[%s3 + $0x8] sm:$0xff]
  %v351 = vld [vmem:[%s3 + $0x10] sm:$0xff]
  %v352 = vld [vmem:[%s3 + $0x18] sm:$0xff]
  %v353 = vld [vmem:[%s3 + $0x20] sm:$0xff]
  %v354 = vld [vmem:[%s3 + $0x28] sm:$0xff]
  %v355 = vld [vmem:[%s3 + $0x30] sm:$0xff]
  %v356 = vld [vmem:[%s3 + $0x38] sm:$0xff]
  %v357 = vld [vmem:[%s3 + $0x40] sm:$0xff]
  %v358 = vld [vmem:[%s3 + $0x48] sm:$0xff]
  %v359 = vld [vmem:[%s3 + $0x50] sm:$0xff]
  %v360 = vld [vmem:[%s3 + $0x58] sm:$0xff]
  %v361 = vld [vmem:[%s3 + $0x60] sm:$0xff]
  %v362 = vld [vmem:[%s3 + $0x68] sm:$0xff]
  %v363 = vld [vmem:[%s3 + $0x70] sm:$0xff]
  %v364 = vld [vmem:[%s3 + $0x78] sm:$0xff]
  %v365 = vld [vmem:[%s3 + $0x80] sm:$0xff]
  %v366 = vld [vmem:[%s3 + $0x88] sm:$0xff]
  %v367 = vld [vmem:[%s3 + $0x90] sm:$0xff]
  %v368 = vld [vmem:[%s3 + $0x98] sm:$0xff]
  %v369 = vld [vmem:[%s3 + $0xa0] sm:$0xff]
  %v370 = vld [vmem:[%s3 + $0xa8] sm:$0xff]
  %v371 = vld [vmem:[%s3 + $0xb0] sm:$0xff]
  %v372 = vld [vmem:[%s3 + $0xb8] sm:$0xff]
  %v373 = vld [vmem:[%s3 + $0xc0] sm:$0xff]
  %v374 = vld [vmem:[%s3 + $0xc8] sm:$0xff]
  %v375 = vld [vmem:[%s3 + $0xd0] sm:$0xff]
  %v376 = vld [vmem:[%s3 + $0xd8] sm:$0xff]
  %v377 = vld [vmem:[%s3 + $0xe0] sm:$0xff]
  %v378 = vld [vmem:[%s3 + $0xe8] sm:$0xff]
  %v379 = vld [vmem:[%s3 + $0xf0] sm:$0xff]
  %v380 = vld [vmem:[%s3 + $0xf8] sm:$0xff]
  %v381 = vld [vmem:[%s3 + $0x100] sm:$0xff]
  %v382 = vld [vmem:[%s3 + $0x108] sm:$0xff]
  %v383 = vld [vmem:[%s3 + $0x110] sm:$0xff]
  %v384 = vld [vmem:[%s3 + $0x118] sm:$0xff]
  %v385 = vld [vmem:[%s3 + $0x120] sm:$0xff]
  %v386 = vld [vmem:[%s3 + $0x128] sm:$0xff]
  %v387 = vld [vmem:[%s3 + $0x130] sm:$0xff]
  %v388 = vld [vmem:[%s3 + $0x138] sm:$0xff]
  %v389 = vld [vmem:[%s3 + $0x140] sm:$0xff]
  %v390 = vld [vmem:[%s3 + $0x148] sm:$0xff]
  %v391 = vld [vmem:[%s3 + $0x150] sm:$0xff]
  %v392 = vld [vmem:[%s3 + $0x158] sm:$0xff]
  %v393 = vld [vmem:[%s3 + $0x160] sm:$0xff]
  %v394 = vld [vmem:[%s3 + $0x168] sm:$0xff]
  %v395 = vld [vmem:[%s3 + $0x170] sm:$0xff]
  %v396 = vld [vmem:[%s3 + $0x178] sm:$0xff]
  %v397 = vld [vmem:[%s3 + $0x180] sm:$0xff]
  %v398 = vld [vmem:[%s3 + $0x188] sm:$0xff]
  %v399 = vld [vmem:[%s3 + $0x190] sm:$0xff]
  %v400 = vld [vmem:[%s3 + $0x198] sm:$0xff]
  %v401 = vld [vmem:[%s3 + $0x1a0] sm:$0xff]
  %v402 = vld [vmem:[%s3 + $0x1a8] sm:$0xff]
  %v403 = vld [vmem:[%s3 + $0x1b0] sm:$0xff]
  %v404 = vld [vmem:[%s3 + $0x1b8] sm:$0xff]
  %v405 = vld [vmem:[%s3 + $0x1c0] sm:$0xff]
  %v406 = vld [vmem:[%s3 + $0x1c8] sm:$0xff]
  %v407 = vld [vmem:[%s3 + $0x1d0] sm:$0xff]
  %v408 = vld [vmem:[%s3 + $0x1d8] sm:$0xff]
  %v409 = vld [vmem:[%s3 + $0x1e0] sm:$0xff]
  %v410 = vld [vmem:[%s3 + $0x1e8] sm:$0xff]
  %v411 = vld [vmem:[%s3 + $0x1f0] sm:$0xff]
  %v412 = vld [vmem:[%s3 + $0x1f8] sm:$0xff]
  %413 = vmatprep.subr.mxu0 %v410
  %414 = vmatpush1.msra.mxu0 %v409
  %415 = vmatprep.subr.mxu0 %v406
  %416 = vmatpush1.msra.mxu0 %v405
  %417 = vmatprep.subr.mxu0 %v402
  %418 = vmatpush1.msra.mxu0 %v401
  %419 = vmatprep.subr.mxu0 %v398
  %420 = vmatpush1.msra.mxu0 %v397
  %421 = vmatprep.subr.mxu0 %v394
  %422 = vmatpush1.msra.mxu0 %v393
  %423 = vmatprep.subr.mxu0 %v390
  %424 = vmatpush1.msra.mxu0 %v389
  %425 = vmatprep.subr.mxu0 %v386
  %426 = vmatpush1.msra.mxu0 %v385
  %427 = vmatprep.subr.mxu0 %v382
  %428 = vmatpush1.msra.mxu0 %v381
  %429 = vmatprep.subr.mxu0 %v378
  %430 = vmatpush1.msra.mxu0 %v377
  %431 = vmatprep.subr.mxu0 %v374
  %432 = vmatpush1.msra.mxu0 %v373
  %433 = vmatprep.subr.mxu0 %v370
  %434 = vmatpush1.msra.mxu0 %v369
  %435 = vmatprep.subr.mxu0 %v366
  %436 = vmatpush1.msra.mxu0 %v365
  %437 = vmatprep.subr.mxu0 %v362
  %438 = vmatpush1.msra.mxu0 %v361
  %439 = vmatprep.subr.mxu0 %v358
  %440 = vmatpush1.msra.mxu0 %v357
  %441 = vmatprep.subr.mxu0 %v354
  %442 = vmatpush1.msra.mxu0 %v353
  %443 = vmatprep.subr.mxu0 %v350
  %444 = vmatpush1.msra.mxu0 %v349
  %445 = vmatprep.subr.mxu0 0.0
  %446 = vmatpush2.msra.mxu0 0.0
  %447 = vmatprep.subr.mxu0 0.0
  %448 = vmatpush2.msra.mxu0 0.0
  %449 = vmatprep.subr.mxu0 0.0
  %450 = vmatpush2.msra.mxu0 0.0
  %451 = vmatprep.subr.mxu0 0.0
  %452 = vmatpush2.msra.mxu0 0.0
  %453 = vmatprep.subr.mxu0 0.0
  %454 = vmatpush2.msra.mxu0 0.0
  %455 = vmatprep.subr.mxu0 0.0
  %456 = vmatpush2.msra.mxu0 0.0
  %457 = vmatprep.subr.mxu0 0.0
  %458 = vmatpush2.msra.mxu0 0.0
  %459 = vmatprep.subr.mxu0 0.0
  %460 = vmatpush2.msra.mxu0 0.0
  %461 = vmatprep.subr.mxu0 0.0
  %462 = vmatpush2.msra.mxu0 0.0
  %463 = vmatprep.subr.mxu0 0.0
  %464 = vmatpush2.msra.mxu0 0.0
  %465 = vmatprep.subr.mxu0 0.0
  %466 = vmatpush2.msra.mxu0 0.0
  %467 = vmatprep.subr.mxu0 0.0
  %468 = vmatpush2.msra.mxu0 0.0
  %469 = vmatprep.subr.mxu0 0.0
  %470 = vmatpush2.msra.mxu0 0.0
  %471 = vmatprep.subr.mxu0 0.0
  %472 = vmatpush2.msra.mxu0 0.0
  %473 = vmatprep.subr.mxu0 0.0
  %474 = vmatpush2.msra.mxu0 0.0
  %475 = vmatprep.subr.mxu0 0.0
  %476 = vmatpush2.msra.mxu0 0.0
  %477 = vmatprep.mubr.f32.mxu0 0.0
  %478 = vmatmul.mubr.f32.gmra.mxu0 %v348
  %v479 = vpop.f32.mrf.mxu0
  %v480 = vadd.f32 0.0, %v479
  %v481 = vpop.f32.mrf.mxu0
  %v482 = vadd.f32 0.0, %v481
  %483 = vdwg.mxu0
  %484 = vmatprep.subr.mxu0 %v412
  %485 = vmatpush1.msra.mxu0 %v411
  %486 = vmatprep.subr.mxu0 %v408
  %487 = vmatpush1.msra.mxu0 %v407
  %488 = vmatprep.subr.mxu0 %v404
  %489 = vmatpush1.msra.mxu0 %v403
  %490 = vmatprep.subr.mxu0 %v400
  %491 = vmatpush1.msra.mxu0 %v399
  %492 = vmatprep.subr.mxu0 %v396
  %493 = vmatpush1.msra.mxu0 %v395
  %494 = vmatprep.subr.mxu0 %v392
  %495 = vmatpush1.msra.mxu0 %v391
  %496 = vmatprep.subr.mxu0 %v388
  %497 = vmatpush1.msra.mxu0 %v387
  %498 = vmatprep.subr.mxu0 %v384
  %499 = vmatpush1.msra.mxu0 %v383
  %500 = vmatprep.subr.mxu0 %v380
  %501 = vmatpush1.msra.mxu0 %v379
  %502 = vmatprep.subr.mxu0 %v376
  %503 = vmatpush1.msra.mxu0 %v375
  %504 = vmatprep.subr.mxu0 %v372
  %505 = vmatpush1.msra.mxu0 %v371
  %506 = vmatprep.subr.mxu0 %v368
  %507 = vmatpush1.msra.mxu0 %v367
  %508 = vmatprep.subr.mxu0 %v364
  %509 = vmatpush1.msra.mxu0 %v363
  %510 = vmatprep.subr.mxu0 %v360
  %511 = vmatpush1.msra.mxu0 %v359
  %512 = vmatprep.subr.mxu0 %v356
  %513 = vmatpush1.msra.mxu0 %v355
  %514 = vmatprep.subr.mxu0 %v352
  %515 = vmatpush1.msra.mxu0 %v351
  %516 = vmatprep.subr.mxu0 0.0
  %517 = vmatpush2.msra.mxu0 0.0
  %518 = vmatprep.subr.mxu0 0.0
  %519 = vmatpush2.msra.mxu0 0.0
  %520 = vmatprep.subr.mxu0 0.0
  %521 = vmatpush2.msra.mxu0 0.0
  %522 = vmatprep.subr.mxu0 0.0
  %523 = vmatpush2.msra.mxu0 0.0
  %524 = vmatprep.subr.mxu0 0.0
  %525 = vmatpush2.msra.mxu0 0.0
  %526 = vmatprep.subr.mxu0 0.0
  %527 = vmatpush2.msra.mxu0 0.0
  %528 = vmatprep.subr.mxu0 0.0
  %529 = vmatpush2.msra.mxu0 0.0
  %530 = vmatprep.subr.mxu0 0.0
  %531 = vmatpush2.msra.mxu0 0.0
  %532 = vmatprep.subr.mxu0 0.0
  %533 = vmatpush2.msra.mxu0 0.0
  %534 = vmatprep.subr.mxu0 0.0
  %535 = vmatpush2.msra.mxu0 0.0
  %536 = vmatprep.subr.mxu0 0.0
  %537 = vmatpush2.msra.mxu0 0.0
  %538 = vmatprep.subr.mxu0 0.0
  %539 = vmatpush2.msra.mxu0 0.0
  %540 = vmatprep.subr.mxu0 0.0
  %541 = vmatpush2.msra.mxu0 0.0
  %542 = vmatprep.subr.mxu0 0.0
  %543 = vmatpush2.msra.mxu0 0.0
  %544 = vmatprep.subr.mxu0 0.0
  %545 = vmatpush2.msra.mxu0 0.0
  %546 = vmatprep.subr.mxu0 0.0
  %547 = vmatpush2.msra.mxu0 0.0
  %548 = vmatprep.mubr.f32.mxu0 0.0
  %549 = vmatmul.mubr.f32.gmra.mxu0 %v348
  %v550 = vpop.f32.mrf.mxu0
  %v551 = vadd.f32 0.0, %v550
  %v552 = vpop.f32.mrf.mxu0
  %v553 = vadd.f32 0.0, %v552
  %554 = vdwg.mxu0
  %v555 = vadd.f32 %v344, %v480
  %v556 = vadd.f32 %v345, %v482
  %v557 = vadd.f32 %v346, %v551
  %v558 = vadd.f32 %v347, %v553
  %v559 = vxor.u32 %v555, 2147483648
  %v560 = vmul.f32 %v559, 1.442695
  %v561 = vpow.pop %v560
  %v562 = vadd.f32 %v561, 1.0
  %v563 = vrcp.pop %v562
  %v564 = vmul.f32 1.0, %v563
  %v565 = vxor.u32 %v556, 2147483648
  %v566 = vmul.f32 %v565, 1.442695
  %v567 = vpow.pop %v566
  %v568 = vadd.f32 %v567, 1.0
  %v569 = vrcp.pop %v568
  %v570 = vmul.f32 1.0, %v569
  %v571 = vtanh.pop %v557
  %v572 = vxor.u32 %v558, 2147483648
  %v573 = vmul.f32 %v572, 1.442695
  %v574 = vpow.pop %v573
  %v575 = vadd.f32 %v574, 1.0
  %v576 = vrcp.pop %v575
  %v577 = vmul.f32 1.0, %v576
  %v578 = vld [vmem:[#allocation4] sm:$0xff]
  %v579 = vmul.f32 %v570, %v578
  %v580 = vmul.f32 %v564, %v571
  %v581 = vadd.f32 %v579, %v580
  %v582 = vtanh.pop %v581
  %v583 = vmul.f32 %v577, %v582
  %584 = vst [vmem:[#allocation4] sm:$0xff] %v581
  %585 = vst [vmem:[#allocation3] sm:$0xff] %v583
  %586 = vst [vmem:[%s4] sm:$0xff] %v583
  %s587 = scalar_lea.vmem [#allocation2], 32
  %v588 = vld [vmem:[%s587] sm:$0xff]
  %v589 = vld [vmem:[%s587 + $0x8] sm:$0xff]
  %v590 = vld [vmem:[%s587 + $0x10] sm:$0xff]
  %v591 = vld [vmem:[%s587 + $0x18] sm:$0xff]
  %v592 = vld [vmem:[#allocation3] sm:$0xff]
  %v593 = vld [vmem:[%s3] sm:$0xff]
  %v594 = vld [vmem:[%s3 + $0x8] sm:$0xff]
  %v595 = vld [vmem:[%s3 + $0x10] sm:$0xff]
  %v596 = vld [vmem:[%s3 + $0x18] sm:$0xff]
  %v597 = vld [vmem:[%s3 + $0x20] sm:$0xff]
  %v598 = vld [vmem:[%s3 + $0x28] sm:$0xff]
  %v599 = vld [vmem:[%s3 + $0x30] sm:$0xff]
  %v600 = vld [vmem:[%s3 + $0x38] sm:$0xff]
  %v601 = vld [vmem:[%s3 + $0x40] sm:$0xff]
  %v602 = vld [vmem:[%s3 + $0x48] sm:$0xff]
  %v603 = vld [vmem:[%s3 + $0x50] sm:$0xff]
  %v604 = vld [vmem:[%s3 + $0x58] sm:$0xff]
  %v605 = vld [vmem:[%s3 + $0x60] sm:$0xff]
  %v606 = vld [vmem:[%s3 + $0x68] sm:$0xff]
  %v607 = vld [vmem:[%s3 + $0x70] sm:$0xff]
  %v608 = vld [vmem:[%s3 + $0x78] sm:$0xff]
  %v609 = vld [vmem:[%s3 + $0x80] sm:$0xff]
  %v610 = vld [vmem:[%s3 + $0x88] sm:$0xff]
  %v611 = vld [vmem:[%s3 + $0x90] sm:$0xff]
  %v612 = vld [vmem:[%s3 + $0x98] sm:$0xff]
  %v613 = vld [vmem:[%s3 + $0xa0] sm:$0xff]
  %v614 = vld [vmem:[%s3 + $0xa8] sm:$0xff]
  %v615 = vld [vmem:[%s3 + $0xb0] sm:$0xff]
  %v616 = vld [vmem:[%s3 + $0xb8] sm:$0xff]
  %v617 = vld [vmem:[%s3 + $0xc0] sm:$0xff]
  %v618 = vld [vmem:[%s3 + $0xc8] sm:$0xff]
  %v619 = vld [vmem:[%s3 + $0xd0] sm:$0xff]
  %v620 = vld [vmem:[%s3 + $0xd8] sm:$0xff]
  %v621 = vld [vmem:[%s3 + $0xe0] sm:$0xff]
  %v622 = vld [vmem:[%s3 + $0xe8] sm:$0xff]
  %v623 = vld [vmem:[%s3 + $0xf0] sm:$0xff]
  %v624 = vld [vmem:[%s3 + $0xf8] sm:$0xff]
  %v625 = vld [vmem:[%s3 + $0x100] sm:$0xff]
  %v626 = vld [vmem:[%s3 + $0x108] sm:$0xff]
  %v627 = vld [vmem:[%s3 + $0x110] sm:$0xff]
  %v628 = vld [vmem:[%s3 + $0x118] sm:$0xff]
  %v629 = vld [vmem:[%s3 + $0x120] sm:$0xff]
  %v630 = vld [vmem:[%s3 + $0x128] sm:$0xff]
  %v631 = vld [vmem:[%s3 + $0x130] sm:$0xff]
  %v632 = vld [vmem:[%s3 + $0x138] sm:$0xff]
  %v633 = vld [vmem:[%s3 + $0x140] sm:$0xff]
  %v634 = vld [vmem:[%s3 + $0x148] sm:$0xff]
  %v635 = vld [vmem:[%s3 + $0x150] sm:$0xff]
  %v636 = vld [vmem:[%s3 + $0x158] sm:$0xff]
  %v637 = vld [vmem:[%s3 + $0x160] sm:$0xff]
  %v638 = vld [vmem:[%s3 + $0x168] sm:$0xff]
  %v639 = vld [vmem:[%s3 + $0x170] sm:$0xff]
  %v640 = vld [vmem:[%s3 + $0x178] sm:$0xff]
  %v641 = vld [vmem:[%s3 + $0x180] sm:$0xff]
  %v642 = vld [vmem:[%s3 + $0x188] sm:$0xff]
  %v643 = vld [vmem:[%s3 + $0x190] sm:$0xff]
  %v644 = vld [vmem:[%s3 + $0x198] sm:$0xff]
  %v645 = vld [vmem:[%s3 + $0x1a0] sm:$0xff]
  %v646 = vld [vmem:[%s3 + $0x1a8] sm:$0xff]
  %v647 = vld [vmem:[%s3 + $0x1b0] sm:$0xff]
  %v648 = vld [vmem:[%s3 + $0x1b8] sm:$0xff]
  %v649 = vld [vmem:[%s3 + $0x1c0] sm:$0xff]
  %v650 = vld [vmem:[%s3 + $0x1c8] sm:$0xff]
  %v651 = vld [vmem:[%s3 + $0x1d0] sm:$0xff]
  %v652 = vld [vmem:[%s3 + $0x1d8] sm:$0xff]
  %v653 = vld [vmem:[%s3 + $0x1e0] sm:$0xff]
  %v654 = vld [vmem:[%s3 + $0x1e8] sm:$0xff]
  %v655 = vld [vmem:[%s3 + $0x1f0] sm:$0xff]
  %v656 = vld [vmem:[%s3 + $0x1f8] sm:$0xff]
  %657 = vmatprep.subr.mxu0 %v654
  %658 = vmatpush1.msra.mxu0 %v653
  %659 = vmatprep.subr.mxu0 %v650
  %660 = vmatpush1.msra.mxu0 %v649
  %661 = vmatprep.subr.mxu0 %v646
  %662 = vmatpush1.msra.mxu0 %v645
  %663 = vmatprep.subr.mxu0 %v642
  %664 = vmatpush1.msra.mxu0 %v641
  %665 = vmatprep.subr.mxu0 %v638
  %666 = vmatpush1.msra.mxu0 %v637
  %667 = vmatprep.subr.mxu0 %v634
  %668 = vmatpush1.msra.mxu0 %v633
  %669 = vmatprep.subr.mxu0 %v630
  %670 = vmatpush1.msra.mxu0 %v629
  %671 = vmatprep.subr.mxu0 %v626
  %672 = vmatpush1.msra.mxu0 %v625
  %673 = vmatprep.subr.mxu0 %v622
  %674 = vmatpush1.msra.mxu0 %v621
  %675 = vmatprep.subr.mxu0 %v618
  %676 = vmatpush1.msra.mxu0 %v617
  %677 = vmatprep.subr.mxu0 %v614
  %678 = vmatpush1.msra.mxu0 %v613
  %679 = vmatprep.subr.mxu0 %v610
  %680 = vmatpush1.msra.mxu0 %v609
  %681 = vmatprep.subr.mxu0 %v606
  %682 = vmatpush1.msra.mxu0 %v605
  %683 = vmatprep.subr.mxu0 %v602
  %684 = vmatpush1.msra.mxu0 %v601
  %685 = vmatprep.subr.mxu0 %v598
  %686 = vmatpush1.msra.mxu0 %v597
  %687 = vmatprep.subr.mxu0 %v594
  %688 = vmatpush1.msra.mxu0 %v593
  %689 = vmatprep.subr.mxu0 0.0
  %690 = vmatpush2.msra.mxu0 0.0
  %691 = vmatprep.subr.mxu0 0.0
  %692 = vmatpush2.msra.mxu0 0.0
  %693 = vmatprep.subr.mxu0 0.0
  %694 = vmatpush2.msra.mxu0 0.0
  %695 = vmatprep.subr.mxu0 0.0
  %696 = vmatpush2.msra.mxu0 0.0
  %697 = vmatprep.subr.mxu0 0.0
  %698 = vmatpush2.msra.mxu0 0.0
  %699 = vmatprep.subr.mxu0 0.0
  %700 = vmatpush2.msra.mxu0 0.0
  %701 = vmatprep.subr.mxu0 0.0
  %702 = vmatpush2.msra.mxu0 0.0
  %703 = vmatprep.subr.mxu0 0.0
  %704 = vmatpush2.msra.mxu0 0.0
  %705 = vmatprep.subr.mxu0 0.0
  %706 = vmatpush2.msra.mxu0 0.0
  %707 = vmatprep.subr.mxu0 0.0
  %708 = vmatpush2.msra.mxu0 0.0
  %709 = vmatprep.subr.mxu0 0.0
  %710 = vmatpush2.msra.mxu0 0.0
  %711 = vmatprep.subr.mxu0 0.0
  %712 = vmatpush2.msra.mxu0 0.0
  %713 = vmatprep.subr.mxu0 0.0
  %714 = vmatpush2.msra.mxu0 0.0
  %715 = vmatprep.subr.mxu0 0.0
  %716 = vmatpush2.msra.mxu0 0.0
  %717 = vmatprep.subr.mxu0 0.0
  %718 = vmatpush2.msra.mxu0 0.0
  %719 = vmatprep.subr.mxu0 0.0
  %720 = vmatpush2.msra.mxu0 0.0
  %721 = vmatprep.mubr.f32.mxu0 0.0
  %722 = vmatmul.mubr.f32.gmra.mxu0 %v592
  %v723 = vpop.f32.mrf.mxu0
  %v724 = vadd.f32 0.0, %v723
  %v725 = vpop.f32.mrf.mxu0
  %v726 = vadd.f32 0.0, %v725
  %727 = vdwg.mxu0
  %728 = vmatprep.subr.mxu0 %v656
  %729 = vmatpush1.msra.mxu0 %v655
  %730 = vmatprep.subr.mxu0 %v652
  %731 = vmatpush1.msra.mxu0 %v651
  %732 = vmatprep.subr.mxu0 %v648
  %733 = vmatpush1.msra.mxu0 %v647
  %734 = vmatprep.subr.mxu0 %v644
  %735 = vmatpush1.msra.mxu0 %v643
  %736 = vmatprep.subr.mxu0 %v640
  %737 = vmatpush1.msra.mxu0 %v639
  %738 = vmatprep.subr.mxu0 %v636
  %739 = vmatpush1.msra.mxu0 %v635
  %740 = vmatprep.subr.mxu0 %v632
  %741 = vmatpush1.msra.mxu0 %v631
  %742 = vmatprep.subr.mxu0 %v628
  %743 = vmatpush1.msra.mxu0 %v627
  %744 = vmatprep.subr.mxu0 %v624
  %745 = vmatpush1.msra.mxu0 %v623
  %746 = vmatprep.subr.mxu0 %v620
  %747 = vmatpush1.msra.mxu0 %v619
  %748 = vmatprep.subr.mxu0 %v616
  %749 = vmatpush1.msra.mxu0 %v615
  %750 = vmatprep.subr.mxu0 %v612
  %751 = vmatpush1.msra.mxu0 %v611
  %752 = vmatprep.subr.mxu0 %v608
  %753 = vmatpush1.msra.mxu0 %v607
  %754 = vmatprep.subr.mxu0 %v604
  %755 = vmatpush1.msra.mxu0 %v603
  %756 = vmatprep.subr.mxu0 %v600
  %757 = vmatpush1.msra.mxu0 %v599
  %758 = vmatprep.subr.mxu0 %v596
  %759 = vmatpush1.msra.mxu0 %v595
  %760 = vmatprep.subr.mxu0 0.0
  %761 = vmatpush2.msra.mxu0 0.0
  %762 = vmatprep.subr.mxu0 0.0
  %763 = vmatpush2.msra.mxu0 0.0
  %764 = vmatprep.subr.mxu0 0.0
  %765 = vmatpush2.msra.mxu0 0.0
  %766 = vmatprep.subr.mxu0 0.0
  %767 = vmatpush2.msra.mxu0 0.0
  %768 = vmatprep.subr.mxu0 0.0
  %769 = vmatpush2.msra.mxu0 0.0
  %770 = vmatprep.subr.mxu0 0.0
  %771 = vmatpush2.msra.mxu0 0.0
  %772 = vmatprep.subr.mxu0 0.0
  %773 = vmatpush2.msra.mxu0 0.0
  %774 = vmatprep.subr.mxu0 0.0
  %775 = vmatpush2.msra.mxu0 0.0
  %776 = vmatprep.subr.mxu0 0.0
  %777 = vmatpush2.msra.mxu0 0.0
  %778 = vmatprep.subr.mxu0 0.0
  %779 = vmatpush2.msra.mxu0 0.0
  %780 = vmatprep.subr.mxu0 0.0
  %781 = vmatpush2.msra.mxu0 0.0
  %782 = vmatprep.subr.mxu0 0.0
  %783 = vmatpush2.msra.mxu0 0.0
  %784 = vmatprep.subr.mxu0 0.0
  %785 = vmatpush2.msra.mxu0 0.0
  %786 = vmatprep.subr.mxu0 0.0
  %787 = vmatpush2.msra.mxu0 0.0
  %788 = vmatprep.subr.mxu0 0.0
  %789 = vmatpush2.msra.mxu0 0.0
  %790 = vmatprep.subr.mxu0 0.0
  %791 = vmatpush2.msra.mxu0 0.0
  %792 = vmatprep.mubr.f32.mxu0 0.0
  %793 = vmatmul.mubr.f32.gmra.mxu0 %v592
  %v794 = vpop.f32.mrf.mxu0
  %v795 = vadd.f32 0.0, %v794
  %v796 = vpop.f32.mrf.mxu0
  %v797 = vadd.f32 0.0, %v796
  %798 = vdwg.mxu0
  %v799 = vadd.f32 %v588, %v724
  %v800 = vadd.f32 %v589, %v726
  %v801 = vadd.f32 %v590, %v795
  %v802 = vadd.f32 %v591, %v797
  %v803 = vxor.u32 %v799, 2147483648
  %v804 = vmul.f32 %v803, 1.442695
  %v805 = vpow.pop %v804
  %v806 = vadd.f32 %v805, 1.0
  %v807 = vrcp.pop %v806
  %v808 = vmul.f32 1.0, %v807
  %v809 = vxor.u32 %v800, 2147483648
  %v810 = vmul.f32 %v809, 1.442695
  %v811 = vpow.pop %v810
  %v812 = vadd.f32 %v811, 1.0
  %v813 = vrcp.pop %v812
  %v814 = vmul.f32 1.0, %v813
  %v815 = vtanh.pop %v801
  %v816 = vxor.u32 %v802, 2147483648
  %v817 = vmul.f32 %v816, 1.442695
  %v818 = vpow.pop %v817
  %v819 = vadd.f32 %v818, 1.0
  %v820 = vrcp.pop %v819
  %v821 = vmul.f32 1.0, %v820
  %v822 = vld [vmem:[#allocation4] sm:$0xff]
  %v823 = vmul.f32 %v814, %v822
  %v824 = vmul.f32 %v808, %v815
  %v825 = vadd.f32 %v823, %v824
  %v826 = vtanh.pop %v825
  %v827 = vmul.f32 %v821, %v826
  %828 = vst [vmem:[#allocation4] sm:$0xff] %v825
  %829 = vst [vmem:[#allocation3] sm:$0xff] %v827
  %s830 = scalar_lea.vmem %s4, 8
  %831 = vst [vmem:[%s830] sm:$0xff] %v827
  %s832 = scalar_lea.vmem [#allocation2], 64
  %v833 = vld [vmem:[%s832] sm:$0xff]
  %v834 = vld [vmem:[%s832 + $0x8] sm:$0xff]
  %v835 = vld [vmem:[%s832 + $0x10] sm:$0xff]
  %v836 = vld [vmem:[%s832 + $0x18] sm:$0xff]
  %v837 = vld [vmem:[#allocation3] sm:$0xff]
  %v838 = vld [vmem:[%s3] sm:$0xff]
  %v839 = vld [vmem:[%s3 + $0x8] sm:$0xff]
  %v840 = vld [vmem:[%s3 + $0x10] sm:$0xff]
  %v841 = vld [vmem:[%s3 + $0x18] sm:$0xff]
  %v842 = vld [vmem:[%s3 + $0x20] sm:$0xff]
  %v843 = vld [vmem:[%s3 + $0x28] sm:$0xff]
  %v844 = vld [vmem:[%s3 + $0x30] sm:$0xff]
  %v845 = vld [vmem:[%s3 + $0x38] sm:$0xff]
  %v846 = vld [vmem:[%s3 + $0x40] sm:$0xff]
  %v847 = vld [vmem:[%s3 + $0x48] sm:$0xff]
  %v848 = vld [vmem:[%s3 + $0x50] sm:$0xff]
  %v849 = vld [vmem:[%s3 + $0x58] sm:$0xff]
  %v850 = vld [vmem:[%s3 + $0x60] sm:$0xff]
  %v851 = vld [vmem:[%s3 + $0x68] sm:$0xff]
  %v852 = vld [vmem:[%s3 + $0x70] sm:$0xff]
  %v853 = vld [vmem:[%s3 + $0x78] sm:$0xff]
  %v854 = vld [vmem:[%s3 + $0x80] sm:$0xff]
  %v855 = vld [vmem:[%s3 + $0x88] sm:$0xff]
  %v856 = vld [vmem:[%s3 + $0x90] sm:$0xff]
  %v857 = vld [vmem:[%s3 + $0x98] sm:$0xff]
  %v858 = vld [vmem:[%s3 + $0xa0] sm:$0xff]
  %v859 = vld [vmem:[%s3 + $0xa8] sm:$0xff]
  %v860 = vld [vmem:[%s3 + $0xb0] sm:$0xff]
  %v861 = vld [vmem:[%s3 + $0xb8] sm:$0xff]
  %v862 = vld [vmem:[%s3 + $0xc0] sm:$0xff]
  %v863 = vld [vmem:[%s3 + $0xc8] sm:$0xff]
  %v864 = vld [vmem:[%s3 + $0xd0] sm:$0xff]
  %v865 = vld [vmem:[%s3 + $0xd8] sm:$0xff]
  %v866 = vld [vmem:[%s3 + $0xe0] sm:$0xff]
  %v867 = vld [vmem:[%s3 + $0xe8] sm:$0xff]
  %v868 = vld [vmem:[%s3 + $0xf0] sm:$0xff]
  %v869 = vld [vmem:[%s3 + $0xf8] sm:$0xff]
  %v870 = vld [vmem:[%s3 + $0x100] sm:$0xff]
  %v871 = vld [vmem:[%s3 + $0x108] sm:$0xff]
  %v872 = vld [vmem:[%s3 + $0x110] sm:$0xff]
  %v873 = vld [vmem:[%s3 + $0x118] sm:$0xff]
  %v874 = vld [vmem:[%s3 + $0x120] sm:$0xff]
  %v875 = vld [vmem:[%s3 + $0x128] sm:$0xff]
  %v876 = vld [vmem:[%s3 + $0x130] sm:$0xff]
  %v877 = vld [vmem:[%s3 + $0x138] sm:$0xff]
  %v878 = vld [vmem:[%s3 + $0x140] sm:$0xff]
  %v879 = vld [vmem:[%s3 + $0x148] sm:$0xff]
  %v880 = vld [vmem:[%s3 + $0x150] sm:$0xff]
  %v881 = vld [vmem:[%s3 + $0x158] sm:$0xff]
  %v882 = vld [vmem:[%s3 + $0x160] sm:$0xff]
  %v883 = vld [vmem:[%s3 + $0x168] sm:$0xff]
  %v884 = vld [vmem:[%s3 + $0x170] sm:$0xff]
  %v885 = vld [vmem:[%s3 + $0x178] sm:$0xff]
  %v886 = vld [vmem:[%s3 + $0x180] sm:$0xff]
  %v887 = vld [vmem:[%s3 + $0x188] sm:$0xff]
  %v888 = vld [vmem:[%s3 + $0x190] sm:$0xff]
  %v889 = vld [vmem:[%s3 + $0x198] sm:$0xff]
  %v890 = vld [vmem:[%s3 + $0x1a0] sm:$0xff]
  %v891 = vld [vmem:[%s3 + $0x1a8] sm:$0xff]
  %v892 = vld [vmem:[%s3 + $0x1b0] sm:$0xff]
  %v893 = vld [vmem:[%s3 + $0x1b8] sm:$0xff]
  %v894 = vld [vmem:[%s3 + $0x1c0] sm:$0xff]
  %v895 = vld [vmem:[%s3 + $0x1c8] sm:$0xff]
  %v896 = vld [vmem:[%s3 + $0x1d0] sm:$0xff]
  %v897 = vld [vmem:[%s3 + $0x1d8] sm:$0xff]
  %v898 = vld [vmem:[%s3 + $0x1e0] sm:$0xff]
  %v899 = vld [vmem:[%s3 + $0x1e8] sm:$0xff]
  %v900 = vld [vmem:[%s3 + $0x1f0] sm:$0xff]
  %v901 = vld [vmem:[%s3 + $0x1f8] sm:$0xff]
  %902 = vmatprep.subr.mxu0 %v899
  %903 = vmatpush1.msra.mxu0 %v898
  %904 = vmatprep.subr.mxu0 %v895
  %905 = vmatpush1.msra.mxu0 %v894
  %906 = vmatprep.subr.mxu0 %v891
  %907 = vmatpush1.msra.mxu0 %v890
  %908 = vmatprep.subr.mxu0 %v887
  %909 = vmatpush1.msra.mxu0 %v886
  %910 = vmatprep.subr.mxu0 %v883
  %911 = vmatpush1.msra.mxu0 %v882
  %912 = vmatprep.subr.mxu0 %v879
  %913 = vmatpush1.msra.mxu0 %v878
  %914 = vmatprep.subr.mxu0 %v875
  %915 = vmatpush1.msra.mxu0 %v874
  %916 = vmatprep.subr.mxu0 %v871
  %917 = vmatpush1.msra.mxu0 %v870
  %918 = vmatprep.subr.mxu0 %v867
  %919 = vmatpush1.msra.mxu0 %v866
  %920 = vmatprep.subr.mxu0 %v863
  %921 = vmatpush1.msra.mxu0 %v862
  %922 = vmatprep.subr.mxu0 %v859
  %923 = vmatpush1.msra.mxu0 %v858
  %924 = vmatprep.subr.mxu0 %v855
  %925 = vmatpush1.msra.mxu0 %v854
  %926 = vmatprep.subr.mxu0 %v851
  %927 = vmatpush1.msra.mxu0 %v850
  %928 = vmatprep.subr.mxu0 %v847
  %929 = vmatpush1.msra.mxu0 %v846
  %930 = vmatprep.subr.mxu0 %v843
  %931 = vmatpush1.msra.mxu0 %v842
  %932 = vmatprep.subr.mxu0 %v839
  %933 = vmatpush1.msra.mxu0 %v838
  %934 = vmatprep.subr.mxu0 0.0
  %935 = vmatpush2.msra.mxu0 0.0
  %936 = vmatprep.subr.mxu0 0.0
  %937 = vmatpush2.msra.mxu0 0.0
  %938 = vmatprep.subr.mxu0 0.0
  %939 = vmatpush2.msra.mxu0 0.0
  %940 = vmatprep.subr.mxu0 0.0
  %941 = vmatpush2.msra.mxu0 0.0
  %942 = vmatprep.subr.mxu0 0.0
  %943 = vmatpush2.msra.mxu0 0.0
  %944 = vmatprep.subr.mxu0 0.0
  %945 = vmatpush2.msra.mxu0 0.0
  %946 = vmatprep.subr.mxu0 0.0
  %947 = vmatpush2.msra.mxu0 0.0
  %948 = vmatprep.subr.mxu0 0.0
  %949 = vmatpush2.msra.mxu0 0.0
  %950 = vmatprep.subr.mxu0 0.0
  %951 = vmatpush2.msra.mxu0 0.0
  %952 = vmatprep.subr.mxu0 0.0
  %953 = vmatpush2.msra.mxu0 0.0
  %954 = vmatprep.subr.mxu0 0.0
  %955 = vmatpush2.msra.mxu0 0.0
  %956 = vmatprep.subr.mxu0 0.0
  %957 = vmatpush2.msra.mxu0 0.0
  %958 = vmatprep.subr.mxu0 0.0
  %959 = vmatpush2.msra.mxu0 0.0
  %960 = vmatprep.subr.mxu0 0.0
  %961 = vmatpush2.msra.mxu0 0.0
  %962 = vmatprep.subr.mxu0 0.0
  %963 = vmatpush2.msra.mxu0 0.0
  %964 = vmatprep.subr.mxu0 0.0
  %965 = vmatpush2.msra.mxu0 0.0
  %966 = vmatprep.mubr.f32.mxu0 0.0
  %967 = vmatmul.mubr.f32.gmra.mxu0 %v837
  %v968 = vpop.f32.mrf.mxu0
  %v969 = vadd.f32 0.0, %v968
  %v970 = vpop.f32.mrf.mxu0
  %v971 = vadd.f32 0.0, %v970
  %972 = vdwg.mxu0
  %973 = vmatprep.subr.mxu0 %v901
  %974 = vmatpush1.msra.mxu0 %v900
  %975 = vmatprep.subr.mxu0 %v897
  %976 = vmatpush1.msra.mxu0 %v896
  %977 = vmatprep.subr.mxu0 %v893
  %978 = vmatpush1.msra.mxu0 %v892
  %979 = vmatprep.subr.mxu0 %v889
  %980 = vmatpush1.msra.mxu0 %v888
  %981 = vmatprep.subr.mxu0 %v885
  %982 = vmatpush1.msra.mxu0 %v884
  %983 = vmatprep.subr.mxu0 %v881
  %984 = vmatpush1.msra.mxu0 %v880
  %985 = vmatprep.subr.mxu0 %v877
  %986 = vmatpush1.msra.mxu0 %v876
  %987 = vmatprep.subr.mxu0 %v873
  %988 = vmatpush1.msra.mxu0 %v872
  %989 = vmatprep.subr.mxu0 %v869
  %990 = vmatpush1.msra.mxu0 %v868
  %991 = vmatprep.subr.mxu0 %v865
  %992 = vmatpush1.msra.mxu0 %v864
  %993 = vmatprep.subr.mxu0 %v861
  %994 = vmatpush1.msra.mxu0 %v860
  %995 = vmatprep.subr.mxu0 %v857
  %996 = vmatpush1.msra.mxu0 %v856
  %997 = vmatprep.subr.mxu0 %v853
  %998 = vmatpush1.msra.mxu0 %v852
  %999 = vmatprep.subr.mxu0 %v849
  %1000 = vmatpush1.msra.mxu0 %v848
  %1001 = vmatprep.subr.mxu0 %v845
  %1002 = vmatpush1.msra.mxu0 %v844
  %1003 = vmatprep.subr.mxu0 %v841
  %1004 = vmatpush1.msra.mxu0 %v840
  %1005 = vmatprep.subr.mxu0 0.0
  %1006 = vmatpush2.msra.mxu0 0.0
  %1007 = vmatprep.subr.mxu0 0.0
  %1008 = vmatpush2.msra.mxu0 0.0
  %1009 = vmatprep.subr.mxu0 0.0
  %1010 = vmatpush2.msra.mxu0 0.0
  %1011 = vmatprep.subr.mxu0 0.0
  %1012 = vmatpush2.msra.mxu0 0.0
  %1013 = vmatprep.subr.mxu0 0.0
  %1014 = vmatpush2.msra.mxu0 0.0
  %1015 = vmatprep.subr.mxu0 0.0
  %1016 = vmatpush2.msra.mxu0 0.0
  %1017 = vmatprep.subr.mxu0 0.0
  %1018 = vmatpush2.msra.mxu0 0.0
  %1019 = vmatprep.subr.mxu0 0.0
  %1020 = vmatpush2.msra.mxu0 0.0
  %1021 = vmatprep.subr.mxu0 0.0
  %1022 = vmatpush2.msra.mxu0 0.0
  %1023 = vmatprep.subr.mxu0 0.0
  %1024 = vmatpush2.msra.mxu0 0.0
  %1025 = vmatprep.subr.mxu0 0.0
  %1026 = vmatpush2.msra.mxu0 0.0
  %1027 = vmatprep.subr.mxu0 0.0
  %1028 = vmatpush2.msra.mxu0 0.0
  %1029 = vmatprep.subr.mxu0 0.0
  %1030 = vmatpush2.msra.mxu0 0.0
  %1031 = vmatprep.subr.mxu0 0.0
  %1032 = vmatpush2.msra.mxu0 0.0
  %1033 = vmatprep.subr.mxu0 0.0
  %1034 = vmatpush2.msra.mxu0 0.0
  %1035 = vmatprep.subr.mxu0 0.0
  %1036 = vmatpush2.msra.mxu0 0.0
  %1037 = vmatprep.mubr.f32.mxu0 0.0
  %1038 = vmatmul.mubr.f32.gmra.mxu0 %v837
  %v1039 = vpop.f32.mrf.mxu0
  %v1040 = vadd.f32 0.0, %v1039
  %v1041 = vpop.f32.mrf.mxu0
  %v1042 = vadd.f32 0.0, %v1041
  %1043 = vdwg.mxu0
  %v1044 = vadd.f32 %v833, %v969
  %v1045 = vadd.f32 %v834, %v971
  %v1046 = vadd.f32 %v835, %v1040
  %v1047 = vadd.f32 %v836, %v1042
  %v1048 = vxor.u32 %v1044, 2147483648
  %v1049 = vmul.f32 %v1048, 1.442695
  %v1050 = vpow.pop %v1049
  %v1051 = vadd.f32 %v1050, 1.0
  %v1052 = vrcp.pop %v1051
  %v1053 = vmul.f32 1.0, %v1052
  %v1054 = vxor.u32 %v1045, 2147483648
  %v1055 = vmul.f32 %v1054, 1.442695
  %v1056 = vpow.pop %v1055
  %v1057 = vadd.f32 %v1056, 1.0
  %v1058 = vrcp.pop %v1057
  %v1059 = vmul.f32 1.0, %v1058
  %v1060 = vtanh.pop %v1046
  %v1061 = vxor.u32 %v1047, 2147483648
  %v1062 = vmul.f32 %v1061, 1.442695
  %v1063 = vpow.pop %v1062
  %v1064 = vadd.f32 %v1063, 1.0
  %v1065 = vrcp.pop %v1064
  %v1066 = vmul.f32 1.0, %v1065
  %v1067 = vld [vmem:[#allocation4] sm:$0xff]
  %v1068 = vmul.f32 %v1059, %v1067
  %v1069 = vmul.f32 %v1053, %v1060
  %v1070 = vadd.f32 %v1068, %v1069
  %v1071 = vtanh.pop %v1070
  %v1072 = vmul.f32 %v1066, %v1071
  %1073 = vst [vmem:[#allocation4] sm:$0xff] %v1070
  %1074 = vst [vmem:[#allocation3] sm:$0xff] %v1072
  %s1075 = scalar_lea.vmem %s4, 16
  %1076 = vst [vmem:[%s1075] sm:$0xff] %v1072
  %s1077 = scalar_lea.vmem [#allocation2], 96
  %v1078 = vld [vmem:[%s1077] sm:$0xff]
  %v1079 = vld [vmem:[%s1077 + $0x8] sm:$0xff]
  %v1080 = vld [vmem:[%s1077 + $0x10] sm:$0xff]
  %v1081 = vld [vmem:[%s1077 + $0x18] sm:$0xff]
  %v1082 = vld [vmem:[#allocation3] sm:$0xff]
  %v1083 = vld [vmem:[%s3] sm:$0xff]
  %v1084 = vld [vmem:[%s3 + $0x8] sm:$0xff]
  %v1085 = vld [vmem:[%s3 + $0x10] sm:$0xff]
  %v1086 = vld [vmem:[%s3 + $0x18] sm:$0xff]
  %v1087 = vld [vmem:[%s3 + $0x20] sm:$0xff]
  %v1088 = vld [vmem:[%s3 + $0x28] sm:$0xff]
  %v1089 = vld [vmem:[%s3 + $0x30] sm:$0xff]
  %v1090 = vld [vmem:[%s3 + $0x38] sm:$0xff]
  %v1091 = vld [vmem:[%s3 + $0x40] sm:$0xff]
  %v1092 = vld [vmem:[%s3 + $0x48] sm:$0xff]
  %v1093 = vld [vmem:[%s3 + $0x50] sm:$0xff]
  %v1094 = vld [vmem:[%s3 + $0x58] sm:$0xff]
  %v1095 = vld [vmem:[%s3 + $0x60] sm:$0xff]
  %v1096 = vld [vmem:[%s3 + $0x68] sm:$0xff]
  %v1097 = vld [vmem:[%s3 + $0x70] sm:$0xff]
  %v1098 = vld [vmem:[%s3 + $0x78] sm:$0xff]
  %v1099 = vld [vmem:[%s3 + $0x80] sm:$0xff]
  %v1100 = vld [vmem:[%s3 + $0x88] sm:$0xff]
  %v1101 = vld [vmem:[%s3 + $0x90] sm:$0xff]
  %v1102 = vld [vmem:[%s3 + $0x98] sm:$0xff]
  %v1103 = vld [vmem:[%s3 + $0xa0] sm:$0xff]
  %v1104 = vld [vmem:[%s3 + $0xa8] sm:$0xff]
  %v1105 = vld [vmem:[%s3 + $0xb0] sm:$0xff]
  %v1106 = vld [vmem:[%s3 + $0xb8] sm:$0xff]
  %v1107 = vld [vmem:[%s3 + $0xc0] sm:$0xff]
  %v1108 = vld [vmem:[%s3 + $0xc8] sm:$0xff]
  %v1109 = vld [vmem:[%s3 + $0xd0] sm:$0xff]
  %v1110 = vld [vmem:[%s3 + $0xd8] sm:$0xff]
  %v1111 = vld [vmem:[%s3 + $0xe0] sm:$0xff]
  %v1112 = vld [vmem:[%s3 + $0xe8] sm:$0xff]
  %v1113 = vld [vmem:[%s3 + $0xf0] sm:$0xff]
  %v1114 = vld [vmem:[%s3 + $0xf8] sm:$0xff]
  %v1115 = vld [vmem:[%s3 + $0x100] sm:$0xff]
  %v1116 = vld [vmem:[%s3 + $0x108] sm:$0xff]
  %v1117 = vld [vmem:[%s3 + $0x110] sm:$0xff]
  %v1118 = vld [vmem:[%s3 + $0x118] sm:$0xff]
  %v1119 = vld [vmem:[%s3 + $0x120] sm:$0xff]
  %v1120 = vld [vmem:[%s3 + $0x128] sm:$0xff]
  %v1121 = vld [vmem:[%s3 + $0x130] sm:$0xff]
  %v1122 = vld [vmem:[%s3 + $0x138] sm:$0xff]
  %v1123 = vld [vmem:[%s3 + $0x140] sm:$0xff]
  %v1124 = vld [vmem:[%s3 + $0x148] sm:$0xff]
  %v1125 = vld [vmem:[%s3 + $0x150] sm:$0xff]
  %v1126 = vld [vmem:[%s3 + $0x158] sm:$0xff]
  %v1127 = vld [vmem:[%s3 + $0x160] sm:$0xff]
  %v1128 = vld [vmem:[%s3 + $0x168] sm:$0xff]
  %v1129 = vld [vmem:[%s3 + $0x170] sm:$0xff]
  %v1130 = vld [vmem:[%s3 + $0x178] sm:$0xff]
  %v1131 = vld [vmem:[%s3 + $0x180] sm:$0xff]
  %v1132 = vld [vmem:[%s3 + $0x188] sm:$0xff]
  %v1133 = vld [vmem:[%s3 + $0x190] sm:$0xff]
  %v1134 = vld [vmem:[%s3 + $0x198] sm:$0xff]
  %v1135 = vld [vmem:[%s3 + $0x1a0] sm:$0xff]
  %v1136 = vld [vmem:[%s3 + $0x1a8] sm:$0xff]
  %v1137 = vld [vmem:[%s3 + $0x1b0] sm:$0xff]
  %v1138 = vld [vmem:[%s3 + $0x1b8] sm:$0xff]
  %v1139 = vld [vmem:[%s3 + $0x1c0] sm:$0xff]
  %v1140 = vld [vmem:[%s3 + $0x1c8] sm:$0xff]
  %v1141 = vld [vmem:[%s3 + $0x1d0] sm:$0xff]
  %v1142 = vld [vmem:[%s3 + $0x1d8] sm:$0xff]
  %v1143 = vld [vmem:[%s3 + $0x1e0] sm:$0xff]
  %v1144 = vld [vmem:[%s3 + $0x1e8] sm:$0xff]
  %v1145 = vld [vmem:[%s3 + $0x1f0] sm:$0xff]
  %v1146 = vld [vmem:[%s3 + $0x1f8] sm:$0xff]
  %1147 = vmatprep.subr.mxu0 %v1144
  %1148 = vmatpush1.msra.mxu0 %v1143
  %1149 = vmatprep.subr.mxu0 %v1140
  %1150 = vmatpush1.msra.mxu0 %v1139
  %1151 = vmatprep.subr.mxu0 %v1136
  %1152 = vmatpush1.msra.mxu0 %v1135
  %1153 = vmatprep.subr.mxu0 %v1132
  %1154 = vmatpush1.msra.mxu0 %v1131
  %1155 = vmatprep.subr.mxu0 %v1128
  %1156 = vmatpush1.msra.mxu0 %v1127
  %1157 = vmatprep.subr.mxu0 %v1124
  %1158 = vmatpush1.msra.mxu0 %v1123
  %1159 = vmatprep.subr.mxu0 %v1120
  %1160 = vmatpush1.msra.mxu0 %v1119
  %1161 = vmatprep.subr.mxu0 %v1116
  %1162 = vmatpush1.msra.mxu0 %v1115
  %1163 = vmatprep.subr.mxu0 %v1112
  %1164 = vmatpush1.msra.mxu0 %v1111
  %1165 = vmatprep.subr.mxu0 %v1108
  %1166 = vmatpush1.msra.mxu0 %v1107
  %1167 = vmatprep.subr.mxu0 %v1104
  %1168 = vmatpush1.msra.mxu0 %v1103
  %1169 = vmatprep.subr.mxu0 %v1100
  %1170 = vmatpush1.msra.mxu0 %v1099
  %1171 = vmatprep.subr.mxu0 %v1096
  %1172 = vmatpush1.msra.mxu0 %v1095
  %1173 = vmatprep.subr.mxu0 %v1092
  %1174 = vmatpush1.msra.mxu0 %v1091
  %1175 = vmatprep.subr.mxu0 %v1088
  %1176 = vmatpush1.msra.mxu0 %v1087
  %1177 = vmatprep.subr.mxu0 %v1084
  %1178 = vmatpush1.msra.mxu0 %v1083
  %1179 = vmatprep.subr.mxu0 0.0
  %1180 = vmatpush2.msra.mxu0 0.0
  %1181 = vmatprep.subr.mxu0 0.0
  %1182 = vmatpush2.msra.mxu0 0.0
  %1183 = vmatprep.subr.mxu0 0.0
  %1184 = vmatpush2.msra.mxu0 0.0
  %1185 = vmatprep.subr.mxu0 0.0
  %1186 = vmatpush2.msra.mxu0 0.0
  %1187 = vmatprep.subr.mxu0 0.0
  %1188 = vmatpush2.msra.mxu0 0.0
  %1189 = vmatprep.subr.mxu0 0.0
  %1190 = vmatpush2.msra.mxu0 0.0
  %1191 = vmatprep.subr.mxu0 0.0
  %1192 = vmatpush2.msra.mxu0 0.0
  %1193 = vmatprep.subr.mxu0 0.0
  %1194 = vmatpush2.msra.mxu0 0.0
  %1195 = vmatprep.subr.mxu0 0.0
  %1196 = vmatpush2.msra.mxu0 0.0
  %1197 = vmatprep.subr.mxu0 0.0
  %1198 = vmatpush2.msra.mxu0 0.0
  %1199 = vmatprep.subr.mxu0 0.0
  %1200 = vmatpush2.msra.mxu0 0.0
  %1201 = vmatprep.subr.mxu0 0.0
  %1202 = vmatpush2.msra.mxu0 0.0
  %1203 = vmatprep.subr.mxu0 0.0
  %1204 = vmatpush2.msra.mxu0 0.0
  %1205 = vmatprep.subr.mxu0 0.0
  %1206 = vmatpush2.msra.mxu0 0.0
  %1207 = vmatprep.subr.mxu0 0.0
  %1208 = vmatpush2.msra.mxu0 0.0
  %1209 = vmatprep.subr.mxu0 0.0
  %1210 = vmatpush2.msra.mxu0 0.0
  %1211 = vmatprep.mubr.f32.mxu0 0.0
  %1212 = vmatmul.mubr.f32.gmra.mxu0 %v1082
  %v1213 = vpop.f32.mrf.mxu0
  %v1214 = vadd.f32 0.0, %v1213
  %v1215 = vpop.f32.mrf.mxu0
  %v1216 = vadd.f32 0.0, %v1215
  %1217 = vdwg.mxu0
  %1218 = vmatprep.subr.mxu0 %v1146
  %1219 = vmatpush1.msra.mxu0 %v1145
  %1220 = vmatprep.subr.mxu0 %v1142
  %1221 = vmatpush1.msra.mxu0 %v1141
  %1222 = vmatprep.subr.mxu0 %v1138
  %1223 = vmatpush1.msra.mxu0 %v1137
  %1224 = vmatprep.subr.mxu0 %v1134
  %1225 = vmatpush1.msra.mxu0 %v1133
  %1226 = vmatprep.subr.mxu0 %v1130
  %1227 = vmatpush1.msra.mxu0 %v1129
  %1228 = vmatprep.subr.mxu0 %v1126
  %1229 = vmatpush1.msra.mxu0 %v1125
  %1230 = vmatprep.subr.mxu0 %v1122
  %1231 = vmatpush1.msra.mxu0 %v1121
  %1232 = vmatprep.subr.mxu0 %v1118
  %1233 = vmatpush1.msra.mxu0 %v1117
  %1234 = vmatprep.subr.mxu0 %v1114
  %1235 = vmatpush1.msra.mxu0 %v1113
  %1236 = vmatprep.subr.mxu0 %v1110
  %1237 = vmatpush1.msra.mxu0 %v1109
  %1238 = vmatprep.subr.mxu0 %v1106
  %1239 = vmatpush1.msra.mxu0 %v1105
  %1240 = vmatprep.subr.mxu0 %v1102
  %1241 = vmatpush1.msra.mxu0 %v1101
  %1242 = vmatprep.subr.mxu0 %v1098
  %1243 = vmatpush1.msra.mxu0 %v1097
  %1244 = vmatprep.subr.mxu0 %v1094
  %1245 = vmatpush1.msra.mxu0 %v1093
  %1246 = vmatprep.subr.mxu0 %v1090
  %1247 = vmatpush1.msra.mxu0 %v1089
  %1248 = vmatprep.subr.mxu0 %v1086
  %1249 = vmatpush1.msra.mxu0 %v1085
  %1250 = vmatprep.subr.mxu0 0.0
  %1251 = vmatpush2.msra.mxu0 0.0
  %1252 = vmatprep.subr.mxu0 0.0
  %1253 = vmatpush2.msra.mxu0 0.0
  %1254 = vmatprep.subr.mxu0 0.0
  %1255 = vmatpush2.msra.mxu0 0.0
  %1256 = vmatprep.subr.mxu0 0.0
  %1257 = vmatpush2.msra.mxu0 0.0
  %1258 = vmatprep.subr.mxu0 0.0
  %1259 = vmatpush2.msra.mxu0 0.0
  %1260 = vmatprep.subr.mxu0 0.0
  %1261 = vmatpush2.msra.mxu0 0.0
  %1262 = vmatprep.subr.mxu0 0.0
  %1263 = vmatpush2.msra.mxu0 0.0
  %1264 = vmatprep.subr.mxu0 0.0
  %1265 = vmatpush2.msra.mxu0 0.0
  %1266 = vmatprep.subr.mxu0 0.0
  %1267 = vmatpush2.msra.mxu0 0.0
  %1268 = vmatprep.subr.mxu0 0.0
  %1269 = vmatpush2.msra.mxu0 0.0
  %1270 = vmatprep.subr.mxu0 0.0
  %1271 = vmatpush2.msra.mxu0 0.0
  %1272 = vmatprep.subr.mxu0 0.0
  %1273 = vmatpush2.msra.mxu0 0.0
  %1274 = vmatprep.subr.mxu0 0.0
  %1275 = vmatpush2.msra.mxu0 0.0
  %1276 = vmatprep.subr.mxu0 0.0
  %1277 = vmatpush2.msra.mxu0 0.0
  %1278 = vmatprep.subr.mxu0 0.0
  %1279 = vmatpush2.msra.mxu0 0.0
  %1280 = vmatprep.subr.mxu0 0.0
  %1281 = vmatpush2.msra.mxu0 0.0
  %1282 = vmatprep.mubr.f32.mxu0 0.0
  %1283 = vmatmul.mubr.f32.gmra.mxu0 %v1082
  %v1284 = vpop.f32.mrf.mxu0
  %v1285 = vadd.f32 0.0, %v1284
  %v1286 = vpop.f32.mrf.mxu0
  %v1287 = vadd.f32 0.0, %v1286
  %1288 = vdwg.mxu0
  %v1289 = vadd.f32 %v1078, %v1214
  %v1290 = vadd.f32 %v1079, %v1216
  %v1291 = vadd.f32 %v1080, %v1285
  %v1292 = vadd.f32 %v1081, %v1287
  %v1293 = vxor.u32 %v1289, 2147483648
  %v1294 = vmul.f32 %v1293, 1.442695
  %v1295 = vpow.pop %v1294
  %v1296 = vadd.f32 %v1295, 1.0
  %v1297 = vrcp.pop %v1296
  %v1298 = vmul.f32 1.0, %v1297
  %v1299 = vxor.u32 %v1290, 2147483648
  %v1300 = vmul.f32 %v1299, 1.442695
  %v1301 = vpow.pop %v1300
  %v1302 = vadd.f32 %v1301, 1.0
  %v1303 = vrcp.pop %v1302
  %v1304 = vmul.f32 1.0, %v1303
  %v1305 = vtanh.pop %v1291
  %v1306 = vxor.u32 %v1292, 2147483648
  %v1307 = vmul.f32 %v1306, 1.442695
  %v1308 = vpow.pop %v1307
  %v1309 = vadd.f32 %v1308, 1.0
  %v1310 = vrcp.pop %v1309
  %v1311 = vmul.f32 1.0, %v1310
  %v1312 = vld [vmem:[#allocation4] sm:$0xff]
  %v1313 = vmul.f32 %v1304, %v1312
  %v1314 = vmul.f32 %v1298, %v1305
  %v1315 = vadd.f32 %v1313, %v1314
  %v1316 = vtanh.pop %v1315
  %v1317 = vmul.f32 %v1311, %v1316
  %1318 = vst [vmem:[#allocation4] sm:$0xff] %v1315
  %1319 = vst [vmem:[#allocation3] sm:$0xff] %v1317
  %s1320 = scalar_lea.vmem %s4, 24
  %1321 = vst [vmem:[%s1320] sm:$0xff] %v1317
  %s1322 = scalar_lea.vmem [#allocation2], 128
  %v1323 = vld [vmem:[%s1322] sm:$0xff]
  %v1324 = vld [vmem:[%s1322 + $0x8] sm:$0xff]
  %v1325 = vld [vmem:[%s1322 + $0x10] sm:$0xff]
  %v1326 = vld [vmem:[%s1322 + $0x18] sm:$0xff]
  %v1327 = vld [vmem:[#allocation3] sm:$0xff]
  %v1328 = vld [vmem:[%s3] sm:$0xff]
  %v1329 = vld [vmem:[%s3 + $0x8] sm:$0xff]
  %v1330 = vld [vmem:[%s3 + $0x10] sm:$0xff]
  %v1331 = vld [vmem:[%s3 + $0x18] sm:$0xff]
  %v1332 = vld [vmem:[%s3 + $0x20] sm:$0xff]
  %v1333 = vld [vmem:[%s3 + $0x28] sm:$0xff]
  %v1334 = vld [vmem:[%s3 + $0x30] sm:$0xff]
  %v1335 = vld [vmem:[%s3 + $0x38] sm:$0xff]
  %v1336 = vld [vmem:[%s3 + $0x40] sm:$0xff]
  %v1337 = vld [vmem:[%s3 + $0x48] sm:$0xff]
  %v1338 = vld [vmem:[%s3 + $0x50] sm:$0xff]
  %v1339 = vld [vmem:[%s3 + $0x58] sm:$0xff]
  %v1340 = vld [vmem:[%s3 + $0x60] sm:$0xff]
  %v1341 = vld [vmem:[%s3 + $0x68] sm:$0xff]
  %v1342 = vld [vmem:[%s3 + $0x70] sm:$0xff]
  %v1343 = vld [vmem:[%s3 + $0x78] sm:$0xff]
  %v1344 = vld [vmem:[%s3 + $0x80] sm:$0xff]
  %v1345 = vld [vmem:[%s3 + $0x88] sm:$0xff]
  %v1346 = vld [vmem:[%s3 + $0x90] sm:$0xff]
  %v1347 = vld [vmem:[%s3 + $0x98] sm:$0xff]
  %v1348 = vld [vmem:[%s3 + $0xa0] sm:$0xff]
  %v1349 = vld [vmem:[%s3 + $0xa8] sm:$0xff]
  %v1350 = vld [vmem:[%s3 + $0xb0] sm:$0xff]
  %v1351 = vld [vmem:[%s3 + $0xb8] sm:$0xff]
  %v1352 = vld [vmem:[%s3 + $0xc0] sm:$0xff]
  %v1353 = vld [vmem:[%s3 + $0xc8] sm:$0xff]
  %v1354 = vld [vmem:[%s3 + $0xd0] sm:$0xff]
  %v1355 = vld [vmem:[%s3 + $0xd8] sm:$0xff]
  %v1356 = vld [vmem:[%s3 + $0xe0] sm:$0xff]
  %v1357 = vld [vmem:[%s3 + $0xe8] sm:$0xff]
  %v1358 = vld [vmem:[%s3 + $0xf0] sm:$0xff]
  %v1359 = vld [vmem:[%s3 + $0xf8] sm:$0xff]
  %v1360 = vld [vmem:[%s3 + $0x100] sm:$0xff]
  %v1361 = vld [vmem:[%s3 + $0x108] sm:$0xff]
  %v1362 = vld [vmem:[%s3 + $0x110] sm:$0xff]
  %v1363 = vld [vmem:[%s3 + $0x118] sm:$0xff]
  %v1364 = vld [vmem:[%s3 + $0x120] sm:$0xff]
  %v1365 = vld [vmem:[%s3 + $0x128] sm:$0xff]
  %v1366 = vld [vmem:[%s3 + $0x130] sm:$0xff]
  %v1367 = vld [vmem:[%s3 + $0x138] sm:$0xff]
  %v1368 = vld [vmem:[%s3 + $0x140] sm:$0xff]
  %v1369 = vld [vmem:[%s3 + $0x148] sm:$0xff]
  %v1370 = vld [vmem:[%s3 + $0x150] sm:$0xff]
  %v1371 = vld [vmem:[%s3 + $0x158] sm:$0xff]
  %v1372 = vld [vmem:[%s3 + $0x160] sm:$0xff]
  %v1373 = vld [vmem:[%s3 + $0x168] sm:$0xff]
  %v1374 = vld [vmem:[%s3 + $0x170] sm:$0xff]
  %v1375 = vld [vmem:[%s3 + $0x178] sm:$0xff]
  %v1376 = vld [vmem:[%s3 + $0x180] sm:$0xff]
  %v1377 = vld [vmem:[%s3 + $0x188] sm:$0xff]
  %v1378 = vld [vmem:[%s3 + $0x190] sm:$0xff]
  %v1379 = vld [vmem:[%s3 + $0x198] sm:$0xff]
  %v1380 = vld [vmem:[%s3 + $0x1a0] sm:$0xff]
  %v1381 = vld [vmem:[%s3 + $0x1a8] sm:$0xff]
  %v1382 = vld [vmem:[%s3 + $0x1b0] sm:$0xff]
  %v1383 = vld [vmem:[%s3 + $0x1b8] sm:$0xff]
  %v1384 = vld [vmem:[%s3 + $0x1c0] sm:$0xff]
  %v1385 = vld [vmem:[%s3 + $0x1c8] sm:$0xff]
  %v1386 = vld [vmem:[%s3 + $0x1d0] sm:$0xff]
  %v1387 = vld [vmem:[%s3 + $0x1d8] sm:$0xff]
  %v1388 = vld [vmem:[%s3 + $0x1e0] sm:$0xff]
  %v1389 = vld [vmem:[%s3 + $0x1e8] sm:$0xff]
  %v1390 = vld [vmem:[%s3 + $0x1f0] sm:$0xff]
  %v1391 = vld [vmem:[%s3 + $0x1f8] sm:$0xff]
  %1392 = vmatprep.subr.mxu0 %v1389
  %1393 = vmatpush1.msra.mxu0 %v1388
  %1394 = vmatprep.subr.mxu0 %v1385
  %1395 = vmatpush1.msra.mxu0 %v1384
  %1396 = vmatprep.subr.mxu0 %v1381
  %1397 = vmatpush1.msra.mxu0 %v1380
  %1398 = vmatprep.subr.mxu0 %v1377
  %1399 = vmatpush1.msra.mxu0 %v1376
  %1400 = vmatprep.subr.mxu0 %v1373
  %1401 = vmatpush1.msra.mxu0 %v1372
  %1402 = vmatprep.subr.mxu0 %v1369
  %1403 = vmatpush1.msra.mxu0 %v1368
  %1404 = vmatprep.subr.mxu0 %v1365
  %1405 = vmatpush1.msra.mxu0 %v1364
  %1406 = vmatprep.subr.mxu0 %v1361
  %1407 = vmatpush1.msra.mxu0 %v1360
  %1408 = vmatprep.subr.mxu0 %v1357
  %1409 = vmatpush1.msra.mxu0 %v1356
  %1410 = vmatprep.subr.mxu0 %v1353
  %1411 = vmatpush1.msra.mxu0 %v1352
  %1412 = vmatprep.subr.mxu0 %v1349
  %1413 = vmatpush1.msra.mxu0 %v1348
  %1414 = vmatprep.subr.mxu0 %v1345
  %1415 = vmatpush1.msra.mxu0 %v1344
  %1416 = vmatprep.subr.mxu0 %v1341
  %1417 = vmatpush1.msra.mxu0 %v1340
  %1418 = vmatprep.subr.mxu0 %v1337
  %1419 = vmatpush1.msra.mxu0 %v1336
  %1420 = vmatprep.subr.mxu0 %v1333
  %1421 = vmatpush1.msra.mxu0 %v1332
  %1422 = vmatprep.subr.mxu0 %v1329
  %1423 = vmatpush1.msra.mxu0 %v1328
  %1424 = vmatprep.subr.mxu0 0.0
  %1425 = vmatpush2.msra.mxu0 0.0
  %1426 = vmatprep.subr.mxu0 0.0
  %1427 = vmatpush2.msra.mxu0 0.0
  %1428 = vmatprep.subr.mxu0 0.0
  %1429 = vmatpush2.msra.mxu0 0.0
  %1430 = vmatprep.subr.mxu0 0.0
  %1431 = vmatpush2.msra.mxu0 0.0
  %1432 = vmatprep.subr.mxu0 0.0
  %1433 = vmatpush2.msra.mxu0 0.0
  %1434 = vmatprep.subr.mxu0 0.0
  %1435 = vmatpush2.msra.mxu0 0.0
  %1436 = vmatprep.subr.mxu0 0.0
  %1437 = vmatpush2.msra.mxu0 0.0
  %1438 = vmatprep.subr.mxu0 0.0
  %1439 = vmatpush2.msra.mxu0 0.0
  %1440 = vmatprep.subr.mxu0 0.0
  %1441 = vmatpush2.msra.mxu0 0.0
  %1442 = vmatprep.subr.mxu0 0.0
  %1443 = vmatpush2.msra.mxu0 0.0
  %1444 = vmatprep.subr.mxu0 0.0
  %1445 = vmatpush2.msra.mxu0 0.0
  %1446 = vmatprep.subr.mxu0 0.0
  %1447 = vmatpush2.msra.mxu0 0.0
  %1448 = vmatprep.subr.mxu0 0.0
  %1449 = vmatpush2.msra.mxu0 0.0
  %1450 = vmatprep.subr.mxu0 0.0
  %1451 = vmatpush2.msra.mxu0 0.0
  %1452 = vmatprep.subr.mxu0 0.0
  %1453 = vmatpush2.msra.mxu0 0.0
  %1454 = vmatprep.subr.mxu0 0.0
  %1455 = vmatpush2.msra.mxu0 0.0
  %1456 = vmatprep.mubr.f32.mxu0 0.0
  %1457 = vmatmul.mubr.f32.gmra.mxu0 %v1327
  %v1458 = vpop.f32.mrf.mxu0
  %v1459 = vadd.f32 0.0, %v1458
  %v1460 = vpop.f32.mrf.mxu0
  %v1461 = vadd.f32 0.0, %v1460
  %1462 = vdwg.mxu0
  %1463 = vmatprep.subr.mxu0 %v1391
  %1464 = vmatpush1.msra.mxu0 %v1390
  %1465 = vmatprep.subr.mxu0 %v1387
  %1466 = vmatpush1.msra.mxu0 %v1386
  %1467 = vmatprep.subr.mxu0 %v1383
  %1468 = vmatpush1.msra.mxu0 %v1382
  %1469 = vmatprep.subr.mxu0 %v1379
  %1470 = vmatpush1.msra.mxu0 %v1378
  %1471 = vmatprep.subr.mxu0 %v1375
  %1472 = vmatpush1.msra.mxu0 %v1374
  %1473 = vmatprep.subr.mxu0 %v1371
  %1474 = vmatpush1.msra.mxu0 %v1370
  %1475 = vmatprep.subr.mxu0 %v1367
  %1476 = vmatpush1.msra.mxu0 %v1366
  %1477 = vmatprep.subr.mxu0 %v1363
  %1478 = vmatpush1.msra.mxu0 %v1362
  %1479 = vmatprep.subr.mxu0 %v1359
  %1480 = vmatpush1.msra.mxu0 %v1358
  %1481 = vmatprep.subr.mxu0 %v1355
  %1482 = vmatpush1.msra.mxu0 %v1354
  %1483 = vmatprep.subr.mxu0 %v1351
  %1484 = vmatpush1.msra.mxu0 %v1350
  %1485 = vmatprep.subr.mxu0 %v1347
  %1486 = vmatpush1.msra.mxu0 %v1346
  %1487 = vmatprep.subr.mxu0 %v1343
  %1488 = vmatpush1.msra.mxu0 %v1342
  %1489 = vmatprep.subr.mxu0 %v1339
  %1490 = vmatpush1.msra.mxu0 %v1338
  %1491 = vmatprep.subr.mxu0 %v1335
  %1492 = vmatpush1.msra.mxu0 %v1334
  %1493 = vmatprep.subr.mxu0 %v1331
  %1494 = vmatpush1.msra.mxu0 %v1330
  %1495 = vmatprep.subr.mxu0 0.0
  %1496 = vmatpush2.msra.mxu0 0.0
  %1497 = vmatprep.subr.mxu0 0.0
  %1498 = vmatpush2.msra.mxu0 0.0
  %1499 = vmatprep.subr.mxu0 0.0
  %1500 = vmatpush2.msra.mxu0 0.0
  %1501 = vmatprep.subr.mxu0 0.0
  %1502 = vmatpush2.msra.mxu0 0.0
  %1503 = vmatprep.subr.mxu0 0.0
  %1504 = vmatpush2.msra.mxu0 0.0
  %1505 = vmatprep.subr.mxu0 0.0
  %1506 = vmatpush2.msra.mxu0 0.0
  %1507 = vmatprep.subr.mxu0 0.0
  %1508 = vmatpush2.msra.mxu0 0.0
  %1509 = vmatprep.subr.mxu0 0.0
  %1510 = vmatpush2.msra.mxu0 0.0
  %1511 = vmatprep.subr.mxu0 0.0
  %1512 = vmatpush2.msra.mxu0 0.0
  %1513 = vmatprep.subr.mxu0 0.0
  %1514 = vmatpush2.msra.mxu0 0.0
  %1515 = vmatprep.subr.mxu0 0.0
  %1516 = vmatpush2.msra.mxu0 0.0
  %1517 = vmatprep.subr.mxu0 0.0
  %1518 = vmatpush2.msra.mxu0 0.0
  %1519 = vmatprep.subr.mxu0 0.0
  %1520 = vmatpush2.msra.mxu0 0.0
  %1521 = vmatprep.subr.mxu0 0.0
  %1522 = vmatpush2.msra.mxu0 0.0
  %1523 = vmatprep.subr.mxu0 0.0
  %1524 = vmatpush2.msra.mxu0 0.0
  %1525 = vmatprep.subr.mxu0 0.0
  %1526 = vmatpush2.msra.mxu0 0.0
  %1527 = vmatprep.mubr.f32.mxu0 0.0
  %1528 = vmatmul.mubr.f32.gmra.mxu0 %v1327
  %v1529 = vpop.f32.mrf.mxu0
  %v1530 = vadd.f32 0.0, %v1529
  %v1531 = vpop.f32.mrf.mxu0
  %v1532 = vadd.f32 0.0, %v1531
  %1533 = vdwg.mxu0
  %v1534 = vadd.f32 %v1323, %v1459
  %v1535 = vadd.f32 %v1324, %v1461
  %v1536 = vadd.f32 %v1325, %v1530
  %v1537 = vadd.f32 %v1326, %v1532
  %v1538 = vxor.u32 %v1534, 2147483648
  %v1539 = vmul.f32 %v1538, 1.442695
  %v1540 = vpow.pop %v1539
  %v1541 = vadd.f32 %v1540, 1.0
  %v1542 = vrcp.pop %v1541
  %v1543 = vmul.f32 1.0, %v1542
  %v1544 = vxor.u32 %v1535, 2147483648
  %v1545 = vmul.f32 %v1544, 1.442695
  %v1546 = vpow.pop %v1545
  %v1547 = vadd.f32 %v1546, 1.0
  %v1548 = vrcp.pop %v1547
  %v1549 = vmul.f32 1.0, %v1548
  %v1550 = vtanh.pop %v1536
  %v1551 = vxor.u32 %v1537, 2147483648
  %v1552 = vmul.f32 %v1551, 1.442695
  %v1553 = vpow.pop %v1552
  %v1554 = vadd.f32 %v1553, 1.0
  %v1555 = vrcp.pop %v1554
  %v1556 = vmul.f32 1.0, %v1555
  %v1557 = vld [vmem:[#allocation4] sm:$0xff]
  %v1558 = vmul.f32 %v1549, %v1557
  %v1559 = vmul.f32 %v1543, %v1550
  %v1560 = vadd.f32 %v1558, %v1559
  %v1561 = vtanh.pop %v1560
  %v1562 = vmul.f32 %v1556, %v1561
  %1563 = vst [vmem:[#allocation4] sm:$0xff] %v1560
  %1564 = vst [vmem:[#allocation3] sm:$0xff] %v1562
  %s1565 = scalar_lea.vmem %s4, 32
  %1566 = vst [vmem:[%s1565] sm:$0xff] %v1562
  %s1567 = scalar_lea.vmem [#allocation2], 160
  %v1568 = vld [vmem:[%s1567] sm:$0xff]
  %v1569 = vld [vmem:[%s1567 + $0x8] sm:$0xff]
  %v1570 = vld [vmem:[%s1567 + $0x10] sm:$0xff]
  %v1571 = vld [vmem:[%s1567 + $0x18] sm:$0xff]
  %v1572 = vld [vmem:[#allocation3] sm:$0xff]
  %v1573 = vld [vmem:[%s3] sm:$0xff]
  %v1574 = vld [vmem:[%s3 + $0x8] sm:$0xff]
  %v1575 = vld [vmem:[%s3 + $0x10] sm:$0xff]
  %v1576 = vld [vmem:[%s3 + $0x18] sm:$0xff]
  %v1577 = vld [vmem:[%s3 + $0x20] sm:$0xff]
  %v1578 = vld [vmem:[%s3 + $0x28] sm:$0xff]
  %v1579 = vld [vmem:[%s3 + $0x30] sm:$0xff]
  %v1580 = vld [vmem:[%s3 + $0x38] sm:$0xff]
  %v1581 = vld [vmem:[%s3 + $0x40] sm:$0xff]
  %v1582 = vld [vmem:[%s3 + $0x48] sm:$0xff]
  %v1583 = vld [vmem:[%s3 + $0x50] sm:$0xff]
  %v1584 = vld [vmem:[%s3 + $0x58] sm:$0xff]
  %v1585 = vld [vmem:[%s3 + $0x60] sm:$0xff]
  %v1586 = vld [vmem:[%s3 + $0x68] sm:$0xff]
  %v1587 = vld [vmem:[%s3 + $0x70] sm:$0xff]
  %v1588 = vld [vmem:[%s3 + $0x78] sm:$0xff]
  %v1589 = vld [vmem:[%s3 + $0x80] sm:$0xff]
  %v1590 = vld [vmem:[%s3 + $0x88] sm:$0xff]
  %v1591 = vld [vmem:[%s3 + $0x90] sm:$0xff]
  %v1592 = vld [vmem:[%s3 + $0x98] sm:$0xff]
  %v1593 = vld [vmem:[%s3 + $0xa0] sm:$0xff]
  %v1594 = vld [vmem:[%s3 + $0xa8] sm:$0xff]
  %v1595 = vld [vmem:[%s3 + $0xb0] sm:$0xff]
  %v1596 = vld [vmem:[%s3 + $0xb8] sm:$0xff]
  %v1597 = vld [vmem:[%s3 + $0xc0] sm:$0xff]
  %v1598 = vld [vmem:[%s3 + $0xc8] sm:$0xff]
  %v1599 = vld [vmem:[%s3 + $0xd0] sm:$0xff]
  %v1600 = vld [vmem:[%s3 + $0xd8] sm:$0xff]
  %v1601 = vld [vmem:[%s3 + $0xe0] sm:$0xff]
  %v1602 = vld [vmem:[%s3 + $0xe8] sm:$0xff]
  %v1603 = vld [vmem:[%s3 + $0xf0] sm:$0xff]
  %v1604 = vld [vmem:[%s3 + $0xf8] sm:$0xff]
  %v1605 = vld [vmem:[%s3 + $0x100] sm:$0xff]
  %v1606 = vld [vmem:[%s3 + $0x108] sm:$0xff]
  %v1607 = vld [vmem:[%s3 + $0x110] sm:$0xff]
  %v1608 = vld [vmem:[%s3 + $0x118] sm:$0xff]
  %v1609 = vld [vmem:[%s3 + $0x120] sm:$0xff]
  %v1610 = vld [vmem:[%s3 + $0x128] sm:$0xff]
  %v1611 = vld [vmem:[%s3 + $0x130] sm:$0xff]
  %v1612 = vld [vmem:[%s3 + $0x138] sm:$0xff]
  %v1613 = vld [vmem:[%s3 + $0x140] sm:$0xff]
  %v1614 = vld [vmem:[%s3 + $0x148] sm:$0xff]
  %v1615 = vld [vmem:[%s3 + $0x150] sm:$0xff]
  %v1616 = vld [vmem:[%s3 + $0x158] sm:$0xff]
  %v1617 = vld [vmem:[%s3 + $0x160] sm:$0xff]
  %v1618 = vld [vmem:[%s3 + $0x168] sm:$0xff]
  %v1619 = vld [vmem:[%s3 + $0x170] sm:$0xff]
  %v1620 = vld [vmem:[%s3 + $0x178] sm:$0xff]
  %v1621 = vld [vmem:[%s3 + $0x180] sm:$0xff]
  %v1622 = vld [vmem:[%s3 + $0x188] sm:$0xff]
  %v1623 = vld [vmem:[%s3 + $0x190] sm:$0xff]
  %v1624 = vld [vmem:[%s3 + $0x198] sm:$0xff]
  %v1625 = vld [vmem:[%s3 + $0x1a0] sm:$0xff]
  %v1626 = vld [vmem:[%s3 + $0x1a8] sm:$0xff]
  %v1627 = vld [vmem:[%s3 + $0x1b0] sm:$0xff]
  %v1628 = vld [vmem:[%s3 + $0x1b8] sm:$0xff]
  %v1629 = vld [vmem:[%s3 + $0x1c0] sm:$0xff]
  %v1630 = vld [vmem:[%s3 + $0x1c8] sm:$0xff]
  %v1631 = vld [vmem:[%s3 + $0x1d0] sm:$0xff]
  %v1632 = vld [vmem:[%s3 + $0x1d8] sm:$0xff]
  %v1633 = vld [vmem:[%s3 + $0x1e0] sm:$0xff]
  %v1634 = vld [vmem:[%s3 + $0x1e8] sm:$0xff]
  %v1635 = vld [vmem:[%s3 + $0x1f0] sm:$0xff]
  %v1636 = vld [vmem:[%s3 + $0x1f8] sm:$0xff]
  %1637 = vmatprep.subr.mxu0 %v1634
  %1638 = vmatpush1.msra.mxu0 %v1633
  %1639 = vmatprep.subr.mxu0 %v1630
  %1640 = vmatpush1.msra.mxu0 %v1629
  %1641 = vmatprep.subr.mxu0 %v1626
  %1642 = vmatpush1.msra.mxu0 %v1625
  %1643 = vmatprep.subr.mxu0 %v1622
  %1644 = vmatpush1.msra.mxu0 %v1621
  %1645 = vmatprep.subr.mxu0 %v1618
  %1646 = vmatpush1.msra.mxu0 %v1617
  %1647 = vmatprep.subr.mxu0 %v1614
  %1648 = vmatpush1.msra.mxu0 %v1613
  %1649 = vmatprep.subr.mxu0 %v1610
  %1650 = vmatpush1.msra.mxu0 %v1609
  %1651 = vmatprep.subr.mxu0 %v1606
  %1652 = vmatpush1.msra.mxu0 %v1605
  %1653 = vmatprep.subr.mxu0 %v1602
  %1654 = vmatpush1.msra.mxu0 %v1601
  %1655 = vmatprep.subr.mxu0 %v1598
  %1656 = vmatpush1.msra.mxu0 %v1597
  %1657 = vmatprep.subr.mxu0 %v1594
  %1658 = vmatpush1.msra.mxu0 %v1593
  %1659 = vmatprep.subr.mxu0 %v1590
  %1660 = vmatpush1.msra.mxu0 %v1589
  %1661 = vmatprep.subr.mxu0 %v1586
  %1662 = vmatpush1.msra.mxu0 %v1585
  %1663 = vmatprep.subr.mxu0 %v1582
  %1664 = vmatpush1.msra.mxu0 %v1581
  %1665 = vmatprep.subr.mxu0 %v1578
  %1666 = vmatpush1.msra.mxu0 %v1577
  %1667 = vmatprep.subr.mxu0 %v1574
  %1668 = vmatpush1.msra.mxu0 %v1573
  %1669 = vmatprep.subr.mxu0 0.0
  %1670 = vmatpush2.msra.mxu0 0.0
  %1671 = vmatprep.subr.mxu0 0.0
  %1672 = vmatpush2.msra.mxu0 0.0
  %1673 = vmatprep.subr.mxu0 0.0
  %1674 = vmatpush2.msra.mxu0 0.0
  %1675 = vmatprep.subr.mxu0 0.0
  %1676 = vmatpush2.msra.mxu0 0.0
  %1677 = vmatprep.subr.mxu0 0.0
  %1678 = vmatpush2.msra.mxu0 0.0
  %1679 = vmatprep.subr.mxu0 0.0
  %1680 = vmatpush2.msra.mxu0 0.0
  %1681 = vmatprep.subr.mxu0 0.0
  %1682 = vmatpush2.msra.mxu0 0.0
  %1683 = vmatprep.subr.mxu0 0.0
  %1684 = vmatpush2.msra.mxu0 0.0
  %1685 = vmatprep.subr.mxu0 0.0
  %1686 = vmatpush2.msra.mxu0 0.0
  %1687 = vmatprep.subr.mxu0 0.0
  %1688 = vmatpush2.msra.mxu0 0.0
  %1689 = vmatprep.subr.mxu0 0.0
  %1690 = vmatpush2.msra.mxu0 0.0
  %1691 = vmatprep.subr.mxu0 0.0
  %1692 = vmatpush2.msra.mxu0 0.0
  %1693 = vmatprep.subr.mxu0 0.0
  %1694 = vmatpush2.msra.mxu0 0.0
  %1695 = vmatprep.subr.mxu0 0.0
  %1696 = vmatpush2.msra.mxu0 0.0
  %1697 = vmatprep.subr.mxu0 0.0
  %1698 = vmatpush2.msra.mxu0 0.0
  %1699 = vmatprep.subr.mxu0 0.0
  %1700 = vmatpush2.msra.mxu0 0.0
  %1701 = vmatprep.mubr.f32.mxu0 0.0
  %1702 = vmatmul.mubr.f32.gmra.mxu0 %v1572
  %v1703 = vpop.f32.mrf.mxu0
  %v1704 = vadd.f32 0.0, %v1703
  %v1705 = vpop.f32.mrf.mxu0
  %v1706 = vadd.f32 0.0, %v1705
  %1707 = vdwg.mxu0
  %1708 = vmatprep.subr.mxu0 %v1636
  %1709 = vmatpush1.msra.mxu0 %v1635
  %1710 = vmatprep.subr.mxu0 %v1632
  %1711 = vmatpush1.msra.mxu0 %v1631
  %1712 = vmatprep.subr.mxu0 %v1628
  %1713 = vmatpush1.msra.mxu0 %v1627
  %1714 = vmatprep.subr.mxu0 %v1624
  %1715 = vmatpush1.msra.mxu0 %v1623
  %1716 = vmatprep.subr.mxu0 %v1620
  %1717 = vmatpush1.msra.mxu0 %v1619
  %1718 = vmatprep.subr.mxu0 %v1616
  %1719 = vmatpush1.msra.mxu0 %v1615
  %1720 = vmatprep.subr.mxu0 %v1612
  %1721 = vmatpush1.msra.mxu0 %v1611
  %1722 = vmatprep.subr.mxu0 %v1608
  %1723 = vmatpush1.msra.mxu0 %v1607
  %1724 = vmatprep.subr.mxu0 %v1604
  %1725 = vmatpush1.msra.mxu0 %v1603
  %1726 = vmatprep.subr.mxu0 %v1600
  %1727 = vmatpush1.msra.mxu0 %v1599
  %1728 = vmatprep.subr.mxu0 %v1596
  %1729 = vmatpush1.msra.mxu0 %v1595
  %1730 = vmatprep.subr.mxu0 %v1592
  %1731 = vmatpush1.msra.mxu0 %v1591
  %1732 = vmatprep.subr.mxu0 %v1588
  %1733 = vmatpush1.msra.mxu0 %v1587
  %1734 = vmatprep.subr.mxu0 %v1584
  %1735 = vmatpush1.msra.mxu0 %v1583
  %1736 = vmatprep.subr.mxu0 %v1580
  %1737 = vmatpush1.msra.mxu0 %v1579
  %1738 = vmatprep.subr.mxu0 %v1576
  %1739 = vmatpush1.msra.mxu0 %v1575
  %1740 = vmatprep.subr.mxu0 0.0
  %1741 = vmatpush2.msra.mxu0 0.0
  %1742 = vmatprep.subr.mxu0 0.0
  %1743 = vmatpush2.msra.mxu0 0.0
  %1744 = vmatprep.subr.mxu0 0.0
  %1745 = vmatpush2.msra.mxu0 0.0
  %1746 = vmatprep.subr.mxu0 0.0
  %1747 = vmatpush2.msra.mxu0 0.0
  %1748 = vmatprep.subr.mxu0 0.0
  %1749 = vmatpush2.msra.mxu0 0.0
  %1750 = vmatprep.subr.mxu0 0.0
  %1751 = vmatpush2.msra.mxu0 0.0
  %1752 = vmatprep.subr.mxu0 0.0
  %1753 = vmatpush2.msra.mxu0 0.0
  %1754 = vmatprep.subr.mxu0 0.0
  %1755 = vmatpush2.msra.mxu0 0.0
  %1756 = vmatprep.subr.mxu0 0.0
  %1757 = vmatpush2.msra.mxu0 0.0
  %1758 = vmatprep.subr.mxu0 0.0
  %1759 = vmatpush2.msra.mxu0 0.0
  %1760 = vmatprep.subr.mxu0 0.0
  %1761 = vmatpush2.msra.mxu0 0.0
  %1762 = vmatprep.subr.mxu0 0.0
  %1763 = vmatpush2.msra.mxu0 0.0
  %1764 = vmatprep.subr.mxu0 0.0
  %1765 = vmatpush2.msra.mxu0 0.0
  %1766 = vmatprep.subr.mxu0 0.0
  %1767 = vmatpush2.msra.mxu0 0.0
  %1768 = vmatprep.subr.mxu0 0.0
  %1769 = vmatpush2.msra.mxu0 0.0
  %1770 = vmatprep.subr.mxu0 0.0
  %1771 = vmatpush2.msra.mxu0 0.0
  %1772 = vmatprep.mubr.f32.mxu0 0.0
  %1773 = vmatmul.mubr.f32.gmra.mxu0 %v1572
  %v1774 = vpop.f32.mrf.mxu0
  %v1775 = vadd.f32 0.0, %v1774
  %v1776 = vpop.f32.mrf.mxu0
  %v1777 = vadd.f32 0.0, %v1776
  %1778 = vdwg.mxu0
  %v1779 = vadd.f32 %v1568, %v1704
  %v1780 = vadd.f32 %v1569, %v1706
  %v1781 = vadd.f32 %v1570, %v1775
  %v1782 = vadd.f32 %v1571, %v1777
  %v1783 = vxor.u32 %v1779, 2147483648
  %v1784 = vmul.f32 %v1783, 1.442695
  %v1785 = vpow.pop %v1784
  %v1786 = vadd.f32 %v1785, 1.0
  %v1787 = vrcp.pop %v1786
  %v1788 = vmul.f32 1.0, %v1787
  %v1789 = vxor.u32 %v1780, 2147483648
  %v1790 = vmul.f32 %v1789, 1.442695
  %v1791 = vpow.pop %v1790
  %v1792 = vadd.f32 %v1791, 1.0
  %v1793 = vrcp.pop %v1792
  %v1794 = vmul.f32 1.0, %v1793
  %v1795 = vtanh.pop %v1781
  %v1796 = vxor.u32 %v1782, 2147483648
  %v1797 = vmul.f32 %v1796, 1.442695
  %v1798 = vpow.pop %v1797
  %v1799 = vadd.f32 %v1798, 1.0
  %v1800 = vrcp.pop %v1799
  %v1801 = vmul.f32 1.0, %v1800
  %v1802 = vld [vmem:[#allocation4] sm:$0xff]
  %v1803 = vmul.f32 %v1794, %v1802
  %v1804 = vmul.f32 %v1788, %v1795
  %v1805 = vadd.f32 %v1803, %v1804
  %v1806 = vtanh.pop %v1805
  %v1807 = vmul.f32 %v1801, %v1806
  %1808 = vst [vmem:[#allocation4] sm:$0xff] %v1805
  %1809 = vst [vmem:[#allocation3] sm:$0xff] %v1807
  %s1810 = scalar_lea.vmem %s4, 40
  %1811 = vst [vmem:[%s1810] sm:$0xff] %v1807
  %s1812 = scalar_lea.vmem [#allocation2], 192
  %v1813 = vld [vmem:[%s1812] sm:$0xff]
  %v1814 = vld [vmem:[%s1812 + $0x8] sm:$0xff]
  %v1815 = vld [vmem:[%s1812 + $0x10] sm:$0xff]
  %v1816 = vld [vmem:[%s1812 + $0x18] sm:$0xff]
  %v1817 = vld [vmem:[#allocation3] sm:$0xff]
  %v1818 = vld [vmem:[%s3] sm:$0xff]
  %v1819 = vld [vmem:[%s3 + $0x8] sm:$0xff]
  %v1820 = vld [vmem:[%s3 + $0x10] sm:$0xff]
  %v1821 = vld [vmem:[%s3 + $0x18] sm:$0xff]
  %v1822 = vld [vmem:[%s3 + $0x20] sm:$0xff]
  %v1823 = vld [vmem:[%s3 + $0x28] sm:$0xff]
  %v1824 = vld [vmem:[%s3 + $0x30] sm:$0xff]
  %v1825 = vld [vmem:[%s3 + $0x38] sm:$0xff]
  %v1826 = vld [vmem:[%s3 + $0x40] sm:$0xff]
  %v1827 = vld [vmem:[%s3 + $0x48] sm:$0xff]
  %v1828 = vld [vmem:[%s3 + $0x50] sm:$0xff]
  %v1829 = vld [vmem:[%s3 + $0x58] sm:$0xff]
  %v1830 = vld [vmem:[%s3 + $0x60] sm:$0xff]
  %v1831 = vld [vmem:[%s3 + $0x68] sm:$0xff]
  %v1832 = vld [vmem:[%s3 + $0x70] sm:$0xff]
  %v1833 = vld [vmem:[%s3 + $0x78] sm:$0xff]
  %v1834 = vld [vmem:[%s3 + $0x80] sm:$0xff]
  %v1835 = vld [vmem:[%s3 + $0x88] sm:$0xff]
  %v1836 = vld [vmem:[%s3 + $0x90] sm:$0xff]
  %v1837 = vld [vmem:[%s3 + $0x98] sm:$0xff]
  %v1838 = vld [vmem:[%s3 + $0xa0] sm:$0xff]
  %v1839 = vld [vmem:[%s3 + $0xa8] sm:$0xff]
  %v1840 = vld [vmem:[%s3 + $0xb0] sm:$0xff]
  %v1841 = vld [vmem:[%s3 + $0xb8] sm:$0xff]
  %v1842 = vld [vmem:[%s3 + $0xc0] sm:$0xff]
  %v1843 = vld [vmem:[%s3 + $0xc8] sm:$0xff]
  %v1844 = vld [vmem:[%s3 + $0xd0] sm:$0xff]
  %v1845 = vld [vmem:[%s3 + $0xd8] sm:$0xff]
  %v1846 = vld [vmem:[%s3 + $0xe0] sm:$0xff]
  %v1847 = vld [vmem:[%s3 + $0xe8] sm:$0xff]
  %v1848 = vld [vmem:[%s3 + $0xf0] sm:$0xff]
  %v1849 = vld [vmem:[%s3 + $0xf8] sm:$0xff]
  %v1850 = vld [vmem:[%s3 + $0x100] sm:$0xff]
  %v1851 = vld [vmem:[%s3 + $0x108] sm:$0xff]
  %v1852 = vld [vmem:[%s3 + $0x110] sm:$0xff]
  %v1853 = vld [vmem:[%s3 + $0x118] sm:$0xff]
  %v1854 = vld [vmem:[%s3 + $0x120] sm:$0xff]
  %v1855 = vld [vmem:[%s3 + $0x128] sm:$0xff]
  %v1856 = vld [vmem:[%s3 + $0x130] sm:$0xff]
  %v1857 = vld [vmem:[%s3 + $0x138] sm:$0xff]
  %v1858 = vld [vmem:[%s3 + $0x140] sm:$0xff]
  %v1859 = vld [vmem:[%s3 + $0x148] sm:$0xff]
  %v1860 = vld [vmem:[%s3 + $0x150] sm:$0xff]
  %v1861 = vld [vmem:[%s3 + $0x158] sm:$0xff]
  %v1862 = vld [vmem:[%s3 + $0x160] sm:$0xff]
  %v1863 = vld [vmem:[%s3 + $0x168] sm:$0xff]
  %v1864 = vld [vmem:[%s3 + $0x170] sm:$0xff]
  %v1865 = vld [vmem:[%s3 + $0x178] sm:$0xff]
  %v1866 = vld [vmem:[%s3 + $0x180] sm:$0xff]
  %v1867 = vld [vmem:[%s3 + $0x188] sm:$0xff]
  %v1868 = vld [vmem:[%s3 + $0x190] sm:$0xff]
  %v1869 = vld [vmem:[%s3 + $0x198] sm:$0xff]
  %v1870 = vld [vmem:[%s3 + $0x1a0] sm:$0xff]
  %v1871 = vld [vmem:[%s3 + $0x1a8] sm:$0xff]
  %v1872 = vld [vmem:[%s3 + $0x1b0] sm:$0xff]
  %v1873 = vld [vmem:[%s3 + $0x1b8] sm:$0xff]
  %v1874 = vld [vmem:[%s3 + $0x1c0] sm:$0xff]
  %v1875 = vld [vmem:[%s3 + $0x1c8] sm:$0xff]
  %v1876 = vld [vmem:[%s3 + $0x1d0] sm:$0xff]
  %v1877 = vld [vmem:[%s3 + $0x1d8] sm:$0xff]
  %v1878 = vld [vmem:[%s3 + $0x1e0] sm:$0xff]
  %v1879 = vld [vmem:[%s3 + $0x1e8] sm:$0xff]
  %v1880 = vld [vmem:[%s3 + $0x1f0] sm:$0xff]
  %v1881 = vld [vmem:[%s3 + $0x1f8] sm:$0xff]
  %1882 = vmatprep.subr.mxu0 %v1879
  %1883 = vmatpush1.msra.mxu0 %v1878
  %1884 = vmatprep.subr.mxu0 %v1875
  %1885 = vmatpush1.msra.mxu0 %v1874
  %1886 = vmatprep.subr.mxu0 %v1871
  %1887 = vmatpush1.msra.mxu0 %v1870
  %1888 = vmatprep.subr.mxu0 %v1867
  %1889 = vmatpush1.msra.mxu0 %v1866
  %1890 = vmatprep.subr.mxu0 %v1863
  %1891 = vmatpush1.msra.mxu0 %v1862
  %1892 = vmatprep.subr.mxu0 %v1859
  %1893 = vmatpush1.msra.mxu0 %v1858
  %1894 = vmatprep.subr.mxu0 %v1855
  %1895 = vmatpush1.msra.mxu0 %v1854
  %1896 = vmatprep.subr.mxu0 %v1851
  %1897 = vmatpush1.msra.mxu0 %v1850
  %1898 = vmatprep.subr.mxu0 %v1847
  %1899 = vmatpush1.msra.mxu0 %v1846
  %1900 = vmatprep.subr.mxu0 %v1843
  %1901 = vmatpush1.msra.mxu0 %v1842
  %1902 = vmatprep.subr.mxu0 %v1839
  %1903 = vmatpush1.msra.mxu0 %v1838
  %1904 = vmatprep.subr.mxu0 %v1835
  %1905 = vmatpush1.msra.mxu0 %v1834
  %1906 = vmatprep.subr.mxu0 %v1831
  %1907 = vmatpush1.msra.mxu0 %v1830
  %1908 = vmatprep.subr.mxu0 %v1827
  %1909 = vmatpush1.msra.mxu0 %v1826
  %1910 = vmatprep.subr.mxu0 %v1823
  %1911 = vmatpush1.msra.mxu0 %v1822
  %1912 = vmatprep.subr.mxu0 %v1819
  %1913 = vmatpush1.msra.mxu0 %v1818
  %1914 = vmatprep.subr.mxu0 0.0
  %1915 = vmatpush2.msra.mxu0 0.0
  %1916 = vmatprep.subr.mxu0 0.0
  %1917 = vmatpush2.msra.mxu0 0.0
  %1918 = vmatprep.subr.mxu0 0.0
  %1919 = vmatpush2.msra.mxu0 0.0
  %1920 = vmatprep.subr.mxu0 0.0
  %1921 = vmatpush2.msra.mxu0 0.0
  %1922 = vmatprep.subr.mxu0 0.0
  %1923 = vmatpush2.msra.mxu0 0.0
  %1924 = vmatprep.subr.mxu0 0.0
  %1925 = vmatpush2.msra.mxu0 0.0
  %1926 = vmatprep.subr.mxu0 0.0
  %1927 = vmatpush2.msra.mxu0 0.0
  %1928 = vmatprep.subr.mxu0 0.0
  %1929 = vmatpush2.msra.mxu0 0.0
  %1930 = vmatprep.subr.mxu0 0.0
  %1931 = vmatpush2.msra.mxu0 0.0
  %1932 = vmatprep.subr.mxu0 0.0
  %1933 = vmatpush2.msra.mxu0 0.0
  %1934 = vmatprep.subr.mxu0 0.0
  %1935 = vmatpush2.msra.mxu0 0.0
  %1936 = vmatprep.subr.mxu0 0.0
  %1937 = vmatpush2.msra.mxu0 0.0
  %1938 = vmatprep.subr.mxu0 0.0
  %1939 = vmatpush2.msra.mxu0 0.0
  %1940 = vmatprep.subr.mxu0 0.0
  %1941 = vmatpush2.msra.mxu0 0.0
  %1942 = vmatprep.subr.mxu0 0.0
  %1943 = vmatpush2.msra.mxu0 0.0
  %1944 = vmatprep.subr.mxu0 0.0
  %1945 = vmatpush2.msra.mxu0 0.0
  %1946 = vmatprep.mubr.f32.mxu0 0.0
  %1947 = vmatmul.mubr.f32.gmra.mxu0 %v1817
  %v1948 = vpop.f32.mrf.mxu0
  %v1949 = vadd.f32 0.0, %v1948
  %v1950 = vpop.f32.mrf.mxu0
  %v1951 = vadd.f32 0.0, %v1950
  %1952 = vdwg.mxu0
  %1953 = vmatprep.subr.mxu0 %v1881
  %1954 = vmatpush1.msra.mxu0 %v1880
  %1955 = vmatprep.subr.mxu0 %v1877
  %1956 = vmatpush1.msra.mxu0 %v1876
  %1957 = vmatprep.subr.mxu0 %v1873
  %1958 = vmatpush1.msra.mxu0 %v1872
  %1959 = vmatprep.subr.mxu0 %v1869
  %1960 = vmatpush1.msra.mxu0 %v1868
  %1961 = vmatprep.subr.mxu0 %v1865
  %1962 = vmatpush1.msra.mxu0 %v1864
  %1963 = vmatprep.subr.mxu0 %v1861
  %1964 = vmatpush1.msra.mxu0 %v1860
  %1965 = vmatprep.subr.mxu0 %v1857
  %1966 = vmatpush1.msra.mxu0 %v1856
  %1967 = vmatprep.subr.mxu0 %v1853
  %1968 = vmatpush1.msra.mxu0 %v1852
  %1969 = vmatprep.subr.mxu0 %v1849
  %1970 = vmatpush1.msra.mxu0 %v1848
  %1971 = vmatprep.subr.mxu0 %v1845
  %1972 = vmatpush1.msra.mxu0 %v1844
  %1973 = vmatprep.subr.mxu0 %v1841
  %1974 = vmatpush1.msra.mxu0 %v1840
  %1975 = vmatprep.subr.mxu0 %v1837
  %1976 = vmatpush1.msra.mxu0 %v1836
  %1977 = vmatprep.subr.mxu0 %v1833
  %1978 = vmatpush1.msra.mxu0 %v1832
  %1979 = vmatprep.subr.mxu0 %v1829
  %1980 = vmatpush1.msra.mxu0 %v1828
  %1981 = vmatprep.subr.mxu0 %v1825
  %1982 = vmatpush1.msra.mxu0 %v1824
  %1983 = vmatprep.subr.mxu0 %v1821
  %1984 = vmatpush1.msra.mxu0 %v1820
  %1985 = vmatprep.subr.mxu0 0.0
  %1986 = vmatpush2.msra.mxu0 0.0
  %1987 = vmatprep.subr.mxu0 0.0
  %1988 = vmatpush2.msra.mxu0 0.0
  %1989 = vmatprep.subr.mxu0 0.0
  %1990 = vmatpush2.msra.mxu0 0.0
  %1991 = vmatprep.subr.mxu0 0.0
  %1992 = vmatpush2.msra.mxu0 0.0
  %1993 = vmatprep.subr.mxu0 0.0
  %1994 = vmatpush2.msra.mxu0 0.0
  %1995 = vmatprep.subr.mxu0 0.0
  %1996 = vmatpush2.msra.mxu0 0.0
  %1997 = vmatprep.subr.mxu0 0.0
  %1998 = vmatpush2.msra.mxu0 0.0
  %1999 = vmatprep.subr.mxu0 0.0
  %2000 = vmatpush2.msra.mxu0 0.0
  %2001 = vmatprep.subr.mxu0 0.0
  %2002 = vmatpush2.msra.mxu0 0.0
  %2003 = vmatprep.subr.mxu0 0.0
  %2004 = vmatpush2.msra.mxu0 0.0
  %2005 = vmatprep.subr.mxu0 0.0
  %2006 = vmatpush2.msra.mxu0 0.0
  %2007 = vmatprep.subr.mxu0 0.0
  %2008 = vmatpush2.msra.mxu0 0.0
  %2009 = vmatprep.subr.mxu0 0.0
  %2010 = vmatpush2.msra.mxu0 0.0
  %2011 = vmatprep.subr.mxu0 0.0
  %2012 = vmatpush2.msra.mxu0 0.0
  %2013 = vmatprep.subr.mxu0 0.0
  %2014 = vmatpush2.msra.mxu0 0.0
  %2015 = vmatprep.subr.mxu0 0.0
  %2016 = vmatpush2.msra.mxu0 0.0
  %2017 = vmatprep.mubr.f32.mxu0 0.0
  %2018 = vmatmul.mubr.f32.gmra.mxu0 %v1817
  %v2019 = vpop.f32.mrf.mxu0
  %v2020 = vadd.f32 0.0, %v2019
  %v2021 = vpop.f32.mrf.mxu0
  %v2022 = vadd.f32 0.0, %v2021
  %2023 = vdwg.mxu0
  %v2024 = vadd.f32 %v1813, %v1949
  %v2025 = vadd.f32 %v1814, %v1951
  %v2026 = vadd.f32 %v1815, %v2020
  %v2027 = vadd.f32 %v1816, %v2022
  %v2028 = vxor.u32 %v2024, 2147483648
  %v2029 = vmul.f32 %v2028, 1.442695
  %v2030 = vpow.pop %v2029
  %v2031 = vadd.f32 %v2030, 1.0
  %v2032 = vrcp.pop %v2031
  %v2033 = vmul.f32 1.0, %v2032
  %v2034 = vxor.u32 %v2025, 2147483648
  %v2035 = vmul.f32 %v2034, 1.442695
  %v2036 = vpow.pop %v2035
  %v2037 = vadd.f32 %v2036, 1.0
  %v2038 = vrcp.pop %v2037
  %v2039 = vmul.f32 1.0, %v2038
  %v2040 = vtanh.pop %v2026
  %v2041 = vxor.u32 %v2027, 2147483648
  %v2042 = vmul.f32 %v2041, 1.442695
  %v2043 = vpow.pop %v2042
  %v2044 = vadd.f32 %v2043, 1.0
  %v2045 = vrcp.pop %v2044
  %v2046 = vmul.f32 1.0, %v2045
  %v2047 = vld [vmem:[#allocation4] sm:$0xff]
  %v2048 = vmul.f32 %v2039, %v2047
  %v2049 = vmul.f32 %v2033, %v2040
  %v2050 = vadd.f32 %v2048, %v2049
  %v2051 = vtanh.pop %v2050
  %v2052 = vmul.f32 %v2046, %v2051
  %2053 = vst [vmem:[#allocation4] sm:$0xff] %v2050
  %2054 = vst [vmem:[#allocation3] sm:$0xff] %v2052
  %s2055 = scalar_lea.vmem %s4, 48
  %2056 = vst [vmem:[%s2055] sm:$0xff] %v2052
  %s2057 = scalar_lea.vmem [#allocation2], 224
  %v2058 = vld [vmem:[%s2057] sm:$0xff]
  %v2059 = vld [vmem:[%s2057 + $0x8] sm:$0xff]
  %v2060 = vld [vmem:[%s2057 + $0x10] sm:$0xff]
  %v2061 = vld [vmem:[%s2057 + $0x18] sm:$0xff]
  %v2062 = vld [vmem:[#allocation3] sm:$0xff]
  %v2063 = vld [vmem:[%s3] sm:$0xff]
  %v2064 = vld [vmem:[%s3 + $0x8] sm:$0xff]
  %v2065 = vld [vmem:[%s3 + $0x10] sm:$0xff]
  %v2066 = vld [vmem:[%s3 + $0x18] sm:$0xff]
  %v2067 = vld [vmem:[%s3 + $0x20] sm:$0xff]
  %v2068 = vld [vmem:[%s3 + $0x28] sm:$0xff]
  %v2069 = vld [vmem:[%s3 + $0x30] sm:$0xff]
  %v2070 = vld [vmem:[%s3 + $0x38] sm:$0xff]
  %v2071 = vld [vmem:[%s3 + $0x40] sm:$0xff]
  %v2072 = vld [vmem:[%s3 + $0x48] sm:$0xff]
  %v2073 = vld [vmem:[%s3 + $0x50] sm:$0xff]
  %v2074 = vld [vmem:[%s3 + $0x58] sm:$0xff]
  %v2075 = vld [vmem:[%s3 + $0x60] sm:$0xff]
  %v2076 = vld [vmem:[%s3 + $0x68] sm:$0xff]
  %v2077 = vld [vmem:[%s3 + $0x70] sm:$0xff]
  %v2078 = vld [vmem:[%s3 + $0x78] sm:$0xff]
  %v2079 = vld [vmem:[%s3 + $0x80] sm:$0xff]
  %v2080 = vld [vmem:[%s3 + $0x88] sm:$0xff]
  %v2081 = vld [vmem:[%s3 + $0x90] sm:$0xff]
  %v2082 = vld [vmem:[%s3 + $0x98] sm:$0xff]
  %v2083 = vld [vmem:[%s3 + $0xa0] sm:$0xff]
  %v2084 = vld [vmem:[%s3 + $0xa8] sm:$0xff]
  %v2085 = vld [vmem:[%s3 + $0xb0] sm:$0xff]
  %v2086 = vld [vmem:[%s3 + $0xb8] sm:$0xff]
  %v2087 = vld [vmem:[%s3 + $0xc0] sm:$0xff]
  %v2088 = vld [vmem:[%s3 + $0xc8] sm:$0xff]
  %v2089 = vld [vmem:[%s3 + $0xd0] sm:$0xff]
  %v2090 = vld [vmem:[%s3 + $0xd8] sm:$0xff]
  %v2091 = vld [vmem:[%s3 + $0xe0] sm:$0xff]
  %v2092 = vld [vmem:[%s3 + $0xe8] sm:$0xff]
  %v2093 = vld [vmem:[%s3 + $0xf0] sm:$0xff]
  %v2094 = vld [vmem:[%s3 + $0xf8] sm:$0xff]
  %v2095 = vld [vmem:[%s3 + $0x100] sm:$0xff]
  %v2096 = vld [vmem:[%s3 + $0x108] sm:$0xff]
  %v2097 = vld [vmem:[%s3 + $0x110] sm:$0xff]
  %v2098 = vld [vmem:[%s3 + $0x118] sm:$0xff]
  %v2099 = vld [vmem:[%s3 + $0x120] sm:$0xff]
  %v2100 = vld [vmem:[%s3 + $0x128] sm:$0xff]
  %v2101 = vld [vmem:[%s3 + $0x130] sm:$0xff]
  %v2102 = vld [vmem:[%s3 + $0x138] sm:$0xff]
  %v2103 = vld [vmem:[%s3 + $0x140] sm:$0xff]
  %v2104 = vld [vmem:[%s3 + $0x148] sm:$0xff]
  %v2105 = vld [vmem:[%s3 + $0x150] sm:$0xff]
  %v2106 = vld [vmem:[%s3 + $0x158] sm:$0xff]
  %v2107 = vld [vmem:[%s3 + $0x160] sm:$0xff]
  %v2108 = vld [vmem:[%s3 + $0x168] sm:$0xff]
  %v2109 = vld [vmem:[%s3 + $0x170] sm:$0xff]
  %v2110 = vld [vmem:[%s3 + $0x178] sm:$0xff]
  %v2111 = vld [vmem:[%s3 + $0x180] sm:$0xff]
  %v2112 = vld [vmem:[%s3 + $0x188] sm:$0xff]
  %v2113 = vld [vmem:[%s3 + $0x190] sm:$0xff]
  %v2114 = vld [vmem:[%s3 + $0x198] sm:$0xff]
  %v2115 = vld [vmem:[%s3 + $0x1a0] sm:$0xff]
  %v2116 = vld [vmem:[%s3 + $0x1a8] sm:$0xff]
  %v2117 = vld [vmem:[%s3 + $0x1b0] sm:$0xff]
  %v2118 = vld [vmem:[%s3 + $0x1b8] sm:$0xff]
  %v2119 = vld [vmem:[%s3 + $0x1c0] sm:$0xff]
  %v2120 = vld [vmem:[%s3 + $0x1c8] sm:$0xff]
  %v2121 = vld [vmem:[%s3 + $0x1d0] sm:$0xff]
  %v2122 = vld [vmem:[%s3 + $0x1d8] sm:$0xff]
  %v2123 = vld [vmem:[%s3 + $0x1e0] sm:$0xff]
  %v2124 = vld [vmem:[%s3 + $0x1e8] sm:$0xff]
  %v2125 = vld [vmem:[%s3 + $0x1f0] sm:$0xff]
  %v2126 = vld [vmem:[%s3 + $0x1f8] sm:$0xff]
  %2127 = vmatprep.subr.mxu0 %v2124
  %2128 = vmatpush1.msra.mxu0 %v2123
  %2129 = vmatprep.subr.mxu0 %v2120
  %2130 = vmatpush1.msra.mxu0 %v2119
  %2131 = vmatprep.subr.mxu0 %v2116
  %2132 = vmatpush1.msra.mxu0 %v2115
  %2133 = vmatprep.subr.mxu0 %v2112
  %2134 = vmatpush1.msra.mxu0 %v2111
  %2135 = vmatprep.subr.mxu0 %v2108
  %2136 = vmatpush1.msra.mxu0 %v2107
  %2137 = vmatprep.subr.mxu0 %v2104
  %2138 = vmatpush1.msra.mxu0 %v2103
  %2139 = vmatprep.subr.mxu0 %v2100
  %2140 = vmatpush1.msra.mxu0 %v2099
  %2141 = vmatprep.subr.mxu0 %v2096
  %2142 = vmatpush1.msra.mxu0 %v2095
  %2143 = vmatprep.subr.mxu0 %v2092
  %2144 = vmatpush1.msra.mxu0 %v2091
  %2145 = vmatprep.subr.mxu0 %v2088
  %2146 = vmatpush1.msra.mxu0 %v2087
  %2147 = vmatprep.subr.mxu0 %v2084
  %2148 = vmatpush1.msra.mxu0 %v2083
  %2149 = vmatprep.subr.mxu0 %v2080
  %2150 = vmatpush1.msra.mxu0 %v2079
  %2151 = vmatprep.subr.mxu0 %v2076
  %2152 = vmatpush1.msra.mxu0 %v2075
  %2153 = vmatprep.subr.mxu0 %v2072
  %2154 = vmatpush1.msra.mxu0 %v2071
  %2155 = vmatprep.subr.mxu0 %v2068
  %2156 = vmatpush1.msra.mxu0 %v2067
  %2157 = vmatprep.subr.mxu0 %v2064
  %2158 = vmatpush1.msra.mxu0 %v2063
  %2159 = vmatprep.subr.mxu0 0.0
  %2160 = vmatpush2.msra.mxu0 0.0
  %2161 = vmatprep.subr.mxu0 0.0
  %2162 = vmatpush2.msra.mxu0 0.0
  %2163 = vmatprep.subr.mxu0 0.0
  %2164 = vmatpush2.msra.mxu0 0.0
  %2165 = vmatprep.subr.mxu0 0.0
  %2166 = vmatpush2.msra.mxu0 0.0
  %2167 = vmatprep.subr.mxu0 0.0
  %2168 = vmatpush2.msra.mxu0 0.0
  %2169 = vmatprep.subr.mxu0 0.0
  %2170 = vmatpush2.msra.mxu0 0.0
  %2171 = vmatprep.subr.mxu0 0.0
  %2172 = vmatpush2.msra.mxu0 0.0
  %2173 = vmatprep.subr.mxu0 0.0
  %2174 = vmatpush2.msra.mxu0 0.0
  %2175 = vmatprep.subr.mxu0 0.0
  %2176 = vmatpush2.msra.mxu0 0.0
  %2177 = vmatprep.subr.mxu0 0.0
  %2178 = vmatpush2.msra.mxu0 0.0
  %2179 = vmatprep.subr.mxu0 0.0
  %2180 = vmatpush2.msra.mxu0 0.0
  %2181 = vmatprep.subr.mxu0 0.0
  %2182 = vmatpush2.msra.mxu0 0.0
  %2183 = vmatprep.subr.mxu0 0.0
  %2184 = vmatpush2.msra.mxu0 0.0
  %2185 = vmatprep.subr.mxu0 0.0
  %2186 = vmatpush2.msra.mxu0 0.0
  %2187 = vmatprep.subr.mxu0 0.0
  %2188 = vmatpush2.msra.mxu0 0.0
  %2189 = vmatprep.subr.mxu0 0.0
  %2190 = vmatpush2.msra.mxu0 0.0
  %2191 = vmatprep.mubr.f32.mxu0 0.0
  %2192 = vmatmul.mubr.f32.gmra.mxu0 %v2062
  %v2193 = vpop.f32.mrf.mxu0
  %v2194 = vadd.f32 0.0, %v2193
  %v2195 = vpop.f32.mrf.mxu0
  %v2196 = vadd.f32 0.0, %v2195
  %2197 = vdwg.mxu0
  %2198 = vmatprep.subr.mxu0 %v2126
  %2199 = vmatpush1.msra.mxu0 %v2125
  %2200 = vmatprep.subr.mxu0 %v2122
  %2201 = vmatpush1.msra.mxu0 %v2121
  %2202 = vmatprep.subr.mxu0 %v2118
  %2203 = vmatpush1.msra.mxu0 %v2117
  %2204 = vmatprep.subr.mxu0 %v2114
  %2205 = vmatpush1.msra.mxu0 %v2113
  %2206 = vmatprep.subr.mxu0 %v2110
  %2207 = vmatpush1.msra.mxu0 %v2109
  %2208 = vmatprep.subr.mxu0 %v2106
  %2209 = vmatpush1.msra.mxu0 %v2105
  %2210 = vmatprep.subr.mxu0 %v2102
  %2211 = vmatpush1.msra.mxu0 %v2101
  %2212 = vmatprep.subr.mxu0 %v2098
  %2213 = vmatpush1.msra.mxu0 %v2097
  %2214 = vmatprep.subr.mxu0 %v2094
  %2215 = vmatpush1.msra.mxu0 %v2093
  %2216 = vmatprep.subr.mxu0 %v2090
  %2217 = vmatpush1.msra.mxu0 %v2089
  %2218 = vmatprep.subr.mxu0 %v2086
  %2219 = vmatpush1.msra.mxu0 %v2085
  %2220 = vmatprep.subr.mxu0 %v2082
  %2221 = vmatpush1.msra.mxu0 %v2081
  %2222 = vmatprep.subr.mxu0 %v2078
  %2223 = vmatpush1.msra.mxu0 %v2077
  %2224 = vmatprep.subr.mxu0 %v2074
  %2225 = vmatpush1.msra.mxu0 %v2073
  %2226 = vmatprep.subr.mxu0 %v2070
  %2227 = vmatpush1.msra.mxu0 %v2069
  %2228 = vmatprep.subr.mxu0 %v2066
  %2229 = vmatpush1.msra.mxu0 %v2065
  %2230 = vmatprep.subr.mxu0 0.0
  %2231 = vmatpush2.msra.mxu0 0.0
  %2232 = vmatprep.subr.mxu0 0.0
  %2233 = vmatpush2.msra.mxu0 0.0
  %2234 = vmatprep.subr.mxu0 0.0
  %2235 = vmatpush2.msra.mxu0 0.0
  %2236 = vmatprep.subr.mxu0 0.0
  %2237 = vmatpush2.msra.mxu0 0.0
  %2238 = vmatprep.subr.mxu0 0.0
  %2239 = vmatpush2.msra.mxu0 0.0
  %2240 = vmatprep.subr.mxu0 0.0
  %2241 = vmatpush2.msra.mxu0 0.0
  %2242 = vmatprep.subr.mxu0 0.0
  %2243 = vmatpush2.msra.mxu0 0.0
  %2244 = vmatprep.subr.mxu0 0.0
  %2245 = vmatpush2.msra.mxu0 0.0
  %2246 = vmatprep.subr.mxu0 0.0
  %2247 = vmatpush2.msra.mxu0 0.0
  %2248 = vmatprep.subr.mxu0 0.0
  %2249 = vmatpush2.msra.mxu0 0.0
  %2250 = vmatprep.subr.mxu0 0.0
  %2251 = vmatpush2.msra.mxu0 0.0
  %2252 = vmatprep.subr.mxu0 0.0
  %2253 = vmatpush2.msra.mxu0 0.0
  %2254 = vmatprep.subr.mxu0 0.0
  %2255 = vmatpush2.msra.mxu0 0.0
  %2256 = vmatprep.subr.mxu0 0.0
  %2257 = vmatpush2.msra.mxu0 0.0
  %2258 = vmatprep.subr.mxu0 0.0
  %2259 = vmatpush2.msra.mxu0 0.0
  %2260 = vmatprep.subr.mxu0 0.0
  %2261 = vmatpush2.msra.mxu0 0.0
  %2262 = vmatprep.mubr.f32.mxu0 0.0
  %2263 = vmatmul.mubr.f32.gmra.mxu0 %v2062
  %v2264 = vpop.f32.mrf.mxu0
  %v2265 = vadd.f32 0.0, %v2264
  %v2266 = vpop.f32.mrf.mxu0
  %v2267 = vadd.f32 0.0, %v2266
  %2268 = vdwg.mxu0
  %v2269 = vadd.f32 %v2058, %v2194
  %v2270 = vadd.f32 %v2059, %v2196
  %v2271 = vadd.f32 %v2060, %v2265
  %v2272 = vadd.f32 %v2061, %v2267
  %v2273 = vxor.u32 %v2269, 2147483648
  %v2274 = vmul.f32 %v2273, 1.442695
  %v2275 = vpow.pop %v2274
  %v2276 = vadd.f32 %v2275, 1.0
  %v2277 = vrcp.pop %v2276
  %v2278 = vmul.f32 1.0, %v2277
  %v2279 = vxor.u32 %v2270, 2147483648
  %v2280 = vmul.f32 %v2279, 1.442695
  %v2281 = vpow.pop %v2280
  %v2282 = vadd.f32 %v2281, 1.0
  %v2283 = vrcp.pop %v2282
  %v2284 = vmul.f32 1.0, %v2283
  %v2285 = vtanh.pop %v2271
  %v2286 = vxor.u32 %v2272, 2147483648
  %v2287 = vmul.f32 %v2286, 1.442695
  %v2288 = vpow.pop %v2287
  %v2289 = vadd.f32 %v2288, 1.0
  %v2290 = vrcp.pop %v2289
  %v2291 = vmul.f32 1.0, %v2290
  %v2292 = vld [vmem:[#allocation4] sm:$0xff]
  %v2293 = vmul.f32 %v2284, %v2292
  %v2294 = vmul.f32 %v2278, %v2285
  %v2295 = vadd.f32 %v2293, %v2294
  %v2296 = vtanh.pop %v2295
  %v2297 = vmul.f32 %v2291, %v2296
  %2298 = vst [vmem:[#allocation4] sm:$0xff] %v2295
  %2299 = vst [vmem:[#allocation3] sm:$0xff] %v2297
  %s2300 = scalar_lea.vmem %s4, 56
  %2301 = vst [vmem:[%s2300] sm:$0xff] %v2297
  // Predicated region
  $region22: #{text_lstm_forward.2} parent=0 // pred_check
    _
  $region23: #{text_lstm_forward.2} parent=0 // pred_check_branch
    %2303 = sbr.rel (0) target = $region25
  $region24: #{text_lstm_forward.2} parent=0 // pred_region
    _
  $region25: #{text_lstm_forward.2} parent=0 // pred_fallthru
    _
  // Predicated region
  $region26: #{text_lstm_forward.2} parent=0 // pred_check
    _
  $region27: #{text_lstm_forward.2} parent=0 // pred_check_branch
    %2305 = sbr.rel (0) target = $region29
  $region28: #{text_lstm_forward.2} parent=0 // pred_region
    _
  $region29: #{text_lstm_forward.2} parent=0 // pred_fallthru
    _

</llo_original>
